<compile_context>
chip_gen: v7x
topology: tpu7x:2x2x1
jax: 0.10.0
libtpu: 0.0.40
codegen_flags: <defaults>
</compile_context>

<pallas_src>
import numpy as np
import jax
import jax.numpy as jnp
from jax import lax
from jax.experimental import pallas as pl
from jax.experimental.pallas import tpu as pltpu


# ----------------------------- Pallas kernel -----------------------------

def pilstm_kernel(ih1_ref, w1_hh_ref, w2_ih_ref, w2_hh_ref, b2_ref,
                  h2_out_ref, state_ref, obuf_ref):
    """Serial 2-layer LSTM recurrence over one chunk of the flattened axis.

    ih1_ref    : (NT, 4H) precomputed (x @ Winp.T + binp) @ W1_ih.T + b1  (f32)
    w1_hh_ref  : (H, 4H)  layer-1 recurrent weights, transposed            (bf16)
    w2_ih_ref  : (H, 4H)  layer-2 input-hidden weights, transposed         (bf16)
    w2_hh_ref  : (H, 4H)  layer-2 recurrent weights, transposed            (bf16)
    b2_ref     : (1, 4H)  b2_ih + b2_hh                                    (f32)
    h2_out_ref : (NT, H)  top-layer hidden state per recurrence step
    state_ref  : (4, H)   persistent (h1, c1, h2, c2) across grid chunks
    obuf_ref   : (8, H)   output staging tile (one store per 8 steps)

    Gate columns are pre-permuted in the wrapper to [i, f, o | g].
    """
    H = w1_hh_ref.shape[0]
    NT = ih1_ref.shape[0]          # chunk rows, multiple of 8
    H3 = 3 * H

    # hidden=None -> zero initial state, only on the very first chunk.
    @pl.when(pl.program_id(0) == 0)
    def _init():
        state_ref[...] = jnp.zeros_like(state_ref)

    b2 = b2_ref[...]               # (1, 4H), hoisted out of the loop

    def gates_to_hc(gates, c):
        # permuted gate order [i, f, o | g]: one sigmoid push, one tanh push.
        sg = jax.nn.sigmoid(gates[:, :H3])
        g = jnp.tanh(gates[:, H3:])
        i_g = sg[:, 0 * H:1 * H]
        f_g = sg[:, 1 * H:2 * H]
        o_g = sg[:, 2 * H:3 * H]
        c_new = f_g * c + i_g * g
        h_new = o_g * jnp.tanh(c_new)
        return h_new, c_new

    def group(gidx, carry):
        h1, c1, h2, c2 = carry
        base = pl.multiple_of(gidx * 8, 8)
        for r in range(8):         # fully unrolled inner 8 recurrence steps
            # Layer-2 hh half depends only on the previous step's h2 -> issue
            # first so it overlaps the whole layer-1 dependent chain.
            g2_hh = jnp.dot(h2.astype(jnp.bfloat16), w2_hh_ref[...],
                            preferred_element_type=jnp.float32) + b2

            # Layer 1: state-independent ih term precomputed; only hh dot left.
            gates1 = ih1_ref[pl.ds(base + r, 1), :] + jnp.dot(
                h1.astype(jnp.bfloat16), w1_hh_ref[...],
                preferred_element_type=jnp.float32)
            h1, c1 = gates_to_hc(gates1, c1)

            # Layer 2: only the h1-dependent half is on the critical path.
            gates2 = jnp.dot(h1.astype(jnp.bfloat16), w2_ih_ref[...],
                             preferred_element_type=jnp.float32) + g2_hh
            h2, c2 = gates_to_hc(gates2, c2)

            obuf_ref[r:r + 1, :] = h2          # static sublane index
        # One aligned, unmasked (8, H) store per 8 recurrence steps.
        h2_out_ref[pl.ds(base, 8), :] = obuf_ref[...]
        return (h1, c1, h2, c2)

    h1_0 = state_ref[0:1, :]
    c1_0 = state_ref[1:2, :]
    h2_0 = state_ref[2:3, :]
    c2_0 = state_ref[3:4, :]
    h1, c1, h2, c2 = lax.fori_loop(0, NT // 8, group, (h1_0, c1_0, h2_0, c2_0))

    # Persist recurrent state for the next grid chunk.
    state_ref[0:1, :] = h1
    state_ref[1:2, :] = c1
    state_ref[2:3, :] = h2
    state_ref[3:4, :] = c2


# ------------------------------- wrapper ----------------------------------

def pilstm_forward(inputs, params, steps, chunk=512):
    """inputs: (B, T, In) float32 (PyTorch layout). Returns (B, T, 1)."""
    B, T, In = inputs.shape
    H = params["w_inp"].shape[0]
    assert steps <= T
    N = steps * B

    # --- gate-column permutation: PyTorch [i, f, g, o] -> kernel [i, f, o, g]
    def perm(w):
        return jnp.concatenate([w[:H], w[H:2 * H], w[3 * H:], w[2 * H:3 * H]],
                               axis=0)

    w1_ih = perm(params["w1_ih"])
    w1_hh = perm(params["w1_hh"])
    w2_ih = perm(params["w2_ih"])
    w2_hh = perm(params["w2_hh"])
    b1 = perm(params["b1_ih"] + params["b1_hh"])
    b2 = perm(params["b2_ih"] + params["b2_hh"]).reshape(1, 4 * H)

    # Flatten the recurrence to a single serial axis n = t*B + b, matching the
    # PyTorch order (outer time loop, inner batch-as-LSTM-time loop).
    x_flat = jnp.transpose(inputs[:, :steps], (1, 0, 2)).reshape(N, In)

    # Hoisted, state-independent projections (large MXU-efficient XLA matmuls).
    u = x_flat @ params["w_inp"].T + params["b_inp"]                  # (N, H)
    ih1 = (u @ w1_ih.T + b1).astype(jnp.float32)                      # (N, 4H)

    # --- chunking over N so VMEM stays bounded (v5e 16 MiB scoped / v7x 64 MiB)
    if N <= chunk:
        chunk = max(8, ((N + 7) // 8) * 8)                            # mult of 8
    n_pad = ((N + chunk - 1) // chunk) * chunk
    if n_pad != N:
        # Padded rows run after all real outputs and are sliced off below.
        ih1 = jnp.pad(ih1, ((0, n_pad - N), (0, 0)))
    n_chunks = n_pad // chunk

    # Recurrent weights: bf16 operands, f32 accumulate/state math in-kernel.
    w1_hh_t = w1_hh.T.astype(jnp.bfloat16)                            # (H, 4H)
    w2_ih_t = w2_ih.T.astype(jnp.bfloat16)                            # (H, 4H)
    w2_hh_t = w2_hh.T.astype(jnp.bfloat16)                            # (H, 4H)

    cost = pl.CostEstimate(
        flops=int(n_pad) * 3 * 2 * H * 4 * H,
        transcendentals=int(n_pad) * 10 * H,
        bytes_accessed=int(n_pad) * 4 * H * 4 + int(n_pad) * H * 4
        + 3 * H * 4 * H * 2 + 4 * H * 4,
    )

    h2_all = pl.pallas_call(
        pilstm_kernel,
        out_shape=jax.ShapeDtypeStruct((n_pad, H), jnp.float32),
        grid_spec=pltpu.PrefetchScalarGridSpec(
            num_scalar_prefetch=0,
            grid=(n_chunks,),
            in_specs=[
                pl.BlockSpec((chunk, 4 * H), lambda i: (i, 0)),   # ih1 stream
                pl.BlockSpec((H, 4 * H), lambda i: (0, 0)),       # w1_hh
                pl.BlockSpec((H, 4 * H), lambda i: (0, 0)),       # w2_ih
                pl.BlockSpec((H, 4 * H), lambda i: (0, 0)),       # w2_hh
                pl.BlockSpec((1, 4 * H), lambda i: (0, 0)),       # b2
            ],
            out_specs=pl.BlockSpec((chunk, H), lambda i: (i, 0)),
            scratch_shapes=[
                pltpu.VMEM((4, H), jnp.float32),                  # (h1,c1,h2,c2)
                pltpu.VMEM((8, H), jnp.float32),                  # output staging
            ],
        ),
        compiler_params=pltpu.CompilerParams(
            dimension_semantics=("arbitrary",)),
        cost_estimate=cost,
    )(ih1, w1_hh_t, w2_ih_t, w2_hh_t, b2)

    # Output Linear applied once to all top-layer hidden states (lane-dense).
    y = h2_all[:N] @ params["w_out"].T + params["b_out"]              # (N, 1)
    y = jnp.transpose(y.reshape(steps, B, 1), (1, 0, 2))              # (B, steps, 1)

    # PyTorch pre-allocates zeros of shape (B, T, 1) and only fills `steps` cols.
    outputs = jnp.zeros((B, T, 1), jnp.float32)
    outputs = outputs.at[:, :steps].set(y)
    return outputs


# -------------------------- pure-numpy reference ---------------------------

def reference_forward(inputs, p, steps):
    inputs = np.asarray(inputs)
    B, T, In = inputs.shape
    H = p["w_inp"].shape[0]
    P = {k: np.asarray(v) for k, v in p.items()}

    def sigmoid(x):
        return 1.0 / (1.0 + np.exp(-x))

    def cell(x, h, c, w_ih, w_hh, b_ih, b_hh):
        gates = x @ w_ih.T + b_ih + h @ w_hh.T + b_hh
        i = sigmoid(gates[0 * H:1 * H])
        f = sigmoid(gates[1 * H:2 * H])
        g = np.tanh(gates[2 * H:3 * H])
        o = sigmoid(gates[3 * H:4 * H])
        c_new = f * c + i * g
        h_new = o * np.tanh(c_new)
        return h_new, c_new

    h1 = np.zeros((H,), np.float32); c1 = np.zeros((H,), np.float32)
    h2 = np.zeros((H,), np.float32); c2 = np.zeros((H,), np.float32)
    outputs = np.zeros((B, T, 1), np.float32)
    for t in range(steps):
        u = inputs[:, t] @ P["w_inp"].T + P["b_inp"]                # (B, H)
        for b in range(B):
            h1, c1 = cell(u[b], h1, c1, P["w1_ih"], P["w1_hh"],
                          P["b1_ih"], P["b1_hh"])
            h2, c2 = cell(h1, h2, c2, P["w2_ih"], P["w2_hh"],
                          P["b2_ih"], P["b2_hh"])
            y = h2 @ P["w_out"].T + P["b_out"]
            outputs[b, t, 0] = y[0]
    return outputs


# --------------------------------- main ------------------------------------

def make_params(key, input_node, hidden_node):
    H = hidden_node
    ks = jax.random.split(key, 12)
    scale = 1.0 / np.sqrt(H)
    u = lambda k, shape: jax.random.uniform(k, shape, jnp.float32, -scale, scale)
    return {
        "w_inp": u(ks[0], (H, input_node)),
        "b_inp": u(ks[1], (H,)),
        "w1_ih": u(ks[2], (4 * H, H)),
        "w1_hh": u(ks[3], (4 * H, H)),
        "b1_ih": u(ks[4], (4 * H,)),
        "b1_hh": u(ks[5], (4 * H,)),
        "w2_ih": u(ks[6], (4 * H, H)),
        "w2_hh": u(ks[7], (4 * H, H)),
        "b2_ih": u(ks[8], (4 * H,)),
        "b2_hh": u(ks[9], (4 * H,)),
        "w_out": u(ks[10], (1, H)),
        "b_out": u(ks[11], (1,)),
    }


if __name__ == "__main__":
    B, T, In, H = 4, 8, 2, 128
    steps = T

    key = jax.random.PRNGKey(0)
    k_in, k_par = jax.random.split(key)
    inputs = jax.random.normal(k_in, (B, T, In), jnp.float32)
    params = make_params(k_par, In, H)

    ref = reference_forward(inputs, params, steps)

    # Single-chunk path (default chunk covers all N = steps*B rows).
    out = jax.block_until_ready(pilstm_forward(inputs, params, steps))
    np.testing.assert_allclose(np.asarray(out), ref, rtol=2e-3, atol=2e-3)

    # Multi-chunk path: exercises the VMEM-scratch state carry across grid steps.
    out2 = jax.block_until_ready(pilstm_forward(inputs, params, steps, chunk=16))
    np.testing.assert_allclose(np.asarray(out2), ref, rtol=2e-3, atol=2e-3)

    print("KERNEL_OK")
</pallas_src>

<mosaic_0001>
module attributes {stable_mosaic.version = 11 : i64} {
  func.func @pilstm_kernel(%arg0: i32, %arg1: memref<32x512xf32, #tpu.memory_space<vmem>>, %arg2: memref<128x512xbf16, #tpu.memory_space<vmem>>, %arg3: memref<128x512xbf16, #tpu.memory_space<vmem>>, %arg4: memref<128x512xbf16, #tpu.memory_space<vmem>>, %arg5: memref<1x512xf32, #tpu.memory_space<vmem>>, %arg6: memref<32x128xf32, #tpu.memory_space<vmem>>, %arg7: memref<4x128xf32, #tpu.memory_space<vmem>>, %arg8: memref<8x128xf32, #tpu.memory_space<vmem>>) attributes {dimension_semantics = [#tpu.dimension_semantics<arbitrary>], iteration_bounds = array<i64: 1>, scalar_prefetch = 0 : i64, scratch_operands = 2 : i64, tpu.core_type = #tpu.core_type<tc>, window_params = [{transform_indices = @transform_0, window_bounds = array<i64: 32, 512>}, {pipeline_mode = #tpu.pipeline_mode<synchronous>, transform_indices = @transform_1, window_bounds = array<i64: 128, 512>}, {pipeline_mode = #tpu.pipeline_mode<synchronous>, transform_indices = @transform_2, window_bounds = array<i64: 128, 512>}, {pipeline_mode = #tpu.pipeline_mode<synchronous>, transform_indices = @transform_3, window_bounds = array<i64: 128, 512>}, {pipeline_mode = #tpu.pipeline_mode<synchronous>, transform_indices = @transform_4, window_bounds = array<i64: 1, 512>}, {transform_indices = @transform_5, window_bounds = array<i64: 32, 128>}]} {
    %c0_i32 = arith.constant 0 : i32
    %0 = arith.cmpi eq, %arg0, %c0_i32 : i32
    %1 = arith.extui %0 : i1 to i32
    %c0_i32_0 = arith.constant 0 : i32
    %2 = arith.cmpi ne, %1, %c0_i32_0 : i32
    scf.if %2 {
      %cst = arith.constant 0.000000e+00 : f32
      %14 = vector.broadcast %cst : f32 to vector<4x128xf32>
      %c0_17 = arith.constant 0 : index
      %c0_18 = arith.constant 0 : index
      %15 = vector.load %arg7[%c0_17, %c0_18] : memref<4x128xf32, #tpu.memory_space<vmem>>, vector<4x128xf32>
      tpu.vector_store %arg7[%c0_17, %c0_18], %14 {strides = array<i32>} : memref<4x128xf32, #tpu.memory_space<vmem>>, vector<4x128xf32>,
    } else {
    }
    %c0 = arith.constant 0 : index
    %c0_1 = arith.constant 0 : index
    %3 = vector.load %arg5[%c0, %c0_1] : memref<1x512xf32, #tpu.memory_space<vmem>>, vector<1x512xf32>
    %c0_2 = arith.constant 0 : index
    %c0_3 = arith.constant 0 : index
    %4 = vector.load %arg7[%c0_2, %c0_3] : memref<4x128xf32, #tpu.memory_space<vmem>>, vector<1x128xf32>
    %c1 = arith.constant 1 : index
    %c0_4 = arith.constant 0 : index
    %5 = vector.load %arg7[%c1, %c0_4] : memref<4x128xf32, #tpu.memory_space<vmem>>, vector<1x128xf32>
    %c2 = arith.constant 2 : index
    %c0_5 = arith.constant 0 : index
    %6 = vector.load %arg7[%c2, %c0_5] : memref<4x128xf32, #tpu.memory_space<vmem>>, vector<1x128xf32>
    %c3 = arith.constant 3 : index
    %c0_6 = arith.constant 0 : index
    %7 = vector.load %arg7[%c3, %c0_6] : memref<4x128xf32, #tpu.memory_space<vmem>>, vector<1x128xf32>
    %c0_i32_7 = arith.constant 0 : i32
    %c4_i32 = arith.constant 4 : i32
    %8 = arith.addi %c0_i32_7, %c4_i32 : i32
    %c1_i32 = arith.constant 1 : i32
    %9:4 = scf.for %arg9 = %c0_i32_7 to %8 step %c1_i32 iter_args(%arg10 = %4, %arg11 = %5, %arg12 = %6, %arg13 = %7) -> (vector<1x128xf32>, vector<1x128xf32>, vector<1x128xf32>, vector<1x128xf32>)  : i32 {
      %c8_i32 = arith.constant 8 : i32
      %14 = arith.muli %arg9, %c8_i32 : i32
      %15 = tpu.assume_multiple %14, 8 : i32
      %16 = arith.truncf %arg12 : vector<1x128xf32> to vector<1x128xbf16>
      %c0_17 = arith.constant 0 : index
      %c0_18 = arith.constant 0 : index
      %17 = vector.load %arg4[%c0_17, %c0_18] : memref<128x512xbf16, #tpu.memory_space<vmem>>, vector<128x512xbf16>
      %cst = arith.constant dense<0.000000e+00> : vector<1x512xf32>
      %18 = tpu.matmul %16, %17, %cst {dimension_numbers = #tpu.dot_dimension_numbers<[1], [0], [0], [1], [0, 0, 1, 1], [], []>} : vector<1x128xbf16>, vector<128x512xbf16>, vector<1x512xf32> -> vector<1x512xf32>
      %19 = arith.addf %18, %3 : vector<1x512xf32>
      %c0_i32_19 = arith.constant 0 : i32
      %20 = arith.addi %15, %c0_i32_19 : i32
      %21 = arith.index_cast %20 : i32 to index
      %c0_20 = arith.constant 0 : index
      %22 = vector.load %arg1[%21, %c0_20] : memref<32x512xf32, #tpu.memory_space<vmem>>, vector<1x512xf32>
      %23 = arith.truncf %arg10 : vector<1x128xf32> to vector<1x128xbf16>
      %c0_21 = arith.constant 0 : index
      %c0_22 = arith.constant 0 : index
      %24 = vector.load %arg2[%c0_21, %c0_22] : memref<128x512xbf16, #tpu.memory_space<vmem>>, vector<128x512xbf16>
      %cst_23 = arith.constant dense<0.000000e+00> : vector<1x512xf32>
      %25 = tpu.matmul %23, %24, %cst_23 {dimension_numbers = #tpu.dot_dimension_numbers<[1], [0], [0], [1], [0, 0, 1, 1], [], []>} : vector<1x128xbf16>, vector<128x512xbf16>, vector<1x512xf32> -> vector<1x512xf32>
      %26 = arith.addf %22, %25 : vector<1x512xf32>
      %27 = vector.extract_strided_slice %26 {offsets = [0, 0], sizes = [1, 384], strides = [1, 1]} : vector<1x512xf32> to vector<1x384xf32>
      %28 = arith.negf %27 : vector<1x384xf32>
      %29 = math.exp %28 : vector<1x384xf32>
      %cst_24 = arith.constant 1.000000e+00 : f32
      %30 = vector.broadcast %cst_24 : f32 to vector<1x384xf32>
      %31 = arith.addf %30, %29 : vector<1x384xf32>
      %32 = arith.divf %30, %31 : vector<1x384xf32>
      %33 = vector.extract_strided_slice %26 {offsets = [0, 384], sizes = [1, 128], strides = [1, 1]} : vector<1x512xf32> to vector<1x128xf32>
      %34 = math.tanh %33 : vector<1x128xf32>
      %35 = vector.extract_strided_slice %32 {offsets = [0, 0], sizes = [1, 128], strides = [1, 1]} : vector<1x384xf32> to vector<1x128xf32>
      %36 = vector.extract_strided_slice %32 {offsets = [0, 128], sizes = [1, 128], strides = [1, 1]} : vector<1x384xf32> to vector<1x128xf32>
      %37 = vector.extract_strided_slice %32 {offsets = [0, 256], sizes = [1, 128], strides = [1, 1]} : vector<1x384xf32> to vector<1x128xf32>
      %38 = arith.mulf %36, %arg11 : vector<1x128xf32>
      %39 = arith.mulf %35, %34 : vector<1x128xf32>
      %40 = arith.addf %38, %39 : vector<1x128xf32>
      %41 = math.tanh %40 : vector<1x128xf32>
      %42 = arith.mulf %37, %41 : vector<1x128xf32>
      %43 = arith.truncf %42 : vector<1x128xf32> to vector<1x128xbf16>
      %c0_25 = arith.constant 0 : index
      %c0_26 = arith.constant 0 : index
      %44 = vector.load %arg3[%c0_25, %c0_26] : memref<128x512xbf16, #tpu.memory_space<vmem>>, vector<128x512xbf16>
      %cst_27 = arith.constant dense<0.000000e+00> : vector<1x512xf32>
      %45 = tpu.matmul %43, %44, %cst_27 {dimension_numbers = #tpu.dot_dimension_numbers<[1], [0], [0], [1], [0, 0, 1, 1], [], []>} : vector<1x128xbf16>, vector<128x512xbf16>, vector<1x512xf32> -> vector<1x512xf32>
      %46 = arith.addf %45, %19 : vector<1x512xf32>
      %47 = vector.extract_strided_slice %46 {offsets = [0, 0], sizes = [1, 384], strides = [1, 1]} : vector<1x512xf32> to vector<1x384xf32>
      %48 = arith.negf %47 : vector<1x384xf32>
      %49 = math.exp %48 : vector<1x384xf32>
      %cst_28 = arith.constant 1.000000e+00 : f32
      %50 = vector.broadcast %cst_28 : f32 to vector<1x384xf32>
      %51 = arith.addf %50, %49 : vector<1x384xf32>
      %52 = arith.divf %50, %51 : vector<1x384xf32>
      %53 = vector.extract_strided_slice %46 {offsets = [0, 384], sizes = [1, 128], strides = [1, 1]} : vector<1x512xf32> to vector<1x128xf32>
      %54 = math.tanh %53 : vector<1x128xf32>
      %55 = vector.extract_strided_slice %52 {offsets = [0, 0], sizes = [1, 128], strides = [1, 1]} : vector<1x384xf32> to vector<1x128xf32>
      %56 = vector.extract_strided_slice %52 {offsets = [0, 128], sizes = [1, 128], strides = [1, 1]} : vector<1x384xf32> to vector<1x128xf32>
      %57 = vector.extract_strided_slice %52 {offsets = [0, 256], sizes = [1, 128], strides = [1, 1]} : vector<1x384xf32> to vector<1x128xf32>
      %58 = arith.mulf %56, %arg13 : vector<1x128xf32>
      %59 = arith.mulf %55, %54 : vector<1x128xf32>
      %60 = arith.addf %58, %59 : vector<1x128xf32>
      %61 = math.tanh %60 : vector<1x128xf32>
      %62 = arith.mulf %57, %61 : vector<1x128xf32>
      %c0_29 = arith.constant 0 : index
      %c0_30 = arith.constant 0 : index
      %63 = vector.load %arg8[%c0_29, %c0_30] : memref<8x128xf32, #tpu.memory_space<vmem>>, vector<1x128xf32>
      tpu.vector_store %arg8[%c0_29, %c0_30], %62 {strides = array<i32>} : memref<8x128xf32, #tpu.memory_space<vmem>>, vector<1x128xf32>,
      %64 = arith.truncf %62 : vector<1x128xf32> to vector<1x128xbf16>
      %c0_31 = arith.constant 0 : index
      %c0_32 = arith.constant 0 : index
      %65 = vector.load %arg4[%c0_31, %c0_32] : memref<128x512xbf16, #tpu.memory_space<vmem>>, vector<128x512xbf16>
      %cst_33 = arith.constant dense<0.000000e+00> : vector<1x512xf32>
      %66 = tpu.matmul %64, %65, %cst_33 {dimension_numbers = #tpu.dot_dimension_numbers<[1], [0], [0], [1], [0, 0, 1, 1], [], []>} : vector<1x128xbf16>, vector<128x512xbf16>, vector<1x512xf32> -> vector<1x512xf32>
      %67 = arith.addf %66, %3 : vector<1x512xf32>
      %c1_i32_34 = arith.constant 1 : i32
      %68 = arith.addi %15, %c1_i32_34 : i32
      %69 = arith.index_cast %68 : i32 to index
      %c0_35 = arith.constant 0 : index
      %70 = vector.load %arg1[%69, %c0_35] : memref<32x512xf32, #tpu.memory_space<vmem>>, vector<1x512xf32>
      %71 = arith.truncf %42 : vector<1x128xf32> to vector<1x128xbf16>
      %c0_36 = arith.constant 0 : index
      %c0_37 = arith.constant 0 : index
      %72 = vector.load %arg2[%c0_36, %c0_37] : memref<128x512xbf16, #tpu.memory_space<vmem>>, vector<128x512xbf16>
      %cst_38 = arith.constant dense<0.000000e+00> : vector<1x512xf32>
      %73 = tpu.matmul %71, %72, %cst_38 {dimension_numbers = #tpu.dot_dimension_numbers<[1], [0], [0], [1], [0, 0, 1, 1], [], []>} : vector<1x128xbf16>, vector<128x512xbf16>, vector<1x512xf32> -> vector<1x512xf32>
      %74 = arith.addf %70, %73 : vector<1x512xf32>
      %75 = vector.extract_strided_slice %74 {offsets = [0, 0], sizes = [1, 384], strides = [1, 1]} : vector<1x512xf32> to vector<1x384xf32>
      %76 = arith.negf %75 : vector<1x384xf32>
      %77 = math.exp %76 : vector<1x384xf32>
      %cst_39 = arith.constant 1.000000e+00 : f32
      %78 = vector.broadcast %cst_39 : f32 to vector<1x384xf32>
      %79 = arith.addf %78, %77 : vector<1x384xf32>
      %80 = arith.divf %78, %79 : vector<1x384xf32>
      %81 = vector.extract_strided_slice %74 {offsets = [0, 384], sizes = [1, 128], strides = [1, 1]} : vector<1x512xf32> to vector<1x128xf32>
      %82 = math.tanh %81 : vector<1x128xf32>
      %83 = vector.extract_strided_slice %80 {offsets = [0, 0], sizes = [1, 128], strides = [1, 1]} : vector<1x384xf32> to vector<1x128xf32>
      %84 = vector.extract_strided_slice %80 {offsets = [0, 128], sizes = [1, 128], strides = [1, 1]} : vector<1x384xf32> to vector<1x128xf32>
      %85 = vector.extract_strided_slice %80 {offsets = [0, 256], sizes = [1, 128], strides = [1, 1]} : vector<1x384xf32> to vector<1x128xf32>
      %86 = arith.mulf %84, %40 : vector<1x128xf32>
      %87 = arith.mulf %83, %82 : vector<1x128xf32>
      %88 = arith.addf %86, %87 : vector<1x128xf32>
      %89 = math.tanh %88 : vector<1x128xf32>
      %90 = arith.mulf %85, %89 : vector<1x128xf32>
      %91 = arith.truncf %90 : vector<1x128xf32> to vector<1x128xbf16>
      %c0_40 = arith.constant 0 : index
      %c0_41 = arith.constant 0 : index
      %92 = vector.load %arg3[%c0_40, %c0_41] : memref<128x512xbf16, #tpu.memory_space<vmem>>, vector<128x512xbf16>
      %cst_42 = arith.constant dense<0.000000e+00> : vector<1x512xf32>
      %93 = tpu.matmul %91, %92, %cst_42 {dimension_numbers = #tpu.dot_dimension_numbers<[1], [0], [0], [1], [0, 0, 1, 1], [], []>} : vector<1x128xbf16>, vector<128x512xbf16>, vector<1x512xf32> -> vector<1x512xf32>
      %94 = arith.addf %93, %67 : vector<1x512xf32>
      %95 = vector.extract_strided_slice %94 {offsets = [0, 0], sizes = [1, 384], strides = [1, 1]} : vector<1x512xf32> to vector<1x384xf32>
      %96 = arith.negf %95 : vector<1x384xf32>
      %97 = math.exp %96 : vector<1x384xf32>
      %cst_43 = arith.constant 1.000000e+00 : f32
      %98 = vector.broadcast %cst_43 : f32 to vector<1x384xf32>
      %99 = arith.addf %98, %97 : vector<1x384xf32>
      %100 = arith.divf %98, %99 : vector<1x384xf32>
      %101 = vector.extract_strided_slice %94 {offsets = [0, 384], sizes = [1, 128], strides = [1, 1]} : vector<1x512xf32> to vector<1x128xf32>
      %102 = math.tanh %101 : vector<1x128xf32>
      %103 = vector.extract_strided_slice %100 {offsets = [0, 0], sizes = [1, 128], strides = [1, 1]} : vector<1x384xf32> to vector<1x128xf32>
      %104 = vector.extract_strided_slice %100 {offsets = [0, 128], sizes = [1, 128], strides = [1, 1]} : vector<1x384xf32> to vector<1x128xf32>
      %105 = vector.extract_strided_slice %100 {offsets = [0, 256], sizes = [1, 128], strides = [1, 1]} : vector<1x384xf32> to vector<1x128xf32>
      %106 = arith.mulf %104, %60 : vector<1x128xf32>
      %107 = arith.mulf %103, %102 : vector<1x128xf32>
      %108 = arith.addf %106, %107 : vector<1x128xf32>
      %109 = math.tanh %108 : vector<1x128xf32>
      %110 = arith.mulf %105, %109 : vector<1x128xf32>
      %c1_44 = arith.constant 1 : index
      %c0_45 = arith.constant 0 : index
      %111 = vector.load %arg8[%c1_44, %c0_45] : memref<8x128xf32, #tpu.memory_space<vmem>>, vector<1x128xf32>
      tpu.vector_store %arg8[%c1_44, %c0_45], %110 {strides = array<i32>} : memref<8x128xf32, #tpu.memory_space<vmem>>, vector<1x128xf32>,
      %112 = arith.truncf %110 : vector<1x128xf32> to vector<1x128xbf16>
      %c0_46 = arith.constant 0 : index
      %c0_47 = arith.constant 0 : index
      %113 = vector.load %arg4[%c0_46, %c0_47] : memref<128x512xbf16, #tpu.memory_space<vmem>>, vector<128x512xbf16>
      %cst_48 = arith.constant dense<0.000000e+00> : vector<1x512xf32>
      %114 = tpu.matmul %112, %113, %cst_48 {dimension_numbers = #tpu.dot_dimension_numbers<[1], [0], [0], [1], [0, 0, 1, 1], [], []>} : vector<1x128xbf16>, vector<128x512xbf16>, vector<1x512xf32> -> vector<1x512xf32>
      %115 = arith.addf %114, %3 : vector<1x512xf32>
      %c2_i32 = arith.constant 2 : i32
      %116 = arith.addi %15, %c2_i32 : i32
      %117 = arith.index_cast %116 : i32 to index
      %c0_49 = arith.constant 0 : index
      %118 = vector.load %arg1[%117, %c0_49] : memref<32x512xf32, #tpu.memory_space<vmem>>, vector<1x512xf32>
      %119 = arith.truncf %90 : vector<1x128xf32> to vector<1x128xbf16>
      %c0_50 = arith.constant 0 : index
      %c0_51 = arith.constant 0 : index
      %120 = vector.load %arg2[%c0_50, %c0_51] : memref<128x512xbf16, #tpu.memory_space<vmem>>, vector<128x512xbf16>
      %cst_52 = arith.constant dense<0.000000e+00> : vector<1x512xf32>
      %121 = tpu.matmul %119, %120, %cst_52 {dimension_numbers = #tpu.dot_dimension_numbers<[1], [0], [0], [1], [0, 0, 1, 1], [], []>} : vector<1x128xbf16>, vector<128x512xbf16>, vector<1x512xf32> -> vector<1x512xf32>
      %122 = arith.addf %118, %121 : vector<1x512xf32>
      %123 = vector.extract_strided_slice %122 {offsets = [0, 0], sizes = [1, 384], strides = [1, 1]} : vector<1x512xf32> to vector<1x384xf32>
      %124 = arith.negf %123 : vector<1x384xf32>
      %125 = math.exp %124 : vector<1x384xf32>
      %cst_53 = arith.constant 1.000000e+00 : f32
      %126 = vector.broadcast %cst_53 : f32 to vector<1x384xf32>
      %127 = arith.addf %126, %125 : vector<1x384xf32>
      %128 = arith.divf %126, %127 : vector<1x384xf32>
      %129 = vector.extract_strided_slice %122 {offsets = [0, 384], sizes = [1, 128], strides = [1, 1]} : vector<1x512xf32> to vector<1x128xf32>
      %130 = math.tanh %129 : vector<1x128xf32>
      %131 = vector.extract_strided_slice %128 {offsets = [0, 0], sizes = [1, 128], strides = [1, 1]} : vector<1x384xf32> to vector<1x128xf32>
      %132 = vector.extract_strided_slice %128 {offsets = [0, 128], sizes = [1, 128], strides = [1, 1]} : vector<1x384xf32> to vector<1x128xf32>
      %133 = vector.extract_strided_slice %128 {offsets = [0, 256], sizes = [1, 128], strides = [1, 1]} : vector<1x384xf32> to vector<1x128xf32>
      %134 = arith.mulf %132, %88 : vector<1x128xf32>
      %135 = arith.mulf %131, %130 : vector<1x128xf32>
      %136 = arith.addf %134, %135 : vector<1x128xf32>
      %137 = math.tanh %136 : vector<1x128xf32>
      %138 = arith.mulf %133, %137 : vector<1x128xf32>
      %139 = arith.truncf %138 : vector<1x128xf32> to vector<1x128xbf16>
      %c0_54 = arith.constant 0 : index
      %c0_55 = arith.constant 0 : index
      %140 = vector.load %arg3[%c0_54, %c0_55] : memref<128x512xbf16, #tpu.memory_space<vmem>>, vector<128x512xbf16>
      %cst_56 = arith.constant dense<0.000000e+00> : vector<1x512xf32>
      %141 = tpu.matmul %139, %140, %cst_56 {dimension_numbers = #tpu.dot_dimension_numbers<[1], [0], [0], [1], [0, 0, 1, 1], [], []>} : vector<1x128xbf16>, vector<128x512xbf16>, vector<1x512xf32> -> vector<1x512xf32>
      %142 = arith.addf %141, %115 : vector<1x512xf32>
      %143 = vector.extract_strided_slice %142 {offsets = [0, 0], sizes = [1, 384], strides = [1, 1]} : vector<1x512xf32> to vector<1x384xf32>
      %144 = arith.negf %143 : vector<1x384xf32>
      %145 = math.exp %144 : vector<1x384xf32>
      %cst_57 = arith.constant 1.000000e+00 : f32
      %146 = vector.broadcast %cst_57 : f32 to vector<1x384xf32>
      %147 = arith.addf %146, %145 : vector<1x384xf32>
      %148 = arith.divf %146, %147 : vector<1x384xf32>
      %149 = vector.extract_strided_slice %142 {offsets = [0, 384], sizes = [1, 128], strides = [1, 1]} : vector<1x512xf32> to vector<1x128xf32>
      %150 = math.tanh %149 : vector<1x128xf32>
      %151 = vector.extract_strided_slice %148 {offsets = [0, 0], sizes = [1, 128], strides = [1, 1]} : vector<1x384xf32> to vector<1x128xf32>
      %152 = vector.extract_strided_slice %148 {offsets = [0, 128], sizes = [1, 128], strides = [1, 1]} : vector<1x384xf32> to vector<1x128xf32>
      %153 = vector.extract_strided_slice %148 {offsets = [0, 256], sizes = [1, 128], strides = [1, 1]} : vector<1x384xf32> to vector<1x128xf32>
      %154 = arith.mulf %152, %108 : vector<1x128xf32>
      %155 = arith.mulf %151, %150 : vector<1x128xf32>
      %156 = arith.addf %154, %155 : vector<1x128xf32>
      %157 = math.tanh %156 : vector<1x128xf32>
      %158 = arith.mulf %153, %157 : vector<1x128xf32>
      %c2_58 = arith.constant 2 : index
      %c0_59 = arith.constant 0 : index
      %159 = vector.load %arg8[%c2_58, %c0_59] : memref<8x128xf32, #tpu.memory_space<vmem>>, vector<1x128xf32>
      tpu.vector_store %arg8[%c2_58, %c0_59], %158 {strides = array<i32>} : memref<8x128xf32, #tpu.memory_space<vmem>>, vector<1x128xf32>,
      %160 = arith.truncf %158 : vector<1x128xf32> to vector<1x128xbf16>
      %c0_60 = arith.constant 0 : index
      %c0_61 = arith.constant 0 : index
      %161 = vector.load %arg4[%c0_60, %c0_61] : memref<128x512xbf16, #tpu.memory_space<vmem>>, vector<128x512xbf16>
      %cst_62 = arith.constant dense<0.000000e+00> : vector<1x512xf32>
      %162 = tpu.matmul %160, %161, %cst_62 {dimension_numbers = #tpu.dot_dimension_numbers<[1], [0], [0], [1], [0, 0, 1, 1], [], []>} : vector<1x128xbf16>, vector<128x512xbf16>, vector<1x512xf32> -> vector<1x512xf32>
      %163 = arith.addf %162, %3 : vector<1x512xf32>
      %c3_i32 = arith.constant 3 : i32
      %164 = arith.addi %15, %c3_i32 : i32
      %165 = arith.index_cast %164 : i32 to index
      %c0_63 = arith.constant 0 : index
      %166 = vector.load %arg1[%165, %c0_63] : memref<32x512xf32, #tpu.memory_space<vmem>>, vector<1x512xf32>
      %167 = arith.truncf %138 : vector<1x128xf32> to vector<1x128xbf16>
      %c0_64 = arith.constant 0 : index
      %c0_65 = arith.constant 0 : index
      %168 = vector.load %arg2[%c0_64, %c0_65] : memref<128x512xbf16, #tpu.memory_space<vmem>>, vector<128x512xbf16>
      %cst_66 = arith.constant dense<0.000000e+00> : vector<1x512xf32>
      %169 = tpu.matmul %167, %168, %cst_66 {dimension_numbers = #tpu.dot_dimension_numbers<[1], [0], [0], [1], [0, 0, 1, 1], [], []>} : vector<1x128xbf16>, vector<128x512xbf16>, vector<1x512xf32> -> vector<1x512xf32>
      %170 = arith.addf %166, %169 : vector<1x512xf32>
      %171 = vector.extract_strided_slice %170 {offsets = [0, 0], sizes = [1, 384], strides = [1, 1]} : vector<1x512xf32> to vector<1x384xf32>
      %172 = arith.negf %171 : vector<1x384xf32>
      %173 = math.exp %172 : vector<1x384xf32>
      %cst_67 = arith.constant 1.000000e+00 : f32
      %174 = vector.broadcast %cst_67 : f32 to vector<1x384xf32>
      %175 = arith.addf %174, %173 : vector<1x384xf32>
      %176 = arith.divf %174, %175 : vector<1x384xf32>
      %177 = vector.extract_strided_slice %170 {offsets = [0, 384], sizes = [1, 128], strides = [1, 1]} : vector<1x512xf32> to vector<1x128xf32>
      %178 = math.tanh %177 : vector<1x128xf32>
      %179 = vector.extract_strided_slice %176 {offsets = [0, 0], sizes = [1, 128], strides = [1, 1]} : vector<1x384xf32> to vector<1x128xf32>
      %180 = vector.extract_strided_slice %176 {offsets = [0, 128], sizes = [1, 128], strides = [1, 1]} : vector<1x384xf32> to vector<1x128xf32>
      %181 = vector.extract_strided_slice %176 {offsets = [0, 256], sizes = [1, 128], strides = [1, 1]} : vector<1x384xf32> to vector<1x128xf32>
      %182 = arith.mulf %180, %136 : vector<1x128xf32>
      %183 = arith.mulf %179, %178 : vector<1x128xf32>
      %184 = arith.addf %182, %183 : vector<1x128xf32>
      %185 = math.tanh %184 : vector<1x128xf32>
      %186 = arith.mulf %181, %185 : vector<1x128xf32>
      %187 = arith.truncf %186 : vector<1x128xf32> to vector<1x128xbf16>
      %c0_68 = arith.constant 0 : index
      %c0_69 = arith.constant 0 : index
      %188 = vector.load %arg3[%c0_68, %c0_69] : memref<128x512xbf16, #tpu.memory_space<vmem>>, vector<128x512xbf16>
      %cst_70 = arith.constant dense<0.000000e+00> : vector<1x512xf32>
      %189 = tpu.matmul %187, %188, %cst_70 {dimension_numbers = #tpu.dot_dimension_numbers<[1], [0], [0], [1], [0, 0, 1, 1], [], []>} : vector<1x128xbf16>, vector<128x512xbf16>, vector<1x512xf32> -> vector<1x512xf32>
      %190 = arith.addf %189, %163 : vector<1x512xf32>
      %191 = vector.extract_strided_slice %190 {offsets = [0, 0], sizes = [1, 384], strides = [1, 1]} : vector<1x512xf32> to vector<1x384xf32>
      %192 = arith.negf %191 : vector<1x384xf32>
      %193 = math.exp %192 : vector<1x384xf32>
      %cst_71 = arith.constant 1.000000e+00 : f32
      %194 = vector.broadcast %cst_71 : f32 to vector<1x384xf32>
      %195 = arith.addf %194, %193 : vector<1x384xf32>
      %196 = arith.divf %194, %195 : vector<1x384xf32>
      %197 = vector.extract_strided_slice %190 {offsets = [0, 384], sizes = [1, 128], strides = [1, 1]} : vector<1x512xf32> to vector<1x128xf32>
      %198 = math.tanh %197 : vector<1x128xf32>
      %199 = vector.extract_strided_slice %196 {offsets = [0, 0], sizes = [1, 128], strides = [1, 1]} : vector<1x384xf32> to vector<1x128xf32>
      %200 = vector.extract_strided_slice %196 {offsets = [0, 128], sizes = [1, 128], strides = [1, 1]} : vector<1x384xf32> to vector<1x128xf32>
      %201 = vector.extract_strided_slice %196 {offsets = [0, 256], sizes = [1, 128], strides = [1, 1]} : vector<1x384xf32> to vector<1x128xf32>
      %202 = arith.mulf %200, %156 : vector<1x128xf32>
      %203 = arith.mulf %199, %198 : vector<1x128xf32>
      %204 = arith.addf %202, %203 : vector<1x128xf32>
      %205 = math.tanh %204 : vector<1x128xf32>
      %206 = arith.mulf %201, %205 : vector<1x128xf32>
      %c3_72 = arith.constant 3 : index
      %c0_73 = arith.constant 0 : index
      %207 = vector.load %arg8[%c3_72, %c0_73] : memref<8x128xf32, #tpu.memory_space<vmem>>, vector<1x128xf32>
      tpu.vector_store %arg8[%c3_72, %c0_73], %206 {strides = array<i32>} : memref<8x128xf32, #tpu.memory_space<vmem>>, vector<1x128xf32>,
      %208 = arith.truncf %206 : vector<1x128xf32> to vector<1x128xbf16>
      %c0_74 = arith.constant 0 : index
      %c0_75 = arith.constant 0 : index
      %209 = vector.load %arg4[%c0_74, %c0_75] : memref<128x512xbf16, #tpu.memory_space<vmem>>, vector<128x512xbf16>
      %cst_76 = arith.constant dense<0.000000e+00> : vector<1x512xf32>
      %210 = tpu.matmul %208, %209, %cst_76 {dimension_numbers = #tpu.dot_dimension_numbers<[1], [0], [0], [1], [0, 0, 1, 1], [], []>} : vector<1x128xbf16>, vector<128x512xbf16>, vector<1x512xf32> -> vector<1x512xf32>
      %211 = arith.addf %210, %3 : vector<1x512xf32>
      %c4_i32_77 = arith.constant 4 : i32
      %212 = arith.addi %15, %c4_i32_77 : i32
      %213 = arith.index_cast %212 : i32 to index
      %c0_78 = arith.constant 0 : index
      %214 = vector.load %arg1[%213, %c0_78] : memref<32x512xf32, #tpu.memory_space<vmem>>, vector<1x512xf32>
      %215 = arith.truncf %186 : vector<1x128xf32> to vector<1x128xbf16>
      %c0_79 = arith.constant 0 : index
      %c0_80 = arith.constant 0 : index
      %216 = vector.load %arg2[%c0_79, %c0_80] : memref<128x512xbf16, #tpu.memory_space<vmem>>, vector<128x512xbf16>
      %cst_81 = arith.constant dense<0.000000e+00> : vector<1x512xf32>
      %217 = tpu.matmul %215, %216, %cst_81 {dimension_numbers = #tpu.dot_dimension_numbers<[1], [0], [0], [1], [0, 0, 1, 1], [], []>} : vector<1x128xbf16>, vector<128x512xbf16>, vector<1x512xf32> -> vector<1x512xf32>
      %218 = arith.addf %214, %217 : vector<1x512xf32>
      %219 = vector.extract_strided_slice %218 {offsets = [0, 0], sizes = [1, 384], strides = [1, 1]} : vector<1x512xf32> to vector<1x384xf32>
      %220 = arith.negf %219 : vector<1x384xf32>
      %221 = math.exp %220 : vector<1x384xf32>
      %cst_82 = arith.constant 1.000000e+00 : f32
      %222 = vector.broadcast %cst_82 : f32 to vector<1x384xf32>
      %223 = arith.addf %222, %221 : vector<1x384xf32>
      %224 = arith.divf %222, %223 : vector<1x384xf32>
      %225 = vector.extract_strided_slice %218 {offsets = [0, 384], sizes = [1, 128], strides = [1, 1]} : vector<1x512xf32> to vector<1x128xf32>
      %226 = math.tanh %225 : vector<1x128xf32>
      %227 = vector.extract_strided_slice %224 {offsets = [0, 0], sizes = [1, 128], strides = [1, 1]} : vector<1x384xf32> to vector<1x128xf32>
      %228 = vector.extract_strided_slice %224 {offsets = [0, 128], sizes = [1, 128], strides = [1, 1]} : vector<1x384xf32> to vector<1x128xf32>
      %229 = vector.extract_strided_slice %224 {offsets = [0, 256], sizes = [1, 128], strides = [1, 1]} : vector<1x384xf32> to vector<1x128xf32>
      %230 = arith.mulf %228, %184 : vector<1x128xf32>
      %231 = arith.mulf %227, %226 : vector<1x128xf32>
      %232 = arith.addf %230, %231 : vector<1x128xf32>
      %233 = math.tanh %232 : vector<1x128xf32>
      %234 = arith.mulf %229, %233 : vector<1x128xf32>
      %235 = arith.truncf %234 : vector<1x128xf32> to vector<1x128xbf16>
      %c0_83 = arith.constant 0 : index
      %c0_84 = arith.constant 0 : index
      %236 = vector.load %arg3[%c0_83, %c0_84] : memref<128x512xbf16, #tpu.memory_space<vmem>>, vector<128x512xbf16>
      %cst_85 = arith.constant dense<0.000000e+00> : vector<1x512xf32>
      %237 = tpu.matmul %235, %236, %cst_85 {dimension_numbers = #tpu.dot_dimension_numbers<[1], [0], [0], [1], [0, 0, 1, 1], [], []>} : vector<1x128xbf16>, vector<128x512xbf16>, vector<1x512xf32> -> vector<1x512xf32>
      %238 = arith.addf %237, %211 : vector<1x512xf32>
      %239 = vector.extract_strided_slice %238 {offsets = [0, 0], sizes = [1, 384], strides = [1, 1]} : vector<1x512xf32> to vector<1x384xf32>
      %240 = arith.negf %239 : vector<1x384xf32>
      %241 = math.exp %240 : vector<1x384xf32>
      %cst_86 = arith.constant 1.000000e+00 : f32
      %242 = vector.broadcast %cst_86 : f32 to vector<1x384xf32>
      %243 = arith.addf %242, %241 : vector<1x384xf32>
      %244 = arith.divf %242, %243 : vector<1x384xf32>
      %245 = vector.extract_strided_slice %238 {offsets = [0, 384], sizes = [1, 128], strides = [1, 1]} : vector<1x512xf32> to vector<1x128xf32>
      %246 = math.tanh %245 : vector<1x128xf32>
      %247 = vector.extract_strided_slice %244 {offsets = [0, 0], sizes = [1, 128], strides = [1, 1]} : vector<1x384xf32> to vector<1x128xf32>
      %248 = vector.extract_strided_slice %244 {offsets = [0, 128], sizes = [1, 128], strides = [1, 1]} : vector<1x384xf32> to vector<1x128xf32>
      %249 = vector.extract_strided_slice %244 {offsets = [0, 256], sizes = [1, 128], strides = [1, 1]} : vector<1x384xf32> to vector<1x128xf32>
      %250 = arith.mulf %248, %204 : vector<1x128xf32>
      %251 = arith.mulf %247, %246 : vector<1x128xf32>
      %252 = arith.addf %250, %251 : vector<1x128xf32>
      %253 = math.tanh %252 : vector<1x128xf32>
      %254 = arith.mulf %249, %253 : vector<1x128xf32>
      %c4 = arith.constant 4 : index
      %c0_87 = arith.constant 0 : index
      %255 = vector.load %arg8[%c4, %c0_87] : memref<8x128xf32, #tpu.memory_space<vmem>>, vector<1x128xf32>
      tpu.vector_store %arg8[%c4, %c0_87], %254 {strides = array<i32>} : memref<8x128xf32, #tpu.memory_space<vmem>>, vector<1x128xf32>,
      %256 = arith.truncf %254 : vector<1x128xf32> to vector<1x128xbf16>
      %c0_88 = arith.constant 0 : index
      %c0_89 = arith.constant 0 : index
      %257 = vector.load %arg4[%c0_88, %c0_89] : memref<128x512xbf16, #tpu.memory_space<vmem>>, vector<128x512xbf16>
      %cst_90 = arith.constant dense<0.000000e+00> : vector<1x512xf32>
      %258 = tpu.matmul %256, %257, %cst_90 {dimension_numbers = #tpu.dot_dimension_numbers<[1], [0], [0], [1], [0, 0, 1, 1], [], []>} : vector<1x128xbf16>, vector<128x512xbf16>, vector<1x512xf32> -> vector<1x512xf32>
      %259 = arith.addf %258, %3 : vector<1x512xf32>
      %c5_i32 = arith.constant 5 : i32
      %260 = arith.addi %15, %c5_i32 : i32
      %261 = arith.index_cast %260 : i32 to index
      %c0_91 = arith.constant 0 : index
      %262 = vector.load %arg1[%261, %c0_91] : memref<32x512xf32, #tpu.memory_space<vmem>>, vector<1x512xf32>
      %263 = arith.truncf %234 : vector<1x128xf32> to vector<1x128xbf16>
      %c0_92 = arith.constant 0 : index
      %c0_93 = arith.constant 0 : index
      %264 = vector.load %arg2[%c0_92, %c0_93] : memref<128x512xbf16, #tpu.memory_space<vmem>>, vector<128x512xbf16>
      %cst_94 = arith.constant dense<0.000000e+00> : vector<1x512xf32>
      %265 = tpu.matmul %263, %264, %cst_94 {dimension_numbers = #tpu.dot_dimension_numbers<[1], [0], [0], [1], [0, 0, 1, 1], [], []>} : vector<1x128xbf16>, vector<128x512xbf16>, vector<1x512xf32> -> vector<1x512xf32>
      %266 = arith.addf %262, %265 : vector<1x512xf32>
      %267 = vector.extract_strided_slice %266 {offsets = [0, 0], sizes = [1, 384], strides = [1, 1]} : vector<1x512xf32> to vector<1x384xf32>
      %268 = arith.negf %267 : vector<1x384xf32>
      %269 = math.exp %268 : vector<1x384xf32>
      %cst_95 = arith.constant 1.000000e+00 : f32
      %270 = vector.broadcast %cst_95 : f32 to vector<1x384xf32>
      %271 = arith.addf %270, %269 : vector<1x384xf32>
      %272 = arith.divf %270, %271 : vector<1x384xf32>
      %273 = vector.extract_strided_slice %266 {offsets = [0, 384], sizes = [1, 128], strides = [1, 1]} : vector<1x512xf32> to vector<1x128xf32>
      %274 = math.tanh %273 : vector<1x128xf32>
      %275 = vector.extract_strided_slice %272 {offsets = [0, 0], sizes = [1, 128], strides = [1, 1]} : vector<1x384xf32> to vector<1x128xf32>
      %276 = vector.extract_strided_slice %272 {offsets = [0, 128], sizes = [1, 128], strides = [1, 1]} : vector<1x384xf32> to vector<1x128xf32>
      %277 = vector.extract_strided_slice %272 {offsets = [0, 256], sizes = [1, 128], strides = [1, 1]} : vector<1x384xf32> to vector<1x128xf32>
      %278 = arith.mulf %276, %232 : vector<1x128xf32>
      %279 = arith.mulf %275, %274 : vector<1x128xf32>
      %280 = arith.addf %278, %279 : vector<1x128xf32>
      %281 = math.tanh %280 : vector<1x128xf32>
      %282 = arith.mulf %277, %281 : vector<1x128xf32>
      %283 = arith.truncf %282 : vector<1x128xf32> to vector<1x128xbf16>
      %c0_96 = arith.constant 0 : index
      %c0_97 = arith.constant 0 : index
      %284 = vector.load %arg3[%c0_96, %c0_97] : memref<128x512xbf16, #tpu.memory_space<vmem>>, vector<128x512xbf16>
      %cst_98 = arith.constant dense<0.000000e+00> : vector<1x512xf32>
      %285 = tpu.matmul %283, %284, %cst_98 {dimension_numbers = #tpu.dot_dimension_numbers<[1], [0], [0], [1], [0, 0, 1, 1], [], []>} : vector<1x128xbf16>, vector<128x512xbf16>, vector<1x512xf32> -> vector<1x512xf32>
      %286 = arith.addf %285, %259 : vector<1x512xf32>
      %287 = vector.extract_strided_slice %286 {offsets = [0, 0], sizes = [1, 384], strides = [1, 1]} : vector<1x512xf32> to vector<1x384xf32>
      %288 = arith.negf %287 : vector<1x384xf32>
      %289 = math.exp %288 : vector<1x384xf32>
      %cst_99 = arith.constant 1.000000e+00 : f32
      %290 = vector.broadcast %cst_99 : f32 to vector<1x384xf32>
      %291 = arith.addf %290, %289 : vector<1x384xf32>
      %292 = arith.divf %290, %291 : vector<1x384xf32>
      %293 = vector.extract_strided_slice %286 {offsets = [0, 384], sizes = [1, 128], strides = [1, 1]} : vector<1x512xf32> to vector<1x128xf32>
      %294 = math.tanh %293 : vector<1x128xf32>
      %295 = vector.extract_strided_slice %292 {offsets = [0, 0], sizes = [1, 128], strides = [1, 1]} : vector<1x384xf32> to vector<1x128xf32>
      %296 = vector.extract_strided_slice %292 {offsets = [0, 128], sizes = [1, 128], strides = [1, 1]} : vector<1x384xf32> to vector<1x128xf32>
      %297 = vector.extract_strided_slice %292 {offsets = [0, 256], sizes = [1, 128], strides = [1, 1]} : vector<1x384xf32> to vector<1x128xf32>
      %298 = arith.mulf %296, %252 : vector<1x128xf32>
      %299 = arith.mulf %295, %294 : vector<1x128xf32>
      %300 = arith.addf %298, %299 : vector<1x128xf32>
      %301 = math.tanh %300 : vector<1x128xf32>
      %302 = arith.mulf %297, %301 : vector<1x128xf32>
      %c5 = arith.constant 5 : index
      %c0_100 = arith.constant 0 : index
      %303 = vector.load %arg8[%c5, %c0_100] : memref<8x128xf32, #tpu.memory_space<vmem>>, vector<1x128xf32>
      tpu.vector_store %arg8[%c5, %c0_100], %302 {strides = array<i32>} : memref<8x128xf32, #tpu.memory_space<vmem>>, vector<1x128xf32>,
      %304 = arith.truncf %302 : vector<1x128xf32> to vector<1x128xbf16>
      %c0_101 = arith.constant 0 : index
      %c0_102 = arith.constant 0 : index
      %305 = vector.load %arg4[%c0_101, %c0_102] : memref<128x512xbf16, #tpu.memory_space<vmem>>, vector<128x512xbf16>
      %cst_103 = arith.constant dense<0.000000e+00> : vector<1x512xf32>
      %306 = tpu.matmul %304, %305, %cst_103 {dimension_numbers = #tpu.dot_dimension_numbers<[1], [0], [0], [1], [0, 0, 1, 1], [], []>} : vector<1x128xbf16>, vector<128x512xbf16>, vector<1x512xf32> -> vector<1x512xf32>
      %307 = arith.addf %306, %3 : vector<1x512xf32>
      %c6_i32 = arith.constant 6 : i32
      %308 = arith.addi %15, %c6_i32 : i32
      %309 = arith.index_cast %308 : i32 to index
      %c0_104 = arith.constant 0 : index
      %310 = vector.load %arg1[%309, %c0_104] : memref<32x512xf32, #tpu.memory_space<vmem>>, vector<1x512xf32>
      %311 = arith.truncf %282 : vector<1x128xf32> to vector<1x128xbf16>
      %c0_105 = arith.constant 0 : index
      %c0_106 = arith.constant 0 : index
      %312 = vector.load %arg2[%c0_105, %c0_106] : memref<128x512xbf16, #tpu.memory_space<vmem>>, vector<128x512xbf16>
      %cst_107 = arith.constant dense<0.000000e+00> : vector<1x512xf32>
      %313 = tpu.matmul %311, %312, %cst_107 {dimension_numbers = #tpu.dot_dimension_numbers<[1], [0], [0], [1], [0, 0, 1, 1], [], []>} : vector<1x128xbf16>, vector<128x512xbf16>, vector<1x512xf32> -> vector<1x512xf32>
      %314 = arith.addf %310, %313 : vector<1x512xf32>
      %315 = vector.extract_strided_slice %314 {offsets = [0, 0], sizes = [1, 384], strides = [1, 1]} : vector<1x512xf32> to vector<1x384xf32>
      %316 = arith.negf %315 : vector<1x384xf32>
      %317 = math.exp %316 : vector<1x384xf32>
      %cst_108 = arith.constant 1.000000e+00 : f32
      %318 = vector.broadcast %cst_108 : f32 to vector<1x384xf32>
      %319 = arith.addf %318, %317 : vector<1x384xf32>
      %320 = arith.divf %318, %319 : vector<1x384xf32>
      %321 = vector.extract_strided_slice %314 {offsets = [0, 384], sizes = [1, 128], strides = [1, 1]} : vector<1x512xf32> to vector<1x128xf32>
      %322 = math.tanh %321 : vector<1x128xf32>
      %323 = vector.extract_strided_slice %320 {offsets = [0, 0], sizes = [1, 128], strides = [1, 1]} : vector<1x384xf32> to vector<1x128xf32>
      %324 = vector.extract_strided_slice %320 {offsets = [0, 128], sizes = [1, 128], strides = [1, 1]} : vector<1x384xf32> to vector<1x128xf32>
      %325 = vector.extract_strided_slice %320 {offsets = [0, 256], sizes = [1, 128], strides = [1, 1]} : vector<1x384xf32> to vector<1x128xf32>
      %326 = arith.mulf %324, %280 : vector<1x128xf32>
      %327 = arith.mulf %323, %322 : vector<1x128xf32>
      %328 = arith.addf %326, %327 : vector<1x128xf32>
      %329 = math.tanh %328 : vector<1x128xf32>
      %330 = arith.mulf %325, %329 : vector<1x128xf32>
      %331 = arith.truncf %330 : vector<1x128xf32> to vector<1x128xbf16>
      %c0_109 = arith.constant 0 : index
      %c0_110 = arith.constant 0 : index
      %332 = vector.load %arg3[%c0_109, %c0_110] : memref<128x512xbf16, #tpu.memory_space<vmem>>, vector<128x512xbf16>
      %cst_111 = arith.constant dense<0.000000e+00> : vector<1x512xf32>
      %333 = tpu.matmul %331, %332, %cst_111 {dimension_numbers = #tpu.dot_dimension_numbers<[1], [0], [0], [1], [0, 0, 1, 1], [], []>} : vector<1x128xbf16>, vector<128x512xbf16>, vector<1x512xf32> -> vector<1x512xf32>
      %334 = arith.addf %333, %307 : vector<1x512xf32>
      %335 = vector.extract_strided_slice %334 {offsets = [0, 0], sizes = [1, 384], strides = [1, 1]} : vector<1x512xf32> to vector<1x384xf32>
      %336 = arith.negf %335 : vector<1x384xf32>
      %337 = math.exp %336 : vector<1x384xf32>
      %cst_112 = arith.constant 1.000000e+00 : f32
      %338 = vector.broadcast %cst_112 : f32 to vector<1x384xf32>
      %339 = arith.addf %338, %337 : vector<1x384xf32>
      %340 = arith.divf %338, %339 : vector<1x384xf32>
      %341 = vector.extract_strided_slice %334 {offsets = [0, 384], sizes = [1, 128], strides = [1, 1]} : vector<1x512xf32> to vector<1x128xf32>
      %342 = math.tanh %341 : vector<1x128xf32>
      %343 = vector.extract_strided_slice %340 {offsets = [0, 0], sizes = [1, 128], strides = [1, 1]} : vector<1x384xf32> to vector<1x128xf32>
      %344 = vector.extract_strided_slice %340 {offsets = [0, 128], sizes = [1, 128], strides = [1, 1]} : vector<1x384xf32> to vector<1x128xf32>
      %345 = vector.extract_strided_slice %340 {offsets = [0, 256], sizes = [1, 128], strides = [1, 1]} : vector<1x384xf32> to vector<1x128xf32>
      %346 = arith.mulf %344, %300 : vector<1x128xf32>
      %347 = arith.mulf %343, %342 : vector<1x128xf32>
      %348 = arith.addf %346, %347 : vector<1x128xf32>
      %349 = math.tanh %348 : vector<1x128xf32>
      %350 = arith.mulf %345, %349 : vector<1x128xf32>
      %c6 = arith.constant 6 : index
      %c0_113 = arith.constant 0 : index
      %351 = vector.load %arg8[%c6, %c0_113] : memref<8x128xf32, #tpu.memory_space<vmem>>, vector<1x128xf32>
      tpu.vector_store %arg8[%c6, %c0_113], %350 {strides = array<i32>} : memref<8x128xf32, #tpu.memory_space<vmem>>, vector<1x128xf32>,
      %352 = arith.truncf %350 : vector<1x128xf32> to vector<1x128xbf16>
      %c0_114 = arith.constant 0 : index
      %c0_115 = arith.constant 0 : index
      %353 = vector.load %arg4[%c0_114, %c0_115] : memref<128x512xbf16, #tpu.memory_space<vmem>>, vector<128x512xbf16>
      %cst_116 = arith.constant dense<0.000000e+00> : vector<1x512xf32>
      %354 = tpu.matmul %352, %353, %cst_116 {dimension_numbers = #tpu.dot_dimension_numbers<[1], [0], [0], [1], [0, 0, 1, 1], [], []>} : vector<1x128xbf16>, vector<128x512xbf16>, vector<1x512xf32> -> vector<1x512xf32>
      %355 = arith.addf %354, %3 : vector<1x512xf32>
      %c7_i32 = arith.constant 7 : i32
      %356 = arith.addi %15, %c7_i32 : i32
      %357 = arith.index_cast %356 : i32 to index
      %c0_117 = arith.constant 0 : index
      %358 = vector.load %arg1[%357, %c0_117] : memref<32x512xf32, #tpu.memory_space<vmem>>, vector<1x512xf32>
      %359 = arith.truncf %330 : vector<1x128xf32> to vector<1x128xbf16>
      %c0_118 = arith.constant 0 : index
      %c0_119 = arith.constant 0 : index
      %360 = vector.load %arg2[%c0_118, %c0_119] : memref<128x512xbf16, #tpu.memory_space<vmem>>, vector<128x512xbf16>
      %cst_120 = arith.constant dense<0.000000e+00> : vector<1x512xf32>
      %361 = tpu.matmul %359, %360, %cst_120 {dimension_numbers = #tpu.dot_dimension_numbers<[1], [0], [0], [1], [0, 0, 1, 1], [], []>} : vector<1x128xbf16>, vector<128x512xbf16>, vector<1x512xf32> -> vector<1x512xf32>
      %362 = arith.addf %358, %361 : vector<1x512xf32>
      %363 = vector.extract_strided_slice %362 {offsets = [0, 0], sizes = [1, 384], strides = [1, 1]} : vector<1x512xf32> to vector<1x384xf32>
      %364 = arith.negf %363 : vector<1x384xf32>
      %365 = math.exp %364 : vector<1x384xf32>
      %cst_121 = arith.constant 1.000000e+00 : f32
      %366 = vector.broadcast %cst_121 : f32 to vector<1x384xf32>
      %367 = arith.addf %366, %365 : vector<1x384xf32>
      %368 = arith.divf %366, %367 : vector<1x384xf32>
      %369 = vector.extract_strided_slice %362 {offsets = [0, 384], sizes = [1, 128], strides = [1, 1]} : vector<1x512xf32> to vector<1x128xf32>
      %370 = math.tanh %369 : vector<1x128xf32>
      %371 = vector.extract_strided_slice %368 {offsets = [0, 0], sizes = [1, 128], strides = [1, 1]} : vector<1x384xf32> to vector<1x128xf32>
      %372 = vector.extract_strided_slice %368 {offsets = [0, 128], sizes = [1, 128], strides = [1, 1]} : vector<1x384xf32> to vector<1x128xf32>
      %373 = vector.extract_strided_slice %368 {offsets = [0, 256], sizes = [1, 128], strides = [1, 1]} : vector<1x384xf32> to vector<1x128xf32>
      %374 = arith.mulf %372, %328 : vector<1x128xf32>
      %375 = arith.mulf %371, %370 : vector<1x128xf32>
      %376 = arith.addf %374, %375 : vector<1x128xf32>
      %377 = math.tanh %376 : vector<1x128xf32>
      %378 = arith.mulf %373, %377 : vector<1x128xf32>
      %379 = arith.truncf %378 : vector<1x128xf32> to vector<1x128xbf16>
      %c0_122 = arith.constant 0 : index
      %c0_123 = arith.constant 0 : index
      %380 = vector.load %arg3[%c0_122, %c0_123] : memref<128x512xbf16, #tpu.memory_space<vmem>>, vector<128x512xbf16>
      %cst_124 = arith.constant dense<0.000000e+00> : vector<1x512xf32>
      %381 = tpu.matmul %379, %380, %cst_124 {dimension_numbers = #tpu.dot_dimension_numbers<[1], [0], [0], [1], [0, 0, 1, 1], [], []>} : vector<1x128xbf16>, vector<128x512xbf16>, vector<1x512xf32> -> vector<1x512xf32>
      %382 = arith.addf %381, %355 : vector<1x512xf32>
      %383 = vector.extract_strided_slice %382 {offsets = [0, 0], sizes = [1, 384], strides = [1, 1]} : vector<1x512xf32> to vector<1x384xf32>
      %384 = arith.negf %383 : vector<1x384xf32>
      %385 = math.exp %384 : vector<1x384xf32>
      %cst_125 = arith.constant 1.000000e+00 : f32
      %386 = vector.broadcast %cst_125 : f32 to vector<1x384xf32>
      %387 = arith.addf %386, %385 : vector<1x384xf32>
      %388 = arith.divf %386, %387 : vector<1x384xf32>
      %389 = vector.extract_strided_slice %382 {offsets = [0, 384], sizes = [1, 128], strides = [1, 1]} : vector<1x512xf32> to vector<1x128xf32>
      %390 = math.tanh %389 : vector<1x128xf32>
      %391 = vector.extract_strided_slice %388 {offsets = [0, 0], sizes = [1, 128], strides = [1, 1]} : vector<1x384xf32> to vector<1x128xf32>
      %392 = vector.extract_strided_slice %388 {offsets = [0, 128], sizes = [1, 128], strides = [1, 1]} : vector<1x384xf32> to vector<1x128xf32>
      %393 = vector.extract_strided_slice %388 {offsets = [0, 256], sizes = [1, 128], strides = [1, 1]} : vector<1x384xf32> to vector<1x128xf32>
      %394 = arith.mulf %392, %348 : vector<1x128xf32>
      %395 = arith.mulf %391, %390 : vector<1x128xf32>
      %396 = arith.addf %394, %395 : vector<1x128xf32>
      %397 = math.tanh %396 : vector<1x128xf32>
      %398 = arith.mulf %393, %397 : vector<1x128xf32>
      %c7 = arith.constant 7 : index
      %c0_126 = arith.constant 0 : index
      %399 = vector.load %arg8[%c7, %c0_126] : memref<8x128xf32, #tpu.memory_space<vmem>>, vector<1x128xf32>
      tpu.vector_store %arg8[%c7, %c0_126], %398 {strides = array<i32>} : memref<8x128xf32, #tpu.memory_space<vmem>>, vector<1x128xf32>,
      %c0_127 = arith.constant 0 : index
      %c0_128 = arith.constant 0 : index
      %400 = vector.load %arg8[%c0_127, %c0_128] : memref<8x128xf32, #tpu.memory_space<vmem>>, vector<8x128xf32>
      %401 = arith.index_cast %15 : i32 to index
      %c0_129 = arith.constant 0 : index
      %402 = vector.load %arg6[%401, %c0_129] : memref<32x128xf32, #tpu.memory_space<vmem>>, vector<8x128xf32>
      tpu.vector_store %arg6[%401, %c0_129], %400 {strides = array<i32>} : memref<32x128xf32, #tpu.memory_space<vmem>>, vector<8x128xf32>,
      scf.yield %378, %376, %398, %396 : vector<1x128xf32>, vector<1x128xf32>, vector<1x128xf32>, vector<1x128xf32>
    }
    %c4_i32_8 = arith.constant 4 : i32
    %c0_9 = arith.constant 0 : index
    %c0_10 = arith.constant 0 : index
    %10 = vector.load %arg7[%c0_9, %c0_10] : memref<4x128xf32, #tpu.memory_space<vmem>>, vector<1x128xf32>
    tpu.vector_store %arg7[%c0_9, %c0_10], %9#0 {strides = array<i32>} : memref<4x128xf32, #tpu.memory_space<vmem>>, vector<1x128xf32>,
    %c1_11 = arith.constant 1 : index
    %c0_12 = arith.constant 0 : index
    %11 = vector.load %arg7[%c1_11, %c0_12] : memref<4x128xf32, #tpu.memory_space<vmem>>, vector<1x128xf32>
    tpu.vector_store %arg7[%c1_11, %c0_12], %9#1 {strides = array<i32>} : memref<4x128xf32, #tpu.memory_space<vmem>>, vector<1x128xf32>,
    %c2_13 = arith.constant 2 : index
    %c0_14 = arith.constant 0 : index
    %12 = vector.load %arg7[%c2_13, %c0_14] : memref<4x128xf32, #tpu.memory_space<vmem>>, vector<1x128xf32>
    tpu.vector_store %arg7[%c2_13, %c0_14], %9#2 {strides = array<i32>} : memref<4x128xf32, #tpu.memory_space<vmem>>, vector<1x128xf32>,
    %c3_15 = arith.constant 3 : index
    %c0_16 = arith.constant 0 : index
    %13 = vector.load %arg7[%c3_15, %c0_16] : memref<4x128xf32, #tpu.memory_space<vmem>>, vector<1x128xf32>
    tpu.vector_store %arg7[%c3_15, %c0_16], %9#3 {strides = array<i32>} : memref<4x128xf32, #tpu.memory_space<vmem>>, vector<1x128xf32>,
    return
  }
  func.func @transform_0(%arg0: i32) -> (i32, i32) {
    %c0_i32 = arith.constant 0 : i32
    %c0_i32_0 = arith.constant 0 : i32
    return %arg0, %c0_i32 : i32, i32
  }
  func.func @transform_1(%arg0: i32) -> (i32, i32) {
    %c0_i32 = arith.constant 0 : i32
    %c0_i32_0 = arith.constant 0 : i32
    %c0_i32_1 = arith.constant 0 : i32
    return %c0_i32, %c0_i32_0 : i32, i32
  }
  func.func @transform_2(%arg0: i32) -> (i32, i32) {
    %c0_i32 = arith.constant 0 : i32
    %c0_i32_0 = arith.constant 0 : i32
    %c0_i32_1 = arith.constant 0 : i32
    return %c0_i32, %c0_i32_0 : i32, i32
  }
  func.func @transform_3(%arg0: i32) -> (i32, i32) {
    %c0_i32 = arith.constant 0 : i32
    %c0_i32_0 = arith.constant 0 : i32
    %c0_i32_1 = arith.constant 0 : i32
    return %c0_i32, %c0_i32_0 : i32, i32
  }
  func.func @transform_4(%arg0: i32) -> (i32, i32) {
    %c0_i32 = arith.constant 0 : i32
    %c0_i32_0 = arith.constant 0 : i32
    %c0_i32_1 = arith.constant 0 : i32
    return %c0_i32, %c0_i32_0 : i32, i32
  }
  func.func @transform_5(%arg0: i32) -> (i32, i32) {
    %c0_i32 = arith.constant 0 : i32
    %c0_i32_0 = arith.constant 0 : i32
    return %arg0, %c0_i32 : i32, i32
  }
}

</mosaic_0001>

<llo_original>
// kernel: tpu_custom_call.1
$region0: #{tpu_custom_call.1}
  #allocation0 [shape = 'u32[]', space=smem, size = 0x4, offset = 0x4, fixed_abs, tag = 'smem constant byte address 0x4 - core index']
  #allocation1 [shape = 'u32[144,128]{1,0:T(1,128)}', space=vmem, size = 0x12000, scoped, tag = 'internal scratch']
  #allocation2 [shape = 'f32[4,128]{1,0:T(4,128)}', space=vmem, size = 0x800, scoped, tag = 'scratch operand']
  #allocation3 [shape = 'f32[8,128]{1,0:T(8,128)}', space=vmem, size = 0x1000, scoped, tag = 'scratch operand']
  %s0 = inlined_call_operand.hbm [shape: f32[32,512], index: 0, kind: input, shape index: {}]
  %s1 = inlined_call_operand.hbm [shape: bf16[128,512], index: 1, kind: input, shape index: {}]
  %s2 = inlined_call_operand.hbm [shape: bf16[128,512], index: 2, kind: input, shape index: {}]
  %s3 = inlined_call_operand.hbm [shape: bf16[128,512], index: 3, kind: input, shape index: {}]
  %s4 = inlined_call_operand.vmem [shape: f32[1,512], index: 4, kind: input, shape index: {}]
  %s5 = inlined_call_operand.hbm [shape: f32[32,128], index: 5, kind: output, shape index: {}]
  %s6 = sld [smem:[#allocation0]]
  $region57: #{tpu_custom_call.1} parent=0
    _
  %s8 = ssub.s32 1, %s6
  %s9 = scalar_select 0, %s8, %s6
  $region1: #{tpu_custom_call.1} parent=0
    #allocation4 [shape = 'u8[65536]{0}', space=vmem, size = 0x10000, scoped, tag = 'input window, operand 0, single buffered']
    #allocation5 [shape = 's32[1]{0}', space=sflag, size = 0x4, scoped, tag = 'scoped memory for tpu_custom_call.1']
    #allocation6 [shape = 's32[1]{0}', space=sflag, size = 0x4, scoped, tag = 'scoped memory for tpu_custom_call.1']
    #allocation7 [shape = 'u8[131072]{0}', space=vmem, size = 0x20000, scoped, tag = 'input window, operand 1, single buffered']
    #allocation8 [shape = 's32[1]{0}', space=sflag, size = 0x4, scoped, tag = 'scoped memory for tpu_custom_call.1']
    #allocation9 [shape = 'u8[131072]{0}', space=vmem, size = 0x20000, scoped, tag = 'input window, operand 2, single buffered']
    #allocation10 [shape = 'u8[131072]{0}', space=vmem, size = 0x20000, scoped, tag = 'input window, operand 3, single buffered']
    #allocation11 [shape = 's32[1]{0}', space=sflag, size = 0x4, scoped, tag = 'scoped memory for tpu_custom_call.1']
    #allocation12 [shape = 'u8[16384]{0}', space=vmem, size = 0x4000, scoped, tag = 'output window, operand 0, single buffered']
    %10 = vsyncpa [#allocation5], 0
    %11 = vsyncpa [#allocation8], 0
    %12 = vsyncpa [#allocation11], 0
    %13 = vsyncpa [#allocation6], 0
    // Predicated region
    $region2: #{tpu_custom_call.1} parent=1 // pred_check
      _
    $region3: #{tpu_custom_call.1} parent=1 // pred_check_branch
      %15 = sbr.rel (0) target = $region5
    $region4: #{tpu_custom_call.1} parent=1 // pred_region
      %s17 = ssub.s32 2048, 2048
      %18 = vsyncadd [#allocation5], %s17
      %s19 = sshll.u32 [#allocation4], 4
      %s20 = int_to_ptr.vmem [resolvable:$true] %s19
      %25 = dma.hbm_to_vmem [thread:$0]  %s0, 2048, %s20, [#allocation5], 512, 512, 32
    $region5: #{tpu_custom_call.1} parent=1 // pred_fallthru
      _
    // Predicated region
    $region6: #{tpu_custom_call.1} parent=1 // pred_check
      _
    $region7: #{tpu_custom_call.1} parent=1 // pred_check_branch
      %27 = sbr.rel (0) target = $region9
    $region8: #{tpu_custom_call.1} parent=1 // pred_region
      %s29 = ssub.s32 4096, 4096
      %30 = vsyncadd [#allocation8], %s29
      %s31 = sshll.u32 [#allocation7], 4
      %s32 = int_to_ptr.vmem [resolvable:$true] %s31
      %37 = dma.hbm_to_vmem [thread:$0]  %s1, 4096, %s32, [#allocation8], 256, 256, 16
    $region9: #{tpu_custom_call.1} parent=1 // pred_fallthru
      _
    // Predicated region
    $region10: #{tpu_custom_call.1} parent=1 // pred_check
      _
    $region11: #{tpu_custom_call.1} parent=1 // pred_check_branch
      %39 = sbr.rel (0) target = $region13
    $region12: #{tpu_custom_call.1} parent=1 // pred_region
      %s41 = ssub.s32 4096, 4096
      %42 = vsyncadd [#allocation8], %s41
      %s43 = sshll.u32 [#allocation9], 4
      %s44 = int_to_ptr.vmem [resolvable:$true] %s43
      %49 = dma.hbm_to_vmem [thread:$0]  %s2, 4096, %s44, [#allocation8], 256, 256, 16
    $region13: #{tpu_custom_call.1} parent=1 // pred_fallthru
      _
    // Predicated region
    $region14: #{tpu_custom_call.1} parent=1 // pred_check
      _
    $region15: #{tpu_custom_call.1} parent=1 // pred_check_branch
      %51 = sbr.rel (0) target = $region17
    $region16: #{tpu_custom_call.1} parent=1 // pred_region
      %s53 = ssub.s32 4096, 4096
      %54 = vsyncadd [#allocation11], %s53
      %s55 = sshll.u32 [#allocation10], 4
      %s56 = int_to_ptr.vmem [resolvable:$true] %s55
      %61 = dma.hbm_to_vmem [thread:$0]  %s3, 4096, %s56, [#allocation11], 256, 256, 16
    $region17: #{tpu_custom_call.1} parent=1 // pred_fallthru
      _
    // Predicated region
    $region18: #{tpu_custom_call.1} parent=1 // pred_check
      _
    $region19: #{tpu_custom_call.1} parent=1 // pred_check_branch
      %63 = sbr.rel (0) target = $region21
    $region20: #{tpu_custom_call.1} parent=1 // pred_region
      _
    $region21: #{tpu_custom_call.1} parent=1 // pred_fallthru
      _
    // Predicated region
    $region22: #{tpu_custom_call.1} parent=1 // pred_check
      _
    $region23: #{tpu_custom_call.1} parent=1 // pred_check_branch
      %65 = sbr.rel (0) target = $region25
    $region24: #{tpu_custom_call.1} parent=1 // pred_region
      %66 = dma.done [#allocation5], 2048
    $region25: #{tpu_custom_call.1} parent=1 // pred_fallthru
      _
    // Predicated region
    $region26: #{tpu_custom_call.1} parent=1 // pred_check
      _
    $region27: #{tpu_custom_call.1} parent=1 // pred_check_branch
      %68 = sbr.rel (0) target = $region29
    $region28: #{tpu_custom_call.1} parent=1 // pred_region
      %69 = dma.done [#allocation8], 4096
    $region29: #{tpu_custom_call.1} parent=1 // pred_fallthru
      _
    // Predicated region
    $region30: #{tpu_custom_call.1} parent=1 // pred_check
      _
    $region31: #{tpu_custom_call.1} parent=1 // pred_check_branch
      %71 = sbr.rel (0) target = $region33
    $region32: #{tpu_custom_call.1} parent=1 // pred_region
      %72 = dma.done [#allocation8], 4096
    $region33: #{tpu_custom_call.1} parent=1 // pred_fallthru
      _
    // Predicated region
    $region34: #{tpu_custom_call.1} parent=1 // pred_check
      _
    $region35: #{tpu_custom_call.1} parent=1 // pred_check_branch
      %74 = sbr.rel (0) target = $region37
    $region36: #{tpu_custom_call.1} parent=1 // pred_region
      %75 = dma.done [#allocation11], 4096
    $region37: #{tpu_custom_call.1} parent=1 // pred_fallthru
      _
    %p77 = scmp.eq.s32.totalorder 0, 0
    // Predicated region
    $region38: #{tpu_custom_call.1} parent=1 // pred_check
      %p78 = pneg %p77
    $region39: #{tpu_custom_call.1} parent=1 // pred_check_branch
      %80 = sbr.rel (%p78) target = $region41
    $region40: #{tpu_custom_call.1} parent=1 // pred_region
      %81 = vst [vmem:[#allocation2] sm:$0xf] 0.0
    $region41: #{tpu_custom_call.1} parent=1 // pred_fallthru
      _
    %v82 = vld [vmem:[%s4] sm:$0xf]
    %v83 = vld [vmem:[#allocation2] sm:$0x1]
    %v84 = vld [vmem:[#allocation2 + $0x1] sm:$0x1]
    %v85 = vld [vmem:[#allocation2 + $0x2] sm:$0x1]
    %v86 = vld [vmem:[#allocation2 + $0x3] sm:$0x1]
    loop: start=0, step=1, limit=4
    $region42: #{tpu_custom_call.1} parent=1 // loop_pre_header
      _
    $region43: #{tpu_custom_call.1} parent=1 // loop_header
      %s88 = sphi 0, %s92
      %p89 = scmp.ge.s32.totalorder %s88, 4
      %v93 = vphi %v83, %v7087
      %v94 = vphi %v84, %v7083
      %v95 = vphi %v85, %v7386
      %v96 = vphi %v86, %v7384
    $region44: #{tpu_custom_call.1} parent=1 // loop_header_branch
      %91 = sbr.rel (%p89) target = $region48
    $region45: #{tpu_custom_call.1} parent=1 // loop_body
      %s97 = smul.u32 %s88, 8
      %v98 = vpack.c.bf16 %v95, %v95
      %v99 = vld [vmem:[#allocation10] sm:$0xff]
      %v100 = vld [vmem:[#allocation10 + $0x8] sm:$0xff]
      %v101 = vld [vmem:[#allocation10 + $0x10] sm:$0xff]
      %v102 = vld [vmem:[#allocation10 + $0x18] sm:$0xff]
      %v103 = vld [vmem:[#allocation10 + $0x20] sm:$0xff]
      %v104 = vld [vmem:[#allocation10 + $0x28] sm:$0xff]
      %v105 = vld [vmem:[#allocation10 + $0x30] sm:$0xff]
      %v106 = vld [vmem:[#allocation10 + $0x38] sm:$0xff]
      %v107 = vld [vmem:[#allocation10 + $0x40] sm:$0xff]
      %v108 = vld [vmem:[#allocation10 + $0x48] sm:$0xff]
      %v109 = vld [vmem:[#allocation10 + $0x50] sm:$0xff]
      %v110 = vld [vmem:[#allocation10 + $0x58] sm:$0xff]
      %v111 = vld [vmem:[#allocation10 + $0x60] sm:$0xff]
      %v112 = vld [vmem:[#allocation10 + $0x68] sm:$0xff]
      %v113 = vld [vmem:[#allocation10 + $0x70] sm:$0xff]
      %v114 = vld [vmem:[#allocation10 + $0x78] sm:$0xff]
      %v115 = vld [vmem:[#allocation10 + $0x80] sm:$0xff]
      %v116 = vld [vmem:[#allocation10 + $0x88] sm:$0xff]
      %v117 = vld [vmem:[#allocation10 + $0x90] sm:$0xff]
      %v118 = vld [vmem:[#allocation10 + $0x98] sm:$0xff]
      %v119 = vld [vmem:[#allocation10 + $0xa0] sm:$0xff]
      %v120 = vld [vmem:[#allocation10 + $0xa8] sm:$0xff]
      %v121 = vld [vmem:[#allocation10 + $0xb0] sm:$0xff]
      %v122 = vld [vmem:[#allocation10 + $0xb8] sm:$0xff]
      %v123 = vld [vmem:[#allocation10 + $0xc0] sm:$0xff]
      %v124 = vld [vmem:[#allocation10 + $0xc8] sm:$0xff]
      %v125 = vld [vmem:[#allocation10 + $0xd0] sm:$0xff]
      %v126 = vld [vmem:[#allocation10 + $0xd8] sm:$0xff]
      %v127 = vld [vmem:[#allocation10 + $0xe0] sm:$0xff]
      %v128 = vld [vmem:[#allocation10 + $0xe8] sm:$0xff]
      %v129 = vld [vmem:[#allocation10 + $0xf0] sm:$0xff]
      %v130 = vld [vmem:[#allocation10 + $0xf8] sm:$0xff]
      %v163 = vunpack.c.l.b16 %v99
      %v164 = vunpack.c.h.b16 %v99
      %v165 = vunpack.c.l.b16 %v100
      %v166 = vunpack.c.h.b16 %v100
      %v167 = vunpack.c.l.b16 %v101
      %v168 = vunpack.c.h.b16 %v101
      %v169 = vunpack.c.l.b16 %v102
      %v170 = vunpack.c.h.b16 %v102
      %v171 = vunpack.c.l.b16 %v103
      %v172 = vunpack.c.h.b16 %v103
      %v173 = vunpack.c.l.b16 %v104
      %v174 = vunpack.c.h.b16 %v104
      %v175 = vunpack.c.l.b16 %v105
      %v176 = vunpack.c.h.b16 %v105
      %v177 = vunpack.c.l.b16 %v106
      %v178 = vunpack.c.h.b16 %v106
      %v179 = vunpack.c.l.b16 %v107
      %v180 = vunpack.c.h.b16 %v107
      %v181 = vunpack.c.l.b16 %v108
      %v182 = vunpack.c.h.b16 %v108
      %v183 = vunpack.c.l.b16 %v109
      %v184 = vunpack.c.h.b16 %v109
      %v185 = vunpack.c.l.b16 %v110
      %v186 = vunpack.c.h.b16 %v110
      %v187 = vunpack.c.l.b16 %v111
      %v188 = vunpack.c.h.b16 %v111
      %v189 = vunpack.c.l.b16 %v112
      %v190 = vunpack.c.h.b16 %v112
      %v191 = vunpack.c.l.b16 %v113
      %v192 = vunpack.c.h.b16 %v113
      %v193 = vunpack.c.l.b16 %v114
      %v194 = vunpack.c.h.b16 %v114
      %v195 = vunpack.c.l.b16 %v115
      %v196 = vunpack.c.h.b16 %v115
      %v197 = vunpack.c.l.b16 %v116
      %v198 = vunpack.c.h.b16 %v116
      %v199 = vunpack.c.l.b16 %v117
      %v200 = vunpack.c.h.b16 %v117
      %v201 = vunpack.c.l.b16 %v118
      %v202 = vunpack.c.h.b16 %v118
      %v203 = vunpack.c.l.b16 %v119
      %v204 = vunpack.c.h.b16 %v119
      %v205 = vunpack.c.l.b16 %v120
      %v206 = vunpack.c.h.b16 %v120
      %v207 = vunpack.c.l.b16 %v121
      %v208 = vunpack.c.h.b16 %v121
      %v209 = vunpack.c.l.b16 %v122
      %v210 = vunpack.c.h.b16 %v122
      %v211 = vunpack.c.l.b16 %v123
      %v212 = vunpack.c.h.b16 %v123
      %v213 = vunpack.c.l.b16 %v124
      %v214 = vunpack.c.h.b16 %v124
      %v215 = vunpack.c.l.b16 %v125
      %v216 = vunpack.c.h.b16 %v125
      %v217 = vunpack.c.l.b16 %v126
      %v218 = vunpack.c.h.b16 %v126
      %v219 = vunpack.c.l.b16 %v127
      %v220 = vunpack.c.h.b16 %v127
      %v221 = vunpack.c.l.b16 %v128
      %v222 = vunpack.c.h.b16 %v128
      %v223 = vunpack.c.l.b16 %v129
      %v224 = vunpack.c.h.b16 %v129
      %v225 = vunpack.c.l.b16 %v130
      %v226 = vunpack.c.h.b16 %v130
      %v227 = vpack.c.b16 %v167, %v163
      %v228 = vpack.c.b16 %v168, %v164
      %v229 = vpack.c.b16 %v169, %v165
      %v230 = vpack.c.b16 %v170, %v166
      %v231 = vpack.c.b16 %v175, %v171
      %v232 = vpack.c.b16 %v176, %v172
      %v233 = vpack.c.b16 %v177, %v173
      %v234 = vpack.c.b16 %v178, %v174
      %v235 = vpack.c.b16 %v183, %v179
      %v236 = vpack.c.b16 %v184, %v180
      %v237 = vpack.c.b16 %v185, %v181
      %v238 = vpack.c.b16 %v186, %v182
      %v239 = vpack.c.b16 %v191, %v187
      %v240 = vpack.c.b16 %v192, %v188
      %v241 = vpack.c.b16 %v193, %v189
      %v242 = vpack.c.b16 %v194, %v190
      %v243 = vpack.c.b16 %v199, %v195
      %v244 = vpack.c.b16 %v200, %v196
      %v245 = vpack.c.b16 %v201, %v197
      %v246 = vpack.c.b16 %v202, %v198
      %v247 = vpack.c.b16 %v207, %v203
      %v248 = vpack.c.b16 %v208, %v204
      %v249 = vpack.c.b16 %v209, %v205
      %v250 = vpack.c.b16 %v210, %v206
      %v251 = vpack.c.b16 %v215, %v211
      %v252 = vpack.c.b16 %v216, %v212
      %v253 = vpack.c.b16 %v217, %v213
      %v254 = vpack.c.b16 %v218, %v214
      %v255 = vpack.c.b16 %v223, %v219
      %v256 = vpack.c.b16 %v224, %v220
      %v257 = vpack.c.b16 %v225, %v221
      %v258 = vpack.c.b16 %v226, %v222
      %v292 = vlaneseq
      %v293 = vshrl.u32 %v292, 7
      %v294 = vsub.s32 0, %v293
      %v295 = vrot.slane %v82, %v294
      %v296 = vlaneseq
      %v297 = vshrl.u32 %v296, 7
      %v298 = vsub.s32 1, %v297
      %v299 = vrot.slane %v82, %v298
      %v300 = vlaneseq
      %v301 = vshrl.u32 %v300, 7
      %v302 = vsub.s32 2, %v301
      %v303 = vrot.slane %v82, %v302
      %v304 = vlaneseq
      %v305 = vshrl.u32 %v304, 7
      %v306 = vsub.s32 3, %v305
      %v307 = vrot.slane %v82, %v306
      %312 = vmatprep.subr.bf16.mxu0 %v228
      %313 = vmatpush1.bf16.msra.mxu0 %v227
      %314 = vmatprep.subr.bf16.mxu0 %v232
      %315 = vmatpush1.bf16.msra.mxu0 %v231
      %316 = vmatprep.subr.bf16.mxu0 %v236
      %317 = vmatpush1.bf16.msra.mxu0 %v235
      %318 = vmatprep.subr.bf16.mxu0 %v240
      %319 = vmatpush1.bf16.msra.mxu0 %v239
      %320 = vmatprep.subr.bf16.mxu0 %v244
      %321 = vmatpush1.bf16.msra.mxu0 %v243
      %322 = vmatprep.subr.bf16.mxu0 %v248
      %323 = vmatpush1.bf16.msra.mxu0 %v247
      %324 = vmatprep.subr.bf16.mxu0 %v252
      %325 = vmatpush1.bf16.msra.mxu0 %v251
      %326 = vmatprep.subr.bf16.mxu0 %v256
      %327 = vmatpush1.bf16.msra.mxu0 %v255
      %328 = vmatprep.subr.bf16.mxu0 0
      %329 = vmatpush1.bf16.msra.mxu0 0
      %330 = vmatprep.subr.bf16.mxu0 0
      %331 = vmatpush1.bf16.msra.mxu0 0
      %332 = vmatprep.subr.bf16.mxu0 0
      %333 = vmatpush1.bf16.msra.mxu0 0
      %334 = vmatprep.subr.bf16.mxu0 0
      %335 = vmatpush1.bf16.msra.mxu0 0
      %336 = vmatprep.subr.bf16.mxu0 0
      %337 = vmatpush1.bf16.msra.mxu0 0
      %338 = vmatprep.subr.bf16.mxu0 0
      %339 = vmatpush1.bf16.msra.mxu0 0
      %340 = vmatprep.subr.bf16.mxu0 0
      %341 = vmatpush1.bf16.msra.mxu0 0
      %342 = vmatprep.subr.bf16.mxu0 0
      %343 = vmatpush1.bf16.msra.mxu0 0
      %344 = vmatprep.mubr.bf16.mxu0 0
      %345 = vmatmul.mubr.bf16.gmra.mrb[0].mxu0 %v98
      %v346 = vpop.f32.mrb[0].mxu0
      %v347 = vadd.f32 %v295, %v346
      %v348 = vpop.f32.mrb[0].mxu0
      %v349 = vadd.f32 %v299, %v348
      %v350 = vpop.f32.mrb[0].mxu0
      %v351 = vpop.f32.mrb[0].mxu0
      %352 = vdwg.mxu0
      %353 = vmatprep.subr.bf16.mxu0 %v230
      %354 = vmatpush1.bf16.msra.mxu0 %v229
      %355 = vmatprep.subr.bf16.mxu0 %v234
      %356 = vmatpush1.bf16.msra.mxu0 %v233
      %357 = vmatprep.subr.bf16.mxu0 %v238
      %358 = vmatpush1.bf16.msra.mxu0 %v237
      %359 = vmatprep.subr.bf16.mxu0 %v242
      %360 = vmatpush1.bf16.msra.mxu0 %v241
      %361 = vmatprep.subr.bf16.mxu0 %v246
      %362 = vmatpush1.bf16.msra.mxu0 %v245
      %363 = vmatprep.subr.bf16.mxu0 %v250
      %364 = vmatpush1.bf16.msra.mxu0 %v249
      %365 = vmatprep.subr.bf16.mxu0 %v254
      %366 = vmatpush1.bf16.msra.mxu0 %v253
      %367 = vmatprep.subr.bf16.mxu0 %v258
      %368 = vmatpush1.bf16.msra.mxu0 %v257
      %369 = vmatprep.subr.bf16.mxu0 0
      %370 = vmatpush1.bf16.msra.mxu0 0
      %371 = vmatprep.subr.bf16.mxu0 0
      %372 = vmatpush1.bf16.msra.mxu0 0
      %373 = vmatprep.subr.bf16.mxu0 0
      %374 = vmatpush1.bf16.msra.mxu0 0
      %375 = vmatprep.subr.bf16.mxu0 0
      %376 = vmatpush1.bf16.msra.mxu0 0
      %377 = vmatprep.subr.bf16.mxu0 0
      %378 = vmatpush1.bf16.msra.mxu0 0
      %379 = vmatprep.subr.bf16.mxu0 0
      %380 = vmatpush1.bf16.msra.mxu0 0
      %381 = vmatprep.subr.bf16.mxu0 0
      %382 = vmatpush1.bf16.msra.mxu0 0
      %383 = vmatprep.subr.bf16.mxu0 0
      %384 = vmatpush1.bf16.msra.mxu0 0
      %385 = vmatprep.mubr.bf16.mxu0 0
      %386 = vmatmul.mubr.bf16.gmra.mrb[0].mxu0 %v98
      %v387 = vpop.f32.mrb[0].mxu0
      %v388 = vadd.f32 %v303, %v387
      %v389 = vpop.f32.mrb[0].mxu0
      %v390 = vadd.f32 %v307, %v389
      %v391 = vpop.f32.mrb[0].mxu0
      %v392 = vpop.f32.mrb[0].mxu0
      %393 = vdwg.mxu0
      %s394 = sshra.s32 %s97, 3
      %s395 = sand.u32 %s97, 7
      %s396 = smul.u32 %s394, 4
      %s397 = smul.addr %s396, 8
      %s398 = scalar_lea.vmem [#allocation4], %s397
      %v399 = vld [vmem:[%s398] ss:$8 sm:$0xf]
      %v400 = vpack.c.bf16 %v93, %v93
      %v401 = vld [vmem:[#allocation7] sm:$0xff]
      %v402 = vld [vmem:[#allocation7 + $0x8] sm:$0xff]
      %v403 = vld [vmem:[#allocation7 + $0x10] sm:$0xff]
      %v404 = vld [vmem:[#allocation7 + $0x18] sm:$0xff]
      %v405 = vld [vmem:[#allocation7 + $0x20] sm:$0xff]
      %v406 = vld [vmem:[#allocation7 + $0x28] sm:$0xff]
      %v407 = vld [vmem:[#allocation7 + $0x30] sm:$0xff]
      %v408 = vld [vmem:[#allocation7 + $0x38] sm:$0xff]
      %v409 = vld [vmem:[#allocation7 + $0x40] sm:$0xff]
      %v410 = vld [vmem:[#allocation7 + $0x48] sm:$0xff]
      %v411 = vld [vmem:[#allocation7 + $0x50] sm:$0xff]
      %v412 = vld [vmem:[#allocation7 + $0x58] sm:$0xff]
      %v413 = vld [vmem:[#allocation7 + $0x60] sm:$0xff]
      %v414 = vld [vmem:[#allocation7 + $0x68] sm:$0xff]
      %v415 = vld [vmem:[#allocation7 + $0x70] sm:$0xff]
      %v416 = vld [vmem:[#allocation7 + $0x78] sm:$0xff]
      %v417 = vld [vmem:[#allocation7 + $0x80] sm:$0xff]
      %v418 = vld [vmem:[#allocation7 + $0x88] sm:$0xff]
      %v419 = vld [vmem:[#allocation7 + $0x90] sm:$0xff]
      %v420 = vld [vmem:[#allocation7 + $0x98] sm:$0xff]
      %v421 = vld [vmem:[#allocation7 + $0xa0] sm:$0xff]
      %v422 = vld [vmem:[#allocation7 + $0xa8] sm:$0xff]
      %v423 = vld [vmem:[#allocation7 + $0xb0] sm:$0xff]
      %v424 = vld [vmem:[#allocation7 + $0xb8] sm:$0xff]
      %v425 = vld [vmem:[#allocation7 + $0xc0] sm:$0xff]
      %v426 = vld [vmem:[#allocation7 + $0xc8] sm:$0xff]
      %v427 = vld [vmem:[#allocation7 + $0xd0] sm:$0xff]
      %v428 = vld [vmem:[#allocation7 + $0xd8] sm:$0xff]
      %v429 = vld [vmem:[#allocation7 + $0xe0] sm:$0xff]
      %v430 = vld [vmem:[#allocation7 + $0xe8] sm:$0xff]
      %v431 = vld [vmem:[#allocation7 + $0xf0] sm:$0xff]
      %v432 = vld [vmem:[#allocation7 + $0xf8] sm:$0xff]
      %v465 = vunpack.c.l.b16 %v401
      %v466 = vunpack.c.h.b16 %v401
      %v467 = vunpack.c.l.b16 %v402
      %v468 = vunpack.c.h.b16 %v402
      %v469 = vunpack.c.l.b16 %v403
      %v470 = vunpack.c.h.b16 %v403
      %v471 = vunpack.c.l.b16 %v404
      %v472 = vunpack.c.h.b16 %v404
      %v473 = vunpack.c.l.b16 %v405
      %v474 = vunpack.c.h.b16 %v405
      %v475 = vunpack.c.l.b16 %v406
      %v476 = vunpack.c.h.b16 %v406
      %v477 = vunpack.c.l.b16 %v407
      %v478 = vunpack.c.h.b16 %v407
      %v479 = vunpack.c.l.b16 %v408
      %v480 = vunpack.c.h.b16 %v408
      %v481 = vunpack.c.l.b16 %v409
      %v482 = vunpack.c.h.b16 %v409
      %v483 = vunpack.c.l.b16 %v410
      %v484 = vunpack.c.h.b16 %v410
      %v485 = vunpack.c.l.b16 %v411
      %v486 = vunpack.c.h.b16 %v411
      %v487 = vunpack.c.l.b16 %v412
      %v488 = vunpack.c.h.b16 %v412
      %v489 = vunpack.c.l.b16 %v413
      %v490 = vunpack.c.h.b16 %v413
      %v491 = vunpack.c.l.b16 %v414
      %v492 = vunpack.c.h.b16 %v414
      %v493 = vunpack.c.l.b16 %v415
      %v494 = vunpack.c.h.b16 %v415
      %v495 = vunpack.c.l.b16 %v416
      %v496 = vunpack.c.h.b16 %v416
      %v497 = vunpack.c.l.b16 %v417
      %v498 = vunpack.c.h.b16 %v417
      %v499 = vunpack.c.l.b16 %v418
      %v500 = vunpack.c.h.b16 %v418
      %v501 = vunpack.c.l.b16 %v419
      %v502 = vunpack.c.h.b16 %v419
      %v503 = vunpack.c.l.b16 %v420
      %v504 = vunpack.c.h.b16 %v420
      %v505 = vunpack.c.l.b16 %v421
      %v506 = vunpack.c.h.b16 %v421
      %v507 = vunpack.c.l.b16 %v422
      %v508 = vunpack.c.h.b16 %v422
      %v509 = vunpack.c.l.b16 %v423
      %v510 = vunpack.c.h.b16 %v423
      %v511 = vunpack.c.l.b16 %v424
      %v512 = vunpack.c.h.b16 %v424
      %v513 = vunpack.c.l.b16 %v425
      %v514 = vunpack.c.h.b16 %v425
      %v515 = vunpack.c.l.b16 %v426
      %v516 = vunpack.c.h.b16 %v426
      %v517 = vunpack.c.l.b16 %v427
      %v518 = vunpack.c.h.b16 %v427
      %v519 = vunpack.c.l.b16 %v428
      %v520 = vunpack.c.h.b16 %v428
      %v521 = vunpack.c.l.b16 %v429
      %v522 = vunpack.c.h.b16 %v429
      %v523 = vunpack.c.l.b16 %v430
      %v524 = vunpack.c.h.b16 %v430
      %v525 = vunpack.c.l.b16 %v431
      %v526 = vunpack.c.h.b16 %v431
      %v527 = vunpack.c.l.b16 %v432
      %v528 = vunpack.c.h.b16 %v432
      %v529 = vpack.c.b16 %v469, %v465
      %v530 = vpack.c.b16 %v470, %v466
      %v531 = vpack.c.b16 %v471, %v467
      %v532 = vpack.c.b16 %v472, %v468
      %v533 = vpack.c.b16 %v477, %v473
      %v534 = vpack.c.b16 %v478, %v474
      %v535 = vpack.c.b16 %v479, %v475
      %v536 = vpack.c.b16 %v480, %v476
      %v537 = vpack.c.b16 %v485, %v481
      %v538 = vpack.c.b16 %v486, %v482
      %v539 = vpack.c.b16 %v487, %v483
      %v540 = vpack.c.b16 %v488, %v484
      %v541 = vpack.c.b16 %v493, %v489
      %v542 = vpack.c.b16 %v494, %v490
      %v543 = vpack.c.b16 %v495, %v491
      %v544 = vpack.c.b16 %v496, %v492
      %v545 = vpack.c.b16 %v501, %v497
      %v546 = vpack.c.b16 %v502, %v498
      %v547 = vpack.c.b16 %v503, %v499
      %v548 = vpack.c.b16 %v504, %v500
      %v549 = vpack.c.b16 %v509, %v505
      %v550 = vpack.c.b16 %v510, %v506
      %v551 = vpack.c.b16 %v511, %v507
      %v552 = vpack.c.b16 %v512, %v508
      %v553 = vpack.c.b16 %v517, %v513
      %v554 = vpack.c.b16 %v518, %v514
      %v555 = vpack.c.b16 %v519, %v515
      %v556 = vpack.c.b16 %v520, %v516
      %v557 = vpack.c.b16 %v525, %v521
      %v558 = vpack.c.b16 %v526, %v522
      %v559 = vpack.c.b16 %v527, %v523
      %v560 = vpack.c.b16 %v528, %v524
      %593 = vmatprep.subr.bf16.mxu0 %v530
      %594 = vmatpush1.bf16.msra.mxu0 %v529
      %595 = vmatprep.subr.bf16.mxu0 %v534
      %596 = vmatpush1.bf16.msra.mxu0 %v533
      %597 = vmatprep.subr.bf16.mxu0 %v538
      %598 = vmatpush1.bf16.msra.mxu0 %v537
      %599 = vmatprep.subr.bf16.mxu0 %v542
      %600 = vmatpush1.bf16.msra.mxu0 %v541
      %601 = vmatprep.subr.bf16.mxu0 %v546
      %602 = vmatpush1.bf16.msra.mxu0 %v545
      %603 = vmatprep.subr.bf16.mxu0 %v550
      %604 = vmatpush1.bf16.msra.mxu0 %v549
      %605 = vmatprep.subr.bf16.mxu0 %v554
      %606 = vmatpush1.bf16.msra.mxu0 %v553
      %607 = vmatprep.subr.bf16.mxu0 %v558
      %608 = vmatpush1.bf16.msra.mxu0 %v557
      %609 = vmatprep.subr.bf16.mxu0 0
      %610 = vmatpush1.bf16.msra.mxu0 0
      %611 = vmatprep.subr.bf16.mxu0 0
      %612 = vmatpush1.bf16.msra.mxu0 0
      %613 = vmatprep.subr.bf16.mxu0 0
      %614 = vmatpush1.bf16.msra.mxu0 0
      %615 = vmatprep.subr.bf16.mxu0 0
      %616 = vmatpush1.bf16.msra.mxu0 0
      %617 = vmatprep.subr.bf16.mxu0 0
      %618 = vmatpush1.bf16.msra.mxu0 0
      %619 = vmatprep.subr.bf16.mxu0 0
      %620 = vmatpush1.bf16.msra.mxu0 0
      %621 = vmatprep.subr.bf16.mxu0 0
      %622 = vmatpush1.bf16.msra.mxu0 0
      %623 = vmatprep.subr.bf16.mxu0 0
      %624 = vmatpush1.bf16.msra.mxu0 0
      %625 = vmatprep.mubr.bf16.mxu0 0
      %626 = vmatmul.mubr.bf16.gmra.mrb[0].mxu0 %v400
      %v627 = vpop.f32.mrb[0].mxu0
      %v628 = vadd.f32 0.0, %v627
      %v629 = vpop.f32.mrb[0].mxu0
      %v630 = vadd.f32 0.0, %v629
      %v631 = vpop.f32.mrb[0].mxu0
      %v632 = vpop.f32.mrb[0].mxu0
      %633 = vdwg.mxu0
      %634 = vmatprep.subr.bf16.mxu0 %v532
      %635 = vmatpush1.bf16.msra.mxu0 %v531
      %636 = vmatprep.subr.bf16.mxu0 %v536
      %637 = vmatpush1.bf16.msra.mxu0 %v535
      %638 = vmatprep.subr.bf16.mxu0 %v540
      %639 = vmatpush1.bf16.msra.mxu0 %v539
      %640 = vmatprep.subr.bf16.mxu0 %v544
      %641 = vmatpush1.bf16.msra.mxu0 %v543
      %642 = vmatprep.subr.bf16.mxu0 %v548
      %643 = vmatpush1.bf16.msra.mxu0 %v547
      %644 = vmatprep.subr.bf16.mxu0 %v552
      %645 = vmatpush1.bf16.msra.mxu0 %v551
      %646 = vmatprep.subr.bf16.mxu0 %v556
      %647 = vmatpush1.bf16.msra.mxu0 %v555
      %648 = vmatprep.subr.bf16.mxu0 %v560
      %649 = vmatpush1.bf16.msra.mxu0 %v559
      %650 = vmatprep.subr.bf16.mxu0 0
      %651 = vmatpush1.bf16.msra.mxu0 0
      %652 = vmatprep.subr.bf16.mxu0 0
      %653 = vmatpush1.bf16.msra.mxu0 0
      %654 = vmatprep.subr.bf16.mxu0 0
      %655 = vmatpush1.bf16.msra.mxu0 0
      %656 = vmatprep.subr.bf16.mxu0 0
      %657 = vmatpush1.bf16.msra.mxu0 0
      %658 = vmatprep.subr.bf16.mxu0 0
      %659 = vmatpush1.bf16.msra.mxu0 0
      %660 = vmatprep.subr.bf16.mxu0 0
      %661 = vmatpush1.bf16.msra.mxu0 0
      %662 = vmatprep.subr.bf16.mxu0 0
      %663 = vmatpush1.bf16.msra.mxu0 0
      %664 = vmatprep.subr.bf16.mxu0 0
      %665 = vmatpush1.bf16.msra.mxu0 0
      %666 = vmatprep.mubr.bf16.mxu0 0
      %667 = vmatmul.mubr.bf16.gmra.mrb[0].mxu0 %v400
      %v668 = vpop.f32.mrb[0].mxu0
      %v669 = vadd.f32 0.0, %v668
      %v670 = vpop.f32.mrb[0].mxu0
      %v671 = vadd.f32 0.0, %v670
      %v672 = vpop.f32.mrb[0].mxu0
      %v673 = vpop.f32.mrb[0].mxu0
      %674 = vdwg.mxu0
      %v679 = vcombine.low %v628, %v630
      %v680 = vcombine.low %v669, %v671
      %v682 = vunpack.c.l.s4 1966171168
      %v683 = vunpack.c.0.s8 %v682
      %v684 = vlaneseq
      %v685 = vshrl.u32 %v684, 7
      %v686 = vsub.s32 %v683, %v685
      %v687 = vrot.slane %v679, %v686
      %v689 = vunpack.c.l.s4 1966171168
      %v690 = vunpack.c.0.s8 %v689
      %v691 = vlaneseq
      %v692 = vshrl.u32 %v691, 7
      %v693 = vsub.s32 %v690, %v692
      %v694 = vrot.slane %v680, %v693
      %v695 = vcombine.low %v687, %v694
      %v697 = vunpack.c.l.s4 1966171168
      %v698 = vunpack.c.0.s8 %v697
      %v699 = vlaneseq
      %v700 = vshrl.u32 %v699, 7
      %v701 = vsub.s32 %v698, %v700
      %v702 = vrot.slane %v695, %v701
      %v704 = vadd.f32 %v399, %v702
      %v705 = vxor.u32 %v704, 2147483648
      %v706 = vmul.f32 %v705, 1.442695
      %v707 = vpow.pop %v706
      %v708 = vadd.f32 %v707, 1.0
      %v709 = vrcp.pop %v708
      %v710 = vmul.f32 1.0, %v709
      %v712 = vrot.slane %v704, 3
      %v714 = vtanh.pop %v712
      %v716 = vrot.slane %v710, 1
      %v718 = vmul.f32 %v716, %v94
      %v719 = vmul.f32 %v710, %v714
      %v720 = vadd.f32 %v718, %v719
      %v721 = vtanh.pop %v720
      %v722 = vrot.slane %v710, 2
      %v724 = vmul.f32 %v722, %v721
      %v725 = vpack.c.bf16 %v724, %v724
      %v726 = vld [vmem:[#allocation9] sm:$0xff]
      %v727 = vld [vmem:[#allocation9 + $0x8] sm:$0xff]
      %v728 = vld [vmem:[#allocation9 + $0x10] sm:$0xff]
      %v729 = vld [vmem:[#allocation9 + $0x18] sm:$0xff]
      %v730 = vld [vmem:[#allocation9 + $0x20] sm:$0xff]
      %v731 = vld [vmem:[#allocation9 + $0x28] sm:$0xff]
      %v732 = vld [vmem:[#allocation9 + $0x30] sm:$0xff]
      %v733 = vld [vmem:[#allocation9 + $0x38] sm:$0xff]
      %v734 = vld [vmem:[#allocation9 + $0x40] sm:$0xff]
      %v735 = vld [vmem:[#allocation9 + $0x48] sm:$0xff]
      %v736 = vld [vmem:[#allocation9 + $0x50] sm:$0xff]
      %v737 = vld [vmem:[#allocation9 + $0x58] sm:$0xff]
      %v738 = vld [vmem:[#allocation9 + $0x60] sm:$0xff]
      %v739 = vld [vmem:[#allocation9 + $0x68] sm:$0xff]
      %v740 = vld [vmem:[#allocation9 + $0x70] sm:$0xff]
      %v741 = vld [vmem:[#allocation9 + $0x78] sm:$0xff]
      %v742 = vld [vmem:[#allocation9 + $0x80] sm:$0xff]
      %v743 = vld [vmem:[#allocation9 + $0x88] sm:$0xff]
      %v744 = vld [vmem:[#allocation9 + $0x90] sm:$0xff]
      %v745 = vld [vmem:[#allocation9 + $0x98] sm:$0xff]
      %v746 = vld [vmem:[#allocation9 + $0xa0] sm:$0xff]
      %v747 = vld [vmem:[#allocation9 + $0xa8] sm:$0xff]
      %v748 = vld [vmem:[#allocation9 + $0xb0] sm:$0xff]
      %v749 = vld [vmem:[#allocation9 + $0xb8] sm:$0xff]
      %v750 = vld [vmem:[#allocation9 + $0xc0] sm:$0xff]
      %v751 = vld [vmem:[#allocation9 + $0xc8] sm:$0xff]
      %v752 = vld [vmem:[#allocation9 + $0xd0] sm:$0xff]
      %v753 = vld [vmem:[#allocation9 + $0xd8] sm:$0xff]
      %v754 = vld [vmem:[#allocation9 + $0xe0] sm:$0xff]
      %v755 = vld [vmem:[#allocation9 + $0xe8] sm:$0xff]
      %v756 = vld [vmem:[#allocation9 + $0xf0] sm:$0xff]
      %v757 = vld [vmem:[#allocation9 + $0xf8] sm:$0xff]
      %v790 = vunpack.c.l.b16 %v726
      %v791 = vunpack.c.h.b16 %v726
      %v792 = vunpack.c.l.b16 %v727
      %v793 = vunpack.c.h.b16 %v727
      %v794 = vunpack.c.l.b16 %v728
      %v795 = vunpack.c.h.b16 %v728
      %v796 = vunpack.c.l.b16 %v729
      %v797 = vunpack.c.h.b16 %v729
      %v798 = vunpack.c.l.b16 %v730
      %v799 = vunpack.c.h.b16 %v730
      %v800 = vunpack.c.l.b16 %v731
      %v801 = vunpack.c.h.b16 %v731
      %v802 = vunpack.c.l.b16 %v732
      %v803 = vunpack.c.h.b16 %v732
      %v804 = vunpack.c.l.b16 %v733
      %v805 = vunpack.c.h.b16 %v733
      %v806 = vunpack.c.l.b16 %v734
      %v807 = vunpack.c.h.b16 %v734
      %v808 = vunpack.c.l.b16 %v735
      %v809 = vunpack.c.h.b16 %v735
      %v810 = vunpack.c.l.b16 %v736
      %v811 = vunpack.c.h.b16 %v736
      %v812 = vunpack.c.l.b16 %v737
      %v813 = vunpack.c.h.b16 %v737
      %v814 = vunpack.c.l.b16 %v738
      %v815 = vunpack.c.h.b16 %v738
      %v816 = vunpack.c.l.b16 %v739
      %v817 = vunpack.c.h.b16 %v739
      %v818 = vunpack.c.l.b16 %v740
      %v819 = vunpack.c.h.b16 %v740
      %v820 = vunpack.c.l.b16 %v741
      %v821 = vunpack.c.h.b16 %v741
      %v822 = vunpack.c.l.b16 %v742
      %v823 = vunpack.c.h.b16 %v742
      %v824 = vunpack.c.l.b16 %v743
      %v825 = vunpack.c.h.b16 %v743
      %v826 = vunpack.c.l.b16 %v744
      %v827 = vunpack.c.h.b16 %v744
      %v828 = vunpack.c.l.b16 %v745
      %v829 = vunpack.c.h.b16 %v745
      %v830 = vunpack.c.l.b16 %v746
      %v831 = vunpack.c.h.b16 %v746
      %v832 = vunpack.c.l.b16 %v747
      %v833 = vunpack.c.h.b16 %v747
      %v834 = vunpack.c.l.b16 %v748
      %v835 = vunpack.c.h.b16 %v748
      %v836 = vunpack.c.l.b16 %v749
      %v837 = vunpack.c.h.b16 %v749
      %v838 = vunpack.c.l.b16 %v750
      %v839 = vunpack.c.h.b16 %v750
      %v840 = vunpack.c.l.b16 %v751
      %v841 = vunpack.c.h.b16 %v751
      %v842 = vunpack.c.l.b16 %v752
      %v843 = vunpack.c.h.b16 %v752
      %v844 = vunpack.c.l.b16 %v753
      %v845 = vunpack.c.h.b16 %v753
      %v846 = vunpack.c.l.b16 %v754
      %v847 = vunpack.c.h.b16 %v754
      %v848 = vunpack.c.l.b16 %v755
      %v849 = vunpack.c.h.b16 %v755
      %v850 = vunpack.c.l.b16 %v756
      %v851 = vunpack.c.h.b16 %v756
      %v852 = vunpack.c.l.b16 %v757
      %v853 = vunpack.c.h.b16 %v757
      %v854 = vpack.c.b16 %v794, %v790
      %v855 = vpack.c.b16 %v795, %v791
      %v856 = vpack.c.b16 %v796, %v792
      %v857 = vpack.c.b16 %v797, %v793
      %v858 = vpack.c.b16 %v802, %v798
      %v859 = vpack.c.b16 %v803, %v799
      %v860 = vpack.c.b16 %v804, %v800
      %v861 = vpack.c.b16 %v805, %v801
      %v862 = vpack.c.b16 %v810, %v806
      %v863 = vpack.c.b16 %v811, %v807
      %v864 = vpack.c.b16 %v812, %v808
      %v865 = vpack.c.b16 %v813, %v809
      %v866 = vpack.c.b16 %v818, %v814
      %v867 = vpack.c.b16 %v819, %v815
      %v868 = vpack.c.b16 %v820, %v816
      %v869 = vpack.c.b16 %v821, %v817
      %v870 = vpack.c.b16 %v826, %v822
      %v871 = vpack.c.b16 %v827, %v823
      %v872 = vpack.c.b16 %v828, %v824
      %v873 = vpack.c.b16 %v829, %v825
      %v874 = vpack.c.b16 %v834, %v830
      %v875 = vpack.c.b16 %v835, %v831
      %v876 = vpack.c.b16 %v836, %v832
      %v877 = vpack.c.b16 %v837, %v833
      %v878 = vpack.c.b16 %v842, %v838
      %v879 = vpack.c.b16 %v843, %v839
      %v880 = vpack.c.b16 %v844, %v840
      %v881 = vpack.c.b16 %v845, %v841
      %v882 = vpack.c.b16 %v850, %v846
      %v883 = vpack.c.b16 %v851, %v847
      %v884 = vpack.c.b16 %v852, %v848
      %v885 = vpack.c.b16 %v853, %v849
      %918 = vmatprep.subr.bf16.mxu0 %v855
      %919 = vmatpush1.bf16.msra.mxu0 %v854
      %920 = vmatprep.subr.bf16.mxu0 %v859
      %921 = vmatpush1.bf16.msra.mxu0 %v858
      %922 = vmatprep.subr.bf16.mxu0 %v863
      %923 = vmatpush1.bf16.msra.mxu0 %v862
      %924 = vmatprep.subr.bf16.mxu0 %v867
      %925 = vmatpush1.bf16.msra.mxu0 %v866
      %926 = vmatprep.subr.bf16.mxu0 %v871
      %927 = vmatpush1.bf16.msra.mxu0 %v870
      %928 = vmatprep.subr.bf16.mxu0 %v875
      %929 = vmatpush1.bf16.msra.mxu0 %v874
      %930 = vmatprep.subr.bf16.mxu0 %v879
      %931 = vmatpush1.bf16.msra.mxu0 %v878
      %932 = vmatprep.subr.bf16.mxu0 %v883
      %933 = vmatpush1.bf16.msra.mxu0 %v882
      %934 = vmatprep.subr.bf16.mxu0 0
      %935 = vmatpush1.bf16.msra.mxu0 0
      %936 = vmatprep.subr.bf16.mxu0 0
      %937 = vmatpush1.bf16.msra.mxu0 0
      %938 = vmatprep.subr.bf16.mxu0 0
      %939 = vmatpush1.bf16.msra.mxu0 0
      %940 = vmatprep.subr.bf16.mxu0 0
      %941 = vmatpush1.bf16.msra.mxu0 0
      %942 = vmatprep.subr.bf16.mxu0 0
      %943 = vmatpush1.bf16.msra.mxu0 0
      %944 = vmatprep.subr.bf16.mxu0 0
      %945 = vmatpush1.bf16.msra.mxu0 0
      %946 = vmatprep.subr.bf16.mxu0 0
      %947 = vmatpush1.bf16.msra.mxu0 0
      %948 = vmatprep.subr.bf16.mxu0 0
      %949 = vmatpush1.bf16.msra.mxu0 0
      %950 = vmatprep.mubr.bf16.mxu0 0
      %951 = vmatmul.mubr.bf16.gmra.mrb[0].mxu0 %v725
      %v952 = vpop.f32.mrb[0].mxu0
      %v953 = vadd.f32 %v347, %v952
      %v954 = vpop.f32.mrb[0].mxu0
      %v955 = vadd.f32 %v349, %v954
      %v956 = vpop.f32.mrb[0].mxu0
      %v957 = vpop.f32.mrb[0].mxu0
      %958 = vdwg.mxu0
      %959 = vmatprep.subr.bf16.mxu0 %v857
      %960 = vmatpush1.bf16.msra.mxu0 %v856
      %961 = vmatprep.subr.bf16.mxu0 %v861
      %962 = vmatpush1.bf16.msra.mxu0 %v860
      %963 = vmatprep.subr.bf16.mxu0 %v865
      %964 = vmatpush1.bf16.msra.mxu0 %v864
      %965 = vmatprep.subr.bf16.mxu0 %v869
      %966 = vmatpush1.bf16.msra.mxu0 %v868
      %967 = vmatprep.subr.bf16.mxu0 %v873
      %968 = vmatpush1.bf16.msra.mxu0 %v872
      %969 = vmatprep.subr.bf16.mxu0 %v877
      %970 = vmatpush1.bf16.msra.mxu0 %v876
      %971 = vmatprep.subr.bf16.mxu0 %v881
      %972 = vmatpush1.bf16.msra.mxu0 %v880
      %973 = vmatprep.subr.bf16.mxu0 %v885
      %974 = vmatpush1.bf16.msra.mxu0 %v884
      %975 = vmatprep.subr.bf16.mxu0 0
      %976 = vmatpush1.bf16.msra.mxu0 0
      %977 = vmatprep.subr.bf16.mxu0 0
      %978 = vmatpush1.bf16.msra.mxu0 0
      %979 = vmatprep.subr.bf16.mxu0 0
      %980 = vmatpush1.bf16.msra.mxu0 0
      %981 = vmatprep.subr.bf16.mxu0 0
      %982 = vmatpush1.bf16.msra.mxu0 0
      %983 = vmatprep.subr.bf16.mxu0 0
      %984 = vmatpush1.bf16.msra.mxu0 0
      %985 = vmatprep.subr.bf16.mxu0 0
      %986 = vmatpush1.bf16.msra.mxu0 0
      %987 = vmatprep.subr.bf16.mxu0 0
      %988 = vmatpush1.bf16.msra.mxu0 0
      %989 = vmatprep.subr.bf16.mxu0 0
      %990 = vmatpush1.bf16.msra.mxu0 0
      %991 = vmatprep.mubr.bf16.mxu0 0
      %992 = vmatmul.mubr.bf16.gmra.mrb[0].mxu0 %v725
      %v993 = vpop.f32.mrb[0].mxu0
      %v994 = vadd.f32 %v388, %v993
      %v995 = vpop.f32.mrb[0].mxu0
      %v996 = vadd.f32 %v390, %v995
      %v997 = vpop.f32.mrb[0].mxu0
      %v998 = vpop.f32.mrb[0].mxu0
      %999 = vdwg.mxu0
      %v1000 = vxor.u32 %v953, 2147483648
      %v1001 = vxor.u32 %v955, 2147483648
      %v1002 = vxor.u32 %v994, 2147483648
      %v1003 = vmul.f32 %v1000, 1.442695
      %v1004 = vpow.pop %v1003
      %v1005 = vmul.f32 %v1001, 1.442695
      %v1006 = vpow.pop %v1005
      %v1007 = vmul.f32 %v1002, 1.442695
      %v1008 = vpow.pop %v1007
      %v1009 = vadd.f32 %v1004, 1.0
      %v1010 = vadd.f32 %v1006, 1.0
      %v1011 = vadd.f32 %v1008, 1.0
      %v1012 = vrcp.pop %v1009
      %v1013 = vmul.f32 1.0, %v1012
      %v1014 = vrcp.pop %v1010
      %v1015 = vmul.f32 1.0, %v1014
      %v1016 = vrcp.pop %v1011
      %v1017 = vmul.f32 1.0, %v1016
      %v1018 = vtanh.pop %v996
      %v1019 = vmul.f32 %v1015, %v96
      %v1020 = vmul.f32 %v1013, %v1018
      %v1021 = vadd.f32 %v1019, %v1020
      %v1022 = vtanh.pop %v1021
      %v1023 = vmul.f32 %v1017, %v1022
      %1024 = vst [vmem:[#allocation3] sm:$0x1] %v1023
      %v1025 = vpack.c.bf16 %v1023, %v1023
      %v1026 = vld [vmem:[#allocation10] sm:$0xff]
      %v1027 = vld [vmem:[#allocation10 + $0x8] sm:$0xff]
      %v1028 = vld [vmem:[#allocation10 + $0x10] sm:$0xff]
      %v1029 = vld [vmem:[#allocation10 + $0x18] sm:$0xff]
      %v1030 = vld [vmem:[#allocation10 + $0x20] sm:$0xff]
      %v1031 = vld [vmem:[#allocation10 + $0x28] sm:$0xff]
      %v1032 = vld [vmem:[#allocation10 + $0x30] sm:$0xff]
      %v1033 = vld [vmem:[#allocation10 + $0x38] sm:$0xff]
      %v1034 = vld [vmem:[#allocation10 + $0x40] sm:$0xff]
      %v1035 = vld [vmem:[#allocation10 + $0x48] sm:$0xff]
      %v1036 = vld [vmem:[#allocation10 + $0x50] sm:$0xff]
      %v1037 = vld [vmem:[#allocation10 + $0x58] sm:$0xff]
      %v1038 = vld [vmem:[#allocation10 + $0x60] sm:$0xff]
      %v1039 = vld [vmem:[#allocation10 + $0x68] sm:$0xff]
      %v1040 = vld [vmem:[#allocation10 + $0x70] sm:$0xff]
      %v1041 = vld [vmem:[#allocation10 + $0x78] sm:$0xff]
      %v1042 = vld [vmem:[#allocation10 + $0x80] sm:$0xff]
      %v1043 = vld [vmem:[#allocation10 + $0x88] sm:$0xff]
      %v1044 = vld [vmem:[#allocation10 + $0x90] sm:$0xff]
      %v1045 = vld [vmem:[#allocation10 + $0x98] sm:$0xff]
      %v1046 = vld [vmem:[#allocation10 + $0xa0] sm:$0xff]
      %v1047 = vld [vmem:[#allocation10 + $0xa8] sm:$0xff]
      %v1048 = vld [vmem:[#allocation10 + $0xb0] sm:$0xff]
      %v1049 = vld [vmem:[#allocation10 + $0xb8] sm:$0xff]
      %v1050 = vld [vmem:[#allocation10 + $0xc0] sm:$0xff]
      %v1051 = vld [vmem:[#allocation10 + $0xc8] sm:$0xff]
      %v1052 = vld [vmem:[#allocation10 + $0xd0] sm:$0xff]
      %v1053 = vld [vmem:[#allocation10 + $0xd8] sm:$0xff]
      %v1054 = vld [vmem:[#allocation10 + $0xe0] sm:$0xff]
      %v1055 = vld [vmem:[#allocation10 + $0xe8] sm:$0xff]
      %v1056 = vld [vmem:[#allocation10 + $0xf0] sm:$0xff]
      %v1057 = vld [vmem:[#allocation10 + $0xf8] sm:$0xff]
      %v1090 = vunpack.c.l.b16 %v1026
      %v1091 = vunpack.c.h.b16 %v1026
      %v1092 = vunpack.c.l.b16 %v1027
      %v1093 = vunpack.c.h.b16 %v1027
      %v1094 = vunpack.c.l.b16 %v1028
      %v1095 = vunpack.c.h.b16 %v1028
      %v1096 = vunpack.c.l.b16 %v1029
      %v1097 = vunpack.c.h.b16 %v1029
      %v1098 = vunpack.c.l.b16 %v1030
      %v1099 = vunpack.c.h.b16 %v1030
      %v1100 = vunpack.c.l.b16 %v1031
      %v1101 = vunpack.c.h.b16 %v1031
      %v1102 = vunpack.c.l.b16 %v1032
      %v1103 = vunpack.c.h.b16 %v1032
      %v1104 = vunpack.c.l.b16 %v1033
      %v1105 = vunpack.c.h.b16 %v1033
      %v1106 = vunpack.c.l.b16 %v1034
      %v1107 = vunpack.c.h.b16 %v1034
      %v1108 = vunpack.c.l.b16 %v1035
      %v1109 = vunpack.c.h.b16 %v1035
      %v1110 = vunpack.c.l.b16 %v1036
      %v1111 = vunpack.c.h.b16 %v1036
      %v1112 = vunpack.c.l.b16 %v1037
      %v1113 = vunpack.c.h.b16 %v1037
      %v1114 = vunpack.c.l.b16 %v1038
      %v1115 = vunpack.c.h.b16 %v1038
      %v1116 = vunpack.c.l.b16 %v1039
      %v1117 = vunpack.c.h.b16 %v1039
      %v1118 = vunpack.c.l.b16 %v1040
      %v1119 = vunpack.c.h.b16 %v1040
      %v1120 = vunpack.c.l.b16 %v1041
      %v1121 = vunpack.c.h.b16 %v1041
      %v1122 = vunpack.c.l.b16 %v1042
      %v1123 = vunpack.c.h.b16 %v1042
      %v1124 = vunpack.c.l.b16 %v1043
      %v1125 = vunpack.c.h.b16 %v1043
      %v1126 = vunpack.c.l.b16 %v1044
      %v1127 = vunpack.c.h.b16 %v1044
      %v1128 = vunpack.c.l.b16 %v1045
      %v1129 = vunpack.c.h.b16 %v1045
      %v1130 = vunpack.c.l.b16 %v1046
      %v1131 = vunpack.c.h.b16 %v1046
      %v1132 = vunpack.c.l.b16 %v1047
      %v1133 = vunpack.c.h.b16 %v1047
      %v1134 = vunpack.c.l.b16 %v1048
      %v1135 = vunpack.c.h.b16 %v1048
      %v1136 = vunpack.c.l.b16 %v1049
      %v1137 = vunpack.c.h.b16 %v1049
      %v1138 = vunpack.c.l.b16 %v1050
      %v1139 = vunpack.c.h.b16 %v1050
      %v1140 = vunpack.c.l.b16 %v1051
      %v1141 = vunpack.c.h.b16 %v1051
      %v1142 = vunpack.c.l.b16 %v1052
      %v1143 = vunpack.c.h.b16 %v1052
      %v1144 = vunpack.c.l.b16 %v1053
      %v1145 = vunpack.c.h.b16 %v1053
      %v1146 = vunpack.c.l.b16 %v1054
      %v1147 = vunpack.c.h.b16 %v1054
      %v1148 = vunpack.c.l.b16 %v1055
      %v1149 = vunpack.c.h.b16 %v1055
      %v1150 = vunpack.c.l.b16 %v1056
      %v1151 = vunpack.c.h.b16 %v1056
      %v1152 = vunpack.c.l.b16 %v1057
      %v1153 = vunpack.c.h.b16 %v1057
      %v1154 = vpack.c.b16 %v1094, %v1090
      %v1155 = vpack.c.b16 %v1095, %v1091
      %v1156 = vpack.c.b16 %v1096, %v1092
      %v1157 = vpack.c.b16 %v1097, %v1093
      %v1158 = vpack.c.b16 %v1102, %v1098
      %v1159 = vpack.c.b16 %v1103, %v1099
      %v1160 = vpack.c.b16 %v1104, %v1100
      %v1161 = vpack.c.b16 %v1105, %v1101
      %v1162 = vpack.c.b16 %v1110, %v1106
      %v1163 = vpack.c.b16 %v1111, %v1107
      %v1164 = vpack.c.b16 %v1112, %v1108
      %v1165 = vpack.c.b16 %v1113, %v1109
      %v1166 = vpack.c.b16 %v1118, %v1114
      %v1167 = vpack.c.b16 %v1119, %v1115
      %v1168 = vpack.c.b16 %v1120, %v1116
      %v1169 = vpack.c.b16 %v1121, %v1117
      %v1170 = vpack.c.b16 %v1126, %v1122
      %v1171 = vpack.c.b16 %v1127, %v1123
      %v1172 = vpack.c.b16 %v1128, %v1124
      %v1173 = vpack.c.b16 %v1129, %v1125
      %v1174 = vpack.c.b16 %v1134, %v1130
      %v1175 = vpack.c.b16 %v1135, %v1131
      %v1176 = vpack.c.b16 %v1136, %v1132
      %v1177 = vpack.c.b16 %v1137, %v1133
      %v1178 = vpack.c.b16 %v1142, %v1138
      %v1179 = vpack.c.b16 %v1143, %v1139
      %v1180 = vpack.c.b16 %v1144, %v1140
      %v1181 = vpack.c.b16 %v1145, %v1141
      %v1182 = vpack.c.b16 %v1150, %v1146
      %v1183 = vpack.c.b16 %v1151, %v1147
      %v1184 = vpack.c.b16 %v1152, %v1148
      %v1185 = vpack.c.b16 %v1153, %v1149
      %1218 = vmatprep.subr.bf16.mxu0 %v1155
      %1219 = vmatpush1.bf16.msra.mxu0 %v1154
      %1220 = vmatprep.subr.bf16.mxu0 %v1159
      %1221 = vmatpush1.bf16.msra.mxu0 %v1158
      %1222 = vmatprep.subr.bf16.mxu0 %v1163
      %1223 = vmatpush1.bf16.msra.mxu0 %v1162
      %1224 = vmatprep.subr.bf16.mxu0 %v1167
      %1225 = vmatpush1.bf16.msra.mxu0 %v1166
      %1226 = vmatprep.subr.bf16.mxu0 %v1171
      %1227 = vmatpush1.bf16.msra.mxu0 %v1170
      %1228 = vmatprep.subr.bf16.mxu0 %v1175
      %1229 = vmatpush1.bf16.msra.mxu0 %v1174
      %1230 = vmatprep.subr.bf16.mxu0 %v1179
      %1231 = vmatpush1.bf16.msra.mxu0 %v1178
      %1232 = vmatprep.subr.bf16.mxu0 %v1183
      %1233 = vmatpush1.bf16.msra.mxu0 %v1182
      %1234 = vmatprep.subr.bf16.mxu0 0
      %1235 = vmatpush1.bf16.msra.mxu0 0
      %1236 = vmatprep.subr.bf16.mxu0 0
      %1237 = vmatpush1.bf16.msra.mxu0 0
      %1238 = vmatprep.subr.bf16.mxu0 0
      %1239 = vmatpush1.bf16.msra.mxu0 0
      %1240 = vmatprep.subr.bf16.mxu0 0
      %1241 = vmatpush1.bf16.msra.mxu0 0
      %1242 = vmatprep.subr.bf16.mxu0 0
      %1243 = vmatpush1.bf16.msra.mxu0 0
      %1244 = vmatprep.subr.bf16.mxu0 0
      %1245 = vmatpush1.bf16.msra.mxu0 0
      %1246 = vmatprep.subr.bf16.mxu0 0
      %1247 = vmatpush1.bf16.msra.mxu0 0
      %1248 = vmatprep.subr.bf16.mxu0 0
      %1249 = vmatpush1.bf16.msra.mxu0 0
      %1250 = vmatprep.mubr.bf16.mxu0 0
      %1251 = vmatmul.mubr.bf16.gmra.mrb[0].mxu0 %v1025
      %v1252 = vpop.f32.mrb[0].mxu0
      %v1253 = vadd.f32 %v295, %v1252
      %v1254 = vpop.f32.mrb[0].mxu0
      %v1255 = vadd.f32 %v299, %v1254
      %v1256 = vpop.f32.mrb[0].mxu0
      %v1257 = vpop.f32.mrb[0].mxu0
      %1258 = vdwg.mxu0
      %1259 = vmatprep.subr.bf16.mxu0 %v1157
      %1260 = vmatpush1.bf16.msra.mxu0 %v1156
      %1261 = vmatprep.subr.bf16.mxu0 %v1161
      %1262 = vmatpush1.bf16.msra.mxu0 %v1160
      %1263 = vmatprep.subr.bf16.mxu0 %v1165
      %1264 = vmatpush1.bf16.msra.mxu0 %v1164
      %1265 = vmatprep.subr.bf16.mxu0 %v1169
      %1266 = vmatpush1.bf16.msra.mxu0 %v1168
      %1267 = vmatprep.subr.bf16.mxu0 %v1173
      %1268 = vmatpush1.bf16.msra.mxu0 %v1172
      %1269 = vmatprep.subr.bf16.mxu0 %v1177
      %1270 = vmatpush1.bf16.msra.mxu0 %v1176
      %1271 = vmatprep.subr.bf16.mxu0 %v1181
      %1272 = vmatpush1.bf16.msra.mxu0 %v1180
      %1273 = vmatprep.subr.bf16.mxu0 %v1185
      %1274 = vmatpush1.bf16.msra.mxu0 %v1184
      %1275 = vmatprep.subr.bf16.mxu0 0
      %1276 = vmatpush1.bf16.msra.mxu0 0
      %1277 = vmatprep.subr.bf16.mxu0 0
      %1278 = vmatpush1.bf16.msra.mxu0 0
      %1279 = vmatprep.subr.bf16.mxu0 0
      %1280 = vmatpush1.bf16.msra.mxu0 0
      %1281 = vmatprep.subr.bf16.mxu0 0
      %1282 = vmatpush1.bf16.msra.mxu0 0
      %1283 = vmatprep.subr.bf16.mxu0 0
      %1284 = vmatpush1.bf16.msra.mxu0 0
      %1285 = vmatprep.subr.bf16.mxu0 0
      %1286 = vmatpush1.bf16.msra.mxu0 0
      %1287 = vmatprep.subr.bf16.mxu0 0
      %1288 = vmatpush1.bf16.msra.mxu0 0
      %1289 = vmatprep.subr.bf16.mxu0 0
      %1290 = vmatpush1.bf16.msra.mxu0 0
      %1291 = vmatprep.mubr.bf16.mxu0 0
      %1292 = vmatmul.mubr.bf16.gmra.mrb[0].mxu0 %v1025
      %v1293 = vpop.f32.mrb[0].mxu0
      %v1294 = vadd.f32 %v303, %v1293
      %v1295 = vpop.f32.mrb[0].mxu0
      %v1296 = vadd.f32 %v307, %v1295
      %v1297 = vpop.f32.mrb[0].mxu0
      %v1298 = vpop.f32.mrb[0].mxu0
      %1299 = vdwg.mxu0
      %s1300 = sadd.s32 %s97, 1
      %s1301 = sshra.s32 %s1300, 3
      %s1302 = sand.u32 %s1300, 7
      %s1303 = sshra.s32 %s1300, 3
      %s1304 = sand.u32 %s1300, 7
      %s1305 = smul.u32 %s1301, 4
      %s1306 = smul.u32 %s1305, 8
      %s1307 = sadd.s32 %s1306, %s1304
      %s1308 = scalar_lea.vmem [#allocation4], %s1307
      %v1309 = vld [vmem:[%s1308] ss:$8 sm:$0xf]
      %v1310 = vld [vmem:[#allocation7] sm:$0xff]
      %v1311 = vld [vmem:[#allocation7 + $0x8] sm:$0xff]
      %v1312 = vld [vmem:[#allocation7 + $0x10] sm:$0xff]
      %v1313 = vld [vmem:[#allocation7 + $0x18] sm:$0xff]
      %v1314 = vld [vmem:[#allocation7 + $0x20] sm:$0xff]
      %v1315 = vld [vmem:[#allocation7 + $0x28] sm:$0xff]
      %v1316 = vld [vmem:[#allocation7 + $0x30] sm:$0xff]
      %v1317 = vld [vmem:[#allocation7 + $0x38] sm:$0xff]
      %v1318 = vld [vmem:[#allocation7 + $0x40] sm:$0xff]
      %v1319 = vld [vmem:[#allocation7 + $0x48] sm:$0xff]
      %v1320 = vld [vmem:[#allocation7 + $0x50] sm:$0xff]
      %v1321 = vld [vmem:[#allocation7 + $0x58] sm:$0xff]
      %v1322 = vld [vmem:[#allocation7 + $0x60] sm:$0xff]
      %v1323 = vld [vmem:[#allocation7 + $0x68] sm:$0xff]
      %v1324 = vld [vmem:[#allocation7 + $0x70] sm:$0xff]
      %v1325 = vld [vmem:[#allocation7 + $0x78] sm:$0xff]
      %v1326 = vld [vmem:[#allocation7 + $0x80] sm:$0xff]
      %v1327 = vld [vmem:[#allocation7 + $0x88] sm:$0xff]
      %v1328 = vld [vmem:[#allocation7 + $0x90] sm:$0xff]
      %v1329 = vld [vmem:[#allocation7 + $0x98] sm:$0xff]
      %v1330 = vld [vmem:[#allocation7 + $0xa0] sm:$0xff]
      %v1331 = vld [vmem:[#allocation7 + $0xa8] sm:$0xff]
      %v1332 = vld [vmem:[#allocation7 + $0xb0] sm:$0xff]
      %v1333 = vld [vmem:[#allocation7 + $0xb8] sm:$0xff]
      %v1334 = vld [vmem:[#allocation7 + $0xc0] sm:$0xff]
      %v1335 = vld [vmem:[#allocation7 + $0xc8] sm:$0xff]
      %v1336 = vld [vmem:[#allocation7 + $0xd0] sm:$0xff]
      %v1337 = vld [vmem:[#allocation7 + $0xd8] sm:$0xff]
      %v1338 = vld [vmem:[#allocation7 + $0xe0] sm:$0xff]
      %v1339 = vld [vmem:[#allocation7 + $0xe8] sm:$0xff]
      %v1340 = vld [vmem:[#allocation7 + $0xf0] sm:$0xff]
      %v1341 = vld [vmem:[#allocation7 + $0xf8] sm:$0xff]
      %v1374 = vunpack.c.l.b16 %v1310
      %v1375 = vunpack.c.h.b16 %v1310
      %v1376 = vunpack.c.l.b16 %v1311
      %v1377 = vunpack.c.h.b16 %v1311
      %v1378 = vunpack.c.l.b16 %v1312
      %v1379 = vunpack.c.h.b16 %v1312
      %v1380 = vunpack.c.l.b16 %v1313
      %v1381 = vunpack.c.h.b16 %v1313
      %v1382 = vunpack.c.l.b16 %v1314
      %v1383 = vunpack.c.h.b16 %v1314
      %v1384 = vunpack.c.l.b16 %v1315
      %v1385 = vunpack.c.h.b16 %v1315
      %v1386 = vunpack.c.l.b16 %v1316
      %v1387 = vunpack.c.h.b16 %v1316
      %v1388 = vunpack.c.l.b16 %v1317
      %v1389 = vunpack.c.h.b16 %v1317
      %v1390 = vunpack.c.l.b16 %v1318
      %v1391 = vunpack.c.h.b16 %v1318
      %v1392 = vunpack.c.l.b16 %v1319
      %v1393 = vunpack.c.h.b16 %v1319
      %v1394 = vunpack.c.l.b16 %v1320
      %v1395 = vunpack.c.h.b16 %v1320
      %v1396 = vunpack.c.l.b16 %v1321
      %v1397 = vunpack.c.h.b16 %v1321
      %v1398 = vunpack.c.l.b16 %v1322
      %v1399 = vunpack.c.h.b16 %v1322
      %v1400 = vunpack.c.l.b16 %v1323
      %v1401 = vunpack.c.h.b16 %v1323
      %v1402 = vunpack.c.l.b16 %v1324
      %v1403 = vunpack.c.h.b16 %v1324
      %v1404 = vunpack.c.l.b16 %v1325
      %v1405 = vunpack.c.h.b16 %v1325
      %v1406 = vunpack.c.l.b16 %v1326
      %v1407 = vunpack.c.h.b16 %v1326
      %v1408 = vunpack.c.l.b16 %v1327
      %v1409 = vunpack.c.h.b16 %v1327
      %v1410 = vunpack.c.l.b16 %v1328
      %v1411 = vunpack.c.h.b16 %v1328
      %v1412 = vunpack.c.l.b16 %v1329
      %v1413 = vunpack.c.h.b16 %v1329
      %v1414 = vunpack.c.l.b16 %v1330
      %v1415 = vunpack.c.h.b16 %v1330
      %v1416 = vunpack.c.l.b16 %v1331
      %v1417 = vunpack.c.h.b16 %v1331
      %v1418 = vunpack.c.l.b16 %v1332
      %v1419 = vunpack.c.h.b16 %v1332
      %v1420 = vunpack.c.l.b16 %v1333
      %v1421 = vunpack.c.h.b16 %v1333
      %v1422 = vunpack.c.l.b16 %v1334
      %v1423 = vunpack.c.h.b16 %v1334
      %v1424 = vunpack.c.l.b16 %v1335
      %v1425 = vunpack.c.h.b16 %v1335
      %v1426 = vunpack.c.l.b16 %v1336
      %v1427 = vunpack.c.h.b16 %v1336
      %v1428 = vunpack.c.l.b16 %v1337
      %v1429 = vunpack.c.h.b16 %v1337
      %v1430 = vunpack.c.l.b16 %v1338
      %v1431 = vunpack.c.h.b16 %v1338
      %v1432 = vunpack.c.l.b16 %v1339
      %v1433 = vunpack.c.h.b16 %v1339
      %v1434 = vunpack.c.l.b16 %v1340
      %v1435 = vunpack.c.h.b16 %v1340
      %v1436 = vunpack.c.l.b16 %v1341
      %v1437 = vunpack.c.h.b16 %v1341
      %v1438 = vpack.c.b16 %v1378, %v1374
      %v1439 = vpack.c.b16 %v1379, %v1375
      %v1440 = vpack.c.b16 %v1380, %v1376
      %v1441 = vpack.c.b16 %v1381, %v1377
      %v1442 = vpack.c.b16 %v1386, %v1382
      %v1443 = vpack.c.b16 %v1387, %v1383
      %v1444 = vpack.c.b16 %v1388, %v1384
      %v1445 = vpack.c.b16 %v1389, %v1385
      %v1446 = vpack.c.b16 %v1394, %v1390
      %v1447 = vpack.c.b16 %v1395, %v1391
      %v1448 = vpack.c.b16 %v1396, %v1392
      %v1449 = vpack.c.b16 %v1397, %v1393
      %v1450 = vpack.c.b16 %v1402, %v1398
      %v1451 = vpack.c.b16 %v1403, %v1399
      %v1452 = vpack.c.b16 %v1404, %v1400
      %v1453 = vpack.c.b16 %v1405, %v1401
      %v1454 = vpack.c.b16 %v1410, %v1406
      %v1455 = vpack.c.b16 %v1411, %v1407
      %v1456 = vpack.c.b16 %v1412, %v1408
      %v1457 = vpack.c.b16 %v1413, %v1409
      %v1458 = vpack.c.b16 %v1418, %v1414
      %v1459 = vpack.c.b16 %v1419, %v1415
      %v1460 = vpack.c.b16 %v1420, %v1416
      %v1461 = vpack.c.b16 %v1421, %v1417
      %v1462 = vpack.c.b16 %v1426, %v1422
      %v1463 = vpack.c.b16 %v1427, %v1423
      %v1464 = vpack.c.b16 %v1428, %v1424
      %v1465 = vpack.c.b16 %v1429, %v1425
      %v1466 = vpack.c.b16 %v1434, %v1430
      %v1467 = vpack.c.b16 %v1435, %v1431
      %v1468 = vpack.c.b16 %v1436, %v1432
      %v1469 = vpack.c.b16 %v1437, %v1433
      %1502 = vmatprep.subr.bf16.mxu0 %v1439
      %1503 = vmatpush1.bf16.msra.mxu0 %v1438
      %1504 = vmatprep.subr.bf16.mxu0 %v1443
      %1505 = vmatpush1.bf16.msra.mxu0 %v1442
      %1506 = vmatprep.subr.bf16.mxu0 %v1447
      %1507 = vmatpush1.bf16.msra.mxu0 %v1446
      %1508 = vmatprep.subr.bf16.mxu0 %v1451
      %1509 = vmatpush1.bf16.msra.mxu0 %v1450
      %1510 = vmatprep.subr.bf16.mxu0 %v1455
      %1511 = vmatpush1.bf16.msra.mxu0 %v1454
      %1512 = vmatprep.subr.bf16.mxu0 %v1459
      %1513 = vmatpush1.bf16.msra.mxu0 %v1458
      %1514 = vmatprep.subr.bf16.mxu0 %v1463
      %1515 = vmatpush1.bf16.msra.mxu0 %v1462
      %1516 = vmatprep.subr.bf16.mxu0 %v1467
      %1517 = vmatpush1.bf16.msra.mxu0 %v1466
      %1518 = vmatprep.subr.bf16.mxu0 0
      %1519 = vmatpush1.bf16.msra.mxu0 0
      %1520 = vmatprep.subr.bf16.mxu0 0
      %1521 = vmatpush1.bf16.msra.mxu0 0
      %1522 = vmatprep.subr.bf16.mxu0 0
      %1523 = vmatpush1.bf16.msra.mxu0 0
      %1524 = vmatprep.subr.bf16.mxu0 0
      %1525 = vmatpush1.bf16.msra.mxu0 0
      %1526 = vmatprep.subr.bf16.mxu0 0
      %1527 = vmatpush1.bf16.msra.mxu0 0
      %1528 = vmatprep.subr.bf16.mxu0 0
      %1529 = vmatpush1.bf16.msra.mxu0 0
      %1530 = vmatprep.subr.bf16.mxu0 0
      %1531 = vmatpush1.bf16.msra.mxu0 0
      %1532 = vmatprep.subr.bf16.mxu0 0
      %1533 = vmatpush1.bf16.msra.mxu0 0
      %1534 = vmatprep.mubr.bf16.mxu0 0
      %1535 = vmatmul.mubr.bf16.gmra.mrb[0].mxu0 %v725
      %v1536 = vpop.f32.mrb[0].mxu0
      %v1537 = vadd.f32 0.0, %v1536
      %v1538 = vpop.f32.mrb[0].mxu0
      %v1539 = vadd.f32 0.0, %v1538
      %v1540 = vpop.f32.mrb[0].mxu0
      %v1541 = vpop.f32.mrb[0].mxu0
      %1542 = vdwg.mxu0
      %1543 = vmatprep.subr.bf16.mxu0 %v1441
      %1544 = vmatpush1.bf16.msra.mxu0 %v1440
      %1545 = vmatprep.subr.bf16.mxu0 %v1445
      %1546 = vmatpush1.bf16.msra.mxu0 %v1444
      %1547 = vmatprep.subr.bf16.mxu0 %v1449
      %1548 = vmatpush1.bf16.msra.mxu0 %v1448
      %1549 = vmatprep.subr.bf16.mxu0 %v1453
      %1550 = vmatpush1.bf16.msra.mxu0 %v1452
      %1551 = vmatprep.subr.bf16.mxu0 %v1457
      %1552 = vmatpush1.bf16.msra.mxu0 %v1456
      %1553 = vmatprep.subr.bf16.mxu0 %v1461
      %1554 = vmatpush1.bf16.msra.mxu0 %v1460
      %1555 = vmatprep.subr.bf16.mxu0 %v1465
      %1556 = vmatpush1.bf16.msra.mxu0 %v1464
      %1557 = vmatprep.subr.bf16.mxu0 %v1469
      %1558 = vmatpush1.bf16.msra.mxu0 %v1468
      %1559 = vmatprep.subr.bf16.mxu0 0
      %1560 = vmatpush1.bf16.msra.mxu0 0
      %1561 = vmatprep.subr.bf16.mxu0 0
      %1562 = vmatpush1.bf16.msra.mxu0 0
      %1563 = vmatprep.subr.bf16.mxu0 0
      %1564 = vmatpush1.bf16.msra.mxu0 0
      %1565 = vmatprep.subr.bf16.mxu0 0
      %1566 = vmatpush1.bf16.msra.mxu0 0
      %1567 = vmatprep.subr.bf16.mxu0 0
      %1568 = vmatpush1.bf16.msra.mxu0 0
      %1569 = vmatprep.subr.bf16.mxu0 0
      %1570 = vmatpush1.bf16.msra.mxu0 0
      %1571 = vmatprep.subr.bf16.mxu0 0
      %1572 = vmatpush1.bf16.msra.mxu0 0
      %1573 = vmatprep.subr.bf16.mxu0 0
      %1574 = vmatpush1.bf16.msra.mxu0 0
      %1575 = vmatprep.mubr.bf16.mxu0 0
      %1576 = vmatmul.mubr.bf16.gmra.mrb[0].mxu0 %v725
      %v1577 = vpop.f32.mrb[0].mxu0
      %v1578 = vadd.f32 0.0, %v1577
      %v1579 = vpop.f32.mrb[0].mxu0
      %v1580 = vadd.f32 0.0, %v1579
      %v1581 = vpop.f32.mrb[0].mxu0
      %v1582 = vpop.f32.mrb[0].mxu0
      %1583 = vdwg.mxu0
      %v1588 = vcombine.low %v1537, %v1539
      %v1589 = vcombine.low %v1578, %v1580
      %v1591 = vunpack.c.l.s4 1966171168
      %v1592 = vunpack.c.0.s8 %v1591
      %v1593 = vlaneseq
      %v1594 = vshrl.u32 %v1593, 7
      %v1595 = vsub.s32 %v1592, %v1594
      %v1596 = vrot.slane %v1588, %v1595
      %v1598 = vunpack.c.l.s4 1966171168
      %v1599 = vunpack.c.0.s8 %v1598
      %v1600 = vlaneseq
      %v1601 = vshrl.u32 %v1600, 7
      %v1602 = vsub.s32 %v1599, %v1601
      %v1603 = vrot.slane %v1589, %v1602
      %v1604 = vcombine.low %v1596, %v1603
      %v1606 = vunpack.c.l.s4 1966171168
      %v1607 = vunpack.c.0.s8 %v1606
      %v1608 = vlaneseq
      %v1609 = vshrl.u32 %v1608, 7
      %v1610 = vsub.s32 %v1607, %v1609
      %v1611 = vrot.slane %v1604, %v1610
      %v1613 = vadd.f32 %v1309, %v1611
      %v1614 = vxor.u32 %v1613, 2147483648
      %v1615 = vmul.f32 %v1614, 1.442695
      %v1616 = vpow.pop %v1615
      %v1617 = vadd.f32 %v1616, 1.0
      %v1618 = vrcp.pop %v1617
      %v1619 = vmul.f32 1.0, %v1618
      %v1621 = vrot.slane %v1613, 3
      %v1623 = vtanh.pop %v1621
      %v1625 = vrot.slane %v1619, 1
      %v1627 = vmul.f32 %v1625, %v720
      %v1628 = vmul.f32 %v1619, %v1623
      %v1629 = vadd.f32 %v1627, %v1628
      %v1630 = vtanh.pop %v1629
      %v1631 = vrot.slane %v1619, 2
      %v1633 = vmul.f32 %v1631, %v1630
      %v1634 = vpack.c.bf16 %v1633, %v1633
      %v1635 = vld [vmem:[#allocation9] sm:$0xff]
      %v1636 = vld [vmem:[#allocation9 + $0x8] sm:$0xff]
      %v1637 = vld [vmem:[#allocation9 + $0x10] sm:$0xff]
      %v1638 = vld [vmem:[#allocation9 + $0x18] sm:$0xff]
      %v1639 = vld [vmem:[#allocation9 + $0x20] sm:$0xff]
      %v1640 = vld [vmem:[#allocation9 + $0x28] sm:$0xff]
      %v1641 = vld [vmem:[#allocation9 + $0x30] sm:$0xff]
      %v1642 = vld [vmem:[#allocation9 + $0x38] sm:$0xff]
      %v1643 = vld [vmem:[#allocation9 + $0x40] sm:$0xff]
      %v1644 = vld [vmem:[#allocation9 + $0x48] sm:$0xff]
      %v1645 = vld [vmem:[#allocation9 + $0x50] sm:$0xff]
      %v1646 = vld [vmem:[#allocation9 + $0x58] sm:$0xff]
      %v1647 = vld [vmem:[#allocation9 + $0x60] sm:$0xff]
      %v1648 = vld [vmem:[#allocation9 + $0x68] sm:$0xff]
      %v1649 = vld [vmem:[#allocation9 + $0x70] sm:$0xff]
      %v1650 = vld [vmem:[#allocation9 + $0x78] sm:$0xff]
      %v1651 = vld [vmem:[#allocation9 + $0x80] sm:$0xff]
      %v1652 = vld [vmem:[#allocation9 + $0x88] sm:$0xff]
      %v1653 = vld [vmem:[#allocation9 + $0x90] sm:$0xff]
      %v1654 = vld [vmem:[#allocation9 + $0x98] sm:$0xff]
      %v1655 = vld [vmem:[#allocation9 + $0xa0] sm:$0xff]
      %v1656 = vld [vmem:[#allocation9 + $0xa8] sm:$0xff]
      %v1657 = vld [vmem:[#allocation9 + $0xb0] sm:$0xff]
      %v1658 = vld [vmem:[#allocation9 + $0xb8] sm:$0xff]
      %v1659 = vld [vmem:[#allocation9 + $0xc0] sm:$0xff]
      %v1660 = vld [vmem:[#allocation9 + $0xc8] sm:$0xff]
      %v1661 = vld [vmem:[#allocation9 + $0xd0] sm:$0xff]
      %v1662 = vld [vmem:[#allocation9 + $0xd8] sm:$0xff]
      %v1663 = vld [vmem:[#allocation9 + $0xe0] sm:$0xff]
      %v1664 = vld [vmem:[#allocation9 + $0xe8] sm:$0xff]
      %v1665 = vld [vmem:[#allocation9 + $0xf0] sm:$0xff]
      %v1666 = vld [vmem:[#allocation9 + $0xf8] sm:$0xff]
      %v1699 = vunpack.c.l.b16 %v1635
      %v1700 = vunpack.c.h.b16 %v1635
      %v1701 = vunpack.c.l.b16 %v1636
      %v1702 = vunpack.c.h.b16 %v1636
      %v1703 = vunpack.c.l.b16 %v1637
      %v1704 = vunpack.c.h.b16 %v1637
      %v1705 = vunpack.c.l.b16 %v1638
      %v1706 = vunpack.c.h.b16 %v1638
      %v1707 = vunpack.c.l.b16 %v1639
      %v1708 = vunpack.c.h.b16 %v1639
      %v1709 = vunpack.c.l.b16 %v1640
      %v1710 = vunpack.c.h.b16 %v1640
      %v1711 = vunpack.c.l.b16 %v1641
      %v1712 = vunpack.c.h.b16 %v1641
      %v1713 = vunpack.c.l.b16 %v1642
      %v1714 = vunpack.c.h.b16 %v1642
      %v1715 = vunpack.c.l.b16 %v1643
      %v1716 = vunpack.c.h.b16 %v1643
      %v1717 = vunpack.c.l.b16 %v1644
      %v1718 = vunpack.c.h.b16 %v1644
      %v1719 = vunpack.c.l.b16 %v1645
      %v1720 = vunpack.c.h.b16 %v1645
      %v1721 = vunpack.c.l.b16 %v1646
      %v1722 = vunpack.c.h.b16 %v1646
      %v1723 = vunpack.c.l.b16 %v1647
      %v1724 = vunpack.c.h.b16 %v1647
      %v1725 = vunpack.c.l.b16 %v1648
      %v1726 = vunpack.c.h.b16 %v1648
      %v1727 = vunpack.c.l.b16 %v1649
      %v1728 = vunpack.c.h.b16 %v1649
      %v1729 = vunpack.c.l.b16 %v1650
      %v1730 = vunpack.c.h.b16 %v1650
      %v1731 = vunpack.c.l.b16 %v1651
      %v1732 = vunpack.c.h.b16 %v1651
      %v1733 = vunpack.c.l.b16 %v1652
      %v1734 = vunpack.c.h.b16 %v1652
      %v1735 = vunpack.c.l.b16 %v1653
      %v1736 = vunpack.c.h.b16 %v1653
      %v1737 = vunpack.c.l.b16 %v1654
      %v1738 = vunpack.c.h.b16 %v1654
      %v1739 = vunpack.c.l.b16 %v1655
      %v1740 = vunpack.c.h.b16 %v1655
      %v1741 = vunpack.c.l.b16 %v1656
      %v1742 = vunpack.c.h.b16 %v1656
      %v1743 = vunpack.c.l.b16 %v1657
      %v1744 = vunpack.c.h.b16 %v1657
      %v1745 = vunpack.c.l.b16 %v1658
      %v1746 = vunpack.c.h.b16 %v1658
      %v1747 = vunpack.c.l.b16 %v1659
      %v1748 = vunpack.c.h.b16 %v1659
      %v1749 = vunpack.c.l.b16 %v1660
      %v1750 = vunpack.c.h.b16 %v1660
      %v1751 = vunpack.c.l.b16 %v1661
      %v1752 = vunpack.c.h.b16 %v1661
      %v1753 = vunpack.c.l.b16 %v1662
      %v1754 = vunpack.c.h.b16 %v1662
      %v1755 = vunpack.c.l.b16 %v1663
      %v1756 = vunpack.c.h.b16 %v1663
      %v1757 = vunpack.c.l.b16 %v1664
      %v1758 = vunpack.c.h.b16 %v1664
      %v1759 = vunpack.c.l.b16 %v1665
      %v1760 = vunpack.c.h.b16 %v1665
      %v1761 = vunpack.c.l.b16 %v1666
      %v1762 = vunpack.c.h.b16 %v1666
      %v1763 = vpack.c.b16 %v1703, %v1699
      %v1764 = vpack.c.b16 %v1704, %v1700
      %v1765 = vpack.c.b16 %v1705, %v1701
      %v1766 = vpack.c.b16 %v1706, %v1702
      %v1767 = vpack.c.b16 %v1711, %v1707
      %v1768 = vpack.c.b16 %v1712, %v1708
      %v1769 = vpack.c.b16 %v1713, %v1709
      %v1770 = vpack.c.b16 %v1714, %v1710
      %v1771 = vpack.c.b16 %v1719, %v1715
      %v1772 = vpack.c.b16 %v1720, %v1716
      %v1773 = vpack.c.b16 %v1721, %v1717
      %v1774 = vpack.c.b16 %v1722, %v1718
      %v1775 = vpack.c.b16 %v1727, %v1723
      %v1776 = vpack.c.b16 %v1728, %v1724
      %v1777 = vpack.c.b16 %v1729, %v1725
      %v1778 = vpack.c.b16 %v1730, %v1726
      %v1779 = vpack.c.b16 %v1735, %v1731
      %v1780 = vpack.c.b16 %v1736, %v1732
      %v1781 = vpack.c.b16 %v1737, %v1733
      %v1782 = vpack.c.b16 %v1738, %v1734
      %v1783 = vpack.c.b16 %v1743, %v1739
      %v1784 = vpack.c.b16 %v1744, %v1740
      %v1785 = vpack.c.b16 %v1745, %v1741
      %v1786 = vpack.c.b16 %v1746, %v1742
      %v1787 = vpack.c.b16 %v1751, %v1747
      %v1788 = vpack.c.b16 %v1752, %v1748
      %v1789 = vpack.c.b16 %v1753, %v1749
      %v1790 = vpack.c.b16 %v1754, %v1750
      %v1791 = vpack.c.b16 %v1759, %v1755
      %v1792 = vpack.c.b16 %v1760, %v1756
      %v1793 = vpack.c.b16 %v1761, %v1757
      %v1794 = vpack.c.b16 %v1762, %v1758
      %1827 = vmatprep.subr.bf16.mxu0 %v1764
      %1828 = vmatpush1.bf16.msra.mxu0 %v1763
      %1829 = vmatprep.subr.bf16.mxu0 %v1768
      %1830 = vmatpush1.bf16.msra.mxu0 %v1767
      %1831 = vmatprep.subr.bf16.mxu0 %v1772
      %1832 = vmatpush1.bf16.msra.mxu0 %v1771
      %1833 = vmatprep.subr.bf16.mxu0 %v1776
      %1834 = vmatpush1.bf16.msra.mxu0 %v1775
      %1835 = vmatprep.subr.bf16.mxu0 %v1780
      %1836 = vmatpush1.bf16.msra.mxu0 %v1779
      %1837 = vmatprep.subr.bf16.mxu0 %v1784
      %1838 = vmatpush1.bf16.msra.mxu0 %v1783
      %1839 = vmatprep.subr.bf16.mxu0 %v1788
      %1840 = vmatpush1.bf16.msra.mxu0 %v1787
      %1841 = vmatprep.subr.bf16.mxu0 %v1792
      %1842 = vmatpush1.bf16.msra.mxu0 %v1791
      %1843 = vmatprep.subr.bf16.mxu0 0
      %1844 = vmatpush1.bf16.msra.mxu0 0
      %1845 = vmatprep.subr.bf16.mxu0 0
      %1846 = vmatpush1.bf16.msra.mxu0 0
      %1847 = vmatprep.subr.bf16.mxu0 0
      %1848 = vmatpush1.bf16.msra.mxu0 0
      %1849 = vmatprep.subr.bf16.mxu0 0
      %1850 = vmatpush1.bf16.msra.mxu0 0
      %1851 = vmatprep.subr.bf16.mxu0 0
      %1852 = vmatpush1.bf16.msra.mxu0 0
      %1853 = vmatprep.subr.bf16.mxu0 0
      %1854 = vmatpush1.bf16.msra.mxu0 0
      %1855 = vmatprep.subr.bf16.mxu0 0
      %1856 = vmatpush1.bf16.msra.mxu0 0
      %1857 = vmatprep.subr.bf16.mxu0 0
      %1858 = vmatpush1.bf16.msra.mxu0 0
      %1859 = vmatprep.mubr.bf16.mxu0 0
      %1860 = vmatmul.mubr.bf16.gmra.mrb[0].mxu0 %v1634
      %v1861 = vpop.f32.mrb[0].mxu0
      %v1862 = vadd.f32 %v1253, %v1861
      %v1863 = vpop.f32.mrb[0].mxu0
      %v1864 = vadd.f32 %v1255, %v1863
      %v1865 = vpop.f32.mrb[0].mxu0
      %v1866 = vpop.f32.mrb[0].mxu0
      %1867 = vdwg.mxu0
      %1868 = vmatprep.subr.bf16.mxu0 %v1766
      %1869 = vmatpush1.bf16.msra.mxu0 %v1765
      %1870 = vmatprep.subr.bf16.mxu0 %v1770
      %1871 = vmatpush1.bf16.msra.mxu0 %v1769
      %1872 = vmatprep.subr.bf16.mxu0 %v1774
      %1873 = vmatpush1.bf16.msra.mxu0 %v1773
      %1874 = vmatprep.subr.bf16.mxu0 %v1778
      %1875 = vmatpush1.bf16.msra.mxu0 %v1777
      %1876 = vmatprep.subr.bf16.mxu0 %v1782
      %1877 = vmatpush1.bf16.msra.mxu0 %v1781
      %1878 = vmatprep.subr.bf16.mxu0 %v1786
      %1879 = vmatpush1.bf16.msra.mxu0 %v1785
      %1880 = vmatprep.subr.bf16.mxu0 %v1790
      %1881 = vmatpush1.bf16.msra.mxu0 %v1789
      %1882 = vmatprep.subr.bf16.mxu0 %v1794
      %1883 = vmatpush1.bf16.msra.mxu0 %v1793
      %1884 = vmatprep.subr.bf16.mxu0 0
      %1885 = vmatpush1.bf16.msra.mxu0 0
      %1886 = vmatprep.subr.bf16.mxu0 0
      %1887 = vmatpush1.bf16.msra.mxu0 0
      %1888 = vmatprep.subr.bf16.mxu0 0
      %1889 = vmatpush1.bf16.msra.mxu0 0
      %1890 = vmatprep.subr.bf16.mxu0 0
      %1891 = vmatpush1.bf16.msra.mxu0 0
      %1892 = vmatprep.subr.bf16.mxu0 0
      %1893 = vmatpush1.bf16.msra.mxu0 0
      %1894 = vmatprep.subr.bf16.mxu0 0
      %1895 = vmatpush1.bf16.msra.mxu0 0
      %1896 = vmatprep.subr.bf16.mxu0 0
      %1897 = vmatpush1.bf16.msra.mxu0 0
      %1898 = vmatprep.subr.bf16.mxu0 0
      %1899 = vmatpush1.bf16.msra.mxu0 0
      %1900 = vmatprep.mubr.bf16.mxu0 0
      %1901 = vmatmul.mubr.bf16.gmra.mrb[0].mxu0 %v1634
      %v1902 = vpop.f32.mrb[0].mxu0
      %v1903 = vadd.f32 %v1294, %v1902
      %v1904 = vpop.f32.mrb[0].mxu0
      %v1905 = vadd.f32 %v1296, %v1904
      %v1906 = vpop.f32.mrb[0].mxu0
      %v1907 = vpop.f32.mrb[0].mxu0
      %1908 = vdwg.mxu0
      %v1909 = vxor.u32 %v1862, 2147483648
      %v1910 = vxor.u32 %v1864, 2147483648
      %v1911 = vxor.u32 %v1903, 2147483648
      %v1912 = vmul.f32 %v1909, 1.442695
      %v1913 = vpow.pop %v1912
      %v1914 = vmul.f32 %v1910, 1.442695
      %v1915 = vpow.pop %v1914
      %v1916 = vmul.f32 %v1911, 1.442695
      %v1917 = vpow.pop %v1916
      %v1918 = vadd.f32 %v1913, 1.0
      %v1919 = vadd.f32 %v1915, 1.0
      %v1920 = vadd.f32 %v1917, 1.0
      %v1921 = vrcp.pop %v1918
      %v1922 = vmul.f32 1.0, %v1921
      %v1923 = vrcp.pop %v1919
      %v1924 = vmul.f32 1.0, %v1923
      %v1925 = vrcp.pop %v1920
      %v1926 = vmul.f32 1.0, %v1925
      %v1927 = vtanh.pop %v1905
      %v1928 = vmul.f32 %v1924, %v1021
      %v1929 = vmul.f32 %v1922, %v1927
      %v1930 = vadd.f32 %v1928, %v1929
      %v1931 = vtanh.pop %v1930
      %v1932 = vmul.f32 %v1926, %v1931
      %1933 = vst [vmem:[#allocation3 + $0x1] sm:$0x1] %v1932
      %v1934 = vpack.c.bf16 %v1932, %v1932
      %v1935 = vld [vmem:[#allocation10] sm:$0xff]
      %v1936 = vld [vmem:[#allocation10 + $0x8] sm:$0xff]
      %v1937 = vld [vmem:[#allocation10 + $0x10] sm:$0xff]
      %v1938 = vld [vmem:[#allocation10 + $0x18] sm:$0xff]
      %v1939 = vld [vmem:[#allocation10 + $0x20] sm:$0xff]
      %v1940 = vld [vmem:[#allocation10 + $0x28] sm:$0xff]
      %v1941 = vld [vmem:[#allocation10 + $0x30] sm:$0xff]
      %v1942 = vld [vmem:[#allocation10 + $0x38] sm:$0xff]
      %v1943 = vld [vmem:[#allocation10 + $0x40] sm:$0xff]
      %v1944 = vld [vmem:[#allocation10 + $0x48] sm:$0xff]
      %v1945 = vld [vmem:[#allocation10 + $0x50] sm:$0xff]
      %v1946 = vld [vmem:[#allocation10 + $0x58] sm:$0xff]
      %v1947 = vld [vmem:[#allocation10 + $0x60] sm:$0xff]
      %v1948 = vld [vmem:[#allocation10 + $0x68] sm:$0xff]
      %v1949 = vld [vmem:[#allocation10 + $0x70] sm:$0xff]
      %v1950 = vld [vmem:[#allocation10 + $0x78] sm:$0xff]
      %v1951 = vld [vmem:[#allocation10 + $0x80] sm:$0xff]
      %v1952 = vld [vmem:[#allocation10 + $0x88] sm:$0xff]
      %v1953 = vld [vmem:[#allocation10 + $0x90] sm:$0xff]
      %v1954 = vld [vmem:[#allocation10 + $0x98] sm:$0xff]
      %v1955 = vld [vmem:[#allocation10 + $0xa0] sm:$0xff]
      %v1956 = vld [vmem:[#allocation10 + $0xa8] sm:$0xff]
      %v1957 = vld [vmem:[#allocation10 + $0xb0] sm:$0xff]
      %v1958 = vld [vmem:[#allocation10 + $0xb8] sm:$0xff]
      %v1959 = vld [vmem:[#allocation10 + $0xc0] sm:$0xff]
      %v1960 = vld [vmem:[#allocation10 + $0xc8] sm:$0xff]
      %v1961 = vld [vmem:[#allocation10 + $0xd0] sm:$0xff]
      %v1962 = vld [vmem:[#allocation10 + $0xd8] sm:$0xff]
      %v1963 = vld [vmem:[#allocation10 + $0xe0] sm:$0xff]
      %v1964 = vld [vmem:[#allocation10 + $0xe8] sm:$0xff]
      %v1965 = vld [vmem:[#allocation10 + $0xf0] sm:$0xff]
      %v1966 = vld [vmem:[#allocation10 + $0xf8] sm:$0xff]
      %v1999 = vunpack.c.l.b16 %v1935
      %v2000 = vunpack.c.h.b16 %v1935
      %v2001 = vunpack.c.l.b16 %v1936
      %v2002 = vunpack.c.h.b16 %v1936
      %v2003 = vunpack.c.l.b16 %v1937
      %v2004 = vunpack.c.h.b16 %v1937
      %v2005 = vunpack.c.l.b16 %v1938
      %v2006 = vunpack.c.h.b16 %v1938
      %v2007 = vunpack.c.l.b16 %v1939
      %v2008 = vunpack.c.h.b16 %v1939
      %v2009 = vunpack.c.l.b16 %v1940
      %v2010 = vunpack.c.h.b16 %v1940
      %v2011 = vunpack.c.l.b16 %v1941
      %v2012 = vunpack.c.h.b16 %v1941
      %v2013 = vunpack.c.l.b16 %v1942
      %v2014 = vunpack.c.h.b16 %v1942
      %v2015 = vunpack.c.l.b16 %v1943
      %v2016 = vunpack.c.h.b16 %v1943
      %v2017 = vunpack.c.l.b16 %v1944
      %v2018 = vunpack.c.h.b16 %v1944
      %v2019 = vunpack.c.l.b16 %v1945
      %v2020 = vunpack.c.h.b16 %v1945
      %v2021 = vunpack.c.l.b16 %v1946
      %v2022 = vunpack.c.h.b16 %v1946
      %v2023 = vunpack.c.l.b16 %v1947
      %v2024 = vunpack.c.h.b16 %v1947
      %v2025 = vunpack.c.l.b16 %v1948
      %v2026 = vunpack.c.h.b16 %v1948
      %v2027 = vunpack.c.l.b16 %v1949
      %v2028 = vunpack.c.h.b16 %v1949
      %v2029 = vunpack.c.l.b16 %v1950
      %v2030 = vunpack.c.h.b16 %v1950
      %v2031 = vunpack.c.l.b16 %v1951
      %v2032 = vunpack.c.h.b16 %v1951
      %v2033 = vunpack.c.l.b16 %v1952
      %v2034 = vunpack.c.h.b16 %v1952
      %v2035 = vunpack.c.l.b16 %v1953
      %v2036 = vunpack.c.h.b16 %v1953
      %v2037 = vunpack.c.l.b16 %v1954
      %v2038 = vunpack.c.h.b16 %v1954
      %v2039 = vunpack.c.l.b16 %v1955
      %v2040 = vunpack.c.h.b16 %v1955
      %v2041 = vunpack.c.l.b16 %v1956
      %v2042 = vunpack.c.h.b16 %v1956
      %v2043 = vunpack.c.l.b16 %v1957
      %v2044 = vunpack.c.h.b16 %v1957
      %v2045 = vunpack.c.l.b16 %v1958
      %v2046 = vunpack.c.h.b16 %v1958
      %v2047 = vunpack.c.l.b16 %v1959
      %v2048 = vunpack.c.h.b16 %v1959
      %v2049 = vunpack.c.l.b16 %v1960
      %v2050 = vunpack.c.h.b16 %v1960
      %v2051 = vunpack.c.l.b16 %v1961
      %v2052 = vunpack.c.h.b16 %v1961
      %v2053 = vunpack.c.l.b16 %v1962
      %v2054 = vunpack.c.h.b16 %v1962
      %v2055 = vunpack.c.l.b16 %v1963
      %v2056 = vunpack.c.h.b16 %v1963
      %v2057 = vunpack.c.l.b16 %v1964
      %v2058 = vunpack.c.h.b16 %v1964
      %v2059 = vunpack.c.l.b16 %v1965
      %v2060 = vunpack.c.h.b16 %v1965
      %v2061 = vunpack.c.l.b16 %v1966
      %v2062 = vunpack.c.h.b16 %v1966
      %v2063 = vpack.c.b16 %v2003, %v1999
      %v2064 = vpack.c.b16 %v2004, %v2000
      %v2065 = vpack.c.b16 %v2005, %v2001
      %v2066 = vpack.c.b16 %v2006, %v2002
      %v2067 = vpack.c.b16 %v2011, %v2007
      %v2068 = vpack.c.b16 %v2012, %v2008
      %v2069 = vpack.c.b16 %v2013, %v2009
      %v2070 = vpack.c.b16 %v2014, %v2010
      %v2071 = vpack.c.b16 %v2019, %v2015
      %v2072 = vpack.c.b16 %v2020, %v2016
      %v2073 = vpack.c.b16 %v2021, %v2017
      %v2074 = vpack.c.b16 %v2022, %v2018
      %v2075 = vpack.c.b16 %v2027, %v2023
      %v2076 = vpack.c.b16 %v2028, %v2024
      %v2077 = vpack.c.b16 %v2029, %v2025
      %v2078 = vpack.c.b16 %v2030, %v2026
      %v2079 = vpack.c.b16 %v2035, %v2031
      %v2080 = vpack.c.b16 %v2036, %v2032
      %v2081 = vpack.c.b16 %v2037, %v2033
      %v2082 = vpack.c.b16 %v2038, %v2034
      %v2083 = vpack.c.b16 %v2043, %v2039
      %v2084 = vpack.c.b16 %v2044, %v2040
      %v2085 = vpack.c.b16 %v2045, %v2041
      %v2086 = vpack.c.b16 %v2046, %v2042
      %v2087 = vpack.c.b16 %v2051, %v2047
      %v2088 = vpack.c.b16 %v2052, %v2048
      %v2089 = vpack.c.b16 %v2053, %v2049
      %v2090 = vpack.c.b16 %v2054, %v2050
      %v2091 = vpack.c.b16 %v2059, %v2055
      %v2092 = vpack.c.b16 %v2060, %v2056
      %v2093 = vpack.c.b16 %v2061, %v2057
      %v2094 = vpack.c.b16 %v2062, %v2058
      %2127 = vmatprep.subr.bf16.mxu0 %v2064
      %2128 = vmatpush1.bf16.msra.mxu0 %v2063
      %2129 = vmatprep.subr.bf16.mxu0 %v2068
      %2130 = vmatpush1.bf16.msra.mxu0 %v2067
      %2131 = vmatprep.subr.bf16.mxu0 %v2072
      %2132 = vmatpush1.bf16.msra.mxu0 %v2071
      %2133 = vmatprep.subr.bf16.mxu0 %v2076
      %2134 = vmatpush1.bf16.msra.mxu0 %v2075
      %2135 = vmatprep.subr.bf16.mxu0 %v2080
      %2136 = vmatpush1.bf16.msra.mxu0 %v2079
      %2137 = vmatprep.subr.bf16.mxu0 %v2084
      %2138 = vmatpush1.bf16.msra.mxu0 %v2083
      %2139 = vmatprep.subr.bf16.mxu0 %v2088
      %2140 = vmatpush1.bf16.msra.mxu0 %v2087
      %2141 = vmatprep.subr.bf16.mxu0 %v2092
      %2142 = vmatpush1.bf16.msra.mxu0 %v2091
      %2143 = vmatprep.subr.bf16.mxu0 0
      %2144 = vmatpush1.bf16.msra.mxu0 0
      %2145 = vmatprep.subr.bf16.mxu0 0
      %2146 = vmatpush1.bf16.msra.mxu0 0
      %2147 = vmatprep.subr.bf16.mxu0 0
      %2148 = vmatpush1.bf16.msra.mxu0 0
      %2149 = vmatprep.subr.bf16.mxu0 0
      %2150 = vmatpush1.bf16.msra.mxu0 0
      %2151 = vmatprep.subr.bf16.mxu0 0
      %2152 = vmatpush1.bf16.msra.mxu0 0
      %2153 = vmatprep.subr.bf16.mxu0 0
      %2154 = vmatpush1.bf16.msra.mxu0 0
      %2155 = vmatprep.subr.bf16.mxu0 0
      %2156 = vmatpush1.bf16.msra.mxu0 0
      %2157 = vmatprep.subr.bf16.mxu0 0
      %2158 = vmatpush1.bf16.msra.mxu0 0
      %2159 = vmatprep.mubr.bf16.mxu0 0
      %2160 = vmatmul.mubr.bf16.gmra.mrb[0].mxu0 %v1934
      %v2161 = vpop.f32.mrb[0].mxu0
      %v2162 = vadd.f32 %v295, %v2161
      %v2163 = vpop.f32.mrb[0].mxu0
      %v2164 = vadd.f32 %v299, %v2163
      %v2165 = vpop.f32.mrb[0].mxu0
      %v2166 = vpop.f32.mrb[0].mxu0
      %2167 = vdwg.mxu0
      %2168 = vmatprep.subr.bf16.mxu0 %v2066
      %2169 = vmatpush1.bf16.msra.mxu0 %v2065
      %2170 = vmatprep.subr.bf16.mxu0 %v2070
      %2171 = vmatpush1.bf16.msra.mxu0 %v2069
      %2172 = vmatprep.subr.bf16.mxu0 %v2074
      %2173 = vmatpush1.bf16.msra.mxu0 %v2073
      %2174 = vmatprep.subr.bf16.mxu0 %v2078
      %2175 = vmatpush1.bf16.msra.mxu0 %v2077
      %2176 = vmatprep.subr.bf16.mxu0 %v2082
      %2177 = vmatpush1.bf16.msra.mxu0 %v2081
      %2178 = vmatprep.subr.bf16.mxu0 %v2086
      %2179 = vmatpush1.bf16.msra.mxu0 %v2085
      %2180 = vmatprep.subr.bf16.mxu0 %v2090
      %2181 = vmatpush1.bf16.msra.mxu0 %v2089
      %2182 = vmatprep.subr.bf16.mxu0 %v2094
      %2183 = vmatpush1.bf16.msra.mxu0 %v2093
      %2184 = vmatprep.subr.bf16.mxu0 0
      %2185 = vmatpush1.bf16.msra.mxu0 0
      %2186 = vmatprep.subr.bf16.mxu0 0
      %2187 = vmatpush1.bf16.msra.mxu0 0
      %2188 = vmatprep.subr.bf16.mxu0 0
      %2189 = vmatpush1.bf16.msra.mxu0 0
      %2190 = vmatprep.subr.bf16.mxu0 0
      %2191 = vmatpush1.bf16.msra.mxu0 0
      %2192 = vmatprep.subr.bf16.mxu0 0
      %2193 = vmatpush1.bf16.msra.mxu0 0
      %2194 = vmatprep.subr.bf16.mxu0 0
      %2195 = vmatpush1.bf16.msra.mxu0 0
      %2196 = vmatprep.subr.bf16.mxu0 0
      %2197 = vmatpush1.bf16.msra.mxu0 0
      %2198 = vmatprep.subr.bf16.mxu0 0
      %2199 = vmatpush1.bf16.msra.mxu0 0
      %2200 = vmatprep.mubr.bf16.mxu0 0
      %2201 = vmatmul.mubr.bf16.gmra.mrb[0].mxu0 %v1934
      %v2202 = vpop.f32.mrb[0].mxu0
      %v2203 = vadd.f32 %v303, %v2202
      %v2204 = vpop.f32.mrb[0].mxu0
      %v2205 = vadd.f32 %v307, %v2204
      %v2206 = vpop.f32.mrb[0].mxu0
      %v2207 = vpop.f32.mrb[0].mxu0
      %2208 = vdwg.mxu0
      %s2209 = sadd.s32 %s97, 2
      %s2210 = sshra.s32 %s2209, 3
      %s2211 = sand.u32 %s2209, 7
      %s2212 = sshra.s32 %s2209, 3
      %s2213 = sand.u32 %s2209, 7
      %s2214 = smul.u32 %s2210, 4
      %s2215 = smul.u32 %s2214, 8
      %s2216 = sadd.s32 %s2215, %s2213
      %s2217 = scalar_lea.vmem [#allocation4], %s2216
      %v2218 = vld [vmem:[%s2217] ss:$8 sm:$0xf]
      %v2219 = vld [vmem:[#allocation7] sm:$0xff]
      %v2220 = vld [vmem:[#allocation7 + $0x8] sm:$0xff]
      %v2221 = vld [vmem:[#allocation7 + $0x10] sm:$0xff]
      %v2222 = vld [vmem:[#allocation7 + $0x18] sm:$0xff]
      %v2223 = vld [vmem:[#allocation7 + $0x20] sm:$0xff]
      %v2224 = vld [vmem:[#allocation7 + $0x28] sm:$0xff]
      %v2225 = vld [vmem:[#allocation7 + $0x30] sm:$0xff]
      %v2226 = vld [vmem:[#allocation7 + $0x38] sm:$0xff]
      %v2227 = vld [vmem:[#allocation7 + $0x40] sm:$0xff]
      %v2228 = vld [vmem:[#allocation7 + $0x48] sm:$0xff]
      %v2229 = vld [vmem:[#allocation7 + $0x50] sm:$0xff]
      %v2230 = vld [vmem:[#allocation7 + $0x58] sm:$0xff]
      %v2231 = vld [vmem:[#allocation7 + $0x60] sm:$0xff]
      %v2232 = vld [vmem:[#allocation7 + $0x68] sm:$0xff]
      %v2233 = vld [vmem:[#allocation7 + $0x70] sm:$0xff]
      %v2234 = vld [vmem:[#allocation7 + $0x78] sm:$0xff]
      %v2235 = vld [vmem:[#allocation7 + $0x80] sm:$0xff]
      %v2236 = vld [vmem:[#allocation7 + $0x88] sm:$0xff]
      %v2237 = vld [vmem:[#allocation7 + $0x90] sm:$0xff]
      %v2238 = vld [vmem:[#allocation7 + $0x98] sm:$0xff]
      %v2239 = vld [vmem:[#allocation7 + $0xa0] sm:$0xff]
      %v2240 = vld [vmem:[#allocation7 + $0xa8] sm:$0xff]
      %v2241 = vld [vmem:[#allocation7 + $0xb0] sm:$0xff]
      %v2242 = vld [vmem:[#allocation7 + $0xb8] sm:$0xff]
      %v2243 = vld [vmem:[#allocation7 + $0xc0] sm:$0xff]
      %v2244 = vld [vmem:[#allocation7 + $0xc8] sm:$0xff]
      %v2245 = vld [vmem:[#allocation7 + $0xd0] sm:$0xff]
      %v2246 = vld [vmem:[#allocation7 + $0xd8] sm:$0xff]
      %v2247 = vld [vmem:[#allocation7 + $0xe0] sm:$0xff]
      %v2248 = vld [vmem:[#allocation7 + $0xe8] sm:$0xff]
      %v2249 = vld [vmem:[#allocation7 + $0xf0] sm:$0xff]
      %v2250 = vld [vmem:[#allocation7 + $0xf8] sm:$0xff]
      %v2283 = vunpack.c.l.b16 %v2219
      %v2284 = vunpack.c.h.b16 %v2219
      %v2285 = vunpack.c.l.b16 %v2220
      %v2286 = vunpack.c.h.b16 %v2220
      %v2287 = vunpack.c.l.b16 %v2221
      %v2288 = vunpack.c.h.b16 %v2221
      %v2289 = vunpack.c.l.b16 %v2222
      %v2290 = vunpack.c.h.b16 %v2222
      %v2291 = vunpack.c.l.b16 %v2223
      %v2292 = vunpack.c.h.b16 %v2223
      %v2293 = vunpack.c.l.b16 %v2224
      %v2294 = vunpack.c.h.b16 %v2224
      %v2295 = vunpack.c.l.b16 %v2225
      %v2296 = vunpack.c.h.b16 %v2225
      %v2297 = vunpack.c.l.b16 %v2226
      %v2298 = vunpack.c.h.b16 %v2226
      %v2299 = vunpack.c.l.b16 %v2227
      %v2300 = vunpack.c.h.b16 %v2227
      %v2301 = vunpack.c.l.b16 %v2228
      %v2302 = vunpack.c.h.b16 %v2228
      %v2303 = vunpack.c.l.b16 %v2229
      %v2304 = vunpack.c.h.b16 %v2229
      %v2305 = vunpack.c.l.b16 %v2230
      %v2306 = vunpack.c.h.b16 %v2230
      %v2307 = vunpack.c.l.b16 %v2231
      %v2308 = vunpack.c.h.b16 %v2231
      %v2309 = vunpack.c.l.b16 %v2232
      %v2310 = vunpack.c.h.b16 %v2232
      %v2311 = vunpack.c.l.b16 %v2233
      %v2312 = vunpack.c.h.b16 %v2233
      %v2313 = vunpack.c.l.b16 %v2234
      %v2314 = vunpack.c.h.b16 %v2234
      %v2315 = vunpack.c.l.b16 %v2235
      %v2316 = vunpack.c.h.b16 %v2235
      %v2317 = vunpack.c.l.b16 %v2236
      %v2318 = vunpack.c.h.b16 %v2236
      %v2319 = vunpack.c.l.b16 %v2237
      %v2320 = vunpack.c.h.b16 %v2237
      %v2321 = vunpack.c.l.b16 %v2238
      %v2322 = vunpack.c.h.b16 %v2238
      %v2323 = vunpack.c.l.b16 %v2239
      %v2324 = vunpack.c.h.b16 %v2239
      %v2325 = vunpack.c.l.b16 %v2240
      %v2326 = vunpack.c.h.b16 %v2240
      %v2327 = vunpack.c.l.b16 %v2241
      %v2328 = vunpack.c.h.b16 %v2241
      %v2329 = vunpack.c.l.b16 %v2242
      %v2330 = vunpack.c.h.b16 %v2242
      %v2331 = vunpack.c.l.b16 %v2243
      %v2332 = vunpack.c.h.b16 %v2243
      %v2333 = vunpack.c.l.b16 %v2244
      %v2334 = vunpack.c.h.b16 %v2244
      %v2335 = vunpack.c.l.b16 %v2245
      %v2336 = vunpack.c.h.b16 %v2245
      %v2337 = vunpack.c.l.b16 %v2246
      %v2338 = vunpack.c.h.b16 %v2246
      %v2339 = vunpack.c.l.b16 %v2247
      %v2340 = vunpack.c.h.b16 %v2247
      %v2341 = vunpack.c.l.b16 %v2248
      %v2342 = vunpack.c.h.b16 %v2248
      %v2343 = vunpack.c.l.b16 %v2249
      %v2344 = vunpack.c.h.b16 %v2249
      %v2345 = vunpack.c.l.b16 %v2250
      %v2346 = vunpack.c.h.b16 %v2250
      %v2347 = vpack.c.b16 %v2287, %v2283
      %v2348 = vpack.c.b16 %v2288, %v2284
      %v2349 = vpack.c.b16 %v2289, %v2285
      %v2350 = vpack.c.b16 %v2290, %v2286
      %v2351 = vpack.c.b16 %v2295, %v2291
      %v2352 = vpack.c.b16 %v2296, %v2292
      %v2353 = vpack.c.b16 %v2297, %v2293
      %v2354 = vpack.c.b16 %v2298, %v2294
      %v2355 = vpack.c.b16 %v2303, %v2299
      %v2356 = vpack.c.b16 %v2304, %v2300
      %v2357 = vpack.c.b16 %v2305, %v2301
      %v2358 = vpack.c.b16 %v2306, %v2302
      %v2359 = vpack.c.b16 %v2311, %v2307
      %v2360 = vpack.c.b16 %v2312, %v2308
      %v2361 = vpack.c.b16 %v2313, %v2309
      %v2362 = vpack.c.b16 %v2314, %v2310
      %v2363 = vpack.c.b16 %v2319, %v2315
      %v2364 = vpack.c.b16 %v2320, %v2316
      %v2365 = vpack.c.b16 %v2321, %v2317
      %v2366 = vpack.c.b16 %v2322, %v2318
      %v2367 = vpack.c.b16 %v2327, %v2323
      %v2368 = vpack.c.b16 %v2328, %v2324
      %v2369 = vpack.c.b16 %v2329, %v2325
      %v2370 = vpack.c.b16 %v2330, %v2326
      %v2371 = vpack.c.b16 %v2335, %v2331
      %v2372 = vpack.c.b16 %v2336, %v2332
      %v2373 = vpack.c.b16 %v2337, %v2333
      %v2374 = vpack.c.b16 %v2338, %v2334
      %v2375 = vpack.c.b16 %v2343, %v2339
      %v2376 = vpack.c.b16 %v2344, %v2340
      %v2377 = vpack.c.b16 %v2345, %v2341
      %v2378 = vpack.c.b16 %v2346, %v2342
      %2411 = vmatprep.subr.bf16.mxu0 %v2348
      %2412 = vmatpush1.bf16.msra.mxu0 %v2347
      %2413 = vmatprep.subr.bf16.mxu0 %v2352
      %2414 = vmatpush1.bf16.msra.mxu0 %v2351
      %2415 = vmatprep.subr.bf16.mxu0 %v2356
      %2416 = vmatpush1.bf16.msra.mxu0 %v2355
      %2417 = vmatprep.subr.bf16.mxu0 %v2360
      %2418 = vmatpush1.bf16.msra.mxu0 %v2359
      %2419 = vmatprep.subr.bf16.mxu0 %v2364
      %2420 = vmatpush1.bf16.msra.mxu0 %v2363
      %2421 = vmatprep.subr.bf16.mxu0 %v2368
      %2422 = vmatpush1.bf16.msra.mxu0 %v2367
      %2423 = vmatprep.subr.bf16.mxu0 %v2372
      %2424 = vmatpush1.bf16.msra.mxu0 %v2371
      %2425 = vmatprep.subr.bf16.mxu0 %v2376
      %2426 = vmatpush1.bf16.msra.mxu0 %v2375
      %2427 = vmatprep.subr.bf16.mxu0 0
      %2428 = vmatpush1.bf16.msra.mxu0 0
      %2429 = vmatprep.subr.bf16.mxu0 0
      %2430 = vmatpush1.bf16.msra.mxu0 0
      %2431 = vmatprep.subr.bf16.mxu0 0
      %2432 = vmatpush1.bf16.msra.mxu0 0
      %2433 = vmatprep.subr.bf16.mxu0 0
      %2434 = vmatpush1.bf16.msra.mxu0 0
      %2435 = vmatprep.subr.bf16.mxu0 0
      %2436 = vmatpush1.bf16.msra.mxu0 0
      %2437 = vmatprep.subr.bf16.mxu0 0
      %2438 = vmatpush1.bf16.msra.mxu0 0
      %2439 = vmatprep.subr.bf16.mxu0 0
      %2440 = vmatpush1.bf16.msra.mxu0 0
      %2441 = vmatprep.subr.bf16.mxu0 0
      %2442 = vmatpush1.bf16.msra.mxu0 0
      %2443 = vmatprep.mubr.bf16.mxu0 0
      %2444 = vmatmul.mubr.bf16.gmra.mrb[0].mxu0 %v1634
      %v2445 = vpop.f32.mrb[0].mxu0
      %v2446 = vadd.f32 0.0, %v2445
      %v2447 = vpop.f32.mrb[0].mxu0
      %v2448 = vadd.f32 0.0, %v2447
      %v2449 = vpop.f32.mrb[0].mxu0
      %v2450 = vpop.f32.mrb[0].mxu0
      %2451 = vdwg.mxu0
      %2452 = vmatprep.subr.bf16.mxu0 %v2350
      %2453 = vmatpush1.bf16.msra.mxu0 %v2349
      %2454 = vmatprep.subr.bf16.mxu0 %v2354
      %2455 = vmatpush1.bf16.msra.mxu0 %v2353
      %2456 = vmatprep.subr.bf16.mxu0 %v2358
      %2457 = vmatpush1.bf16.msra.mxu0 %v2357
      %2458 = vmatprep.subr.bf16.mxu0 %v2362
      %2459 = vmatpush1.bf16.msra.mxu0 %v2361
      %2460 = vmatprep.subr.bf16.mxu0 %v2366
      %2461 = vmatpush1.bf16.msra.mxu0 %v2365
      %2462 = vmatprep.subr.bf16.mxu0 %v2370
      %2463 = vmatpush1.bf16.msra.mxu0 %v2369
      %2464 = vmatprep.subr.bf16.mxu0 %v2374
      %2465 = vmatpush1.bf16.msra.mxu0 %v2373
      %2466 = vmatprep.subr.bf16.mxu0 %v2378
      %2467 = vmatpush1.bf16.msra.mxu0 %v2377
      %2468 = vmatprep.subr.bf16.mxu0 0
      %2469 = vmatpush1.bf16.msra.mxu0 0
      %2470 = vmatprep.subr.bf16.mxu0 0
      %2471 = vmatpush1.bf16.msra.mxu0 0
      %2472 = vmatprep.subr.bf16.mxu0 0
      %2473 = vmatpush1.bf16.msra.mxu0 0
      %2474 = vmatprep.subr.bf16.mxu0 0
      %2475 = vmatpush1.bf16.msra.mxu0 0
      %2476 = vmatprep.subr.bf16.mxu0 0
      %2477 = vmatpush1.bf16.msra.mxu0 0
      %2478 = vmatprep.subr.bf16.mxu0 0
      %2479 = vmatpush1.bf16.msra.mxu0 0
      %2480 = vmatprep.subr.bf16.mxu0 0
      %2481 = vmatpush1.bf16.msra.mxu0 0
      %2482 = vmatprep.subr.bf16.mxu0 0
      %2483 = vmatpush1.bf16.msra.mxu0 0
      %2484 = vmatprep.mubr.bf16.mxu0 0
      %2485 = vmatmul.mubr.bf16.gmra.mrb[0].mxu0 %v1634
      %v2486 = vpop.f32.mrb[0].mxu0
      %v2487 = vadd.f32 0.0, %v2486
      %v2488 = vpop.f32.mrb[0].mxu0
      %v2489 = vadd.f32 0.0, %v2488
      %v2490 = vpop.f32.mrb[0].mxu0
      %v2491 = vpop.f32.mrb[0].mxu0
      %2492 = vdwg.mxu0
      %v2497 = vcombine.low %v2446, %v2448
      %v2498 = vcombine.low %v2487, %v2489
      %v2500 = vunpack.c.l.s4 1966171168
      %v2501 = vunpack.c.0.s8 %v2500
      %v2502 = vlaneseq
      %v2503 = vshrl.u32 %v2502, 7
      %v2504 = vsub.s32 %v2501, %v2503
      %v2505 = vrot.slane %v2497, %v2504
      %v2507 = vunpack.c.l.s4 1966171168
      %v2508 = vunpack.c.0.s8 %v2507
      %v2509 = vlaneseq
      %v2510 = vshrl.u32 %v2509, 7
      %v2511 = vsub.s32 %v2508, %v2510
      %v2512 = vrot.slane %v2498, %v2511
      %v2513 = vcombine.low %v2505, %v2512
      %v2515 = vunpack.c.l.s4 1966171168
      %v2516 = vunpack.c.0.s8 %v2515
      %v2517 = vlaneseq
      %v2518 = vshrl.u32 %v2517, 7
      %v2519 = vsub.s32 %v2516, %v2518
      %v2520 = vrot.slane %v2513, %v2519
      %v2522 = vadd.f32 %v2218, %v2520
      %v2523 = vxor.u32 %v2522, 2147483648
      %v2524 = vmul.f32 %v2523, 1.442695
      %v2525 = vpow.pop %v2524
      %v2526 = vadd.f32 %v2525, 1.0
      %v2527 = vrcp.pop %v2526
      %v2528 = vmul.f32 1.0, %v2527
      %v2530 = vrot.slane %v2522, 3
      %v2532 = vtanh.pop %v2530
      %v2534 = vrot.slane %v2528, 1
      %v2536 = vmul.f32 %v2534, %v1629
      %v2537 = vmul.f32 %v2528, %v2532
      %v2538 = vadd.f32 %v2536, %v2537
      %v2539 = vtanh.pop %v2538
      %v2540 = vrot.slane %v2528, 2
      %v2542 = vmul.f32 %v2540, %v2539
      %v2543 = vpack.c.bf16 %v2542, %v2542
      %v2544 = vld [vmem:[#allocation9] sm:$0xff]
      %v2545 = vld [vmem:[#allocation9 + $0x8] sm:$0xff]
      %v2546 = vld [vmem:[#allocation9 + $0x10] sm:$0xff]
      %v2547 = vld [vmem:[#allocation9 + $0x18] sm:$0xff]
      %v2548 = vld [vmem:[#allocation9 + $0x20] sm:$0xff]
      %v2549 = vld [vmem:[#allocation9 + $0x28] sm:$0xff]
      %v2550 = vld [vmem:[#allocation9 + $0x30] sm:$0xff]
      %v2551 = vld [vmem:[#allocation9 + $0x38] sm:$0xff]
      %v2552 = vld [vmem:[#allocation9 + $0x40] sm:$0xff]
      %v2553 = vld [vmem:[#allocation9 + $0x48] sm:$0xff]
      %v2554 = vld [vmem:[#allocation9 + $0x50] sm:$0xff]
      %v2555 = vld [vmem:[#allocation9 + $0x58] sm:$0xff]
      %v2556 = vld [vmem:[#allocation9 + $0x60] sm:$0xff]
      %v2557 = vld [vmem:[#allocation9 + $0x68] sm:$0xff]
      %v2558 = vld [vmem:[#allocation9 + $0x70] sm:$0xff]
      %v2559 = vld [vmem:[#allocation9 + $0x78] sm:$0xff]
      %v2560 = vld [vmem:[#allocation9 + $0x80] sm:$0xff]
      %v2561 = vld [vmem:[#allocation9 + $0x88] sm:$0xff]
      %v2562 = vld [vmem:[#allocation9 + $0x90] sm:$0xff]
      %v2563 = vld [vmem:[#allocation9 + $0x98] sm:$0xff]
      %v2564 = vld [vmem:[#allocation9 + $0xa0] sm:$0xff]
      %v2565 = vld [vmem:[#allocation9 + $0xa8] sm:$0xff]
      %v2566 = vld [vmem:[#allocation9 + $0xb0] sm:$0xff]
      %v2567 = vld [vmem:[#allocation9 + $0xb8] sm:$0xff]
      %v2568 = vld [vmem:[#allocation9 + $0xc0] sm:$0xff]
      %v2569 = vld [vmem:[#allocation9 + $0xc8] sm:$0xff]
      %v2570 = vld [vmem:[#allocation9 + $0xd0] sm:$0xff]
      %v2571 = vld [vmem:[#allocation9 + $0xd8] sm:$0xff]
      %v2572 = vld [vmem:[#allocation9 + $0xe0] sm:$0xff]
      %v2573 = vld [vmem:[#allocation9 + $0xe8] sm:$0xff]
      %v2574 = vld [vmem:[#allocation9 + $0xf0] sm:$0xff]
      %v2575 = vld [vmem:[#allocation9 + $0xf8] sm:$0xff]
      %v2608 = vunpack.c.l.b16 %v2544
      %v2609 = vunpack.c.h.b16 %v2544
      %v2610 = vunpack.c.l.b16 %v2545
      %v2611 = vunpack.c.h.b16 %v2545
      %v2612 = vunpack.c.l.b16 %v2546
      %v2613 = vunpack.c.h.b16 %v2546
      %v2614 = vunpack.c.l.b16 %v2547
      %v2615 = vunpack.c.h.b16 %v2547
      %v2616 = vunpack.c.l.b16 %v2548
      %v2617 = vunpack.c.h.b16 %v2548
      %v2618 = vunpack.c.l.b16 %v2549
      %v2619 = vunpack.c.h.b16 %v2549
      %v2620 = vunpack.c.l.b16 %v2550
      %v2621 = vunpack.c.h.b16 %v2550
      %v2622 = vunpack.c.l.b16 %v2551
      %v2623 = vunpack.c.h.b16 %v2551
      %v2624 = vunpack.c.l.b16 %v2552
      %v2625 = vunpack.c.h.b16 %v2552
      %v2626 = vunpack.c.l.b16 %v2553
      %v2627 = vunpack.c.h.b16 %v2553
      %v2628 = vunpack.c.l.b16 %v2554
      %v2629 = vunpack.c.h.b16 %v2554
      %v2630 = vunpack.c.l.b16 %v2555
      %v2631 = vunpack.c.h.b16 %v2555
      %v2632 = vunpack.c.l.b16 %v2556
      %v2633 = vunpack.c.h.b16 %v2556
      %v2634 = vunpack.c.l.b16 %v2557
      %v2635 = vunpack.c.h.b16 %v2557
      %v2636 = vunpack.c.l.b16 %v2558
      %v2637 = vunpack.c.h.b16 %v2558
      %v2638 = vunpack.c.l.b16 %v2559
      %v2639 = vunpack.c.h.b16 %v2559
      %v2640 = vunpack.c.l.b16 %v2560
      %v2641 = vunpack.c.h.b16 %v2560
      %v2642 = vunpack.c.l.b16 %v2561
      %v2643 = vunpack.c.h.b16 %v2561
      %v2644 = vunpack.c.l.b16 %v2562
      %v2645 = vunpack.c.h.b16 %v2562
      %v2646 = vunpack.c.l.b16 %v2563
      %v2647 = vunpack.c.h.b16 %v2563
      %v2648 = vunpack.c.l.b16 %v2564
      %v2649 = vunpack.c.h.b16 %v2564
      %v2650 = vunpack.c.l.b16 %v2565
      %v2651 = vunpack.c.h.b16 %v2565
      %v2652 = vunpack.c.l.b16 %v2566
      %v2653 = vunpack.c.h.b16 %v2566
      %v2654 = vunpack.c.l.b16 %v2567
      %v2655 = vunpack.c.h.b16 %v2567
      %v2656 = vunpack.c.l.b16 %v2568
      %v2657 = vunpack.c.h.b16 %v2568
      %v2658 = vunpack.c.l.b16 %v2569
      %v2659 = vunpack.c.h.b16 %v2569
      %v2660 = vunpack.c.l.b16 %v2570
      %v2661 = vunpack.c.h.b16 %v2570
      %v2662 = vunpack.c.l.b16 %v2571
      %v2663 = vunpack.c.h.b16 %v2571
      %v2664 = vunpack.c.l.b16 %v2572
      %v2665 = vunpack.c.h.b16 %v2572
      %v2666 = vunpack.c.l.b16 %v2573
      %v2667 = vunpack.c.h.b16 %v2573
      %v2668 = vunpack.c.l.b16 %v2574
      %v2669 = vunpack.c.h.b16 %v2574
      %v2670 = vunpack.c.l.b16 %v2575
      %v2671 = vunpack.c.h.b16 %v2575
      %v2672 = vpack.c.b16 %v2612, %v2608
      %v2673 = vpack.c.b16 %v2613, %v2609
      %v2674 = vpack.c.b16 %v2614, %v2610
      %v2675 = vpack.c.b16 %v2615, %v2611
      %v2676 = vpack.c.b16 %v2620, %v2616
      %v2677 = vpack.c.b16 %v2621, %v2617
      %v2678 = vpack.c.b16 %v2622, %v2618
      %v2679 = vpack.c.b16 %v2623, %v2619
      %v2680 = vpack.c.b16 %v2628, %v2624
      %v2681 = vpack.c.b16 %v2629, %v2625
      %v2682 = vpack.c.b16 %v2630, %v2626
      %v2683 = vpack.c.b16 %v2631, %v2627
      %v2684 = vpack.c.b16 %v2636, %v2632
      %v2685 = vpack.c.b16 %v2637, %v2633
      %v2686 = vpack.c.b16 %v2638, %v2634
      %v2687 = vpack.c.b16 %v2639, %v2635
      %v2688 = vpack.c.b16 %v2644, %v2640
      %v2689 = vpack.c.b16 %v2645, %v2641
      %v2690 = vpack.c.b16 %v2646, %v2642
      %v2691 = vpack.c.b16 %v2647, %v2643
      %v2692 = vpack.c.b16 %v2652, %v2648
      %v2693 = vpack.c.b16 %v2653, %v2649
      %v2694 = vpack.c.b16 %v2654, %v2650
      %v2695 = vpack.c.b16 %v2655, %v2651
      %v2696 = vpack.c.b16 %v2660, %v2656
      %v2697 = vpack.c.b16 %v2661, %v2657
      %v2698 = vpack.c.b16 %v2662, %v2658
      %v2699 = vpack.c.b16 %v2663, %v2659
      %v2700 = vpack.c.b16 %v2668, %v2664
      %v2701 = vpack.c.b16 %v2669, %v2665
      %v2702 = vpack.c.b16 %v2670, %v2666
      %v2703 = vpack.c.b16 %v2671, %v2667
      %2736 = vmatprep.subr.bf16.mxu0 %v2673
      %2737 = vmatpush1.bf16.msra.mxu0 %v2672
      %2738 = vmatprep.subr.bf16.mxu0 %v2677
      %2739 = vmatpush1.bf16.msra.mxu0 %v2676
      %2740 = vmatprep.subr.bf16.mxu0 %v2681
      %2741 = vmatpush1.bf16.msra.mxu0 %v2680
      %2742 = vmatprep.subr.bf16.mxu0 %v2685
      %2743 = vmatpush1.bf16.msra.mxu0 %v2684
      %2744 = vmatprep.subr.bf16.mxu0 %v2689
      %2745 = vmatpush1.bf16.msra.mxu0 %v2688
      %2746 = vmatprep.subr.bf16.mxu0 %v2693
      %2747 = vmatpush1.bf16.msra.mxu0 %v2692
      %2748 = vmatprep.subr.bf16.mxu0 %v2697
      %2749 = vmatpush1.bf16.msra.mxu0 %v2696
      %2750 = vmatprep.subr.bf16.mxu0 %v2701
      %2751 = vmatpush1.bf16.msra.mxu0 %v2700
      %2752 = vmatprep.subr.bf16.mxu0 0
      %2753 = vmatpush1.bf16.msra.mxu0 0
      %2754 = vmatprep.subr.bf16.mxu0 0
      %2755 = vmatpush1.bf16.msra.mxu0 0
      %2756 = vmatprep.subr.bf16.mxu0 0
      %2757 = vmatpush1.bf16.msra.mxu0 0
      %2758 = vmatprep.subr.bf16.mxu0 0
      %2759 = vmatpush1.bf16.msra.mxu0 0
      %2760 = vmatprep.subr.bf16.mxu0 0
      %2761 = vmatpush1.bf16.msra.mxu0 0
      %2762 = vmatprep.subr.bf16.mxu0 0
      %2763 = vmatpush1.bf16.msra.mxu0 0
      %2764 = vmatprep.subr.bf16.mxu0 0
      %2765 = vmatpush1.bf16.msra.mxu0 0
      %2766 = vmatprep.subr.bf16.mxu0 0
      %2767 = vmatpush1.bf16.msra.mxu0 0
      %2768 = vmatprep.mubr.bf16.mxu0 0
      %2769 = vmatmul.mubr.bf16.gmra.mrb[0].mxu0 %v2543
      %v2770 = vpop.f32.mrb[0].mxu0
      %v2771 = vadd.f32 %v2162, %v2770
      %v2772 = vpop.f32.mrb[0].mxu0
      %v2773 = vadd.f32 %v2164, %v2772
      %v2774 = vpop.f32.mrb[0].mxu0
      %v2775 = vpop.f32.mrb[0].mxu0
      %2776 = vdwg.mxu0
      %2777 = vmatprep.subr.bf16.mxu0 %v2675
      %2778 = vmatpush1.bf16.msra.mxu0 %v2674
      %2779 = vmatprep.subr.bf16.mxu0 %v2679
      %2780 = vmatpush1.bf16.msra.mxu0 %v2678
      %2781 = vmatprep.subr.bf16.mxu0 %v2683
      %2782 = vmatpush1.bf16.msra.mxu0 %v2682
      %2783 = vmatprep.subr.bf16.mxu0 %v2687
      %2784 = vmatpush1.bf16.msra.mxu0 %v2686
      %2785 = vmatprep.subr.bf16.mxu0 %v2691
      %2786 = vmatpush1.bf16.msra.mxu0 %v2690
      %2787 = vmatprep.subr.bf16.mxu0 %v2695
      %2788 = vmatpush1.bf16.msra.mxu0 %v2694
      %2789 = vmatprep.subr.bf16.mxu0 %v2699
      %2790 = vmatpush1.bf16.msra.mxu0 %v2698
      %2791 = vmatprep.subr.bf16.mxu0 %v2703
      %2792 = vmatpush1.bf16.msra.mxu0 %v2702
      %2793 = vmatprep.subr.bf16.mxu0 0
      %2794 = vmatpush1.bf16.msra.mxu0 0
      %2795 = vmatprep.subr.bf16.mxu0 0
      %2796 = vmatpush1.bf16.msra.mxu0 0
      %2797 = vmatprep.subr.bf16.mxu0 0
      %2798 = vmatpush1.bf16.msra.mxu0 0
      %2799 = vmatprep.subr.bf16.mxu0 0
      %2800 = vmatpush1.bf16.msra.mxu0 0
      %2801 = vmatprep.subr.bf16.mxu0 0
      %2802 = vmatpush1.bf16.msra.mxu0 0
      %2803 = vmatprep.subr.bf16.mxu0 0
      %2804 = vmatpush1.bf16.msra.mxu0 0
      %2805 = vmatprep.subr.bf16.mxu0 0
      %2806 = vmatpush1.bf16.msra.mxu0 0
      %2807 = vmatprep.subr.bf16.mxu0 0
      %2808 = vmatpush1.bf16.msra.mxu0 0
      %2809 = vmatprep.mubr.bf16.mxu0 0
      %2810 = vmatmul.mubr.bf16.gmra.mrb[0].mxu0 %v2543
      %v2811 = vpop.f32.mrb[0].mxu0
      %v2812 = vadd.f32 %v2203, %v2811
      %v2813 = vpop.f32.mrb[0].mxu0
      %v2814 = vadd.f32 %v2205, %v2813
      %v2815 = vpop.f32.mrb[0].mxu0
      %v2816 = vpop.f32.mrb[0].mxu0
      %2817 = vdwg.mxu0
      %v2818 = vxor.u32 %v2771, 2147483648
      %v2819 = vxor.u32 %v2773, 2147483648
      %v2820 = vxor.u32 %v2812, 2147483648
      %v2821 = vmul.f32 %v2818, 1.442695
      %v2822 = vpow.pop %v2821
      %v2823 = vmul.f32 %v2819, 1.442695
      %v2824 = vpow.pop %v2823
      %v2825 = vmul.f32 %v2820, 1.442695
      %v2826 = vpow.pop %v2825
      %v2827 = vadd.f32 %v2822, 1.0
      %v2828 = vadd.f32 %v2824, 1.0
      %v2829 = vadd.f32 %v2826, 1.0
      %v2830 = vrcp.pop %v2827
      %v2831 = vmul.f32 1.0, %v2830
      %v2832 = vrcp.pop %v2828
      %v2833 = vmul.f32 1.0, %v2832
      %v2834 = vrcp.pop %v2829
      %v2835 = vmul.f32 1.0, %v2834
      %v2836 = vtanh.pop %v2814
      %v2837 = vmul.f32 %v2833, %v1930
      %v2838 = vmul.f32 %v2831, %v2836
      %v2839 = vadd.f32 %v2837, %v2838
      %v2840 = vtanh.pop %v2839
      %v2841 = vmul.f32 %v2835, %v2840
      %2842 = vst [vmem:[#allocation3 + $0x2] sm:$0x1] %v2841
      %v2843 = vpack.c.bf16 %v2841, %v2841
      %v2844 = vld [vmem:[#allocation10] sm:$0xff]
      %v2845 = vld [vmem:[#allocation10 + $0x8] sm:$0xff]
      %v2846 = vld [vmem:[#allocation10 + $0x10] sm:$0xff]
      %v2847 = vld [vmem:[#allocation10 + $0x18] sm:$0xff]
      %v2848 = vld [vmem:[#allocation10 + $0x20] sm:$0xff]
      %v2849 = vld [vmem:[#allocation10 + $0x28] sm:$0xff]
      %v2850 = vld [vmem:[#allocation10 + $0x30] sm:$0xff]
      %v2851 = vld [vmem:[#allocation10 + $0x38] sm:$0xff]
      %v2852 = vld [vmem:[#allocation10 + $0x40] sm:$0xff]
      %v2853 = vld [vmem:[#allocation10 + $0x48] sm:$0xff]
      %v2854 = vld [vmem:[#allocation10 + $0x50] sm:$0xff]
      %v2855 = vld [vmem:[#allocation10 + $0x58] sm:$0xff]
      %v2856 = vld [vmem:[#allocation10 + $0x60] sm:$0xff]
      %v2857 = vld [vmem:[#allocation10 + $0x68] sm:$0xff]
      %v2858 = vld [vmem:[#allocation10 + $0x70] sm:$0xff]
      %v2859 = vld [vmem:[#allocation10 + $0x78] sm:$0xff]
      %v2860 = vld [vmem:[#allocation10 + $0x80] sm:$0xff]
      %v2861 = vld [vmem:[#allocation10 + $0x88] sm:$0xff]
      %v2862 = vld [vmem:[#allocation10 + $0x90] sm:$0xff]
      %v2863 = vld [vmem:[#allocation10 + $0x98] sm:$0xff]
      %v2864 = vld [vmem:[#allocation10 + $0xa0] sm:$0xff]
      %v2865 = vld [vmem:[#allocation10 + $0xa8] sm:$0xff]
      %v2866 = vld [vmem:[#allocation10 + $0xb0] sm:$0xff]
      %v2867 = vld [vmem:[#allocation10 + $0xb8] sm:$0xff]
      %v2868 = vld [vmem:[#allocation10 + $0xc0] sm:$0xff]
      %v2869 = vld [vmem:[#allocation10 + $0xc8] sm:$0xff]
      %v2870 = vld [vmem:[#allocation10 + $0xd0] sm:$0xff]
      %v2871 = vld [vmem:[#allocation10 + $0xd8] sm:$0xff]
      %v2872 = vld [vmem:[#allocation10 + $0xe0] sm:$0xff]
      %v2873 = vld [vmem:[#allocation10 + $0xe8] sm:$0xff]
      %v2874 = vld [vmem:[#allocation10 + $0xf0] sm:$0xff]
      %v2875 = vld [vmem:[#allocation10 + $0xf8] sm:$0xff]
      %v2908 = vunpack.c.l.b16 %v2844
      %v2909 = vunpack.c.h.b16 %v2844
      %v2910 = vunpack.c.l.b16 %v2845
      %v2911 = vunpack.c.h.b16 %v2845
      %v2912 = vunpack.c.l.b16 %v2846
      %v2913 = vunpack.c.h.b16 %v2846
      %v2914 = vunpack.c.l.b16 %v2847
      %v2915 = vunpack.c.h.b16 %v2847
      %v2916 = vunpack.c.l.b16 %v2848
      %v2917 = vunpack.c.h.b16 %v2848
      %v2918 = vunpack.c.l.b16 %v2849
      %v2919 = vunpack.c.h.b16 %v2849
      %v2920 = vunpack.c.l.b16 %v2850
      %v2921 = vunpack.c.h.b16 %v2850
      %v2922 = vunpack.c.l.b16 %v2851
      %v2923 = vunpack.c.h.b16 %v2851
      %v2924 = vunpack.c.l.b16 %v2852
      %v2925 = vunpack.c.h.b16 %v2852
      %v2926 = vunpack.c.l.b16 %v2853
      %v2927 = vunpack.c.h.b16 %v2853
      %v2928 = vunpack.c.l.b16 %v2854
      %v2929 = vunpack.c.h.b16 %v2854
      %v2930 = vunpack.c.l.b16 %v2855
      %v2931 = vunpack.c.h.b16 %v2855
      %v2932 = vunpack.c.l.b16 %v2856
      %v2933 = vunpack.c.h.b16 %v2856
      %v2934 = vunpack.c.l.b16 %v2857
      %v2935 = vunpack.c.h.b16 %v2857
      %v2936 = vunpack.c.l.b16 %v2858
      %v2937 = vunpack.c.h.b16 %v2858
      %v2938 = vunpack.c.l.b16 %v2859
      %v2939 = vunpack.c.h.b16 %v2859
      %v2940 = vunpack.c.l.b16 %v2860
      %v2941 = vunpack.c.h.b16 %v2860
      %v2942 = vunpack.c.l.b16 %v2861
      %v2943 = vunpack.c.h.b16 %v2861
      %v2944 = vunpack.c.l.b16 %v2862
      %v2945 = vunpack.c.h.b16 %v2862
      %v2946 = vunpack.c.l.b16 %v2863
      %v2947 = vunpack.c.h.b16 %v2863
      %v2948 = vunpack.c.l.b16 %v2864
      %v2949 = vunpack.c.h.b16 %v2864
      %v2950 = vunpack.c.l.b16 %v2865
      %v2951 = vunpack.c.h.b16 %v2865
      %v2952 = vunpack.c.l.b16 %v2866
      %v2953 = vunpack.c.h.b16 %v2866
      %v2954 = vunpack.c.l.b16 %v2867
      %v2955 = vunpack.c.h.b16 %v2867
      %v2956 = vunpack.c.l.b16 %v2868
      %v2957 = vunpack.c.h.b16 %v2868
      %v2958 = vunpack.c.l.b16 %v2869
      %v2959 = vunpack.c.h.b16 %v2869
      %v2960 = vunpack.c.l.b16 %v2870
      %v2961 = vunpack.c.h.b16 %v2870
      %v2962 = vunpack.c.l.b16 %v2871
      %v2963 = vunpack.c.h.b16 %v2871
      %v2964 = vunpack.c.l.b16 %v2872
      %v2965 = vunpack.c.h.b16 %v2872
      %v2966 = vunpack.c.l.b16 %v2873
      %v2967 = vunpack.c.h.b16 %v2873
      %v2968 = vunpack.c.l.b16 %v2874
      %v2969 = vunpack.c.h.b16 %v2874
      %v2970 = vunpack.c.l.b16 %v2875
      %v2971 = vunpack.c.h.b16 %v2875
      %v2972 = vpack.c.b16 %v2912, %v2908
      %v2973 = vpack.c.b16 %v2913, %v2909
      %v2974 = vpack.c.b16 %v2914, %v2910
      %v2975 = vpack.c.b16 %v2915, %v2911
      %v2976 = vpack.c.b16 %v2920, %v2916
      %v2977 = vpack.c.b16 %v2921, %v2917
      %v2978 = vpack.c.b16 %v2922, %v2918
      %v2979 = vpack.c.b16 %v2923, %v2919
      %v2980 = vpack.c.b16 %v2928, %v2924
      %v2981 = vpack.c.b16 %v2929, %v2925
      %v2982 = vpack.c.b16 %v2930, %v2926
      %v2983 = vpack.c.b16 %v2931, %v2927
      %v2984 = vpack.c.b16 %v2936, %v2932
      %v2985 = vpack.c.b16 %v2937, %v2933
      %v2986 = vpack.c.b16 %v2938, %v2934
      %v2987 = vpack.c.b16 %v2939, %v2935
      %v2988 = vpack.c.b16 %v2944, %v2940
      %v2989 = vpack.c.b16 %v2945, %v2941
      %v2990 = vpack.c.b16 %v2946, %v2942
      %v2991 = vpack.c.b16 %v2947, %v2943
      %v2992 = vpack.c.b16 %v2952, %v2948
      %v2993 = vpack.c.b16 %v2953, %v2949
      %v2994 = vpack.c.b16 %v2954, %v2950
      %v2995 = vpack.c.b16 %v2955, %v2951
      %v2996 = vpack.c.b16 %v2960, %v2956
      %v2997 = vpack.c.b16 %v2961, %v2957
      %v2998 = vpack.c.b16 %v2962, %v2958
      %v2999 = vpack.c.b16 %v2963, %v2959
      %v3000 = vpack.c.b16 %v2968, %v2964
      %v3001 = vpack.c.b16 %v2969, %v2965
      %v3002 = vpack.c.b16 %v2970, %v2966
      %v3003 = vpack.c.b16 %v2971, %v2967
      %3036 = vmatprep.subr.bf16.mxu0 %v2973
      %3037 = vmatpush1.bf16.msra.mxu0 %v2972
      %3038 = vmatprep.subr.bf16.mxu0 %v2977
      %3039 = vmatpush1.bf16.msra.mxu0 %v2976
      %3040 = vmatprep.subr.bf16.mxu0 %v2981
      %3041 = vmatpush1.bf16.msra.mxu0 %v2980
      %3042 = vmatprep.subr.bf16.mxu0 %v2985
      %3043 = vmatpush1.bf16.msra.mxu0 %v2984
      %3044 = vmatprep.subr.bf16.mxu0 %v2989
      %3045 = vmatpush1.bf16.msra.mxu0 %v2988
      %3046 = vmatprep.subr.bf16.mxu0 %v2993
      %3047 = vmatpush1.bf16.msra.mxu0 %v2992
      %3048 = vmatprep.subr.bf16.mxu0 %v2997
      %3049 = vmatpush1.bf16.msra.mxu0 %v2996
      %3050 = vmatprep.subr.bf16.mxu0 %v3001
      %3051 = vmatpush1.bf16.msra.mxu0 %v3000
      %3052 = vmatprep.subr.bf16.mxu0 0
      %3053 = vmatpush1.bf16.msra.mxu0 0
      %3054 = vmatprep.subr.bf16.mxu0 0
      %3055 = vmatpush1.bf16.msra.mxu0 0
      %3056 = vmatprep.subr.bf16.mxu0 0
      %3057 = vmatpush1.bf16.msra.mxu0 0
      %3058 = vmatprep.subr.bf16.mxu0 0
      %3059 = vmatpush1.bf16.msra.mxu0 0
      %3060 = vmatprep.subr.bf16.mxu0 0
      %3061 = vmatpush1.bf16.msra.mxu0 0
      %3062 = vmatprep.subr.bf16.mxu0 0
      %3063 = vmatpush1.bf16.msra.mxu0 0
      %3064 = vmatprep.subr.bf16.mxu0 0
      %3065 = vmatpush1.bf16.msra.mxu0 0
      %3066 = vmatprep.subr.bf16.mxu0 0
      %3067 = vmatpush1.bf16.msra.mxu0 0
      %3068 = vmatprep.mubr.bf16.mxu0 0
      %3069 = vmatmul.mubr.bf16.gmra.mrb[0].mxu0 %v2843
      %v3070 = vpop.f32.mrb[0].mxu0
      %v3071 = vadd.f32 %v295, %v3070
      %v3072 = vpop.f32.mrb[0].mxu0
      %v3073 = vadd.f32 %v299, %v3072
      %v3074 = vpop.f32.mrb[0].mxu0
      %v3075 = vpop.f32.mrb[0].mxu0
      %3076 = vdwg.mxu0
      %3077 = vmatprep.subr.bf16.mxu0 %v2975
      %3078 = vmatpush1.bf16.msra.mxu0 %v2974
      %3079 = vmatprep.subr.bf16.mxu0 %v2979
      %3080 = vmatpush1.bf16.msra.mxu0 %v2978
      %3081 = vmatprep.subr.bf16.mxu0 %v2983
      %3082 = vmatpush1.bf16.msra.mxu0 %v2982
      %3083 = vmatprep.subr.bf16.mxu0 %v2987
      %3084 = vmatpush1.bf16.msra.mxu0 %v2986
      %3085 = vmatprep.subr.bf16.mxu0 %v2991
      %3086 = vmatpush1.bf16.msra.mxu0 %v2990
      %3087 = vmatprep.subr.bf16.mxu0 %v2995
      %3088 = vmatpush1.bf16.msra.mxu0 %v2994
      %3089 = vmatprep.subr.bf16.mxu0 %v2999
      %3090 = vmatpush1.bf16.msra.mxu0 %v2998
      %3091 = vmatprep.subr.bf16.mxu0 %v3003
      %3092 = vmatpush1.bf16.msra.mxu0 %v3002
      %3093 = vmatprep.subr.bf16.mxu0 0
      %3094 = vmatpush1.bf16.msra.mxu0 0
      %3095 = vmatprep.subr.bf16.mxu0 0
      %3096 = vmatpush1.bf16.msra.mxu0 0
      %3097 = vmatprep.subr.bf16.mxu0 0
      %3098 = vmatpush1.bf16.msra.mxu0 0
      %3099 = vmatprep.subr.bf16.mxu0 0
      %3100 = vmatpush1.bf16.msra.mxu0 0
      %3101 = vmatprep.subr.bf16.mxu0 0
      %3102 = vmatpush1.bf16.msra.mxu0 0
      %3103 = vmatprep.subr.bf16.mxu0 0
      %3104 = vmatpush1.bf16.msra.mxu0 0
      %3105 = vmatprep.subr.bf16.mxu0 0
      %3106 = vmatpush1.bf16.msra.mxu0 0
      %3107 = vmatprep.subr.bf16.mxu0 0
      %3108 = vmatpush1.bf16.msra.mxu0 0
      %3109 = vmatprep.mubr.bf16.mxu0 0
      %3110 = vmatmul.mubr.bf16.gmra.mrb[0].mxu0 %v2843
      %v3111 = vpop.f32.mrb[0].mxu0
      %v3112 = vadd.f32 %v303, %v3111
      %v3113 = vpop.f32.mrb[0].mxu0
      %v3114 = vadd.f32 %v307, %v3113
      %v3115 = vpop.f32.mrb[0].mxu0
      %v3116 = vpop.f32.mrb[0].mxu0
      %3117 = vdwg.mxu0
      %s3118 = sadd.s32 %s97, 3
      %s3119 = sshra.s32 %s3118, 3
      %s3120 = sand.u32 %s3118, 7
      %s3121 = sshra.s32 %s3118, 3
      %s3122 = sand.u32 %s3118, 7
      %s3123 = smul.u32 %s3119, 4
      %s3124 = smul.u32 %s3123, 8
      %s3125 = sadd.s32 %s3124, %s3122
      %s3126 = scalar_lea.vmem [#allocation4], %s3125
      %v3127 = vld [vmem:[%s3126] ss:$8 sm:$0xf]
      %v3128 = vld [vmem:[#allocation7] sm:$0xff]
      %v3129 = vld [vmem:[#allocation7 + $0x8] sm:$0xff]
      %v3130 = vld [vmem:[#allocation7 + $0x10] sm:$0xff]
      %v3131 = vld [vmem:[#allocation7 + $0x18] sm:$0xff]
      %v3132 = vld [vmem:[#allocation7 + $0x20] sm:$0xff]
      %v3133 = vld [vmem:[#allocation7 + $0x28] sm:$0xff]
      %v3134 = vld [vmem:[#allocation7 + $0x30] sm:$0xff]
      %v3135 = vld [vmem:[#allocation7 + $0x38] sm:$0xff]
      %v3136 = vld [vmem:[#allocation7 + $0x40] sm:$0xff]
      %v3137 = vld [vmem:[#allocation7 + $0x48] sm:$0xff]
      %v3138 = vld [vmem:[#allocation7 + $0x50] sm:$0xff]
      %v3139 = vld [vmem:[#allocation7 + $0x58] sm:$0xff]
      %v3140 = vld [vmem:[#allocation7 + $0x60] sm:$0xff]
      %v3141 = vld [vmem:[#allocation7 + $0x68] sm:$0xff]
      %v3142 = vld [vmem:[#allocation7 + $0x70] sm:$0xff]
      %v3143 = vld [vmem:[#allocation7 + $0x78] sm:$0xff]
      %v3144 = vld [vmem:[#allocation7 + $0x80] sm:$0xff]
      %v3145 = vld [vmem:[#allocation7 + $0x88] sm:$0xff]
      %v3146 = vld [vmem:[#allocation7 + $0x90] sm:$0xff]
      %v3147 = vld [vmem:[#allocation7 + $0x98] sm:$0xff]
      %v3148 = vld [vmem:[#allocation7 + $0xa0] sm:$0xff]
      %v3149 = vld [vmem:[#allocation7 + $0xa8] sm:$0xff]
      %v3150 = vld [vmem:[#allocation7 + $0xb0] sm:$0xff]
      %v3151 = vld [vmem:[#allocation7 + $0xb8] sm:$0xff]
      %v3152 = vld [vmem:[#allocation7 + $0xc0] sm:$0xff]
      %v3153 = vld [vmem:[#allocation7 + $0xc8] sm:$0xff]
      %v3154 = vld [vmem:[#allocation7 + $0xd0] sm:$0xff]
      %v3155 = vld [vmem:[#allocation7 + $0xd8] sm:$0xff]
      %v3156 = vld [vmem:[#allocation7 + $0xe0] sm:$0xff]
      %v3157 = vld [vmem:[#allocation7 + $0xe8] sm:$0xff]
      %v3158 = vld [vmem:[#allocation7 + $0xf0] sm:$0xff]
      %v3159 = vld [vmem:[#allocation7 + $0xf8] sm:$0xff]
      %v3192 = vunpack.c.l.b16 %v3128
      %v3193 = vunpack.c.h.b16 %v3128
      %v3194 = vunpack.c.l.b16 %v3129
      %v3195 = vunpack.c.h.b16 %v3129
      %v3196 = vunpack.c.l.b16 %v3130
      %v3197 = vunpack.c.h.b16 %v3130
      %v3198 = vunpack.c.l.b16 %v3131
      %v3199 = vunpack.c.h.b16 %v3131
      %v3200 = vunpack.c.l.b16 %v3132
      %v3201 = vunpack.c.h.b16 %v3132
      %v3202 = vunpack.c.l.b16 %v3133
      %v3203 = vunpack.c.h.b16 %v3133
      %v3204 = vunpack.c.l.b16 %v3134
      %v3205 = vunpack.c.h.b16 %v3134
      %v3206 = vunpack.c.l.b16 %v3135
      %v3207 = vunpack.c.h.b16 %v3135
      %v3208 = vunpack.c.l.b16 %v3136
      %v3209 = vunpack.c.h.b16 %v3136
      %v3210 = vunpack.c.l.b16 %v3137
      %v3211 = vunpack.c.h.b16 %v3137
      %v3212 = vunpack.c.l.b16 %v3138
      %v3213 = vunpack.c.h.b16 %v3138
      %v3214 = vunpack.c.l.b16 %v3139
      %v3215 = vunpack.c.h.b16 %v3139
      %v3216 = vunpack.c.l.b16 %v3140
      %v3217 = vunpack.c.h.b16 %v3140
      %v3218 = vunpack.c.l.b16 %v3141
      %v3219 = vunpack.c.h.b16 %v3141
      %v3220 = vunpack.c.l.b16 %v3142
      %v3221 = vunpack.c.h.b16 %v3142
      %v3222 = vunpack.c.l.b16 %v3143
      %v3223 = vunpack.c.h.b16 %v3143
      %v3224 = vunpack.c.l.b16 %v3144
      %v3225 = vunpack.c.h.b16 %v3144
      %v3226 = vunpack.c.l.b16 %v3145
      %v3227 = vunpack.c.h.b16 %v3145
      %v3228 = vunpack.c.l.b16 %v3146
      %v3229 = vunpack.c.h.b16 %v3146
      %v3230 = vunpack.c.l.b16 %v3147
      %v3231 = vunpack.c.h.b16 %v3147
      %v3232 = vunpack.c.l.b16 %v3148
      %v3233 = vunpack.c.h.b16 %v3148
      %v3234 = vunpack.c.l.b16 %v3149
      %v3235 = vunpack.c.h.b16 %v3149
      %v3236 = vunpack.c.l.b16 %v3150
      %v3237 = vunpack.c.h.b16 %v3150
      %v3238 = vunpack.c.l.b16 %v3151
      %v3239 = vunpack.c.h.b16 %v3151
      %v3240 = vunpack.c.l.b16 %v3152
      %v3241 = vunpack.c.h.b16 %v3152
      %v3242 = vunpack.c.l.b16 %v3153
      %v3243 = vunpack.c.h.b16 %v3153
      %v3244 = vunpack.c.l.b16 %v3154
      %v3245 = vunpack.c.h.b16 %v3154
      %v3246 = vunpack.c.l.b16 %v3155
      %v3247 = vunpack.c.h.b16 %v3155
      %v3248 = vunpack.c.l.b16 %v3156
      %v3249 = vunpack.c.h.b16 %v3156
      %v3250 = vunpack.c.l.b16 %v3157
      %v3251 = vunpack.c.h.b16 %v3157
      %v3252 = vunpack.c.l.b16 %v3158
      %v3253 = vunpack.c.h.b16 %v3158
      %v3254 = vunpack.c.l.b16 %v3159
      %v3255 = vunpack.c.h.b16 %v3159
      %v3256 = vpack.c.b16 %v3196, %v3192
      %v3257 = vpack.c.b16 %v3197, %v3193
      %v3258 = vpack.c.b16 %v3198, %v3194
      %v3259 = vpack.c.b16 %v3199, %v3195
      %v3260 = vpack.c.b16 %v3204, %v3200
      %v3261 = vpack.c.b16 %v3205, %v3201
      %v3262 = vpack.c.b16 %v3206, %v3202
      %v3263 = vpack.c.b16 %v3207, %v3203
      %v3264 = vpack.c.b16 %v3212, %v3208
      %v3265 = vpack.c.b16 %v3213, %v3209
      %v3266 = vpack.c.b16 %v3214, %v3210
      %v3267 = vpack.c.b16 %v3215, %v3211
      %v3268 = vpack.c.b16 %v3220, %v3216
      %v3269 = vpack.c.b16 %v3221, %v3217
      %v3270 = vpack.c.b16 %v3222, %v3218
      %v3271 = vpack.c.b16 %v3223, %v3219
      %v3272 = vpack.c.b16 %v3228, %v3224
      %v3273 = vpack.c.b16 %v3229, %v3225
      %v3274 = vpack.c.b16 %v3230, %v3226
      %v3275 = vpack.c.b16 %v3231, %v3227
      %v3276 = vpack.c.b16 %v3236, %v3232
      %v3277 = vpack.c.b16 %v3237, %v3233
      %v3278 = vpack.c.b16 %v3238, %v3234
      %v3279 = vpack.c.b16 %v3239, %v3235
      %v3280 = vpack.c.b16 %v3244, %v3240
      %v3281 = vpack.c.b16 %v3245, %v3241
      %v3282 = vpack.c.b16 %v3246, %v3242
      %v3283 = vpack.c.b16 %v3247, %v3243
      %v3284 = vpack.c.b16 %v3252, %v3248
      %v3285 = vpack.c.b16 %v3253, %v3249
      %v3286 = vpack.c.b16 %v3254, %v3250
      %v3287 = vpack.c.b16 %v3255, %v3251
      %3320 = vmatprep.subr.bf16.mxu0 %v3257
      %3321 = vmatpush1.bf16.msra.mxu0 %v3256
      %3322 = vmatprep.subr.bf16.mxu0 %v3261
      %3323 = vmatpush1.bf16.msra.mxu0 %v3260
      %3324 = vmatprep.subr.bf16.mxu0 %v3265
      %3325 = vmatpush1.bf16.msra.mxu0 %v3264
      %3326 = vmatprep.subr.bf16.mxu0 %v3269
      %3327 = vmatpush1.bf16.msra.mxu0 %v3268
      %3328 = vmatprep.subr.bf16.mxu0 %v3273
      %3329 = vmatpush1.bf16.msra.mxu0 %v3272
      %3330 = vmatprep.subr.bf16.mxu0 %v3277
      %3331 = vmatpush1.bf16.msra.mxu0 %v3276
      %3332 = vmatprep.subr.bf16.mxu0 %v3281
      %3333 = vmatpush1.bf16.msra.mxu0 %v3280
      %3334 = vmatprep.subr.bf16.mxu0 %v3285
      %3335 = vmatpush1.bf16.msra.mxu0 %v3284
      %3336 = vmatprep.subr.bf16.mxu0 0
      %3337 = vmatpush1.bf16.msra.mxu0 0
      %3338 = vmatprep.subr.bf16.mxu0 0
      %3339 = vmatpush1.bf16.msra.mxu0 0
      %3340 = vmatprep.subr.bf16.mxu0 0
      %3341 = vmatpush1.bf16.msra.mxu0 0
      %3342 = vmatprep.subr.bf16.mxu0 0
      %3343 = vmatpush1.bf16.msra.mxu0 0
      %3344 = vmatprep.subr.bf16.mxu0 0
      %3345 = vmatpush1.bf16.msra.mxu0 0
      %3346 = vmatprep.subr.bf16.mxu0 0
      %3347 = vmatpush1.bf16.msra.mxu0 0
      %3348 = vmatprep.subr.bf16.mxu0 0
      %3349 = vmatpush1.bf16.msra.mxu0 0
      %3350 = vmatprep.subr.bf16.mxu0 0
      %3351 = vmatpush1.bf16.msra.mxu0 0
      %3352 = vmatprep.mubr.bf16.mxu0 0
      %3353 = vmatmul.mubr.bf16.gmra.mrb[0].mxu0 %v2543
      %v3354 = vpop.f32.mrb[0].mxu0
      %v3355 = vadd.f32 0.0, %v3354
      %v3356 = vpop.f32.mrb[0].mxu0
      %v3357 = vadd.f32 0.0, %v3356
      %v3358 = vpop.f32.mrb[0].mxu0
      %v3359 = vpop.f32.mrb[0].mxu0
      %3360 = vdwg.mxu0
      %3361 = vmatprep.subr.bf16.mxu0 %v3259
      %3362 = vmatpush1.bf16.msra.mxu0 %v3258
      %3363 = vmatprep.subr.bf16.mxu0 %v3263
      %3364 = vmatpush1.bf16.msra.mxu0 %v3262
      %3365 = vmatprep.subr.bf16.mxu0 %v3267
      %3366 = vmatpush1.bf16.msra.mxu0 %v3266
      %3367 = vmatprep.subr.bf16.mxu0 %v3271
      %3368 = vmatpush1.bf16.msra.mxu0 %v3270
      %3369 = vmatprep.subr.bf16.mxu0 %v3275
      %3370 = vmatpush1.bf16.msra.mxu0 %v3274
      %3371 = vmatprep.subr.bf16.mxu0 %v3279
      %3372 = vmatpush1.bf16.msra.mxu0 %v3278
      %3373 = vmatprep.subr.bf16.mxu0 %v3283
      %3374 = vmatpush1.bf16.msra.mxu0 %v3282
      %3375 = vmatprep.subr.bf16.mxu0 %v3287
      %3376 = vmatpush1.bf16.msra.mxu0 %v3286
      %3377 = vmatprep.subr.bf16.mxu0 0
      %3378 = vmatpush1.bf16.msra.mxu0 0
      %3379 = vmatprep.subr.bf16.mxu0 0
      %3380 = vmatpush1.bf16.msra.mxu0 0
      %3381 = vmatprep.subr.bf16.mxu0 0
      %3382 = vmatpush1.bf16.msra.mxu0 0
      %3383 = vmatprep.subr.bf16.mxu0 0
      %3384 = vmatpush1.bf16.msra.mxu0 0
      %3385 = vmatprep.subr.bf16.mxu0 0
      %3386 = vmatpush1.bf16.msra.mxu0 0
      %3387 = vmatprep.subr.bf16.mxu0 0
      %3388 = vmatpush1.bf16.msra.mxu0 0
      %3389 = vmatprep.subr.bf16.mxu0 0
      %3390 = vmatpush1.bf16.msra.mxu0 0
      %3391 = vmatprep.subr.bf16.mxu0 0
      %3392 = vmatpush1.bf16.msra.mxu0 0
      %3393 = vmatprep.mubr.bf16.mxu0 0
      %3394 = vmatmul.mubr.bf16.gmra.mrb[0].mxu0 %v2543
      %v3395 = vpop.f32.mrb[0].mxu0
      %v3396 = vadd.f32 0.0, %v3395
      %v3397 = vpop.f32.mrb[0].mxu0
      %v3398 = vadd.f32 0.0, %v3397
      %v3399 = vpop.f32.mrb[0].mxu0
      %v3400 = vpop.f32.mrb[0].mxu0
      %3401 = vdwg.mxu0
      %v3406 = vcombine.low %v3355, %v3357
      %v3407 = vcombine.low %v3396, %v3398
      %v3409 = vunpack.c.l.s4 1966171168
      %v3410 = vunpack.c.0.s8 %v3409
      %v3411 = vlaneseq
      %v3412 = vshrl.u32 %v3411, 7
      %v3413 = vsub.s32 %v3410, %v3412
      %v3414 = vrot.slane %v3406, %v3413
      %v3416 = vunpack.c.l.s4 1966171168
      %v3417 = vunpack.c.0.s8 %v3416
      %v3418 = vlaneseq
      %v3419 = vshrl.u32 %v3418, 7
      %v3420 = vsub.s32 %v3417, %v3419
      %v3421 = vrot.slane %v3407, %v3420
      %v3422 = vcombine.low %v3414, %v3421
      %v3424 = vunpack.c.l.s4 1966171168
      %v3425 = vunpack.c.0.s8 %v3424
      %v3426 = vlaneseq
      %v3427 = vshrl.u32 %v3426, 7
      %v3428 = vsub.s32 %v3425, %v3427
      %v3429 = vrot.slane %v3422, %v3428
      %v3431 = vadd.f32 %v3127, %v3429
      %v3432 = vxor.u32 %v3431, 2147483648
      %v3433 = vmul.f32 %v3432, 1.442695
      %v3434 = vpow.pop %v3433
      %v3435 = vadd.f32 %v3434, 1.0
      %v3436 = vrcp.pop %v3435
      %v3437 = vmul.f32 1.0, %v3436
      %v3439 = vrot.slane %v3431, 3
      %v3441 = vtanh.pop %v3439
      %v3443 = vrot.slane %v3437, 1
      %v3445 = vmul.f32 %v3443, %v2538
      %v3446 = vmul.f32 %v3437, %v3441
      %v3447 = vadd.f32 %v3445, %v3446
      %v3448 = vtanh.pop %v3447
      %v3449 = vrot.slane %v3437, 2
      %v3451 = vmul.f32 %v3449, %v3448
      %v3452 = vpack.c.bf16 %v3451, %v3451
      %v3453 = vld [vmem:[#allocation9] sm:$0xff]
      %v3454 = vld [vmem:[#allocation9 + $0x8] sm:$0xff]
      %v3455 = vld [vmem:[#allocation9 + $0x10] sm:$0xff]
      %v3456 = vld [vmem:[#allocation9 + $0x18] sm:$0xff]
      %v3457 = vld [vmem:[#allocation9 + $0x20] sm:$0xff]
      %v3458 = vld [vmem:[#allocation9 + $0x28] sm:$0xff]
      %v3459 = vld [vmem:[#allocation9 + $0x30] sm:$0xff]
      %v3460 = vld [vmem:[#allocation9 + $0x38] sm:$0xff]
      %v3461 = vld [vmem:[#allocation9 + $0x40] sm:$0xff]
      %v3462 = vld [vmem:[#allocation9 + $0x48] sm:$0xff]
      %v3463 = vld [vmem:[#allocation9 + $0x50] sm:$0xff]
      %v3464 = vld [vmem:[#allocation9 + $0x58] sm:$0xff]
      %v3465 = vld [vmem:[#allocation9 + $0x60] sm:$0xff]
      %v3466 = vld [vmem:[#allocation9 + $0x68] sm:$0xff]
      %v3467 = vld [vmem:[#allocation9 + $0x70] sm:$0xff]
      %v3468 = vld [vmem:[#allocation9 + $0x78] sm:$0xff]
      %v3469 = vld [vmem:[#allocation9 + $0x80] sm:$0xff]
      %v3470 = vld [vmem:[#allocation9 + $0x88] sm:$0xff]
      %v3471 = vld [vmem:[#allocation9 + $0x90] sm:$0xff]
      %v3472 = vld [vmem:[#allocation9 + $0x98] sm:$0xff]
      %v3473 = vld [vmem:[#allocation9 + $0xa0] sm:$0xff]
      %v3474 = vld [vmem:[#allocation9 + $0xa8] sm:$0xff]
      %v3475 = vld [vmem:[#allocation9 + $0xb0] sm:$0xff]
      %v3476 = vld [vmem:[#allocation9 + $0xb8] sm:$0xff]
      %v3477 = vld [vmem:[#allocation9 + $0xc0] sm:$0xff]
      %v3478 = vld [vmem:[#allocation9 + $0xc8] sm:$0xff]
      %v3479 = vld [vmem:[#allocation9 + $0xd0] sm:$0xff]
      %v3480 = vld [vmem:[#allocation9 + $0xd8] sm:$0xff]
      %v3481 = vld [vmem:[#allocation9 + $0xe0] sm:$0xff]
      %v3482 = vld [vmem:[#allocation9 + $0xe8] sm:$0xff]
      %v3483 = vld [vmem:[#allocation9 + $0xf0] sm:$0xff]
      %v3484 = vld [vmem:[#allocation9 + $0xf8] sm:$0xff]
      %v3517 = vunpack.c.l.b16 %v3453
      %v3518 = vunpack.c.h.b16 %v3453
      %v3519 = vunpack.c.l.b16 %v3454
      %v3520 = vunpack.c.h.b16 %v3454
      %v3521 = vunpack.c.l.b16 %v3455
      %v3522 = vunpack.c.h.b16 %v3455
      %v3523 = vunpack.c.l.b16 %v3456
      %v3524 = vunpack.c.h.b16 %v3456
      %v3525 = vunpack.c.l.b16 %v3457
      %v3526 = vunpack.c.h.b16 %v3457
      %v3527 = vunpack.c.l.b16 %v3458
      %v3528 = vunpack.c.h.b16 %v3458
      %v3529 = vunpack.c.l.b16 %v3459
      %v3530 = vunpack.c.h.b16 %v3459
      %v3531 = vunpack.c.l.b16 %v3460
      %v3532 = vunpack.c.h.b16 %v3460
      %v3533 = vunpack.c.l.b16 %v3461
      %v3534 = vunpack.c.h.b16 %v3461
      %v3535 = vunpack.c.l.b16 %v3462
      %v3536 = vunpack.c.h.b16 %v3462
      %v3537 = vunpack.c.l.b16 %v3463
      %v3538 = vunpack.c.h.b16 %v3463
      %v3539 = vunpack.c.l.b16 %v3464
      %v3540 = vunpack.c.h.b16 %v3464
      %v3541 = vunpack.c.l.b16 %v3465
      %v3542 = vunpack.c.h.b16 %v3465
      %v3543 = vunpack.c.l.b16 %v3466
      %v3544 = vunpack.c.h.b16 %v3466
      %v3545 = vunpack.c.l.b16 %v3467
      %v3546 = vunpack.c.h.b16 %v3467
      %v3547 = vunpack.c.l.b16 %v3468
      %v3548 = vunpack.c.h.b16 %v3468
      %v3549 = vunpack.c.l.b16 %v3469
      %v3550 = vunpack.c.h.b16 %v3469
      %v3551 = vunpack.c.l.b16 %v3470
      %v3552 = vunpack.c.h.b16 %v3470
      %v3553 = vunpack.c.l.b16 %v3471
      %v3554 = vunpack.c.h.b16 %v3471
      %v3555 = vunpack.c.l.b16 %v3472
      %v3556 = vunpack.c.h.b16 %v3472
      %v3557 = vunpack.c.l.b16 %v3473
      %v3558 = vunpack.c.h.b16 %v3473
      %v3559 = vunpack.c.l.b16 %v3474
      %v3560 = vunpack.c.h.b16 %v3474
      %v3561 = vunpack.c.l.b16 %v3475
      %v3562 = vunpack.c.h.b16 %v3475
      %v3563 = vunpack.c.l.b16 %v3476
      %v3564 = vunpack.c.h.b16 %v3476
      %v3565 = vunpack.c.l.b16 %v3477
      %v3566 = vunpack.c.h.b16 %v3477
      %v3567 = vunpack.c.l.b16 %v3478
      %v3568 = vunpack.c.h.b16 %v3478
      %v3569 = vunpack.c.l.b16 %v3479
      %v3570 = vunpack.c.h.b16 %v3479
      %v3571 = vunpack.c.l.b16 %v3480
      %v3572 = vunpack.c.h.b16 %v3480
      %v3573 = vunpack.c.l.b16 %v3481
      %v3574 = vunpack.c.h.b16 %v3481
      %v3575 = vunpack.c.l.b16 %v3482
      %v3576 = vunpack.c.h.b16 %v3482
      %v3577 = vunpack.c.l.b16 %v3483
      %v3578 = vunpack.c.h.b16 %v3483
      %v3579 = vunpack.c.l.b16 %v3484
      %v3580 = vunpack.c.h.b16 %v3484
      %v3581 = vpack.c.b16 %v3521, %v3517
      %v3582 = vpack.c.b16 %v3522, %v3518
      %v3583 = vpack.c.b16 %v3523, %v3519
      %v3584 = vpack.c.b16 %v3524, %v3520
      %v3585 = vpack.c.b16 %v3529, %v3525
      %v3586 = vpack.c.b16 %v3530, %v3526
      %v3587 = vpack.c.b16 %v3531, %v3527
      %v3588 = vpack.c.b16 %v3532, %v3528
      %v3589 = vpack.c.b16 %v3537, %v3533
      %v3590 = vpack.c.b16 %v3538, %v3534
      %v3591 = vpack.c.b16 %v3539, %v3535
      %v3592 = vpack.c.b16 %v3540, %v3536
      %v3593 = vpack.c.b16 %v3545, %v3541
      %v3594 = vpack.c.b16 %v3546, %v3542
      %v3595 = vpack.c.b16 %v3547, %v3543
      %v3596 = vpack.c.b16 %v3548, %v3544
      %v3597 = vpack.c.b16 %v3553, %v3549
      %v3598 = vpack.c.b16 %v3554, %v3550
      %v3599 = vpack.c.b16 %v3555, %v3551
      %v3600 = vpack.c.b16 %v3556, %v3552
      %v3601 = vpack.c.b16 %v3561, %v3557
      %v3602 = vpack.c.b16 %v3562, %v3558
      %v3603 = vpack.c.b16 %v3563, %v3559
      %v3604 = vpack.c.b16 %v3564, %v3560
      %v3605 = vpack.c.b16 %v3569, %v3565
      %v3606 = vpack.c.b16 %v3570, %v3566
      %v3607 = vpack.c.b16 %v3571, %v3567
      %v3608 = vpack.c.b16 %v3572, %v3568
      %v3609 = vpack.c.b16 %v3577, %v3573
      %v3610 = vpack.c.b16 %v3578, %v3574
      %v3611 = vpack.c.b16 %v3579, %v3575
      %v3612 = vpack.c.b16 %v3580, %v3576
      %3645 = vmatprep.subr.bf16.mxu0 %v3582
      %3646 = vmatpush1.bf16.msra.mxu0 %v3581
      %3647 = vmatprep.subr.bf16.mxu0 %v3586
      %3648 = vmatpush1.bf16.msra.mxu0 %v3585
      %3649 = vmatprep.subr.bf16.mxu0 %v3590
      %3650 = vmatpush1.bf16.msra.mxu0 %v3589
      %3651 = vmatprep.subr.bf16.mxu0 %v3594
      %3652 = vmatpush1.bf16.msra.mxu0 %v3593
      %3653 = vmatprep.subr.bf16.mxu0 %v3598
      %3654 = vmatpush1.bf16.msra.mxu0 %v3597
      %3655 = vmatprep.subr.bf16.mxu0 %v3602
      %3656 = vmatpush1.bf16.msra.mxu0 %v3601
      %3657 = vmatprep.subr.bf16.mxu0 %v3606
      %3658 = vmatpush1.bf16.msra.mxu0 %v3605
      %3659 = vmatprep.subr.bf16.mxu0 %v3610
      %3660 = vmatpush1.bf16.msra.mxu0 %v3609
      %3661 = vmatprep.subr.bf16.mxu0 0
      %3662 = vmatpush1.bf16.msra.mxu0 0
      %3663 = vmatprep.subr.bf16.mxu0 0
      %3664 = vmatpush1.bf16.msra.mxu0 0
      %3665 = vmatprep.subr.bf16.mxu0 0
      %3666 = vmatpush1.bf16.msra.mxu0 0
      %3667 = vmatprep.subr.bf16.mxu0 0
      %3668 = vmatpush1.bf16.msra.mxu0 0
      %3669 = vmatprep.subr.bf16.mxu0 0
      %3670 = vmatpush1.bf16.msra.mxu0 0
      %3671 = vmatprep.subr.bf16.mxu0 0
      %3672 = vmatpush1.bf16.msra.mxu0 0
      %3673 = vmatprep.subr.bf16.mxu0 0
      %3674 = vmatpush1.bf16.msra.mxu0 0
      %3675 = vmatprep.subr.bf16.mxu0 0
      %3676 = vmatpush1.bf16.msra.mxu0 0
      %3677 = vmatprep.mubr.bf16.mxu0 0
      %3678 = vmatmul.mubr.bf16.gmra.mrb[0].mxu0 %v3452
      %v3679 = vpop.f32.mrb[0].mxu0
      %v3680 = vadd.f32 %v3071, %v3679
      %v3681 = vpop.f32.mrb[0].mxu0
      %v3682 = vadd.f32 %v3073, %v3681
      %v3683 = vpop.f32.mrb[0].mxu0
      %v3684 = vpop.f32.mrb[0].mxu0
      %3685 = vdwg.mxu0
      %3686 = vmatprep.subr.bf16.mxu0 %v3584
      %3687 = vmatpush1.bf16.msra.mxu0 %v3583
      %3688 = vmatprep.subr.bf16.mxu0 %v3588
      %3689 = vmatpush1.bf16.msra.mxu0 %v3587
      %3690 = vmatprep.subr.bf16.mxu0 %v3592
      %3691 = vmatpush1.bf16.msra.mxu0 %v3591
      %3692 = vmatprep.subr.bf16.mxu0 %v3596
      %3693 = vmatpush1.bf16.msra.mxu0 %v3595
      %3694 = vmatprep.subr.bf16.mxu0 %v3600
      %3695 = vmatpush1.bf16.msra.mxu0 %v3599
      %3696 = vmatprep.subr.bf16.mxu0 %v3604
      %3697 = vmatpush1.bf16.msra.mxu0 %v3603
      %3698 = vmatprep.subr.bf16.mxu0 %v3608
      %3699 = vmatpush1.bf16.msra.mxu0 %v3607
      %3700 = vmatprep.subr.bf16.mxu0 %v3612
      %3701 = vmatpush1.bf16.msra.mxu0 %v3611
      %3702 = vmatprep.subr.bf16.mxu0 0
      %3703 = vmatpush1.bf16.msra.mxu0 0
      %3704 = vmatprep.subr.bf16.mxu0 0
      %3705 = vmatpush1.bf16.msra.mxu0 0
      %3706 = vmatprep.subr.bf16.mxu0 0
      %3707 = vmatpush1.bf16.msra.mxu0 0
      %3708 = vmatprep.subr.bf16.mxu0 0
      %3709 = vmatpush1.bf16.msra.mxu0 0
      %3710 = vmatprep.subr.bf16.mxu0 0
      %3711 = vmatpush1.bf16.msra.mxu0 0
      %3712 = vmatprep.subr.bf16.mxu0 0
      %3713 = vmatpush1.bf16.msra.mxu0 0
      %3714 = vmatprep.subr.bf16.mxu0 0
      %3715 = vmatpush1.bf16.msra.mxu0 0
      %3716 = vmatprep.subr.bf16.mxu0 0
      %3717 = vmatpush1.bf16.msra.mxu0 0
      %3718 = vmatprep.mubr.bf16.mxu0 0
      %3719 = vmatmul.mubr.bf16.gmra.mrb[0].mxu0 %v3452
      %v3720 = vpop.f32.mrb[0].mxu0
      %v3721 = vadd.f32 %v3112, %v3720
      %v3722 = vpop.f32.mrb[0].mxu0
      %v3723 = vadd.f32 %v3114, %v3722
      %v3724 = vpop.f32.mrb[0].mxu0
      %v3725 = vpop.f32.mrb[0].mxu0
      %3726 = vdwg.mxu0
      %v3727 = vxor.u32 %v3680, 2147483648
      %v3728 = vxor.u32 %v3682, 2147483648
      %v3729 = vxor.u32 %v3721, 2147483648
      %v3730 = vmul.f32 %v3727, 1.442695
      %v3731 = vpow.pop %v3730
      %v3732 = vmul.f32 %v3728, 1.442695
      %v3733 = vpow.pop %v3732
      %v3734 = vmul.f32 %v3729, 1.442695
      %v3735 = vpow.pop %v3734
      %v3736 = vadd.f32 %v3731, 1.0
      %v3737 = vadd.f32 %v3733, 1.0
      %v3738 = vadd.f32 %v3735, 1.0
      %v3739 = vrcp.pop %v3736
      %v3740 = vmul.f32 1.0, %v3739
      %v3741 = vrcp.pop %v3737
      %v3742 = vmul.f32 1.0, %v3741
      %v3743 = vrcp.pop %v3738
      %v3744 = vmul.f32 1.0, %v3743
      %v3745 = vtanh.pop %v3723
      %v3746 = vmul.f32 %v3742, %v2839
      %v3747 = vmul.f32 %v3740, %v3745
      %v3748 = vadd.f32 %v3746, %v3747
      %v3749 = vtanh.pop %v3748
      %v3750 = vmul.f32 %v3744, %v3749
      %3751 = vst [vmem:[#allocation3 + $0x3] sm:$0x1] %v3750
      %v3752 = vpack.c.bf16 %v3750, %v3750
      %v3753 = vld [vmem:[#allocation10] sm:$0xff]
      %v3754 = vld [vmem:[#allocation10 + $0x8] sm:$0xff]
      %v3755 = vld [vmem:[#allocation10 + $0x10] sm:$0xff]
      %v3756 = vld [vmem:[#allocation10 + $0x18] sm:$0xff]
      %v3757 = vld [vmem:[#allocation10 + $0x20] sm:$0xff]
      %v3758 = vld [vmem:[#allocation10 + $0x28] sm:$0xff]
      %v3759 = vld [vmem:[#allocation10 + $0x30] sm:$0xff]
      %v3760 = vld [vmem:[#allocation10 + $0x38] sm:$0xff]
      %v3761 = vld [vmem:[#allocation10 + $0x40] sm:$0xff]
      %v3762 = vld [vmem:[#allocation10 + $0x48] sm:$0xff]
      %v3763 = vld [vmem:[#allocation10 + $0x50] sm:$0xff]
      %v3764 = vld [vmem:[#allocation10 + $0x58] sm:$0xff]
      %v3765 = vld [vmem:[#allocation10 + $0x60] sm:$0xff]
      %v3766 = vld [vmem:[#allocation10 + $0x68] sm:$0xff]
      %v3767 = vld [vmem:[#allocation10 + $0x70] sm:$0xff]
      %v3768 = vld [vmem:[#allocation10 + $0x78] sm:$0xff]
      %v3769 = vld [vmem:[#allocation10 + $0x80] sm:$0xff]
      %v3770 = vld [vmem:[#allocation10 + $0x88] sm:$0xff]
      %v3771 = vld [vmem:[#allocation10 + $0x90] sm:$0xff]
      %v3772 = vld [vmem:[#allocation10 + $0x98] sm:$0xff]
      %v3773 = vld [vmem:[#allocation10 + $0xa0] sm:$0xff]
      %v3774 = vld [vmem:[#allocation10 + $0xa8] sm:$0xff]
      %v3775 = vld [vmem:[#allocation10 + $0xb0] sm:$0xff]
      %v3776 = vld [vmem:[#allocation10 + $0xb8] sm:$0xff]
      %v3777 = vld [vmem:[#allocation10 + $0xc0] sm:$0xff]
      %v3778 = vld [vmem:[#allocation10 + $0xc8] sm:$0xff]
      %v3779 = vld [vmem:[#allocation10 + $0xd0] sm:$0xff]
      %v3780 = vld [vmem:[#allocation10 + $0xd8] sm:$0xff]
      %v3781 = vld [vmem:[#allocation10 + $0xe0] sm:$0xff]
      %v3782 = vld [vmem:[#allocation10 + $0xe8] sm:$0xff]
      %v3783 = vld [vmem:[#allocation10 + $0xf0] sm:$0xff]
      %v3784 = vld [vmem:[#allocation10 + $0xf8] sm:$0xff]
      %v3817 = vunpack.c.l.b16 %v3753
      %v3818 = vunpack.c.h.b16 %v3753
      %v3819 = vunpack.c.l.b16 %v3754
      %v3820 = vunpack.c.h.b16 %v3754
      %v3821 = vunpack.c.l.b16 %v3755
      %v3822 = vunpack.c.h.b16 %v3755
      %v3823 = vunpack.c.l.b16 %v3756
      %v3824 = vunpack.c.h.b16 %v3756
      %v3825 = vunpack.c.l.b16 %v3757
      %v3826 = vunpack.c.h.b16 %v3757
      %v3827 = vunpack.c.l.b16 %v3758
      %v3828 = vunpack.c.h.b16 %v3758
      %v3829 = vunpack.c.l.b16 %v3759
      %v3830 = vunpack.c.h.b16 %v3759
      %v3831 = vunpack.c.l.b16 %v3760
      %v3832 = vunpack.c.h.b16 %v3760
      %v3833 = vunpack.c.l.b16 %v3761
      %v3834 = vunpack.c.h.b16 %v3761
      %v3835 = vunpack.c.l.b16 %v3762
      %v3836 = vunpack.c.h.b16 %v3762
      %v3837 = vunpack.c.l.b16 %v3763
      %v3838 = vunpack.c.h.b16 %v3763
      %v3839 = vunpack.c.l.b16 %v3764
      %v3840 = vunpack.c.h.b16 %v3764
      %v3841 = vunpack.c.l.b16 %v3765
      %v3842 = vunpack.c.h.b16 %v3765
      %v3843 = vunpack.c.l.b16 %v3766
      %v3844 = vunpack.c.h.b16 %v3766
      %v3845 = vunpack.c.l.b16 %v3767
      %v3846 = vunpack.c.h.b16 %v3767
      %v3847 = vunpack.c.l.b16 %v3768
      %v3848 = vunpack.c.h.b16 %v3768
      %v3849 = vunpack.c.l.b16 %v3769
      %v3850 = vunpack.c.h.b16 %v3769
      %v3851 = vunpack.c.l.b16 %v3770
      %v3852 = vunpack.c.h.b16 %v3770
      %v3853 = vunpack.c.l.b16 %v3771
      %v3854 = vunpack.c.h.b16 %v3771
      %v3855 = vunpack.c.l.b16 %v3772
      %v3856 = vunpack.c.h.b16 %v3772
      %v3857 = vunpack.c.l.b16 %v3773
      %v3858 = vunpack.c.h.b16 %v3773
      %v3859 = vunpack.c.l.b16 %v3774
      %v3860 = vunpack.c.h.b16 %v3774
      %v3861 = vunpack.c.l.b16 %v3775
      %v3862 = vunpack.c.h.b16 %v3775
      %v3863 = vunpack.c.l.b16 %v3776
      %v3864 = vunpack.c.h.b16 %v3776
      %v3865 = vunpack.c.l.b16 %v3777
      %v3866 = vunpack.c.h.b16 %v3777
      %v3867 = vunpack.c.l.b16 %v3778
      %v3868 = vunpack.c.h.b16 %v3778
      %v3869 = vunpack.c.l.b16 %v3779
      %v3870 = vunpack.c.h.b16 %v3779
      %v3871 = vunpack.c.l.b16 %v3780
      %v3872 = vunpack.c.h.b16 %v3780
      %v3873 = vunpack.c.l.b16 %v3781
      %v3874 = vunpack.c.h.b16 %v3781
      %v3875 = vunpack.c.l.b16 %v3782
      %v3876 = vunpack.c.h.b16 %v3782
      %v3877 = vunpack.c.l.b16 %v3783
      %v3878 = vunpack.c.h.b16 %v3783
      %v3879 = vunpack.c.l.b16 %v3784
      %v3880 = vunpack.c.h.b16 %v3784
      %v3881 = vpack.c.b16 %v3821, %v3817
      %v3882 = vpack.c.b16 %v3822, %v3818
      %v3883 = vpack.c.b16 %v3823, %v3819
      %v3884 = vpack.c.b16 %v3824, %v3820
      %v3885 = vpack.c.b16 %v3829, %v3825
      %v3886 = vpack.c.b16 %v3830, %v3826
      %v3887 = vpack.c.b16 %v3831, %v3827
      %v3888 = vpack.c.b16 %v3832, %v3828
      %v3889 = vpack.c.b16 %v3837, %v3833
      %v3890 = vpack.c.b16 %v3838, %v3834
      %v3891 = vpack.c.b16 %v3839, %v3835
      %v3892 = vpack.c.b16 %v3840, %v3836
      %v3893 = vpack.c.b16 %v3845, %v3841
      %v3894 = vpack.c.b16 %v3846, %v3842
      %v3895 = vpack.c.b16 %v3847, %v3843
      %v3896 = vpack.c.b16 %v3848, %v3844
      %v3897 = vpack.c.b16 %v3853, %v3849
      %v3898 = vpack.c.b16 %v3854, %v3850
      %v3899 = vpack.c.b16 %v3855, %v3851
      %v3900 = vpack.c.b16 %v3856, %v3852
      %v3901 = vpack.c.b16 %v3861, %v3857
      %v3902 = vpack.c.b16 %v3862, %v3858
      %v3903 = vpack.c.b16 %v3863, %v3859
      %v3904 = vpack.c.b16 %v3864, %v3860
      %v3905 = vpack.c.b16 %v3869, %v3865
      %v3906 = vpack.c.b16 %v3870, %v3866
      %v3907 = vpack.c.b16 %v3871, %v3867
      %v3908 = vpack.c.b16 %v3872, %v3868
      %v3909 = vpack.c.b16 %v3877, %v3873
      %v3910 = vpack.c.b16 %v3878, %v3874
      %v3911 = vpack.c.b16 %v3879, %v3875
      %v3912 = vpack.c.b16 %v3880, %v3876
      %3945 = vmatprep.subr.bf16.mxu0 %v3882
      %3946 = vmatpush1.bf16.msra.mxu0 %v3881
      %3947 = vmatprep.subr.bf16.mxu0 %v3886
      %3948 = vmatpush1.bf16.msra.mxu0 %v3885
      %3949 = vmatprep.subr.bf16.mxu0 %v3890
      %3950 = vmatpush1.bf16.msra.mxu0 %v3889
      %3951 = vmatprep.subr.bf16.mxu0 %v3894
      %3952 = vmatpush1.bf16.msra.mxu0 %v3893
      %3953 = vmatprep.subr.bf16.mxu0 %v3898
      %3954 = vmatpush1.bf16.msra.mxu0 %v3897
      %3955 = vmatprep.subr.bf16.mxu0 %v3902
      %3956 = vmatpush1.bf16.msra.mxu0 %v3901
      %3957 = vmatprep.subr.bf16.mxu0 %v3906
      %3958 = vmatpush1.bf16.msra.mxu0 %v3905
      %3959 = vmatprep.subr.bf16.mxu0 %v3910
      %3960 = vmatpush1.bf16.msra.mxu0 %v3909
      %3961 = vmatprep.subr.bf16.mxu0 0
      %3962 = vmatpush1.bf16.msra.mxu0 0
      %3963 = vmatprep.subr.bf16.mxu0 0
      %3964 = vmatpush1.bf16.msra.mxu0 0
      %3965 = vmatprep.subr.bf16.mxu0 0
      %3966 = vmatpush1.bf16.msra.mxu0 0
      %3967 = vmatprep.subr.bf16.mxu0 0
      %3968 = vmatpush1.bf16.msra.mxu0 0
      %3969 = vmatprep.subr.bf16.mxu0 0
      %3970 = vmatpush1.bf16.msra.mxu0 0
      %3971 = vmatprep.subr.bf16.mxu0 0
      %3972 = vmatpush1.bf16.msra.mxu0 0
      %3973 = vmatprep.subr.bf16.mxu0 0
      %3974 = vmatpush1.bf16.msra.mxu0 0
      %3975 = vmatprep.subr.bf16.mxu0 0
      %3976 = vmatpush1.bf16.msra.mxu0 0
      %3977 = vmatprep.mubr.bf16.mxu0 0
      %3978 = vmatmul.mubr.bf16.gmra.mrb[0].mxu0 %v3752
      %v3979 = vpop.f32.mrb[0].mxu0
      %v3980 = vadd.f32 %v295, %v3979
      %v3981 = vpop.f32.mrb[0].mxu0
      %v3982 = vadd.f32 %v299, %v3981
      %v3983 = vpop.f32.mrb[0].mxu0
      %v3984 = vpop.f32.mrb[0].mxu0
      %3985 = vdwg.mxu0
      %3986 = vmatprep.subr.bf16.mxu0 %v3884
      %3987 = vmatpush1.bf16.msra.mxu0 %v3883
      %3988 = vmatprep.subr.bf16.mxu0 %v3888
      %3989 = vmatpush1.bf16.msra.mxu0 %v3887
      %3990 = vmatprep.subr.bf16.mxu0 %v3892
      %3991 = vmatpush1.bf16.msra.mxu0 %v3891
      %3992 = vmatprep.subr.bf16.mxu0 %v3896
      %3993 = vmatpush1.bf16.msra.mxu0 %v3895
      %3994 = vmatprep.subr.bf16.mxu0 %v3900
      %3995 = vmatpush1.bf16.msra.mxu0 %v3899
      %3996 = vmatprep.subr.bf16.mxu0 %v3904
      %3997 = vmatpush1.bf16.msra.mxu0 %v3903
      %3998 = vmatprep.subr.bf16.mxu0 %v3908
      %3999 = vmatpush1.bf16.msra.mxu0 %v3907
      %4000 = vmatprep.subr.bf16.mxu0 %v3912
      %4001 = vmatpush1.bf16.msra.mxu0 %v3911
      %4002 = vmatprep.subr.bf16.mxu0 0
      %4003 = vmatpush1.bf16.msra.mxu0 0
      %4004 = vmatprep.subr.bf16.mxu0 0
      %4005 = vmatpush1.bf16.msra.mxu0 0
      %4006 = vmatprep.subr.bf16.mxu0 0
      %4007 = vmatpush1.bf16.msra.mxu0 0
      %4008 = vmatprep.subr.bf16.mxu0 0
      %4009 = vmatpush1.bf16.msra.mxu0 0
      %4010 = vmatprep.subr.bf16.mxu0 0
      %4011 = vmatpush1.bf16.msra.mxu0 0
      %4012 = vmatprep.subr.bf16.mxu0 0
      %4013 = vmatpush1.bf16.msra.mxu0 0
      %4014 = vmatprep.subr.bf16.mxu0 0
      %4015 = vmatpush1.bf16.msra.mxu0 0
      %4016 = vmatprep.subr.bf16.mxu0 0
      %4017 = vmatpush1.bf16.msra.mxu0 0
      %4018 = vmatprep.mubr.bf16.mxu0 0
      %4019 = vmatmul.mubr.bf16.gmra.mrb[0].mxu0 %v3752
      %v4020 = vpop.f32.mrb[0].mxu0
      %v4021 = vadd.f32 %v303, %v4020
      %v4022 = vpop.f32.mrb[0].mxu0
      %v4023 = vadd.f32 %v307, %v4022
      %v4024 = vpop.f32.mrb[0].mxu0
      %v4025 = vpop.f32.mrb[0].mxu0
      %4026 = vdwg.mxu0
      %s4027 = sadd.s32 %s97, 4
      %s4028 = sshra.s32 %s4027, 3
      %s4029 = sand.u32 %s4027, 7
      %s4030 = sshra.s32 %s4027, 3
      %s4031 = sand.u32 %s4027, 7
      %s4032 = smul.u32 %s4028, 4
      %s4033 = smul.u32 %s4032, 8
      %s4034 = sadd.s32 %s4033, %s4031
      %s4035 = scalar_lea.vmem [#allocation4], %s4034
      %v4036 = vld [vmem:[%s4035] ss:$8 sm:$0xf]
      %v4037 = vld [vmem:[#allocation7] sm:$0xff]
      %v4038 = vld [vmem:[#allocation7 + $0x8] sm:$0xff]
      %v4039 = vld [vmem:[#allocation7 + $0x10] sm:$0xff]
      %v4040 = vld [vmem:[#allocation7 + $0x18] sm:$0xff]
      %v4041 = vld [vmem:[#allocation7 + $0x20] sm:$0xff]
      %v4042 = vld [vmem:[#allocation7 + $0x28] sm:$0xff]
      %v4043 = vld [vmem:[#allocation7 + $0x30] sm:$0xff]
      %v4044 = vld [vmem:[#allocation7 + $0x38] sm:$0xff]
      %v4045 = vld [vmem:[#allocation7 + $0x40] sm:$0xff]
      %v4046 = vld [vmem:[#allocation7 + $0x48] sm:$0xff]
      %v4047 = vld [vmem:[#allocation7 + $0x50] sm:$0xff]
      %v4048 = vld [vmem:[#allocation7 + $0x58] sm:$0xff]
      %v4049 = vld [vmem:[#allocation7 + $0x60] sm:$0xff]
      %v4050 = vld [vmem:[#allocation7 + $0x68] sm:$0xff]
      %v4051 = vld [vmem:[#allocation7 + $0x70] sm:$0xff]
      %v4052 = vld [vmem:[#allocation7 + $0x78] sm:$0xff]
      %v4053 = vld [vmem:[#allocation7 + $0x80] sm:$0xff]
      %v4054 = vld [vmem:[#allocation7 + $0x88] sm:$0xff]
      %v4055 = vld [vmem:[#allocation7 + $0x90] sm:$0xff]
      %v4056 = vld [vmem:[#allocation7 + $0x98] sm:$0xff]
      %v4057 = vld [vmem:[#allocation7 + $0xa0] sm:$0xff]
      %v4058 = vld [vmem:[#allocation7 + $0xa8] sm:$0xff]
      %v4059 = vld [vmem:[#allocation7 + $0xb0] sm:$0xff]
      %v4060 = vld [vmem:[#allocation7 + $0xb8] sm:$0xff]
      %v4061 = vld [vmem:[#allocation7 + $0xc0] sm:$0xff]
      %v4062 = vld [vmem:[#allocation7 + $0xc8] sm:$0xff]
      %v4063 = vld [vmem:[#allocation7 + $0xd0] sm:$0xff]
      %v4064 = vld [vmem:[#allocation7 + $0xd8] sm:$0xff]
      %v4065 = vld [vmem:[#allocation7 + $0xe0] sm:$0xff]
      %v4066 = vld [vmem:[#allocation7 + $0xe8] sm:$0xff]
      %v4067 = vld [vmem:[#allocation7 + $0xf0] sm:$0xff]
      %v4068 = vld [vmem:[#allocation7 + $0xf8] sm:$0xff]
      %v4101 = vunpack.c.l.b16 %v4037
      %v4102 = vunpack.c.h.b16 %v4037
      %v4103 = vunpack.c.l.b16 %v4038
      %v4104 = vunpack.c.h.b16 %v4038
      %v4105 = vunpack.c.l.b16 %v4039
      %v4106 = vunpack.c.h.b16 %v4039
      %v4107 = vunpack.c.l.b16 %v4040
      %v4108 = vunpack.c.h.b16 %v4040
      %v4109 = vunpack.c.l.b16 %v4041
      %v4110 = vunpack.c.h.b16 %v4041
      %v4111 = vunpack.c.l.b16 %v4042
      %v4112 = vunpack.c.h.b16 %v4042
      %v4113 = vunpack.c.l.b16 %v4043
      %v4114 = vunpack.c.h.b16 %v4043
      %v4115 = vunpack.c.l.b16 %v4044
      %v4116 = vunpack.c.h.b16 %v4044
      %v4117 = vunpack.c.l.b16 %v4045
      %v4118 = vunpack.c.h.b16 %v4045
      %v4119 = vunpack.c.l.b16 %v4046
      %v4120 = vunpack.c.h.b16 %v4046
      %v4121 = vunpack.c.l.b16 %v4047
      %v4122 = vunpack.c.h.b16 %v4047
      %v4123 = vunpack.c.l.b16 %v4048
      %v4124 = vunpack.c.h.b16 %v4048
      %v4125 = vunpack.c.l.b16 %v4049
      %v4126 = vunpack.c.h.b16 %v4049
      %v4127 = vunpack.c.l.b16 %v4050
      %v4128 = vunpack.c.h.b16 %v4050
      %v4129 = vunpack.c.l.b16 %v4051
      %v4130 = vunpack.c.h.b16 %v4051
      %v4131 = vunpack.c.l.b16 %v4052
      %v4132 = vunpack.c.h.b16 %v4052
      %v4133 = vunpack.c.l.b16 %v4053
      %v4134 = vunpack.c.h.b16 %v4053
      %v4135 = vunpack.c.l.b16 %v4054
      %v4136 = vunpack.c.h.b16 %v4054
      %v4137 = vunpack.c.l.b16 %v4055
      %v4138 = vunpack.c.h.b16 %v4055
      %v4139 = vunpack.c.l.b16 %v4056
      %v4140 = vunpack.c.h.b16 %v4056
      %v4141 = vunpack.c.l.b16 %v4057
      %v4142 = vunpack.c.h.b16 %v4057
      %v4143 = vunpack.c.l.b16 %v4058
      %v4144 = vunpack.c.h.b16 %v4058
      %v4145 = vunpack.c.l.b16 %v4059
      %v4146 = vunpack.c.h.b16 %v4059
      %v4147 = vunpack.c.l.b16 %v4060
      %v4148 = vunpack.c.h.b16 %v4060
      %v4149 = vunpack.c.l.b16 %v4061
      %v4150 = vunpack.c.h.b16 %v4061
      %v4151 = vunpack.c.l.b16 %v4062
      %v4152 = vunpack.c.h.b16 %v4062
      %v4153 = vunpack.c.l.b16 %v4063
      %v4154 = vunpack.c.h.b16 %v4063
      %v4155 = vunpack.c.l.b16 %v4064
      %v4156 = vunpack.c.h.b16 %v4064
      %v4157 = vunpack.c.l.b16 %v4065
      %v4158 = vunpack.c.h.b16 %v4065
      %v4159 = vunpack.c.l.b16 %v4066
      %v4160 = vunpack.c.h.b16 %v4066
      %v4161 = vunpack.c.l.b16 %v4067
      %v4162 = vunpack.c.h.b16 %v4067
      %v4163 = vunpack.c.l.b16 %v4068
      %v4164 = vunpack.c.h.b16 %v4068
      %v4165 = vpack.c.b16 %v4105, %v4101
      %v4166 = vpack.c.b16 %v4106, %v4102
      %v4167 = vpack.c.b16 %v4107, %v4103
      %v4168 = vpack.c.b16 %v4108, %v4104
      %v4169 = vpack.c.b16 %v4113, %v4109
      %v4170 = vpack.c.b16 %v4114, %v4110
      %v4171 = vpack.c.b16 %v4115, %v4111
      %v4172 = vpack.c.b16 %v4116, %v4112
      %v4173 = vpack.c.b16 %v4121, %v4117
      %v4174 = vpack.c.b16 %v4122, %v4118
      %v4175 = vpack.c.b16 %v4123, %v4119
      %v4176 = vpack.c.b16 %v4124, %v4120
      %v4177 = vpack.c.b16 %v4129, %v4125
      %v4178 = vpack.c.b16 %v4130, %v4126
      %v4179 = vpack.c.b16 %v4131, %v4127
      %v4180 = vpack.c.b16 %v4132, %v4128
      %v4181 = vpack.c.b16 %v4137, %v4133
      %v4182 = vpack.c.b16 %v4138, %v4134
      %v4183 = vpack.c.b16 %v4139, %v4135
      %v4184 = vpack.c.b16 %v4140, %v4136
      %v4185 = vpack.c.b16 %v4145, %v4141
      %v4186 = vpack.c.b16 %v4146, %v4142
      %v4187 = vpack.c.b16 %v4147, %v4143
      %v4188 = vpack.c.b16 %v4148, %v4144
      %v4189 = vpack.c.b16 %v4153, %v4149
      %v4190 = vpack.c.b16 %v4154, %v4150
      %v4191 = vpack.c.b16 %v4155, %v4151
      %v4192 = vpack.c.b16 %v4156, %v4152
      %v4193 = vpack.c.b16 %v4161, %v4157
      %v4194 = vpack.c.b16 %v4162, %v4158
      %v4195 = vpack.c.b16 %v4163, %v4159
      %v4196 = vpack.c.b16 %v4164, %v4160
      %4229 = vmatprep.subr.bf16.mxu0 %v4166
      %4230 = vmatpush1.bf16.msra.mxu0 %v4165
      %4231 = vmatprep.subr.bf16.mxu0 %v4170
      %4232 = vmatpush1.bf16.msra.mxu0 %v4169
      %4233 = vmatprep.subr.bf16.mxu0 %v4174
      %4234 = vmatpush1.bf16.msra.mxu0 %v4173
      %4235 = vmatprep.subr.bf16.mxu0 %v4178
      %4236 = vmatpush1.bf16.msra.mxu0 %v4177
      %4237 = vmatprep.subr.bf16.mxu0 %v4182
      %4238 = vmatpush1.bf16.msra.mxu0 %v4181
      %4239 = vmatprep.subr.bf16.mxu0 %v4186
      %4240 = vmatpush1.bf16.msra.mxu0 %v4185
      %4241 = vmatprep.subr.bf16.mxu0 %v4190
      %4242 = vmatpush1.bf16.msra.mxu0 %v4189
      %4243 = vmatprep.subr.bf16.mxu0 %v4194
      %4244 = vmatpush1.bf16.msra.mxu0 %v4193
      %4245 = vmatprep.subr.bf16.mxu0 0
      %4246 = vmatpush1.bf16.msra.mxu0 0
      %4247 = vmatprep.subr.bf16.mxu0 0
      %4248 = vmatpush1.bf16.msra.mxu0 0
      %4249 = vmatprep.subr.bf16.mxu0 0
      %4250 = vmatpush1.bf16.msra.mxu0 0
      %4251 = vmatprep.subr.bf16.mxu0 0
      %4252 = vmatpush1.bf16.msra.mxu0 0
      %4253 = vmatprep.subr.bf16.mxu0 0
      %4254 = vmatpush1.bf16.msra.mxu0 0
      %4255 = vmatprep.subr.bf16.mxu0 0
      %4256 = vmatpush1.bf16.msra.mxu0 0
      %4257 = vmatprep.subr.bf16.mxu0 0
      %4258 = vmatpush1.bf16.msra.mxu0 0
      %4259 = vmatprep.subr.bf16.mxu0 0
      %4260 = vmatpush1.bf16.msra.mxu0 0
      %4261 = vmatprep.mubr.bf16.mxu0 0
      %4262 = vmatmul.mubr.bf16.gmra.mrb[0].mxu0 %v3452
      %v4263 = vpop.f32.mrb[0].mxu0
      %v4264 = vadd.f32 0.0, %v4263
      %v4265 = vpop.f32.mrb[0].mxu0
      %v4266 = vadd.f32 0.0, %v4265
      %v4267 = vpop.f32.mrb[0].mxu0
      %v4268 = vpop.f32.mrb[0].mxu0
      %4269 = vdwg.mxu0
      %4270 = vmatprep.subr.bf16.mxu0 %v4168
      %4271 = vmatpush1.bf16.msra.mxu0 %v4167
      %4272 = vmatprep.subr.bf16.mxu0 %v4172
      %4273 = vmatpush1.bf16.msra.mxu0 %v4171
      %4274 = vmatprep.subr.bf16.mxu0 %v4176
      %4275 = vmatpush1.bf16.msra.mxu0 %v4175
      %4276 = vmatprep.subr.bf16.mxu0 %v4180
      %4277 = vmatpush1.bf16.msra.mxu0 %v4179
      %4278 = vmatprep.subr.bf16.mxu0 %v4184
      %4279 = vmatpush1.bf16.msra.mxu0 %v4183
      %4280 = vmatprep.subr.bf16.mxu0 %v4188
      %4281 = vmatpush1.bf16.msra.mxu0 %v4187
      %4282 = vmatprep.subr.bf16.mxu0 %v4192
      %4283 = vmatpush1.bf16.msra.mxu0 %v4191
      %4284 = vmatprep.subr.bf16.mxu0 %v4196
      %4285 = vmatpush1.bf16.msra.mxu0 %v4195
      %4286 = vmatprep.subr.bf16.mxu0 0
      %4287 = vmatpush1.bf16.msra.mxu0 0
      %4288 = vmatprep.subr.bf16.mxu0 0
      %4289 = vmatpush1.bf16.msra.mxu0 0
      %4290 = vmatprep.subr.bf16.mxu0 0
      %4291 = vmatpush1.bf16.msra.mxu0 0
      %4292 = vmatprep.subr.bf16.mxu0 0
      %4293 = vmatpush1.bf16.msra.mxu0 0
      %4294 = vmatprep.subr.bf16.mxu0 0
      %4295 = vmatpush1.bf16.msra.mxu0 0
      %4296 = vmatprep.subr.bf16.mxu0 0
      %4297 = vmatpush1.bf16.msra.mxu0 0
      %4298 = vmatprep.subr.bf16.mxu0 0
      %4299 = vmatpush1.bf16.msra.mxu0 0
      %4300 = vmatprep.subr.bf16.mxu0 0
      %4301 = vmatpush1.bf16.msra.mxu0 0
      %4302 = vmatprep.mubr.bf16.mxu0 0
      %4303 = vmatmul.mubr.bf16.gmra.mrb[0].mxu0 %v3452
      %v4304 = vpop.f32.mrb[0].mxu0
      %v4305 = vadd.f32 0.0, %v4304
      %v4306 = vpop.f32.mrb[0].mxu0
      %v4307 = vadd.f32 0.0, %v4306
      %v4308 = vpop.f32.mrb[0].mxu0
      %v4309 = vpop.f32.mrb[0].mxu0
      %4310 = vdwg.mxu0
      %v4315 = vcombine.low %v4264, %v4266
      %v4316 = vcombine.low %v4305, %v4307
      %v4318 = vunpack.c.l.s4 1966171168
      %v4319 = vunpack.c.0.s8 %v4318
      %v4320 = vlaneseq
      %v4321 = vshrl.u32 %v4320, 7
      %v4322 = vsub.s32 %v4319, %v4321
      %v4323 = vrot.slane %v4315, %v4322
      %v4325 = vunpack.c.l.s4 1966171168
      %v4326 = vunpack.c.0.s8 %v4325
      %v4327 = vlaneseq
      %v4328 = vshrl.u32 %v4327, 7
      %v4329 = vsub.s32 %v4326, %v4328
      %v4330 = vrot.slane %v4316, %v4329
      %v4331 = vcombine.low %v4323, %v4330
      %v4333 = vunpack.c.l.s4 1966171168
      %v4334 = vunpack.c.0.s8 %v4333
      %v4335 = vlaneseq
      %v4336 = vshrl.u32 %v4335, 7
      %v4337 = vsub.s32 %v4334, %v4336
      %v4338 = vrot.slane %v4331, %v4337
      %v4340 = vadd.f32 %v4036, %v4338
      %v4341 = vxor.u32 %v4340, 2147483648
      %v4342 = vmul.f32 %v4341, 1.442695
      %v4343 = vpow.pop %v4342
      %v4344 = vadd.f32 %v4343, 1.0
      %v4345 = vrcp.pop %v4344
      %v4346 = vmul.f32 1.0, %v4345
      %v4348 = vrot.slane %v4340, 3
      %v4350 = vtanh.pop %v4348
      %v4352 = vrot.slane %v4346, 1
      %v4354 = vmul.f32 %v4352, %v3447
      %v4355 = vmul.f32 %v4346, %v4350
      %v4356 = vadd.f32 %v4354, %v4355
      %v4357 = vtanh.pop %v4356
      %v4358 = vrot.slane %v4346, 2
      %v4360 = vmul.f32 %v4358, %v4357
      %v4361 = vpack.c.bf16 %v4360, %v4360
      %v4362 = vld [vmem:[#allocation9] sm:$0xff]
      %v4363 = vld [vmem:[#allocation9 + $0x8] sm:$0xff]
      %v4364 = vld [vmem:[#allocation9 + $0x10] sm:$0xff]
      %v4365 = vld [vmem:[#allocation9 + $0x18] sm:$0xff]
      %v4366 = vld [vmem:[#allocation9 + $0x20] sm:$0xff]
      %v4367 = vld [vmem:[#allocation9 + $0x28] sm:$0xff]
      %v4368 = vld [vmem:[#allocation9 + $0x30] sm:$0xff]
      %v4369 = vld [vmem:[#allocation9 + $0x38] sm:$0xff]
      %v4370 = vld [vmem:[#allocation9 + $0x40] sm:$0xff]
      %v4371 = vld [vmem:[#allocation9 + $0x48] sm:$0xff]
      %v4372 = vld [vmem:[#allocation9 + $0x50] sm:$0xff]
      %v4373 = vld [vmem:[#allocation9 + $0x58] sm:$0xff]
      %v4374 = vld [vmem:[#allocation9 + $0x60] sm:$0xff]
      %v4375 = vld [vmem:[#allocation9 + $0x68] sm:$0xff]
      %v4376 = vld [vmem:[#allocation9 + $0x70] sm:$0xff]
      %v4377 = vld [vmem:[#allocation9 + $0x78] sm:$0xff]
      %v4378 = vld [vmem:[#allocation9 + $0x80] sm:$0xff]
      %v4379 = vld [vmem:[#allocation9 + $0x88] sm:$0xff]
      %v4380 = vld [vmem:[#allocation9 + $0x90] sm:$0xff]
      %v4381 = vld [vmem:[#allocation9 + $0x98] sm:$0xff]
      %v4382 = vld [vmem:[#allocation9 + $0xa0] sm:$0xff]
      %v4383 = vld [vmem:[#allocation9 + $0xa8] sm:$0xff]
      %v4384 = vld [vmem:[#allocation9 + $0xb0] sm:$0xff]
      %v4385 = vld [vmem:[#allocation9 + $0xb8] sm:$0xff]
      %v4386 = vld [vmem:[#allocation9 + $0xc0] sm:$0xff]
      %v4387 = vld [vmem:[#allocation9 + $0xc8] sm:$0xff]
      %v4388 = vld [vmem:[#allocation9 + $0xd0] sm:$0xff]
      %v4389 = vld [vmem:[#allocation9 + $0xd8] sm:$0xff]
      %v4390 = vld [vmem:[#allocation9 + $0xe0] sm:$0xff]
      %v4391 = vld [vmem:[#allocation9 + $0xe8] sm:$0xff]
      %v4392 = vld [vmem:[#allocation9 + $0xf0] sm:$0xff]
      %v4393 = vld [vmem:[#allocation9 + $0xf8] sm:$0xff]
      %v4426 = vunpack.c.l.b16 %v4362
      %v4427 = vunpack.c.h.b16 %v4362
      %v4428 = vunpack.c.l.b16 %v4363
      %v4429 = vunpack.c.h.b16 %v4363
      %v4430 = vunpack.c.l.b16 %v4364
      %v4431 = vunpack.c.h.b16 %v4364
      %v4432 = vunpack.c.l.b16 %v4365
      %v4433 = vunpack.c.h.b16 %v4365
      %v4434 = vunpack.c.l.b16 %v4366
      %v4435 = vunpack.c.h.b16 %v4366
      %v4436 = vunpack.c.l.b16 %v4367
      %v4437 = vunpack.c.h.b16 %v4367
      %v4438 = vunpack.c.l.b16 %v4368
      %v4439 = vunpack.c.h.b16 %v4368
      %v4440 = vunpack.c.l.b16 %v4369
      %v4441 = vunpack.c.h.b16 %v4369
      %v4442 = vunpack.c.l.b16 %v4370
      %v4443 = vunpack.c.h.b16 %v4370
      %v4444 = vunpack.c.l.b16 %v4371
      %v4445 = vunpack.c.h.b16 %v4371
      %v4446 = vunpack.c.l.b16 %v4372
      %v4447 = vunpack.c.h.b16 %v4372
      %v4448 = vunpack.c.l.b16 %v4373
      %v4449 = vunpack.c.h.b16 %v4373
      %v4450 = vunpack.c.l.b16 %v4374
      %v4451 = vunpack.c.h.b16 %v4374
      %v4452 = vunpack.c.l.b16 %v4375
      %v4453 = vunpack.c.h.b16 %v4375
      %v4454 = vunpack.c.l.b16 %v4376
      %v4455 = vunpack.c.h.b16 %v4376
      %v4456 = vunpack.c.l.b16 %v4377
      %v4457 = vunpack.c.h.b16 %v4377
      %v4458 = vunpack.c.l.b16 %v4378
      %v4459 = vunpack.c.h.b16 %v4378
      %v4460 = vunpack.c.l.b16 %v4379
      %v4461 = vunpack.c.h.b16 %v4379
      %v4462 = vunpack.c.l.b16 %v4380
      %v4463 = vunpack.c.h.b16 %v4380
      %v4464 = vunpack.c.l.b16 %v4381
      %v4465 = vunpack.c.h.b16 %v4381
      %v4466 = vunpack.c.l.b16 %v4382
      %v4467 = vunpack.c.h.b16 %v4382
      %v4468 = vunpack.c.l.b16 %v4383
      %v4469 = vunpack.c.h.b16 %v4383
      %v4470 = vunpack.c.l.b16 %v4384
      %v4471 = vunpack.c.h.b16 %v4384
      %v4472 = vunpack.c.l.b16 %v4385
      %v4473 = vunpack.c.h.b16 %v4385
      %v4474 = vunpack.c.l.b16 %v4386
      %v4475 = vunpack.c.h.b16 %v4386
      %v4476 = vunpack.c.l.b16 %v4387
      %v4477 = vunpack.c.h.b16 %v4387
      %v4478 = vunpack.c.l.b16 %v4388
      %v4479 = vunpack.c.h.b16 %v4388
      %v4480 = vunpack.c.l.b16 %v4389
      %v4481 = vunpack.c.h.b16 %v4389
      %v4482 = vunpack.c.l.b16 %v4390
      %v4483 = vunpack.c.h.b16 %v4390
      %v4484 = vunpack.c.l.b16 %v4391
      %v4485 = vunpack.c.h.b16 %v4391
      %v4486 = vunpack.c.l.b16 %v4392
      %v4487 = vunpack.c.h.b16 %v4392
      %v4488 = vunpack.c.l.b16 %v4393
      %v4489 = vunpack.c.h.b16 %v4393
      %v4490 = vpack.c.b16 %v4430, %v4426
      %v4491 = vpack.c.b16 %v4431, %v4427
      %v4492 = vpack.c.b16 %v4432, %v4428
      %v4493 = vpack.c.b16 %v4433, %v4429
      %v4494 = vpack.c.b16 %v4438, %v4434
      %v4495 = vpack.c.b16 %v4439, %v4435
      %v4496 = vpack.c.b16 %v4440, %v4436
      %v4497 = vpack.c.b16 %v4441, %v4437
      %v4498 = vpack.c.b16 %v4446, %v4442
      %v4499 = vpack.c.b16 %v4447, %v4443
      %v4500 = vpack.c.b16 %v4448, %v4444
      %v4501 = vpack.c.b16 %v4449, %v4445
      %v4502 = vpack.c.b16 %v4454, %v4450
      %v4503 = vpack.c.b16 %v4455, %v4451
      %v4504 = vpack.c.b16 %v4456, %v4452
      %v4505 = vpack.c.b16 %v4457, %v4453
      %v4506 = vpack.c.b16 %v4462, %v4458
      %v4507 = vpack.c.b16 %v4463, %v4459
      %v4508 = vpack.c.b16 %v4464, %v4460
      %v4509 = vpack.c.b16 %v4465, %v4461
      %v4510 = vpack.c.b16 %v4470, %v4466
      %v4511 = vpack.c.b16 %v4471, %v4467
      %v4512 = vpack.c.b16 %v4472, %v4468
      %v4513 = vpack.c.b16 %v4473, %v4469
      %v4514 = vpack.c.b16 %v4478, %v4474
      %v4515 = vpack.c.b16 %v4479, %v4475
      %v4516 = vpack.c.b16 %v4480, %v4476
      %v4517 = vpack.c.b16 %v4481, %v4477
      %v4518 = vpack.c.b16 %v4486, %v4482
      %v4519 = vpack.c.b16 %v4487, %v4483
      %v4520 = vpack.c.b16 %v4488, %v4484
      %v4521 = vpack.c.b16 %v4489, %v4485
      %4554 = vmatprep.subr.bf16.mxu0 %v4491
      %4555 = vmatpush1.bf16.msra.mxu0 %v4490
      %4556 = vmatprep.subr.bf16.mxu0 %v4495
      %4557 = vmatpush1.bf16.msra.mxu0 %v4494
      %4558 = vmatprep.subr.bf16.mxu0 %v4499
      %4559 = vmatpush1.bf16.msra.mxu0 %v4498
      %4560 = vmatprep.subr.bf16.mxu0 %v4503
      %4561 = vmatpush1.bf16.msra.mxu0 %v4502
      %4562 = vmatprep.subr.bf16.mxu0 %v4507
      %4563 = vmatpush1.bf16.msra.mxu0 %v4506
      %4564 = vmatprep.subr.bf16.mxu0 %v4511
      %4565 = vmatpush1.bf16.msra.mxu0 %v4510
      %4566 = vmatprep.subr.bf16.mxu0 %v4515
      %4567 = vmatpush1.bf16.msra.mxu0 %v4514
      %4568 = vmatprep.subr.bf16.mxu0 %v4519
      %4569 = vmatpush1.bf16.msra.mxu0 %v4518
      %4570 = vmatprep.subr.bf16.mxu0 0
      %4571 = vmatpush1.bf16.msra.mxu0 0
      %4572 = vmatprep.subr.bf16.mxu0 0
      %4573 = vmatpush1.bf16.msra.mxu0 0
      %4574 = vmatprep.subr.bf16.mxu0 0
      %4575 = vmatpush1.bf16.msra.mxu0 0
      %4576 = vmatprep.subr.bf16.mxu0 0
      %4577 = vmatpush1.bf16.msra.mxu0 0
      %4578 = vmatprep.subr.bf16.mxu0 0
      %4579 = vmatpush1.bf16.msra.mxu0 0
      %4580 = vmatprep.subr.bf16.mxu0 0
      %4581 = vmatpush1.bf16.msra.mxu0 0
      %4582 = vmatprep.subr.bf16.mxu0 0
      %4583 = vmatpush1.bf16.msra.mxu0 0
      %4584 = vmatprep.subr.bf16.mxu0 0
      %4585 = vmatpush1.bf16.msra.mxu0 0
      %4586 = vmatprep.mubr.bf16.mxu0 0
      %4587 = vmatmul.mubr.bf16.gmra.mrb[0].mxu0 %v4361
      %v4588 = vpop.f32.mrb[0].mxu0
      %v4589 = vadd.f32 %v3980, %v4588
      %v4590 = vpop.f32.mrb[0].mxu0
      %v4591 = vadd.f32 %v3982, %v4590
      %v4592 = vpop.f32.mrb[0].mxu0
      %v4593 = vpop.f32.mrb[0].mxu0
      %4594 = vdwg.mxu0
      %4595 = vmatprep.subr.bf16.mxu0 %v4493
      %4596 = vmatpush1.bf16.msra.mxu0 %v4492
      %4597 = vmatprep.subr.bf16.mxu0 %v4497
      %4598 = vmatpush1.bf16.msra.mxu0 %v4496
      %4599 = vmatprep.subr.bf16.mxu0 %v4501
      %4600 = vmatpush1.bf16.msra.mxu0 %v4500
      %4601 = vmatprep.subr.bf16.mxu0 %v4505
      %4602 = vmatpush1.bf16.msra.mxu0 %v4504
      %4603 = vmatprep.subr.bf16.mxu0 %v4509
      %4604 = vmatpush1.bf16.msra.mxu0 %v4508
      %4605 = vmatprep.subr.bf16.mxu0 %v4513
      %4606 = vmatpush1.bf16.msra.mxu0 %v4512
      %4607 = vmatprep.subr.bf16.mxu0 %v4517
      %4608 = vmatpush1.bf16.msra.mxu0 %v4516
      %4609 = vmatprep.subr.bf16.mxu0 %v4521
      %4610 = vmatpush1.bf16.msra.mxu0 %v4520
      %4611 = vmatprep.subr.bf16.mxu0 0
      %4612 = vmatpush1.bf16.msra.mxu0 0
      %4613 = vmatprep.subr.bf16.mxu0 0
      %4614 = vmatpush1.bf16.msra.mxu0 0
      %4615 = vmatprep.subr.bf16.mxu0 0
      %4616 = vmatpush1.bf16.msra.mxu0 0
      %4617 = vmatprep.subr.bf16.mxu0 0
      %4618 = vmatpush1.bf16.msra.mxu0 0
      %4619 = vmatprep.subr.bf16.mxu0 0
      %4620 = vmatpush1.bf16.msra.mxu0 0
      %4621 = vmatprep.subr.bf16.mxu0 0
      %4622 = vmatpush1.bf16.msra.mxu0 0
      %4623 = vmatprep.subr.bf16.mxu0 0
      %4624 = vmatpush1.bf16.msra.mxu0 0
      %4625 = vmatprep.subr.bf16.mxu0 0
      %4626 = vmatpush1.bf16.msra.mxu0 0
      %4627 = vmatprep.mubr.bf16.mxu0 0
      %4628 = vmatmul.mubr.bf16.gmra.mrb[0].mxu0 %v4361
      %v4629 = vpop.f32.mrb[0].mxu0
      %v4630 = vadd.f32 %v4021, %v4629
      %v4631 = vpop.f32.mrb[0].mxu0
      %v4632 = vadd.f32 %v4023, %v4631
      %v4633 = vpop.f32.mrb[0].mxu0
      %v4634 = vpop.f32.mrb[0].mxu0
      %4635 = vdwg.mxu0
      %v4636 = vxor.u32 %v4589, 2147483648
      %v4637 = vxor.u32 %v4591, 2147483648
      %v4638 = vxor.u32 %v4630, 2147483648
      %v4639 = vmul.f32 %v4636, 1.442695
      %v4640 = vpow.pop %v4639
      %v4641 = vmul.f32 %v4637, 1.442695
      %v4642 = vpow.pop %v4641
      %v4643 = vmul.f32 %v4638, 1.442695
      %v4644 = vpow.pop %v4643
      %v4645 = vadd.f32 %v4640, 1.0
      %v4646 = vadd.f32 %v4642, 1.0
      %v4647 = vadd.f32 %v4644, 1.0
      %v4648 = vrcp.pop %v4645
      %v4649 = vmul.f32 1.0, %v4648
      %v4650 = vrcp.pop %v4646
      %v4651 = vmul.f32 1.0, %v4650
      %v4652 = vrcp.pop %v4647
      %v4653 = vmul.f32 1.0, %v4652
      %v4654 = vtanh.pop %v4632
      %v4655 = vmul.f32 %v4651, %v3748
      %v4656 = vmul.f32 %v4649, %v4654
      %v4657 = vadd.f32 %v4655, %v4656
      %v4658 = vtanh.pop %v4657
      %v4659 = vmul.f32 %v4653, %v4658
      %4660 = vst [vmem:[#allocation3 + $0x4] sm:$0x1] %v4659
      %v4661 = vpack.c.bf16 %v4659, %v4659
      %v4662 = vld [vmem:[#allocation10] sm:$0xff]
      %v4663 = vld [vmem:[#allocation10 + $0x8] sm:$0xff]
      %v4664 = vld [vmem:[#allocation10 + $0x10] sm:$0xff]
      %v4665 = vld [vmem:[#allocation10 + $0x18] sm:$0xff]
      %v4666 = vld [vmem:[#allocation10 + $0x20] sm:$0xff]
      %v4667 = vld [vmem:[#allocation10 + $0x28] sm:$0xff]
      %v4668 = vld [vmem:[#allocation10 + $0x30] sm:$0xff]
      %v4669 = vld [vmem:[#allocation10 + $0x38] sm:$0xff]
      %v4670 = vld [vmem:[#allocation10 + $0x40] sm:$0xff]
      %v4671 = vld [vmem:[#allocation10 + $0x48] sm:$0xff]
      %v4672 = vld [vmem:[#allocation10 + $0x50] sm:$0xff]
      %v4673 = vld [vmem:[#allocation10 + $0x58] sm:$0xff]
      %v4674 = vld [vmem:[#allocation10 + $0x60] sm:$0xff]
      %v4675 = vld [vmem:[#allocation10 + $0x68] sm:$0xff]
      %v4676 = vld [vmem:[#allocation10 + $0x70] sm:$0xff]
      %v4677 = vld [vmem:[#allocation10 + $0x78] sm:$0xff]
      %v4678 = vld [vmem:[#allocation10 + $0x80] sm:$0xff]
      %v4679 = vld [vmem:[#allocation10 + $0x88] sm:$0xff]
      %v4680 = vld [vmem:[#allocation10 + $0x90] sm:$0xff]
      %v4681 = vld [vmem:[#allocation10 + $0x98] sm:$0xff]
      %v4682 = vld [vmem:[#allocation10 + $0xa0] sm:$0xff]
      %v4683 = vld [vmem:[#allocation10 + $0xa8] sm:$0xff]
      %v4684 = vld [vmem:[#allocation10 + $0xb0] sm:$0xff]
      %v4685 = vld [vmem:[#allocation10 + $0xb8] sm:$0xff]
      %v4686 = vld [vmem:[#allocation10 + $0xc0] sm:$0xff]
      %v4687 = vld [vmem:[#allocation10 + $0xc8] sm:$0xff]
      %v4688 = vld [vmem:[#allocation10 + $0xd0] sm:$0xff]
      %v4689 = vld [vmem:[#allocation10 + $0xd8] sm:$0xff]
      %v4690 = vld [vmem:[#allocation10 + $0xe0] sm:$0xff]
      %v4691 = vld [vmem:[#allocation10 + $0xe8] sm:$0xff]
      %v4692 = vld [vmem:[#allocation10 + $0xf0] sm:$0xff]
      %v4693 = vld [vmem:[#allocation10 + $0xf8] sm:$0xff]
      %v4726 = vunpack.c.l.b16 %v4662
      %v4727 = vunpack.c.h.b16 %v4662
      %v4728 = vunpack.c.l.b16 %v4663
      %v4729 = vunpack.c.h.b16 %v4663
      %v4730 = vunpack.c.l.b16 %v4664
      %v4731 = vunpack.c.h.b16 %v4664
      %v4732 = vunpack.c.l.b16 %v4665
      %v4733 = vunpack.c.h.b16 %v4665
      %v4734 = vunpack.c.l.b16 %v4666
      %v4735 = vunpack.c.h.b16 %v4666
      %v4736 = vunpack.c.l.b16 %v4667
      %v4737 = vunpack.c.h.b16 %v4667
      %v4738 = vunpack.c.l.b16 %v4668
      %v4739 = vunpack.c.h.b16 %v4668
      %v4740 = vunpack.c.l.b16 %v4669
      %v4741 = vunpack.c.h.b16 %v4669
      %v4742 = vunpack.c.l.b16 %v4670
      %v4743 = vunpack.c.h.b16 %v4670
      %v4744 = vunpack.c.l.b16 %v4671
      %v4745 = vunpack.c.h.b16 %v4671
      %v4746 = vunpack.c.l.b16 %v4672
      %v4747 = vunpack.c.h.b16 %v4672
      %v4748 = vunpack.c.l.b16 %v4673
      %v4749 = vunpack.c.h.b16 %v4673
      %v4750 = vunpack.c.l.b16 %v4674
      %v4751 = vunpack.c.h.b16 %v4674
      %v4752 = vunpack.c.l.b16 %v4675
      %v4753 = vunpack.c.h.b16 %v4675
      %v4754 = vunpack.c.l.b16 %v4676
      %v4755 = vunpack.c.h.b16 %v4676
      %v4756 = vunpack.c.l.b16 %v4677
      %v4757 = vunpack.c.h.b16 %v4677
      %v4758 = vunpack.c.l.b16 %v4678
      %v4759 = vunpack.c.h.b16 %v4678
      %v4760 = vunpack.c.l.b16 %v4679
      %v4761 = vunpack.c.h.b16 %v4679
      %v4762 = vunpack.c.l.b16 %v4680
      %v4763 = vunpack.c.h.b16 %v4680
      %v4764 = vunpack.c.l.b16 %v4681
      %v4765 = vunpack.c.h.b16 %v4681
      %v4766 = vunpack.c.l.b16 %v4682
      %v4767 = vunpack.c.h.b16 %v4682
      %v4768 = vunpack.c.l.b16 %v4683
      %v4769 = vunpack.c.h.b16 %v4683
      %v4770 = vunpack.c.l.b16 %v4684
      %v4771 = vunpack.c.h.b16 %v4684
      %v4772 = vunpack.c.l.b16 %v4685
      %v4773 = vunpack.c.h.b16 %v4685
      %v4774 = vunpack.c.l.b16 %v4686
      %v4775 = vunpack.c.h.b16 %v4686
      %v4776 = vunpack.c.l.b16 %v4687
      %v4777 = vunpack.c.h.b16 %v4687
      %v4778 = vunpack.c.l.b16 %v4688
      %v4779 = vunpack.c.h.b16 %v4688
      %v4780 = vunpack.c.l.b16 %v4689
      %v4781 = vunpack.c.h.b16 %v4689
      %v4782 = vunpack.c.l.b16 %v4690
      %v4783 = vunpack.c.h.b16 %v4690
      %v4784 = vunpack.c.l.b16 %v4691
      %v4785 = vunpack.c.h.b16 %v4691
      %v4786 = vunpack.c.l.b16 %v4692
      %v4787 = vunpack.c.h.b16 %v4692
      %v4788 = vunpack.c.l.b16 %v4693
      %v4789 = vunpack.c.h.b16 %v4693
      %v4790 = vpack.c.b16 %v4730, %v4726
      %v4791 = vpack.c.b16 %v4731, %v4727
      %v4792 = vpack.c.b16 %v4732, %v4728
      %v4793 = vpack.c.b16 %v4733, %v4729
      %v4794 = vpack.c.b16 %v4738, %v4734
      %v4795 = vpack.c.b16 %v4739, %v4735
      %v4796 = vpack.c.b16 %v4740, %v4736
      %v4797 = vpack.c.b16 %v4741, %v4737
      %v4798 = vpack.c.b16 %v4746, %v4742
      %v4799 = vpack.c.b16 %v4747, %v4743
      %v4800 = vpack.c.b16 %v4748, %v4744
      %v4801 = vpack.c.b16 %v4749, %v4745
      %v4802 = vpack.c.b16 %v4754, %v4750
      %v4803 = vpack.c.b16 %v4755, %v4751
      %v4804 = vpack.c.b16 %v4756, %v4752
      %v4805 = vpack.c.b16 %v4757, %v4753
      %v4806 = vpack.c.b16 %v4762, %v4758
      %v4807 = vpack.c.b16 %v4763, %v4759
      %v4808 = vpack.c.b16 %v4764, %v4760
      %v4809 = vpack.c.b16 %v4765, %v4761
      %v4810 = vpack.c.b16 %v4770, %v4766
      %v4811 = vpack.c.b16 %v4771, %v4767
      %v4812 = vpack.c.b16 %v4772, %v4768
      %v4813 = vpack.c.b16 %v4773, %v4769
      %v4814 = vpack.c.b16 %v4778, %v4774
      %v4815 = vpack.c.b16 %v4779, %v4775
      %v4816 = vpack.c.b16 %v4780, %v4776
      %v4817 = vpack.c.b16 %v4781, %v4777
      %v4818 = vpack.c.b16 %v4786, %v4782
      %v4819 = vpack.c.b16 %v4787, %v4783
      %v4820 = vpack.c.b16 %v4788, %v4784
      %v4821 = vpack.c.b16 %v4789, %v4785
      %4854 = vmatprep.subr.bf16.mxu0 %v4791
      %4855 = vmatpush1.bf16.msra.mxu0 %v4790
      %4856 = vmatprep.subr.bf16.mxu0 %v4795
      %4857 = vmatpush1.bf16.msra.mxu0 %v4794
      %4858 = vmatprep.subr.bf16.mxu0 %v4799
      %4859 = vmatpush1.bf16.msra.mxu0 %v4798
      %4860 = vmatprep.subr.bf16.mxu0 %v4803
      %4861 = vmatpush1.bf16.msra.mxu0 %v4802
      %4862 = vmatprep.subr.bf16.mxu0 %v4807
      %4863 = vmatpush1.bf16.msra.mxu0 %v4806
      %4864 = vmatprep.subr.bf16.mxu0 %v4811
      %4865 = vmatpush1.bf16.msra.mxu0 %v4810
      %4866 = vmatprep.subr.bf16.mxu0 %v4815
      %4867 = vmatpush1.bf16.msra.mxu0 %v4814
      %4868 = vmatprep.subr.bf16.mxu0 %v4819
      %4869 = vmatpush1.bf16.msra.mxu0 %v4818
      %4870 = vmatprep.subr.bf16.mxu0 0
      %4871 = vmatpush1.bf16.msra.mxu0 0
      %4872 = vmatprep.subr.bf16.mxu0 0
      %4873 = vmatpush1.bf16.msra.mxu0 0
      %4874 = vmatprep.subr.bf16.mxu0 0
      %4875 = vmatpush1.bf16.msra.mxu0 0
      %4876 = vmatprep.subr.bf16.mxu0 0
      %4877 = vmatpush1.bf16.msra.mxu0 0
      %4878 = vmatprep.subr.bf16.mxu0 0
      %4879 = vmatpush1.bf16.msra.mxu0 0
      %4880 = vmatprep.subr.bf16.mxu0 0
      %4881 = vmatpush1.bf16.msra.mxu0 0
      %4882 = vmatprep.subr.bf16.mxu0 0
      %4883 = vmatpush1.bf16.msra.mxu0 0
      %4884 = vmatprep.subr.bf16.mxu0 0
      %4885 = vmatpush1.bf16.msra.mxu0 0
      %4886 = vmatprep.mubr.bf16.mxu0 0
      %4887 = vmatmul.mubr.bf16.gmra.mrb[0].mxu0 %v4661
      %v4888 = vpop.f32.mrb[0].mxu0
      %v4889 = vadd.f32 %v295, %v4888
      %v4890 = vpop.f32.mrb[0].mxu0
      %v4891 = vadd.f32 %v299, %v4890
      %v4892 = vpop.f32.mrb[0].mxu0
      %v4893 = vpop.f32.mrb[0].mxu0
      %4894 = vdwg.mxu0
      %4895 = vmatprep.subr.bf16.mxu0 %v4793
      %4896 = vmatpush1.bf16.msra.mxu0 %v4792
      %4897 = vmatprep.subr.bf16.mxu0 %v4797
      %4898 = vmatpush1.bf16.msra.mxu0 %v4796
      %4899 = vmatprep.subr.bf16.mxu0 %v4801
      %4900 = vmatpush1.bf16.msra.mxu0 %v4800
      %4901 = vmatprep.subr.bf16.mxu0 %v4805
      %4902 = vmatpush1.bf16.msra.mxu0 %v4804
      %4903 = vmatprep.subr.bf16.mxu0 %v4809
      %4904 = vmatpush1.bf16.msra.mxu0 %v4808
      %4905 = vmatprep.subr.bf16.mxu0 %v4813
      %4906 = vmatpush1.bf16.msra.mxu0 %v4812
      %4907 = vmatprep.subr.bf16.mxu0 %v4817
      %4908 = vmatpush1.bf16.msra.mxu0 %v4816
      %4909 = vmatprep.subr.bf16.mxu0 %v4821
      %4910 = vmatpush1.bf16.msra.mxu0 %v4820
      %4911 = vmatprep.subr.bf16.mxu0 0
      %4912 = vmatpush1.bf16.msra.mxu0 0
      %4913 = vmatprep.subr.bf16.mxu0 0
      %4914 = vmatpush1.bf16.msra.mxu0 0
      %4915 = vmatprep.subr.bf16.mxu0 0
      %4916 = vmatpush1.bf16.msra.mxu0 0
      %4917 = vmatprep.subr.bf16.mxu0 0
      %4918 = vmatpush1.bf16.msra.mxu0 0
      %4919 = vmatprep.subr.bf16.mxu0 0
      %4920 = vmatpush1.bf16.msra.mxu0 0
      %4921 = vmatprep.subr.bf16.mxu0 0
      %4922 = vmatpush1.bf16.msra.mxu0 0
      %4923 = vmatprep.subr.bf16.mxu0 0
      %4924 = vmatpush1.bf16.msra.mxu0 0
      %4925 = vmatprep.subr.bf16.mxu0 0
      %4926 = vmatpush1.bf16.msra.mxu0 0
      %4927 = vmatprep.mubr.bf16.mxu0 0
      %4928 = vmatmul.mubr.bf16.gmra.mrb[0].mxu0 %v4661
      %v4929 = vpop.f32.mrb[0].mxu0
      %v4930 = vadd.f32 %v303, %v4929
      %v4931 = vpop.f32.mrb[0].mxu0
      %v4932 = vadd.f32 %v307, %v4931
      %v4933 = vpop.f32.mrb[0].mxu0
      %v4934 = vpop.f32.mrb[0].mxu0
      %4935 = vdwg.mxu0
      %s4936 = sadd.s32 %s97, 5
      %s4937 = sshra.s32 %s4936, 3
      %s4938 = sand.u32 %s4936, 7
      %s4939 = sshra.s32 %s4936, 3
      %s4940 = sand.u32 %s4936, 7
      %s4941 = smul.u32 %s4937, 4
      %s4942 = smul.u32 %s4941, 8
      %s4943 = sadd.s32 %s4942, %s4940
      %s4944 = scalar_lea.vmem [#allocation4], %s4943
      %v4945 = vld [vmem:[%s4944] ss:$8 sm:$0xf]
      %v4946 = vld [vmem:[#allocation7] sm:$0xff]
      %v4947 = vld [vmem:[#allocation7 + $0x8] sm:$0xff]
      %v4948 = vld [vmem:[#allocation7 + $0x10] sm:$0xff]
      %v4949 = vld [vmem:[#allocation7 + $0x18] sm:$0xff]
      %v4950 = vld [vmem:[#allocation7 + $0x20] sm:$0xff]
      %v4951 = vld [vmem:[#allocation7 + $0x28] sm:$0xff]
      %v4952 = vld [vmem:[#allocation7 + $0x30] sm:$0xff]
      %v4953 = vld [vmem:[#allocation7 + $0x38] sm:$0xff]
      %v4954 = vld [vmem:[#allocation7 + $0x40] sm:$0xff]
      %v4955 = vld [vmem:[#allocation7 + $0x48] sm:$0xff]
      %v4956 = vld [vmem:[#allocation7 + $0x50] sm:$0xff]
      %v4957 = vld [vmem:[#allocation7 + $0x58] sm:$0xff]
      %v4958 = vld [vmem:[#allocation7 + $0x60] sm:$0xff]
      %v4959 = vld [vmem:[#allocation7 + $0x68] sm:$0xff]
      %v4960 = vld [vmem:[#allocation7 + $0x70] sm:$0xff]
      %v4961 = vld [vmem:[#allocation7 + $0x78] sm:$0xff]
      %v4962 = vld [vmem:[#allocation7 + $0x80] sm:$0xff]
      %v4963 = vld [vmem:[#allocation7 + $0x88] sm:$0xff]
      %v4964 = vld [vmem:[#allocation7 + $0x90] sm:$0xff]
      %v4965 = vld [vmem:[#allocation7 + $0x98] sm:$0xff]
      %v4966 = vld [vmem:[#allocation7 + $0xa0] sm:$0xff]
      %v4967 = vld [vmem:[#allocation7 + $0xa8] sm:$0xff]
      %v4968 = vld [vmem:[#allocation7 + $0xb0] sm:$0xff]
      %v4969 = vld [vmem:[#allocation7 + $0xb8] sm:$0xff]
      %v4970 = vld [vmem:[#allocation7 + $0xc0] sm:$0xff]
      %v4971 = vld [vmem:[#allocation7 + $0xc8] sm:$0xff]
      %v4972 = vld [vmem:[#allocation7 + $0xd0] sm:$0xff]
      %v4973 = vld [vmem:[#allocation7 + $0xd8] sm:$0xff]
      %v4974 = vld [vmem:[#allocation7 + $0xe0] sm:$0xff]
      %v4975 = vld [vmem:[#allocation7 + $0xe8] sm:$0xff]
      %v4976 = vld [vmem:[#allocation7 + $0xf0] sm:$0xff]
      %v4977 = vld [vmem:[#allocation7 + $0xf8] sm:$0xff]
      %v5010 = vunpack.c.l.b16 %v4946
      %v5011 = vunpack.c.h.b16 %v4946
      %v5012 = vunpack.c.l.b16 %v4947
      %v5013 = vunpack.c.h.b16 %v4947
      %v5014 = vunpack.c.l.b16 %v4948
      %v5015 = vunpack.c.h.b16 %v4948
      %v5016 = vunpack.c.l.b16 %v4949
      %v5017 = vunpack.c.h.b16 %v4949
      %v5018 = vunpack.c.l.b16 %v4950
      %v5019 = vunpack.c.h.b16 %v4950
      %v5020 = vunpack.c.l.b16 %v4951
      %v5021 = vunpack.c.h.b16 %v4951
      %v5022 = vunpack.c.l.b16 %v4952
      %v5023 = vunpack.c.h.b16 %v4952
      %v5024 = vunpack.c.l.b16 %v4953
      %v5025 = vunpack.c.h.b16 %v4953
      %v5026 = vunpack.c.l.b16 %v4954
      %v5027 = vunpack.c.h.b16 %v4954
      %v5028 = vunpack.c.l.b16 %v4955
      %v5029 = vunpack.c.h.b16 %v4955
      %v5030 = vunpack.c.l.b16 %v4956
      %v5031 = vunpack.c.h.b16 %v4956
      %v5032 = vunpack.c.l.b16 %v4957
      %v5033 = vunpack.c.h.b16 %v4957
      %v5034 = vunpack.c.l.b16 %v4958
      %v5035 = vunpack.c.h.b16 %v4958
      %v5036 = vunpack.c.l.b16 %v4959
      %v5037 = vunpack.c.h.b16 %v4959
      %v5038 = vunpack.c.l.b16 %v4960
      %v5039 = vunpack.c.h.b16 %v4960
      %v5040 = vunpack.c.l.b16 %v4961
      %v5041 = vunpack.c.h.b16 %v4961
      %v5042 = vunpack.c.l.b16 %v4962
      %v5043 = vunpack.c.h.b16 %v4962
      %v5044 = vunpack.c.l.b16 %v4963
      %v5045 = vunpack.c.h.b16 %v4963
      %v5046 = vunpack.c.l.b16 %v4964
      %v5047 = vunpack.c.h.b16 %v4964
      %v5048 = vunpack.c.l.b16 %v4965
      %v5049 = vunpack.c.h.b16 %v4965
      %v5050 = vunpack.c.l.b16 %v4966
      %v5051 = vunpack.c.h.b16 %v4966
      %v5052 = vunpack.c.l.b16 %v4967
      %v5053 = vunpack.c.h.b16 %v4967
      %v5054 = vunpack.c.l.b16 %v4968
      %v5055 = vunpack.c.h.b16 %v4968
      %v5056 = vunpack.c.l.b16 %v4969
      %v5057 = vunpack.c.h.b16 %v4969
      %v5058 = vunpack.c.l.b16 %v4970
      %v5059 = vunpack.c.h.b16 %v4970
      %v5060 = vunpack.c.l.b16 %v4971
      %v5061 = vunpack.c.h.b16 %v4971
      %v5062 = vunpack.c.l.b16 %v4972
      %v5063 = vunpack.c.h.b16 %v4972
      %v5064 = vunpack.c.l.b16 %v4973
      %v5065 = vunpack.c.h.b16 %v4973
      %v5066 = vunpack.c.l.b16 %v4974
      %v5067 = vunpack.c.h.b16 %v4974
      %v5068 = vunpack.c.l.b16 %v4975
      %v5069 = vunpack.c.h.b16 %v4975
      %v5070 = vunpack.c.l.b16 %v4976
      %v5071 = vunpack.c.h.b16 %v4976
      %v5072 = vunpack.c.l.b16 %v4977
      %v5073 = vunpack.c.h.b16 %v4977
      %v5074 = vpack.c.b16 %v5014, %v5010
      %v5075 = vpack.c.b16 %v5015, %v5011
      %v5076 = vpack.c.b16 %v5016, %v5012
      %v5077 = vpack.c.b16 %v5017, %v5013
      %v5078 = vpack.c.b16 %v5022, %v5018
      %v5079 = vpack.c.b16 %v5023, %v5019
      %v5080 = vpack.c.b16 %v5024, %v5020
      %v5081 = vpack.c.b16 %v5025, %v5021
      %v5082 = vpack.c.b16 %v5030, %v5026
      %v5083 = vpack.c.b16 %v5031, %v5027
      %v5084 = vpack.c.b16 %v5032, %v5028
      %v5085 = vpack.c.b16 %v5033, %v5029
      %v5086 = vpack.c.b16 %v5038, %v5034
      %v5087 = vpack.c.b16 %v5039, %v5035
      %v5088 = vpack.c.b16 %v5040, %v5036
      %v5089 = vpack.c.b16 %v5041, %v5037
      %v5090 = vpack.c.b16 %v5046, %v5042
      %v5091 = vpack.c.b16 %v5047, %v5043
      %v5092 = vpack.c.b16 %v5048, %v5044
      %v5093 = vpack.c.b16 %v5049, %v5045
      %v5094 = vpack.c.b16 %v5054, %v5050
      %v5095 = vpack.c.b16 %v5055, %v5051
      %v5096 = vpack.c.b16 %v5056, %v5052
      %v5097 = vpack.c.b16 %v5057, %v5053
      %v5098 = vpack.c.b16 %v5062, %v5058
      %v5099 = vpack.c.b16 %v5063, %v5059
      %v5100 = vpack.c.b16 %v5064, %v5060
      %v5101 = vpack.c.b16 %v5065, %v5061
      %v5102 = vpack.c.b16 %v5070, %v5066
      %v5103 = vpack.c.b16 %v5071, %v5067
      %v5104 = vpack.c.b16 %v5072, %v5068
      %v5105 = vpack.c.b16 %v5073, %v5069
      %5138 = vmatprep.subr.bf16.mxu0 %v5075
      %5139 = vmatpush1.bf16.msra.mxu0 %v5074
      %5140 = vmatprep.subr.bf16.mxu0 %v5079
      %5141 = vmatpush1.bf16.msra.mxu0 %v5078
      %5142 = vmatprep.subr.bf16.mxu0 %v5083
      %5143 = vmatpush1.bf16.msra.mxu0 %v5082
      %5144 = vmatprep.subr.bf16.mxu0 %v5087
      %5145 = vmatpush1.bf16.msra.mxu0 %v5086
      %5146 = vmatprep.subr.bf16.mxu0 %v5091
      %5147 = vmatpush1.bf16.msra.mxu0 %v5090
      %5148 = vmatprep.subr.bf16.mxu0 %v5095
      %5149 = vmatpush1.bf16.msra.mxu0 %v5094
      %5150 = vmatprep.subr.bf16.mxu0 %v5099
      %5151 = vmatpush1.bf16.msra.mxu0 %v5098
      %5152 = vmatprep.subr.bf16.mxu0 %v5103
      %5153 = vmatpush1.bf16.msra.mxu0 %v5102
      %5154 = vmatprep.subr.bf16.mxu0 0
      %5155 = vmatpush1.bf16.msra.mxu0 0
      %5156 = vmatprep.subr.bf16.mxu0 0
      %5157 = vmatpush1.bf16.msra.mxu0 0
      %5158 = vmatprep.subr.bf16.mxu0 0
      %5159 = vmatpush1.bf16.msra.mxu0 0
      %5160 = vmatprep.subr.bf16.mxu0 0
      %5161 = vmatpush1.bf16.msra.mxu0 0
      %5162 = vmatprep.subr.bf16.mxu0 0
      %5163 = vmatpush1.bf16.msra.mxu0 0
      %5164 = vmatprep.subr.bf16.mxu0 0
      %5165 = vmatpush1.bf16.msra.mxu0 0
      %5166 = vmatprep.subr.bf16.mxu0 0
      %5167 = vmatpush1.bf16.msra.mxu0 0
      %5168 = vmatprep.subr.bf16.mxu0 0
      %5169 = vmatpush1.bf16.msra.mxu0 0
      %5170 = vmatprep.mubr.bf16.mxu0 0
      %5171 = vmatmul.mubr.bf16.gmra.mrb[0].mxu0 %v4361
      %v5172 = vpop.f32.mrb[0].mxu0
      %v5173 = vadd.f32 0.0, %v5172
      %v5174 = vpop.f32.mrb[0].mxu0
      %v5175 = vadd.f32 0.0, %v5174
      %v5176 = vpop.f32.mrb[0].mxu0
      %v5177 = vpop.f32.mrb[0].mxu0
      %5178 = vdwg.mxu0
      %5179 = vmatprep.subr.bf16.mxu0 %v5077
      %5180 = vmatpush1.bf16.msra.mxu0 %v5076
      %5181 = vmatprep.subr.bf16.mxu0 %v5081
      %5182 = vmatpush1.bf16.msra.mxu0 %v5080
      %5183 = vmatprep.subr.bf16.mxu0 %v5085
      %5184 = vmatpush1.bf16.msra.mxu0 %v5084
      %5185 = vmatprep.subr.bf16.mxu0 %v5089
      %5186 = vmatpush1.bf16.msra.mxu0 %v5088
      %5187 = vmatprep.subr.bf16.mxu0 %v5093
      %5188 = vmatpush1.bf16.msra.mxu0 %v5092
      %5189 = vmatprep.subr.bf16.mxu0 %v5097
      %5190 = vmatpush1.bf16.msra.mxu0 %v5096
      %5191 = vmatprep.subr.bf16.mxu0 %v5101
      %5192 = vmatpush1.bf16.msra.mxu0 %v5100
      %5193 = vmatprep.subr.bf16.mxu0 %v5105
      %5194 = vmatpush1.bf16.msra.mxu0 %v5104
      %5195 = vmatprep.subr.bf16.mxu0 0
      %5196 = vmatpush1.bf16.msra.mxu0 0
      %5197 = vmatprep.subr.bf16.mxu0 0
      %5198 = vmatpush1.bf16.msra.mxu0 0
      %5199 = vmatprep.subr.bf16.mxu0 0
      %5200 = vmatpush1.bf16.msra.mxu0 0
      %5201 = vmatprep.subr.bf16.mxu0 0
      %5202 = vmatpush1.bf16.msra.mxu0 0
      %5203 = vmatprep.subr.bf16.mxu0 0
      %5204 = vmatpush1.bf16.msra.mxu0 0
      %5205 = vmatprep.subr.bf16.mxu0 0
      %5206 = vmatpush1.bf16.msra.mxu0 0
      %5207 = vmatprep.subr.bf16.mxu0 0
      %5208 = vmatpush1.bf16.msra.mxu0 0
      %5209 = vmatprep.subr.bf16.mxu0 0
      %5210 = vmatpush1.bf16.msra.mxu0 0
      %5211 = vmatprep.mubr.bf16.mxu0 0
      %5212 = vmatmul.mubr.bf16.gmra.mrb[0].mxu0 %v4361
      %v5213 = vpop.f32.mrb[0].mxu0
      %v5214 = vadd.f32 0.0, %v5213
      %v5215 = vpop.f32.mrb[0].mxu0
      %v5216 = vadd.f32 0.0, %v5215
      %v5217 = vpop.f32.mrb[0].mxu0
      %v5218 = vpop.f32.mrb[0].mxu0
      %5219 = vdwg.mxu0
      %v5224 = vcombine.low %v5173, %v5175
      %v5225 = vcombine.low %v5214, %v5216
      %v5227 = vunpack.c.l.s4 1966171168
      %v5228 = vunpack.c.0.s8 %v5227
      %v5229 = vlaneseq
      %v5230 = vshrl.u32 %v5229, 7
      %v5231 = vsub.s32 %v5228, %v5230
      %v5232 = vrot.slane %v5224, %v5231
      %v5234 = vunpack.c.l.s4 1966171168
      %v5235 = vunpack.c.0.s8 %v5234
      %v5236 = vlaneseq
      %v5237 = vshrl.u32 %v5236, 7
      %v5238 = vsub.s32 %v5235, %v5237
      %v5239 = vrot.slane %v5225, %v5238
      %v5240 = vcombine.low %v5232, %v5239
      %v5242 = vunpack.c.l.s4 1966171168
      %v5243 = vunpack.c.0.s8 %v5242
      %v5244 = vlaneseq
      %v5245 = vshrl.u32 %v5244, 7
      %v5246 = vsub.s32 %v5243, %v5245
      %v5247 = vrot.slane %v5240, %v5246
      %v5249 = vadd.f32 %v4945, %v5247
      %v5250 = vxor.u32 %v5249, 2147483648
      %v5251 = vmul.f32 %v5250, 1.442695
      %v5252 = vpow.pop %v5251
      %v5253 = vadd.f32 %v5252, 1.0
      %v5254 = vrcp.pop %v5253
      %v5255 = vmul.f32 1.0, %v5254
      %v5257 = vrot.slane %v5249, 3
      %v5259 = vtanh.pop %v5257
      %v5261 = vrot.slane %v5255, 1
      %v5263 = vmul.f32 %v5261, %v4356
      %v5264 = vmul.f32 %v5255, %v5259
      %v5265 = vadd.f32 %v5263, %v5264
      %v5266 = vtanh.pop %v5265
      %v5267 = vrot.slane %v5255, 2
      %v5269 = vmul.f32 %v5267, %v5266
      %v5270 = vpack.c.bf16 %v5269, %v5269
      %v5271 = vld [vmem:[#allocation9] sm:$0xff]
      %v5272 = vld [vmem:[#allocation9 + $0x8] sm:$0xff]
      %v5273 = vld [vmem:[#allocation9 + $0x10] sm:$0xff]
      %v5274 = vld [vmem:[#allocation9 + $0x18] sm:$0xff]
      %v5275 = vld [vmem:[#allocation9 + $0x20] sm:$0xff]
      %v5276 = vld [vmem:[#allocation9 + $0x28] sm:$0xff]
      %v5277 = vld [vmem:[#allocation9 + $0x30] sm:$0xff]
      %v5278 = vld [vmem:[#allocation9 + $0x38] sm:$0xff]
      %v5279 = vld [vmem:[#allocation9 + $0x40] sm:$0xff]
      %v5280 = vld [vmem:[#allocation9 + $0x48] sm:$0xff]
      %v5281 = vld [vmem:[#allocation9 + $0x50] sm:$0xff]
      %v5282 = vld [vmem:[#allocation9 + $0x58] sm:$0xff]
      %v5283 = vld [vmem:[#allocation9 + $0x60] sm:$0xff]
      %v5284 = vld [vmem:[#allocation9 + $0x68] sm:$0xff]
      %v5285 = vld [vmem:[#allocation9 + $0x70] sm:$0xff]
      %v5286 = vld [vmem:[#allocation9 + $0x78] sm:$0xff]
      %v5287 = vld [vmem:[#allocation9 + $0x80] sm:$0xff]
      %v5288 = vld [vmem:[#allocation9 + $0x88] sm:$0xff]
      %v5289 = vld [vmem:[#allocation9 + $0x90] sm:$0xff]
      %v5290 = vld [vmem:[#allocation9 + $0x98] sm:$0xff]
      %v5291 = vld [vmem:[#allocation9 + $0xa0] sm:$0xff]
      %v5292 = vld [vmem:[#allocation9 + $0xa8] sm:$0xff]
      %v5293 = vld [vmem:[#allocation9 + $0xb0] sm:$0xff]
      %v5294 = vld [vmem:[#allocation9 + $0xb8] sm:$0xff]
      %v5295 = vld [vmem:[#allocation9 + $0xc0] sm:$0xff]
      %v5296 = vld [vmem:[#allocation9 + $0xc8] sm:$0xff]
      %v5297 = vld [vmem:[#allocation9 + $0xd0] sm:$0xff]
      %v5298 = vld [vmem:[#allocation9 + $0xd8] sm:$0xff]
      %v5299 = vld [vmem:[#allocation9 + $0xe0] sm:$0xff]
      %v5300 = vld [vmem:[#allocation9 + $0xe8] sm:$0xff]
      %v5301 = vld [vmem:[#allocation9 + $0xf0] sm:$0xff]
      %v5302 = vld [vmem:[#allocation9 + $0xf8] sm:$0xff]
      %v5335 = vunpack.c.l.b16 %v5271
      %v5336 = vunpack.c.h.b16 %v5271
      %v5337 = vunpack.c.l.b16 %v5272
      %v5338 = vunpack.c.h.b16 %v5272
      %v5339 = vunpack.c.l.b16 %v5273
      %v5340 = vunpack.c.h.b16 %v5273
      %v5341 = vunpack.c.l.b16 %v5274
      %v5342 = vunpack.c.h.b16 %v5274
      %v5343 = vunpack.c.l.b16 %v5275
      %v5344 = vunpack.c.h.b16 %v5275
      %v5345 = vunpack.c.l.b16 %v5276
      %v5346 = vunpack.c.h.b16 %v5276
      %v5347 = vunpack.c.l.b16 %v5277
      %v5348 = vunpack.c.h.b16 %v5277
      %v5349 = vunpack.c.l.b16 %v5278
      %v5350 = vunpack.c.h.b16 %v5278
      %v5351 = vunpack.c.l.b16 %v5279
      %v5352 = vunpack.c.h.b16 %v5279
      %v5353 = vunpack.c.l.b16 %v5280
      %v5354 = vunpack.c.h.b16 %v5280
      %v5355 = vunpack.c.l.b16 %v5281
      %v5356 = vunpack.c.h.b16 %v5281
      %v5357 = vunpack.c.l.b16 %v5282
      %v5358 = vunpack.c.h.b16 %v5282
      %v5359 = vunpack.c.l.b16 %v5283
      %v5360 = vunpack.c.h.b16 %v5283
      %v5361 = vunpack.c.l.b16 %v5284
      %v5362 = vunpack.c.h.b16 %v5284
      %v5363 = vunpack.c.l.b16 %v5285
      %v5364 = vunpack.c.h.b16 %v5285
      %v5365 = vunpack.c.l.b16 %v5286
      %v5366 = vunpack.c.h.b16 %v5286
      %v5367 = vunpack.c.l.b16 %v5287
      %v5368 = vunpack.c.h.b16 %v5287
      %v5369 = vunpack.c.l.b16 %v5288
      %v5370 = vunpack.c.h.b16 %v5288
      %v5371 = vunpack.c.l.b16 %v5289
      %v5372 = vunpack.c.h.b16 %v5289
      %v5373 = vunpack.c.l.b16 %v5290
      %v5374 = vunpack.c.h.b16 %v5290
      %v5375 = vunpack.c.l.b16 %v5291
      %v5376 = vunpack.c.h.b16 %v5291
      %v5377 = vunpack.c.l.b16 %v5292
      %v5378 = vunpack.c.h.b16 %v5292
      %v5379 = vunpack.c.l.b16 %v5293
      %v5380 = vunpack.c.h.b16 %v5293
      %v5381 = vunpack.c.l.b16 %v5294
      %v5382 = vunpack.c.h.b16 %v5294
      %v5383 = vunpack.c.l.b16 %v5295
      %v5384 = vunpack.c.h.b16 %v5295
      %v5385 = vunpack.c.l.b16 %v5296
      %v5386 = vunpack.c.h.b16 %v5296
      %v5387 = vunpack.c.l.b16 %v5297
      %v5388 = vunpack.c.h.b16 %v5297
      %v5389 = vunpack.c.l.b16 %v5298
      %v5390 = vunpack.c.h.b16 %v5298
      %v5391 = vunpack.c.l.b16 %v5299
      %v5392 = vunpack.c.h.b16 %v5299
      %v5393 = vunpack.c.l.b16 %v5300
      %v5394 = vunpack.c.h.b16 %v5300
      %v5395 = vunpack.c.l.b16 %v5301
      %v5396 = vunpack.c.h.b16 %v5301
      %v5397 = vunpack.c.l.b16 %v5302
      %v5398 = vunpack.c.h.b16 %v5302
      %v5399 = vpack.c.b16 %v5339, %v5335
      %v5400 = vpack.c.b16 %v5340, %v5336
      %v5401 = vpack.c.b16 %v5341, %v5337
      %v5402 = vpack.c.b16 %v5342, %v5338
      %v5403 = vpack.c.b16 %v5347, %v5343
      %v5404 = vpack.c.b16 %v5348, %v5344
      %v5405 = vpack.c.b16 %v5349, %v5345
      %v5406 = vpack.c.b16 %v5350, %v5346
      %v5407 = vpack.c.b16 %v5355, %v5351
      %v5408 = vpack.c.b16 %v5356, %v5352
      %v5409 = vpack.c.b16 %v5357, %v5353
      %v5410 = vpack.c.b16 %v5358, %v5354
      %v5411 = vpack.c.b16 %v5363, %v5359
      %v5412 = vpack.c.b16 %v5364, %v5360
      %v5413 = vpack.c.b16 %v5365, %v5361
      %v5414 = vpack.c.b16 %v5366, %v5362
      %v5415 = vpack.c.b16 %v5371, %v5367
      %v5416 = vpack.c.b16 %v5372, %v5368
      %v5417 = vpack.c.b16 %v5373, %v5369
      %v5418 = vpack.c.b16 %v5374, %v5370
      %v5419 = vpack.c.b16 %v5379, %v5375
      %v5420 = vpack.c.b16 %v5380, %v5376
      %v5421 = vpack.c.b16 %v5381, %v5377
      %v5422 = vpack.c.b16 %v5382, %v5378
      %v5423 = vpack.c.b16 %v5387, %v5383
      %v5424 = vpack.c.b16 %v5388, %v5384
      %v5425 = vpack.c.b16 %v5389, %v5385
      %v5426 = vpack.c.b16 %v5390, %v5386
      %v5427 = vpack.c.b16 %v5395, %v5391
      %v5428 = vpack.c.b16 %v5396, %v5392
      %v5429 = vpack.c.b16 %v5397, %v5393
      %v5430 = vpack.c.b16 %v5398, %v5394
      %5463 = vmatprep.subr.bf16.mxu0 %v5400
      %5464 = vmatpush1.bf16.msra.mxu0 %v5399
      %5465 = vmatprep.subr.bf16.mxu0 %v5404
      %5466 = vmatpush1.bf16.msra.mxu0 %v5403
      %5467 = vmatprep.subr.bf16.mxu0 %v5408
      %5468 = vmatpush1.bf16.msra.mxu0 %v5407
      %5469 = vmatprep.subr.bf16.mxu0 %v5412
      %5470 = vmatpush1.bf16.msra.mxu0 %v5411
      %5471 = vmatprep.subr.bf16.mxu0 %v5416
      %5472 = vmatpush1.bf16.msra.mxu0 %v5415
      %5473 = vmatprep.subr.bf16.mxu0 %v5420
      %5474 = vmatpush1.bf16.msra.mxu0 %v5419
      %5475 = vmatprep.subr.bf16.mxu0 %v5424
      %5476 = vmatpush1.bf16.msra.mxu0 %v5423
      %5477 = vmatprep.subr.bf16.mxu0 %v5428
      %5478 = vmatpush1.bf16.msra.mxu0 %v5427
      %5479 = vmatprep.subr.bf16.mxu0 0
      %5480 = vmatpush1.bf16.msra.mxu0 0
      %5481 = vmatprep.subr.bf16.mxu0 0
      %5482 = vmatpush1.bf16.msra.mxu0 0
      %5483 = vmatprep.subr.bf16.mxu0 0
      %5484 = vmatpush1.bf16.msra.mxu0 0
      %5485 = vmatprep.subr.bf16.mxu0 0
      %5486 = vmatpush1.bf16.msra.mxu0 0
      %5487 = vmatprep.subr.bf16.mxu0 0
      %5488 = vmatpush1.bf16.msra.mxu0 0
      %5489 = vmatprep.subr.bf16.mxu0 0
      %5490 = vmatpush1.bf16.msra.mxu0 0
      %5491 = vmatprep.subr.bf16.mxu0 0
      %5492 = vmatpush1.bf16.msra.mxu0 0
      %5493 = vmatprep.subr.bf16.mxu0 0
      %5494 = vmatpush1.bf16.msra.mxu0 0
      %5495 = vmatprep.mubr.bf16.mxu0 0
      %5496 = vmatmul.mubr.bf16.gmra.mrb[0].mxu0 %v5270
      %v5497 = vpop.f32.mrb[0].mxu0
      %v5498 = vadd.f32 %v4889, %v5497
      %v5499 = vpop.f32.mrb[0].mxu0
      %v5500 = vadd.f32 %v4891, %v5499
      %v5501 = vpop.f32.mrb[0].mxu0
      %v5502 = vpop.f32.mrb[0].mxu0
      %5503 = vdwg.mxu0
      %5504 = vmatprep.subr.bf16.mxu0 %v5402
      %5505 = vmatpush1.bf16.msra.mxu0 %v5401
      %5506 = vmatprep.subr.bf16.mxu0 %v5406
      %5507 = vmatpush1.bf16.msra.mxu0 %v5405
      %5508 = vmatprep.subr.bf16.mxu0 %v5410
      %5509 = vmatpush1.bf16.msra.mxu0 %v5409
      %5510 = vmatprep.subr.bf16.mxu0 %v5414
      %5511 = vmatpush1.bf16.msra.mxu0 %v5413
      %5512 = vmatprep.subr.bf16.mxu0 %v5418
      %5513 = vmatpush1.bf16.msra.mxu0 %v5417
      %5514 = vmatprep.subr.bf16.mxu0 %v5422
      %5515 = vmatpush1.bf16.msra.mxu0 %v5421
      %5516 = vmatprep.subr.bf16.mxu0 %v5426
      %5517 = vmatpush1.bf16.msra.mxu0 %v5425
      %5518 = vmatprep.subr.bf16.mxu0 %v5430
      %5519 = vmatpush1.bf16.msra.mxu0 %v5429
      %5520 = vmatprep.subr.bf16.mxu0 0
      %5521 = vmatpush1.bf16.msra.mxu0 0
      %5522 = vmatprep.subr.bf16.mxu0 0
      %5523 = vmatpush1.bf16.msra.mxu0 0
      %5524 = vmatprep.subr.bf16.mxu0 0
      %5525 = vmatpush1.bf16.msra.mxu0 0
      %5526 = vmatprep.subr.bf16.mxu0 0
      %5527 = vmatpush1.bf16.msra.mxu0 0
      %5528 = vmatprep.subr.bf16.mxu0 0
      %5529 = vmatpush1.bf16.msra.mxu0 0
      %5530 = vmatprep.subr.bf16.mxu0 0
      %5531 = vmatpush1.bf16.msra.mxu0 0
      %5532 = vmatprep.subr.bf16.mxu0 0
      %5533 = vmatpush1.bf16.msra.mxu0 0
      %5534 = vmatprep.subr.bf16.mxu0 0
      %5535 = vmatpush1.bf16.msra.mxu0 0
      %5536 = vmatprep.mubr.bf16.mxu0 0
      %5537 = vmatmul.mubr.bf16.gmra.mrb[0].mxu0 %v5270
      %v5538 = vpop.f32.mrb[0].mxu0
      %v5539 = vadd.f32 %v4930, %v5538
      %v5540 = vpop.f32.mrb[0].mxu0
      %v5541 = vadd.f32 %v4932, %v5540
      %v5542 = vpop.f32.mrb[0].mxu0
      %v5543 = vpop.f32.mrb[0].mxu0
      %5544 = vdwg.mxu0
      %v5545 = vxor.u32 %v5498, 2147483648
      %v5546 = vxor.u32 %v5500, 2147483648
      %v5547 = vxor.u32 %v5539, 2147483648
      %v5548 = vmul.f32 %v5545, 1.442695
      %v5549 = vpow.pop %v5548
      %v5550 = vmul.f32 %v5546, 1.442695
      %v5551 = vpow.pop %v5550
      %v5552 = vmul.f32 %v5547, 1.442695
      %v5553 = vpow.pop %v5552
      %v5554 = vadd.f32 %v5549, 1.0
      %v5555 = vadd.f32 %v5551, 1.0
      %v5556 = vadd.f32 %v5553, 1.0
      %v5557 = vrcp.pop %v5554
      %v5558 = vmul.f32 1.0, %v5557
      %v5559 = vrcp.pop %v5555
      %v5560 = vmul.f32 1.0, %v5559
      %v5561 = vrcp.pop %v5556
      %v5562 = vmul.f32 1.0, %v5561
      %v5563 = vtanh.pop %v5541
      %v5564 = vmul.f32 %v5560, %v4657
      %v5565 = vmul.f32 %v5558, %v5563
      %v5566 = vadd.f32 %v5564, %v5565
      %v5567 = vtanh.pop %v5566
      %v5568 = vmul.f32 %v5562, %v5567
      %5569 = vst [vmem:[#allocation3 + $0x5] sm:$0x1] %v5568
      %v5570 = vpack.c.bf16 %v5568, %v5568
      %v5571 = vld [vmem:[#allocation10] sm:$0xff]
      %v5572 = vld [vmem:[#allocation10 + $0x8] sm:$0xff]
      %v5573 = vld [vmem:[#allocation10 + $0x10] sm:$0xff]
      %v5574 = vld [vmem:[#allocation10 + $0x18] sm:$0xff]
      %v5575 = vld [vmem:[#allocation10 + $0x20] sm:$0xff]
      %v5576 = vld [vmem:[#allocation10 + $0x28] sm:$0xff]
      %v5577 = vld [vmem:[#allocation10 + $0x30] sm:$0xff]
      %v5578 = vld [vmem:[#allocation10 + $0x38] sm:$0xff]
      %v5579 = vld [vmem:[#allocation10 + $0x40] sm:$0xff]
      %v5580 = vld [vmem:[#allocation10 + $0x48] sm:$0xff]
      %v5581 = vld [vmem:[#allocation10 + $0x50] sm:$0xff]
      %v5582 = vld [vmem:[#allocation10 + $0x58] sm:$0xff]
      %v5583 = vld [vmem:[#allocation10 + $0x60] sm:$0xff]
      %v5584 = vld [vmem:[#allocation10 + $0x68] sm:$0xff]
      %v5585 = vld [vmem:[#allocation10 + $0x70] sm:$0xff]
      %v5586 = vld [vmem:[#allocation10 + $0x78] sm:$0xff]
      %v5587 = vld [vmem:[#allocation10 + $0x80] sm:$0xff]
      %v5588 = vld [vmem:[#allocation10 + $0x88] sm:$0xff]
      %v5589 = vld [vmem:[#allocation10 + $0x90] sm:$0xff]
      %v5590 = vld [vmem:[#allocation10 + $0x98] sm:$0xff]
      %v5591 = vld [vmem:[#allocation10 + $0xa0] sm:$0xff]
      %v5592 = vld [vmem:[#allocation10 + $0xa8] sm:$0xff]
      %v5593 = vld [vmem:[#allocation10 + $0xb0] sm:$0xff]
      %v5594 = vld [vmem:[#allocation10 + $0xb8] sm:$0xff]
      %v5595 = vld [vmem:[#allocation10 + $0xc0] sm:$0xff]
      %v5596 = vld [vmem:[#allocation10 + $0xc8] sm:$0xff]
      %v5597 = vld [vmem:[#allocation10 + $0xd0] sm:$0xff]
      %v5598 = vld [vmem:[#allocation10 + $0xd8] sm:$0xff]
      %v5599 = vld [vmem:[#allocation10 + $0xe0] sm:$0xff]
      %v5600 = vld [vmem:[#allocation10 + $0xe8] sm:$0xff]
      %v5601 = vld [vmem:[#allocation10 + $0xf0] sm:$0xff]
      %v5602 = vld [vmem:[#allocation10 + $0xf8] sm:$0xff]
      %v5635 = vunpack.c.l.b16 %v5571
      %v5636 = vunpack.c.h.b16 %v5571
      %v5637 = vunpack.c.l.b16 %v5572
      %v5638 = vunpack.c.h.b16 %v5572
      %v5639 = vunpack.c.l.b16 %v5573
      %v5640 = vunpack.c.h.b16 %v5573
      %v5641 = vunpack.c.l.b16 %v5574
      %v5642 = vunpack.c.h.b16 %v5574
      %v5643 = vunpack.c.l.b16 %v5575
      %v5644 = vunpack.c.h.b16 %v5575
      %v5645 = vunpack.c.l.b16 %v5576
      %v5646 = vunpack.c.h.b16 %v5576
      %v5647 = vunpack.c.l.b16 %v5577
      %v5648 = vunpack.c.h.b16 %v5577
      %v5649 = vunpack.c.l.b16 %v5578
      %v5650 = vunpack.c.h.b16 %v5578
      %v5651 = vunpack.c.l.b16 %v5579
      %v5652 = vunpack.c.h.b16 %v5579
      %v5653 = vunpack.c.l.b16 %v5580
      %v5654 = vunpack.c.h.b16 %v5580
      %v5655 = vunpack.c.l.b16 %v5581
      %v5656 = vunpack.c.h.b16 %v5581
      %v5657 = vunpack.c.l.b16 %v5582
      %v5658 = vunpack.c.h.b16 %v5582
      %v5659 = vunpack.c.l.b16 %v5583
      %v5660 = vunpack.c.h.b16 %v5583
      %v5661 = vunpack.c.l.b16 %v5584
      %v5662 = vunpack.c.h.b16 %v5584
      %v5663 = vunpack.c.l.b16 %v5585
      %v5664 = vunpack.c.h.b16 %v5585
      %v5665 = vunpack.c.l.b16 %v5586
      %v5666 = vunpack.c.h.b16 %v5586
      %v5667 = vunpack.c.l.b16 %v5587
      %v5668 = vunpack.c.h.b16 %v5587
      %v5669 = vunpack.c.l.b16 %v5588
      %v5670 = vunpack.c.h.b16 %v5588
      %v5671 = vunpack.c.l.b16 %v5589
      %v5672 = vunpack.c.h.b16 %v5589
      %v5673 = vunpack.c.l.b16 %v5590
      %v5674 = vunpack.c.h.b16 %v5590
      %v5675 = vunpack.c.l.b16 %v5591
      %v5676 = vunpack.c.h.b16 %v5591
      %v5677 = vunpack.c.l.b16 %v5592
      %v5678 = vunpack.c.h.b16 %v5592
      %v5679 = vunpack.c.l.b16 %v5593
      %v5680 = vunpack.c.h.b16 %v5593
      %v5681 = vunpack.c.l.b16 %v5594
      %v5682 = vunpack.c.h.b16 %v5594
      %v5683 = vunpack.c.l.b16 %v5595
      %v5684 = vunpack.c.h.b16 %v5595
      %v5685 = vunpack.c.l.b16 %v5596
      %v5686 = vunpack.c.h.b16 %v5596
      %v5687 = vunpack.c.l.b16 %v5597
      %v5688 = vunpack.c.h.b16 %v5597
      %v5689 = vunpack.c.l.b16 %v5598
      %v5690 = vunpack.c.h.b16 %v5598
      %v5691 = vunpack.c.l.b16 %v5599
      %v5692 = vunpack.c.h.b16 %v5599
      %v5693 = vunpack.c.l.b16 %v5600
      %v5694 = vunpack.c.h.b16 %v5600
      %v5695 = vunpack.c.l.b16 %v5601
      %v5696 = vunpack.c.h.b16 %v5601
      %v5697 = vunpack.c.l.b16 %v5602
      %v5698 = vunpack.c.h.b16 %v5602
      %v5699 = vpack.c.b16 %v5639, %v5635
      %v5700 = vpack.c.b16 %v5640, %v5636
      %v5701 = vpack.c.b16 %v5641, %v5637
      %v5702 = vpack.c.b16 %v5642, %v5638
      %v5703 = vpack.c.b16 %v5647, %v5643
      %v5704 = vpack.c.b16 %v5648, %v5644
      %v5705 = vpack.c.b16 %v5649, %v5645
      %v5706 = vpack.c.b16 %v5650, %v5646
      %v5707 = vpack.c.b16 %v5655, %v5651
      %v5708 = vpack.c.b16 %v5656, %v5652
      %v5709 = vpack.c.b16 %v5657, %v5653
      %v5710 = vpack.c.b16 %v5658, %v5654
      %v5711 = vpack.c.b16 %v5663, %v5659
      %v5712 = vpack.c.b16 %v5664, %v5660
      %v5713 = vpack.c.b16 %v5665, %v5661
      %v5714 = vpack.c.b16 %v5666, %v5662
      %v5715 = vpack.c.b16 %v5671, %v5667
      %v5716 = vpack.c.b16 %v5672, %v5668
      %v5717 = vpack.c.b16 %v5673, %v5669
      %v5718 = vpack.c.b16 %v5674, %v5670
      %v5719 = vpack.c.b16 %v5679, %v5675
      %v5720 = vpack.c.b16 %v5680, %v5676
      %v5721 = vpack.c.b16 %v5681, %v5677
      %v5722 = vpack.c.b16 %v5682, %v5678
      %v5723 = vpack.c.b16 %v5687, %v5683
      %v5724 = vpack.c.b16 %v5688, %v5684
      %v5725 = vpack.c.b16 %v5689, %v5685
      %v5726 = vpack.c.b16 %v5690, %v5686
      %v5727 = vpack.c.b16 %v5695, %v5691
      %v5728 = vpack.c.b16 %v5696, %v5692
      %v5729 = vpack.c.b16 %v5697, %v5693
      %v5730 = vpack.c.b16 %v5698, %v5694
      %5763 = vmatprep.subr.bf16.mxu0 %v5700
      %5764 = vmatpush1.bf16.msra.mxu0 %v5699
      %5765 = vmatprep.subr.bf16.mxu0 %v5704
      %5766 = vmatpush1.bf16.msra.mxu0 %v5703
      %5767 = vmatprep.subr.bf16.mxu0 %v5708
      %5768 = vmatpush1.bf16.msra.mxu0 %v5707
      %5769 = vmatprep.subr.bf16.mxu0 %v5712
      %5770 = vmatpush1.bf16.msra.mxu0 %v5711
      %5771 = vmatprep.subr.bf16.mxu0 %v5716
      %5772 = vmatpush1.bf16.msra.mxu0 %v5715
      %5773 = vmatprep.subr.bf16.mxu0 %v5720
      %5774 = vmatpush1.bf16.msra.mxu0 %v5719
      %5775 = vmatprep.subr.bf16.mxu0 %v5724
      %5776 = vmatpush1.bf16.msra.mxu0 %v5723
      %5777 = vmatprep.subr.bf16.mxu0 %v5728
      %5778 = vmatpush1.bf16.msra.mxu0 %v5727
      %5779 = vmatprep.subr.bf16.mxu0 0
      %5780 = vmatpush1.bf16.msra.mxu0 0
      %5781 = vmatprep.subr.bf16.mxu0 0
      %5782 = vmatpush1.bf16.msra.mxu0 0
      %5783 = vmatprep.subr.bf16.mxu0 0
      %5784 = vmatpush1.bf16.msra.mxu0 0
      %5785 = vmatprep.subr.bf16.mxu0 0
      %5786 = vmatpush1.bf16.msra.mxu0 0
      %5787 = vmatprep.subr.bf16.mxu0 0
      %5788 = vmatpush1.bf16.msra.mxu0 0
      %5789 = vmatprep.subr.bf16.mxu0 0
      %5790 = vmatpush1.bf16.msra.mxu0 0
      %5791 = vmatprep.subr.bf16.mxu0 0
      %5792 = vmatpush1.bf16.msra.mxu0 0
      %5793 = vmatprep.subr.bf16.mxu0 0
      %5794 = vmatpush1.bf16.msra.mxu0 0
      %5795 = vmatprep.mubr.bf16.mxu0 0
      %5796 = vmatmul.mubr.bf16.gmra.mrb[0].mxu0 %v5570
      %v5797 = vpop.f32.mrb[0].mxu0
      %v5798 = vadd.f32 %v295, %v5797
      %v5799 = vpop.f32.mrb[0].mxu0
      %v5800 = vadd.f32 %v299, %v5799
      %v5801 = vpop.f32.mrb[0].mxu0
      %v5802 = vpop.f32.mrb[0].mxu0
      %5803 = vdwg.mxu0
      %5804 = vmatprep.subr.bf16.mxu0 %v5702
      %5805 = vmatpush1.bf16.msra.mxu0 %v5701
      %5806 = vmatprep.subr.bf16.mxu0 %v5706
      %5807 = vmatpush1.bf16.msra.mxu0 %v5705
      %5808 = vmatprep.subr.bf16.mxu0 %v5710
      %5809 = vmatpush1.bf16.msra.mxu0 %v5709
      %5810 = vmatprep.subr.bf16.mxu0 %v5714
      %5811 = vmatpush1.bf16.msra.mxu0 %v5713
      %5812 = vmatprep.subr.bf16.mxu0 %v5718
      %5813 = vmatpush1.bf16.msra.mxu0 %v5717
      %5814 = vmatprep.subr.bf16.mxu0 %v5722
      %5815 = vmatpush1.bf16.msra.mxu0 %v5721
      %5816 = vmatprep.subr.bf16.mxu0 %v5726
      %5817 = vmatpush1.bf16.msra.mxu0 %v5725
      %5818 = vmatprep.subr.bf16.mxu0 %v5730
      %5819 = vmatpush1.bf16.msra.mxu0 %v5729
      %5820 = vmatprep.subr.bf16.mxu0 0
      %5821 = vmatpush1.bf16.msra.mxu0 0
      %5822 = vmatprep.subr.bf16.mxu0 0
      %5823 = vmatpush1.bf16.msra.mxu0 0
      %5824 = vmatprep.subr.bf16.mxu0 0
      %5825 = vmatpush1.bf16.msra.mxu0 0
      %5826 = vmatprep.subr.bf16.mxu0 0
      %5827 = vmatpush1.bf16.msra.mxu0 0
      %5828 = vmatprep.subr.bf16.mxu0 0
      %5829 = vmatpush1.bf16.msra.mxu0 0
      %5830 = vmatprep.subr.bf16.mxu0 0
      %5831 = vmatpush1.bf16.msra.mxu0 0
      %5832 = vmatprep.subr.bf16.mxu0 0
      %5833 = vmatpush1.bf16.msra.mxu0 0
      %5834 = vmatprep.subr.bf16.mxu0 0
      %5835 = vmatpush1.bf16.msra.mxu0 0
      %5836 = vmatprep.mubr.bf16.mxu0 0
      %5837 = vmatmul.mubr.bf16.gmra.mrb[0].mxu0 %v5570
      %v5838 = vpop.f32.mrb[0].mxu0
      %v5839 = vadd.f32 %v303, %v5838
      %v5840 = vpop.f32.mrb[0].mxu0
      %v5841 = vadd.f32 %v307, %v5840
      %v5842 = vpop.f32.mrb[0].mxu0
      %v5843 = vpop.f32.mrb[0].mxu0
      %5844 = vdwg.mxu0
      %s5845 = sadd.s32 %s97, 6
      %s5846 = sshra.s32 %s5845, 3
      %s5847 = sand.u32 %s5845, 7
      %s5848 = sshra.s32 %s5845, 3
      %s5849 = sand.u32 %s5845, 7
      %s5850 = smul.u32 %s5846, 4
      %s5851 = smul.u32 %s5850, 8
      %s5852 = sadd.s32 %s5851, %s5849
      %s5853 = scalar_lea.vmem [#allocation4], %s5852
      %v5854 = vld [vmem:[%s5853] ss:$8 sm:$0xf]
      %v5855 = vld [vmem:[#allocation7] sm:$0xff]
      %v5856 = vld [vmem:[#allocation7 + $0x8] sm:$0xff]
      %v5857 = vld [vmem:[#allocation7 + $0x10] sm:$0xff]
      %v5858 = vld [vmem:[#allocation7 + $0x18] sm:$0xff]
      %v5859 = vld [vmem:[#allocation7 + $0x20] sm:$0xff]
      %v5860 = vld [vmem:[#allocation7 + $0x28] sm:$0xff]
      %v5861 = vld [vmem:[#allocation7 + $0x30] sm:$0xff]
      %v5862 = vld [vmem:[#allocation7 + $0x38] sm:$0xff]
      %v5863 = vld [vmem:[#allocation7 + $0x40] sm:$0xff]
      %v5864 = vld [vmem:[#allocation7 + $0x48] sm:$0xff]
      %v5865 = vld [vmem:[#allocation7 + $0x50] sm:$0xff]
      %v5866 = vld [vmem:[#allocation7 + $0x58] sm:$0xff]
      %v5867 = vld [vmem:[#allocation7 + $0x60] sm:$0xff]
      %v5868 = vld [vmem:[#allocation7 + $0x68] sm:$0xff]
      %v5869 = vld [vmem:[#allocation7 + $0x70] sm:$0xff]
      %v5870 = vld [vmem:[#allocation7 + $0x78] sm:$0xff]
      %v5871 = vld [vmem:[#allocation7 + $0x80] sm:$0xff]
      %v5872 = vld [vmem:[#allocation7 + $0x88] sm:$0xff]
      %v5873 = vld [vmem:[#allocation7 + $0x90] sm:$0xff]
      %v5874 = vld [vmem:[#allocation7 + $0x98] sm:$0xff]
      %v5875 = vld [vmem:[#allocation7 + $0xa0] sm:$0xff]
      %v5876 = vld [vmem:[#allocation7 + $0xa8] sm:$0xff]
      %v5877 = vld [vmem:[#allocation7 + $0xb0] sm:$0xff]
      %v5878 = vld [vmem:[#allocation7 + $0xb8] sm:$0xff]
      %v5879 = vld [vmem:[#allocation7 + $0xc0] sm:$0xff]
      %v5880 = vld [vmem:[#allocation7 + $0xc8] sm:$0xff]
      %v5881 = vld [vmem:[#allocation7 + $0xd0] sm:$0xff]
      %v5882 = vld [vmem:[#allocation7 + $0xd8] sm:$0xff]
      %v5883 = vld [vmem:[#allocation7 + $0xe0] sm:$0xff]
      %v5884 = vld [vmem:[#allocation7 + $0xe8] sm:$0xff]
      %v5885 = vld [vmem:[#allocation7 + $0xf0] sm:$0xff]
      %v5886 = vld [vmem:[#allocation7 + $0xf8] sm:$0xff]
      %v5919 = vunpack.c.l.b16 %v5855
      %v5920 = vunpack.c.h.b16 %v5855
      %v5921 = vunpack.c.l.b16 %v5856
      %v5922 = vunpack.c.h.b16 %v5856
      %v5923 = vunpack.c.l.b16 %v5857
      %v5924 = vunpack.c.h.b16 %v5857
      %v5925 = vunpack.c.l.b16 %v5858
      %v5926 = vunpack.c.h.b16 %v5858
      %v5927 = vunpack.c.l.b16 %v5859
      %v5928 = vunpack.c.h.b16 %v5859
      %v5929 = vunpack.c.l.b16 %v5860
      %v5930 = vunpack.c.h.b16 %v5860
      %v5931 = vunpack.c.l.b16 %v5861
      %v5932 = vunpack.c.h.b16 %v5861
      %v5933 = vunpack.c.l.b16 %v5862
      %v5934 = vunpack.c.h.b16 %v5862
      %v5935 = vunpack.c.l.b16 %v5863
      %v5936 = vunpack.c.h.b16 %v5863
      %v5937 = vunpack.c.l.b16 %v5864
      %v5938 = vunpack.c.h.b16 %v5864
      %v5939 = vunpack.c.l.b16 %v5865
      %v5940 = vunpack.c.h.b16 %v5865
      %v5941 = vunpack.c.l.b16 %v5866
      %v5942 = vunpack.c.h.b16 %v5866
      %v5943 = vunpack.c.l.b16 %v5867
      %v5944 = vunpack.c.h.b16 %v5867
      %v5945 = vunpack.c.l.b16 %v5868
      %v5946 = vunpack.c.h.b16 %v5868
      %v5947 = vunpack.c.l.b16 %v5869
      %v5948 = vunpack.c.h.b16 %v5869
      %v5949 = vunpack.c.l.b16 %v5870
      %v5950 = vunpack.c.h.b16 %v5870
      %v5951 = vunpack.c.l.b16 %v5871
      %v5952 = vunpack.c.h.b16 %v5871
      %v5953 = vunpack.c.l.b16 %v5872
      %v5954 = vunpack.c.h.b16 %v5872
      %v5955 = vunpack.c.l.b16 %v5873
      %v5956 = vunpack.c.h.b16 %v5873
      %v5957 = vunpack.c.l.b16 %v5874
      %v5958 = vunpack.c.h.b16 %v5874
      %v5959 = vunpack.c.l.b16 %v5875
      %v5960 = vunpack.c.h.b16 %v5875
      %v5961 = vunpack.c.l.b16 %v5876
      %v5962 = vunpack.c.h.b16 %v5876
      %v5963 = vunpack.c.l.b16 %v5877
      %v5964 = vunpack.c.h.b16 %v5877
      %v5965 = vunpack.c.l.b16 %v5878
      %v5966 = vunpack.c.h.b16 %v5878
      %v5967 = vunpack.c.l.b16 %v5879
      %v5968 = vunpack.c.h.b16 %v5879
      %v5969 = vunpack.c.l.b16 %v5880
      %v5970 = vunpack.c.h.b16 %v5880
      %v5971 = vunpack.c.l.b16 %v5881
      %v5972 = vunpack.c.h.b16 %v5881
      %v5973 = vunpack.c.l.b16 %v5882
      %v5974 = vunpack.c.h.b16 %v5882
      %v5975 = vunpack.c.l.b16 %v5883
      %v5976 = vunpack.c.h.b16 %v5883
      %v5977 = vunpack.c.l.b16 %v5884
      %v5978 = vunpack.c.h.b16 %v5884
      %v5979 = vunpack.c.l.b16 %v5885
      %v5980 = vunpack.c.h.b16 %v5885
      %v5981 = vunpack.c.l.b16 %v5886
      %v5982 = vunpack.c.h.b16 %v5886
      %v5983 = vpack.c.b16 %v5923, %v5919
      %v5984 = vpack.c.b16 %v5924, %v5920
      %v5985 = vpack.c.b16 %v5925, %v5921
      %v5986 = vpack.c.b16 %v5926, %v5922
      %v5987 = vpack.c.b16 %v5931, %v5927
      %v5988 = vpack.c.b16 %v5932, %v5928
      %v5989 = vpack.c.b16 %v5933, %v5929
      %v5990 = vpack.c.b16 %v5934, %v5930
      %v5991 = vpack.c.b16 %v5939, %v5935
      %v5992 = vpack.c.b16 %v5940, %v5936
      %v5993 = vpack.c.b16 %v5941, %v5937
      %v5994 = vpack.c.b16 %v5942, %v5938
      %v5995 = vpack.c.b16 %v5947, %v5943
      %v5996 = vpack.c.b16 %v5948, %v5944
      %v5997 = vpack.c.b16 %v5949, %v5945
      %v5998 = vpack.c.b16 %v5950, %v5946
      %v5999 = vpack.c.b16 %v5955, %v5951
      %v6000 = vpack.c.b16 %v5956, %v5952
      %v6001 = vpack.c.b16 %v5957, %v5953
      %v6002 = vpack.c.b16 %v5958, %v5954
      %v6003 = vpack.c.b16 %v5963, %v5959
      %v6004 = vpack.c.b16 %v5964, %v5960
      %v6005 = vpack.c.b16 %v5965, %v5961
      %v6006 = vpack.c.b16 %v5966, %v5962
      %v6007 = vpack.c.b16 %v5971, %v5967
      %v6008 = vpack.c.b16 %v5972, %v5968
      %v6009 = vpack.c.b16 %v5973, %v5969
      %v6010 = vpack.c.b16 %v5974, %v5970
      %v6011 = vpack.c.b16 %v5979, %v5975
      %v6012 = vpack.c.b16 %v5980, %v5976
      %v6013 = vpack.c.b16 %v5981, %v5977
      %v6014 = vpack.c.b16 %v5982, %v5978
      %6047 = vmatprep.subr.bf16.mxu0 %v5984
      %6048 = vmatpush1.bf16.msra.mxu0 %v5983
      %6049 = vmatprep.subr.bf16.mxu0 %v5988
      %6050 = vmatpush1.bf16.msra.mxu0 %v5987
      %6051 = vmatprep.subr.bf16.mxu0 %v5992
      %6052 = vmatpush1.bf16.msra.mxu0 %v5991
      %6053 = vmatprep.subr.bf16.mxu0 %v5996
      %6054 = vmatpush1.bf16.msra.mxu0 %v5995
      %6055 = vmatprep.subr.bf16.mxu0 %v6000
      %6056 = vmatpush1.bf16.msra.mxu0 %v5999
      %6057 = vmatprep.subr.bf16.mxu0 %v6004
      %6058 = vmatpush1.bf16.msra.mxu0 %v6003
      %6059 = vmatprep.subr.bf16.mxu0 %v6008
      %6060 = vmatpush1.bf16.msra.mxu0 %v6007
      %6061 = vmatprep.subr.bf16.mxu0 %v6012
      %6062 = vmatpush1.bf16.msra.mxu0 %v6011
      %6063 = vmatprep.subr.bf16.mxu0 0
      %6064 = vmatpush1.bf16.msra.mxu0 0
      %6065 = vmatprep.subr.bf16.mxu0 0
      %6066 = vmatpush1.bf16.msra.mxu0 0
      %6067 = vmatprep.subr.bf16.mxu0 0
      %6068 = vmatpush1.bf16.msra.mxu0 0
      %6069 = vmatprep.subr.bf16.mxu0 0
      %6070 = vmatpush1.bf16.msra.mxu0 0
      %6071 = vmatprep.subr.bf16.mxu0 0
      %6072 = vmatpush1.bf16.msra.mxu0 0
      %6073 = vmatprep.subr.bf16.mxu0 0
      %6074 = vmatpush1.bf16.msra.mxu0 0
      %6075 = vmatprep.subr.bf16.mxu0 0
      %6076 = vmatpush1.bf16.msra.mxu0 0
      %6077 = vmatprep.subr.bf16.mxu0 0
      %6078 = vmatpush1.bf16.msra.mxu0 0
      %6079 = vmatprep.mubr.bf16.mxu0 0
      %6080 = vmatmul.mubr.bf16.gmra.mrb[0].mxu0 %v5270
      %v6081 = vpop.f32.mrb[0].mxu0
      %v6082 = vadd.f32 0.0, %v6081
      %v6083 = vpop.f32.mrb[0].mxu0
      %v6084 = vadd.f32 0.0, %v6083
      %v6085 = vpop.f32.mrb[0].mxu0
      %v6086 = vpop.f32.mrb[0].mxu0
      %6087 = vdwg.mxu0
      %6088 = vmatprep.subr.bf16.mxu0 %v5986
      %6089 = vmatpush1.bf16.msra.mxu0 %v5985
      %6090 = vmatprep.subr.bf16.mxu0 %v5990
      %6091 = vmatpush1.bf16.msra.mxu0 %v5989
      %6092 = vmatprep.subr.bf16.mxu0 %v5994
      %6093 = vmatpush1.bf16.msra.mxu0 %v5993
      %6094 = vmatprep.subr.bf16.mxu0 %v5998
      %6095 = vmatpush1.bf16.msra.mxu0 %v5997
      %6096 = vmatprep.subr.bf16.mxu0 %v6002
      %6097 = vmatpush1.bf16.msra.mxu0 %v6001
      %6098 = vmatprep.subr.bf16.mxu0 %v6006
      %6099 = vmatpush1.bf16.msra.mxu0 %v6005
      %6100 = vmatprep.subr.bf16.mxu0 %v6010
      %6101 = vmatpush1.bf16.msra.mxu0 %v6009
      %6102 = vmatprep.subr.bf16.mxu0 %v6014
      %6103 = vmatpush1.bf16.msra.mxu0 %v6013
      %6104 = vmatprep.subr.bf16.mxu0 0
      %6105 = vmatpush1.bf16.msra.mxu0 0
      %6106 = vmatprep.subr.bf16.mxu0 0
      %6107 = vmatpush1.bf16.msra.mxu0 0
      %6108 = vmatprep.subr.bf16.mxu0 0
      %6109 = vmatpush1.bf16.msra.mxu0 0
      %6110 = vmatprep.subr.bf16.mxu0 0
      %6111 = vmatpush1.bf16.msra.mxu0 0
      %6112 = vmatprep.subr.bf16.mxu0 0
      %6113 = vmatpush1.bf16.msra.mxu0 0
      %6114 = vmatprep.subr.bf16.mxu0 0
      %6115 = vmatpush1.bf16.msra.mxu0 0
      %6116 = vmatprep.subr.bf16.mxu0 0
      %6117 = vmatpush1.bf16.msra.mxu0 0
      %6118 = vmatprep.subr.bf16.mxu0 0
      %6119 = vmatpush1.bf16.msra.mxu0 0
      %6120 = vmatprep.mubr.bf16.mxu0 0
      %6121 = vmatmul.mubr.bf16.gmra.mrb[0].mxu0 %v5270
      %v6122 = vpop.f32.mrb[0].mxu0
      %v6123 = vadd.f32 0.0, %v6122
      %v6124 = vpop.f32.mrb[0].mxu0
      %v6125 = vadd.f32 0.0, %v6124
      %v6126 = vpop.f32.mrb[0].mxu0
      %v6127 = vpop.f32.mrb[0].mxu0
      %6128 = vdwg.mxu0
      %v6133 = vcombine.low %v6082, %v6084
      %v6134 = vcombine.low %v6123, %v6125
      %v6136 = vunpack.c.l.s4 1966171168
      %v6137 = vunpack.c.0.s8 %v6136
      %v6138 = vlaneseq
      %v6139 = vshrl.u32 %v6138, 7
      %v6140 = vsub.s32 %v6137, %v6139
      %v6141 = vrot.slane %v6133, %v6140
      %v6143 = vunpack.c.l.s4 1966171168
      %v6144 = vunpack.c.0.s8 %v6143
      %v6145 = vlaneseq
      %v6146 = vshrl.u32 %v6145, 7
      %v6147 = vsub.s32 %v6144, %v6146
      %v6148 = vrot.slane %v6134, %v6147
      %v6149 = vcombine.low %v6141, %v6148
      %v6151 = vunpack.c.l.s4 1966171168
      %v6152 = vunpack.c.0.s8 %v6151
      %v6153 = vlaneseq
      %v6154 = vshrl.u32 %v6153, 7
      %v6155 = vsub.s32 %v6152, %v6154
      %v6156 = vrot.slane %v6149, %v6155
      %v6158 = vadd.f32 %v5854, %v6156
      %v6159 = vxor.u32 %v6158, 2147483648
      %v6160 = vmul.f32 %v6159, 1.442695
      %v6161 = vpow.pop %v6160
      %v6162 = vadd.f32 %v6161, 1.0
      %v6163 = vrcp.pop %v6162
      %v6164 = vmul.f32 1.0, %v6163
      %v6166 = vrot.slane %v6158, 3
      %v6168 = vtanh.pop %v6166
      %v6170 = vrot.slane %v6164, 1
      %v6172 = vmul.f32 %v6170, %v5265
      %v6173 = vmul.f32 %v6164, %v6168
      %v6174 = vadd.f32 %v6172, %v6173
      %v6175 = vtanh.pop %v6174
      %v6176 = vrot.slane %v6164, 2
      %v6178 = vmul.f32 %v6176, %v6175
      %v6179 = vpack.c.bf16 %v6178, %v6178
      %v6180 = vld [vmem:[#allocation9] sm:$0xff]
      %v6181 = vld [vmem:[#allocation9 + $0x8] sm:$0xff]
      %v6182 = vld [vmem:[#allocation9 + $0x10] sm:$0xff]
      %v6183 = vld [vmem:[#allocation9 + $0x18] sm:$0xff]
      %v6184 = vld [vmem:[#allocation9 + $0x20] sm:$0xff]
      %v6185 = vld [vmem:[#allocation9 + $0x28] sm:$0xff]
      %v6186 = vld [vmem:[#allocation9 + $0x30] sm:$0xff]
      %v6187 = vld [vmem:[#allocation9 + $0x38] sm:$0xff]
      %v6188 = vld [vmem:[#allocation9 + $0x40] sm:$0xff]
      %v6189 = vld [vmem:[#allocation9 + $0x48] sm:$0xff]
      %v6190 = vld [vmem:[#allocation9 + $0x50] sm:$0xff]
      %v6191 = vld [vmem:[#allocation9 + $0x58] sm:$0xff]
      %v6192 = vld [vmem:[#allocation9 + $0x60] sm:$0xff]
      %v6193 = vld [vmem:[#allocation9 + $0x68] sm:$0xff]
      %v6194 = vld [vmem:[#allocation9 + $0x70] sm:$0xff]
      %v6195 = vld [vmem:[#allocation9 + $0x78] sm:$0xff]
      %v6196 = vld [vmem:[#allocation9 + $0x80] sm:$0xff]
      %v6197 = vld [vmem:[#allocation9 + $0x88] sm:$0xff]
      %v6198 = vld [vmem:[#allocation9 + $0x90] sm:$0xff]
      %v6199 = vld [vmem:[#allocation9 + $0x98] sm:$0xff]
      %v6200 = vld [vmem:[#allocation9 + $0xa0] sm:$0xff]
      %v6201 = vld [vmem:[#allocation9 + $0xa8] sm:$0xff]
      %v6202 = vld [vmem:[#allocation9 + $0xb0] sm:$0xff]
      %v6203 = vld [vmem:[#allocation9 + $0xb8] sm:$0xff]
      %v6204 = vld [vmem:[#allocation9 + $0xc0] sm:$0xff]
      %v6205 = vld [vmem:[#allocation9 + $0xc8] sm:$0xff]
      %v6206 = vld [vmem:[#allocation9 + $0xd0] sm:$0xff]
      %v6207 = vld [vmem:[#allocation9 + $0xd8] sm:$0xff]
      %v6208 = vld [vmem:[#allocation9 + $0xe0] sm:$0xff]
      %v6209 = vld [vmem:[#allocation9 + $0xe8] sm:$0xff]
      %v6210 = vld [vmem:[#allocation9 + $0xf0] sm:$0xff]
      %v6211 = vld [vmem:[#allocation9 + $0xf8] sm:$0xff]
      %v6244 = vunpack.c.l.b16 %v6180
      %v6245 = vunpack.c.h.b16 %v6180
      %v6246 = vunpack.c.l.b16 %v6181
      %v6247 = vunpack.c.h.b16 %v6181
      %v6248 = vunpack.c.l.b16 %v6182
      %v6249 = vunpack.c.h.b16 %v6182
      %v6250 = vunpack.c.l.b16 %v6183
      %v6251 = vunpack.c.h.b16 %v6183
      %v6252 = vunpack.c.l.b16 %v6184
      %v6253 = vunpack.c.h.b16 %v6184
      %v6254 = vunpack.c.l.b16 %v6185
      %v6255 = vunpack.c.h.b16 %v6185
      %v6256 = vunpack.c.l.b16 %v6186
      %v6257 = vunpack.c.h.b16 %v6186
      %v6258 = vunpack.c.l.b16 %v6187
      %v6259 = vunpack.c.h.b16 %v6187
      %v6260 = vunpack.c.l.b16 %v6188
      %v6261 = vunpack.c.h.b16 %v6188
      %v6262 = vunpack.c.l.b16 %v6189
      %v6263 = vunpack.c.h.b16 %v6189
      %v6264 = vunpack.c.l.b16 %v6190
      %v6265 = vunpack.c.h.b16 %v6190
      %v6266 = vunpack.c.l.b16 %v6191
      %v6267 = vunpack.c.h.b16 %v6191
      %v6268 = vunpack.c.l.b16 %v6192
      %v6269 = vunpack.c.h.b16 %v6192
      %v6270 = vunpack.c.l.b16 %v6193
      %v6271 = vunpack.c.h.b16 %v6193
      %v6272 = vunpack.c.l.b16 %v6194
      %v6273 = vunpack.c.h.b16 %v6194
      %v6274 = vunpack.c.l.b16 %v6195
      %v6275 = vunpack.c.h.b16 %v6195
      %v6276 = vunpack.c.l.b16 %v6196
      %v6277 = vunpack.c.h.b16 %v6196
      %v6278 = vunpack.c.l.b16 %v6197
      %v6279 = vunpack.c.h.b16 %v6197
      %v6280 = vunpack.c.l.b16 %v6198
      %v6281 = vunpack.c.h.b16 %v6198
      %v6282 = vunpack.c.l.b16 %v6199
      %v6283 = vunpack.c.h.b16 %v6199
      %v6284 = vunpack.c.l.b16 %v6200
      %v6285 = vunpack.c.h.b16 %v6200
      %v6286 = vunpack.c.l.b16 %v6201
      %v6287 = vunpack.c.h.b16 %v6201
      %v6288 = vunpack.c.l.b16 %v6202
      %v6289 = vunpack.c.h.b16 %v6202
      %v6290 = vunpack.c.l.b16 %v6203
      %v6291 = vunpack.c.h.b16 %v6203
      %v6292 = vunpack.c.l.b16 %v6204
      %v6293 = vunpack.c.h.b16 %v6204
      %v6294 = vunpack.c.l.b16 %v6205
      %v6295 = vunpack.c.h.b16 %v6205
      %v6296 = vunpack.c.l.b16 %v6206
      %v6297 = vunpack.c.h.b16 %v6206
      %v6298 = vunpack.c.l.b16 %v6207
      %v6299 = vunpack.c.h.b16 %v6207
      %v6300 = vunpack.c.l.b16 %v6208
      %v6301 = vunpack.c.h.b16 %v6208
      %v6302 = vunpack.c.l.b16 %v6209
      %v6303 = vunpack.c.h.b16 %v6209
      %v6304 = vunpack.c.l.b16 %v6210
      %v6305 = vunpack.c.h.b16 %v6210
      %v6306 = vunpack.c.l.b16 %v6211
      %v6307 = vunpack.c.h.b16 %v6211
      %v6308 = vpack.c.b16 %v6248, %v6244
      %v6309 = vpack.c.b16 %v6249, %v6245
      %v6310 = vpack.c.b16 %v6250, %v6246
      %v6311 = vpack.c.b16 %v6251, %v6247
      %v6312 = vpack.c.b16 %v6256, %v6252
      %v6313 = vpack.c.b16 %v6257, %v6253
      %v6314 = vpack.c.b16 %v6258, %v6254
      %v6315 = vpack.c.b16 %v6259, %v6255
      %v6316 = vpack.c.b16 %v6264, %v6260
      %v6317 = vpack.c.b16 %v6265, %v6261
      %v6318 = vpack.c.b16 %v6266, %v6262
      %v6319 = vpack.c.b16 %v6267, %v6263
      %v6320 = vpack.c.b16 %v6272, %v6268
      %v6321 = vpack.c.b16 %v6273, %v6269
      %v6322 = vpack.c.b16 %v6274, %v6270
      %v6323 = vpack.c.b16 %v6275, %v6271
      %v6324 = vpack.c.b16 %v6280, %v6276
      %v6325 = vpack.c.b16 %v6281, %v6277
      %v6326 = vpack.c.b16 %v6282, %v6278
      %v6327 = vpack.c.b16 %v6283, %v6279
      %v6328 = vpack.c.b16 %v6288, %v6284
      %v6329 = vpack.c.b16 %v6289, %v6285
      %v6330 = vpack.c.b16 %v6290, %v6286
      %v6331 = vpack.c.b16 %v6291, %v6287
      %v6332 = vpack.c.b16 %v6296, %v6292
      %v6333 = vpack.c.b16 %v6297, %v6293
      %v6334 = vpack.c.b16 %v6298, %v6294
      %v6335 = vpack.c.b16 %v6299, %v6295
      %v6336 = vpack.c.b16 %v6304, %v6300
      %v6337 = vpack.c.b16 %v6305, %v6301
      %v6338 = vpack.c.b16 %v6306, %v6302
      %v6339 = vpack.c.b16 %v6307, %v6303
      %6372 = vmatprep.subr.bf16.mxu0 %v6309
      %6373 = vmatpush1.bf16.msra.mxu0 %v6308
      %6374 = vmatprep.subr.bf16.mxu0 %v6313
      %6375 = vmatpush1.bf16.msra.mxu0 %v6312
      %6376 = vmatprep.subr.bf16.mxu0 %v6317
      %6377 = vmatpush1.bf16.msra.mxu0 %v6316
      %6378 = vmatprep.subr.bf16.mxu0 %v6321
      %6379 = vmatpush1.bf16.msra.mxu0 %v6320
      %6380 = vmatprep.subr.bf16.mxu0 %v6325
      %6381 = vmatpush1.bf16.msra.mxu0 %v6324
      %6382 = vmatprep.subr.bf16.mxu0 %v6329
      %6383 = vmatpush1.bf16.msra.mxu0 %v6328
      %6384 = vmatprep.subr.bf16.mxu0 %v6333
      %6385 = vmatpush1.bf16.msra.mxu0 %v6332
      %6386 = vmatprep.subr.bf16.mxu0 %v6337
      %6387 = vmatpush1.bf16.msra.mxu0 %v6336
      %6388 = vmatprep.subr.bf16.mxu0 0
      %6389 = vmatpush1.bf16.msra.mxu0 0
      %6390 = vmatprep.subr.bf16.mxu0 0
      %6391 = vmatpush1.bf16.msra.mxu0 0
      %6392 = vmatprep.subr.bf16.mxu0 0
      %6393 = vmatpush1.bf16.msra.mxu0 0
      %6394 = vmatprep.subr.bf16.mxu0 0
      %6395 = vmatpush1.bf16.msra.mxu0 0
      %6396 = vmatprep.subr.bf16.mxu0 0
      %6397 = vmatpush1.bf16.msra.mxu0 0
      %6398 = vmatprep.subr.bf16.mxu0 0
      %6399 = vmatpush1.bf16.msra.mxu0 0
      %6400 = vmatprep.subr.bf16.mxu0 0
      %6401 = vmatpush1.bf16.msra.mxu0 0
      %6402 = vmatprep.subr.bf16.mxu0 0
      %6403 = vmatpush1.bf16.msra.mxu0 0
      %6404 = vmatprep.mubr.bf16.mxu0 0
      %6405 = vmatmul.mubr.bf16.gmra.mrb[0].mxu0 %v6179
      %v6406 = vpop.f32.mrb[0].mxu0
      %v6407 = vadd.f32 %v5798, %v6406
      %v6408 = vpop.f32.mrb[0].mxu0
      %v6409 = vadd.f32 %v5800, %v6408
      %v6410 = vpop.f32.mrb[0].mxu0
      %v6411 = vpop.f32.mrb[0].mxu0
      %6412 = vdwg.mxu0
      %6413 = vmatprep.subr.bf16.mxu0 %v6311
      %6414 = vmatpush1.bf16.msra.mxu0 %v6310
      %6415 = vmatprep.subr.bf16.mxu0 %v6315
      %6416 = vmatpush1.bf16.msra.mxu0 %v6314
      %6417 = vmatprep.subr.bf16.mxu0 %v6319
      %6418 = vmatpush1.bf16.msra.mxu0 %v6318
      %6419 = vmatprep.subr.bf16.mxu0 %v6323
      %6420 = vmatpush1.bf16.msra.mxu0 %v6322
      %6421 = vmatprep.subr.bf16.mxu0 %v6327
      %6422 = vmatpush1.bf16.msra.mxu0 %v6326
      %6423 = vmatprep.subr.bf16.mxu0 %v6331
      %6424 = vmatpush1.bf16.msra.mxu0 %v6330
      %6425 = vmatprep.subr.bf16.mxu0 %v6335
      %6426 = vmatpush1.bf16.msra.mxu0 %v6334
      %6427 = vmatprep.subr.bf16.mxu0 %v6339
      %6428 = vmatpush1.bf16.msra.mxu0 %v6338
      %6429 = vmatprep.subr.bf16.mxu0 0
      %6430 = vmatpush1.bf16.msra.mxu0 0
      %6431 = vmatprep.subr.bf16.mxu0 0
      %6432 = vmatpush1.bf16.msra.mxu0 0
      %6433 = vmatprep.subr.bf16.mxu0 0
      %6434 = vmatpush1.bf16.msra.mxu0 0
      %6435 = vmatprep.subr.bf16.mxu0 0
      %6436 = vmatpush1.bf16.msra.mxu0 0
      %6437 = vmatprep.subr.bf16.mxu0 0
      %6438 = vmatpush1.bf16.msra.mxu0 0
      %6439 = vmatprep.subr.bf16.mxu0 0
      %6440 = vmatpush1.bf16.msra.mxu0 0
      %6441 = vmatprep.subr.bf16.mxu0 0
      %6442 = vmatpush1.bf16.msra.mxu0 0
      %6443 = vmatprep.subr.bf16.mxu0 0
      %6444 = vmatpush1.bf16.msra.mxu0 0
      %6445 = vmatprep.mubr.bf16.mxu0 0
      %6446 = vmatmul.mubr.bf16.gmra.mrb[0].mxu0 %v6179
      %v6447 = vpop.f32.mrb[0].mxu0
      %v6448 = vadd.f32 %v5839, %v6447
      %v6449 = vpop.f32.mrb[0].mxu0
      %v6450 = vadd.f32 %v5841, %v6449
      %v6451 = vpop.f32.mrb[0].mxu0
      %v6452 = vpop.f32.mrb[0].mxu0
      %6453 = vdwg.mxu0
      %v6454 = vxor.u32 %v6407, 2147483648
      %v6455 = vxor.u32 %v6409, 2147483648
      %v6456 = vxor.u32 %v6448, 2147483648
      %v6457 = vmul.f32 %v6454, 1.442695
      %v6458 = vpow.pop %v6457
      %v6459 = vmul.f32 %v6455, 1.442695
      %v6460 = vpow.pop %v6459
      %v6461 = vmul.f32 %v6456, 1.442695
      %v6462 = vpow.pop %v6461
      %v6463 = vadd.f32 %v6458, 1.0
      %v6464 = vadd.f32 %v6460, 1.0
      %v6465 = vadd.f32 %v6462, 1.0
      %v6466 = vrcp.pop %v6463
      %v6467 = vmul.f32 1.0, %v6466
      %v6468 = vrcp.pop %v6464
      %v6469 = vmul.f32 1.0, %v6468
      %v6470 = vrcp.pop %v6465
      %v6471 = vmul.f32 1.0, %v6470
      %v6472 = vtanh.pop %v6450
      %v6473 = vmul.f32 %v6469, %v5566
      %v6474 = vmul.f32 %v6467, %v6472
      %v6475 = vadd.f32 %v6473, %v6474
      %v6476 = vtanh.pop %v6475
      %v6477 = vmul.f32 %v6471, %v6476
      %6478 = vst [vmem:[#allocation3 + $0x6] sm:$0x1] %v6477
      %v6479 = vpack.c.bf16 %v6477, %v6477
      %v6480 = vld [vmem:[#allocation10] sm:$0xff]
      %v6481 = vld [vmem:[#allocation10 + $0x8] sm:$0xff]
      %v6482 = vld [vmem:[#allocation10 + $0x10] sm:$0xff]
      %v6483 = vld [vmem:[#allocation10 + $0x18] sm:$0xff]
      %v6484 = vld [vmem:[#allocation10 + $0x20] sm:$0xff]
      %v6485 = vld [vmem:[#allocation10 + $0x28] sm:$0xff]
      %v6486 = vld [vmem:[#allocation10 + $0x30] sm:$0xff]
      %v6487 = vld [vmem:[#allocation10 + $0x38] sm:$0xff]
      %v6488 = vld [vmem:[#allocation10 + $0x40] sm:$0xff]
      %v6489 = vld [vmem:[#allocation10 + $0x48] sm:$0xff]
      %v6490 = vld [vmem:[#allocation10 + $0x50] sm:$0xff]
      %v6491 = vld [vmem:[#allocation10 + $0x58] sm:$0xff]
      %v6492 = vld [vmem:[#allocation10 + $0x60] sm:$0xff]
      %v6493 = vld [vmem:[#allocation10 + $0x68] sm:$0xff]
      %v6494 = vld [vmem:[#allocation10 + $0x70] sm:$0xff]
      %v6495 = vld [vmem:[#allocation10 + $0x78] sm:$0xff]
      %v6496 = vld [vmem:[#allocation10 + $0x80] sm:$0xff]
      %v6497 = vld [vmem:[#allocation10 + $0x88] sm:$0xff]
      %v6498 = vld [vmem:[#allocation10 + $0x90] sm:$0xff]
      %v6499 = vld [vmem:[#allocation10 + $0x98] sm:$0xff]
      %v6500 = vld [vmem:[#allocation10 + $0xa0] sm:$0xff]
      %v6501 = vld [vmem:[#allocation10 + $0xa8] sm:$0xff]
      %v6502 = vld [vmem:[#allocation10 + $0xb0] sm:$0xff]
      %v6503 = vld [vmem:[#allocation10 + $0xb8] sm:$0xff]
      %v6504 = vld [vmem:[#allocation10 + $0xc0] sm:$0xff]
      %v6505 = vld [vmem:[#allocation10 + $0xc8] sm:$0xff]
      %v6506 = vld [vmem:[#allocation10 + $0xd0] sm:$0xff]
      %v6507 = vld [vmem:[#allocation10 + $0xd8] sm:$0xff]
      %v6508 = vld [vmem:[#allocation10 + $0xe0] sm:$0xff]
      %v6509 = vld [vmem:[#allocation10 + $0xe8] sm:$0xff]
      %v6510 = vld [vmem:[#allocation10 + $0xf0] sm:$0xff]
      %v6511 = vld [vmem:[#allocation10 + $0xf8] sm:$0xff]
      %v6544 = vunpack.c.l.b16 %v6480
      %v6545 = vunpack.c.h.b16 %v6480
      %v6546 = vunpack.c.l.b16 %v6481
      %v6547 = vunpack.c.h.b16 %v6481
      %v6548 = vunpack.c.l.b16 %v6482
      %v6549 = vunpack.c.h.b16 %v6482
      %v6550 = vunpack.c.l.b16 %v6483
      %v6551 = vunpack.c.h.b16 %v6483
      %v6552 = vunpack.c.l.b16 %v6484
      %v6553 = vunpack.c.h.b16 %v6484
      %v6554 = vunpack.c.l.b16 %v6485
      %v6555 = vunpack.c.h.b16 %v6485
      %v6556 = vunpack.c.l.b16 %v6486
      %v6557 = vunpack.c.h.b16 %v6486
      %v6558 = vunpack.c.l.b16 %v6487
      %v6559 = vunpack.c.h.b16 %v6487
      %v6560 = vunpack.c.l.b16 %v6488
      %v6561 = vunpack.c.h.b16 %v6488
      %v6562 = vunpack.c.l.b16 %v6489
      %v6563 = vunpack.c.h.b16 %v6489
      %v6564 = vunpack.c.l.b16 %v6490
      %v6565 = vunpack.c.h.b16 %v6490
      %v6566 = vunpack.c.l.b16 %v6491
      %v6567 = vunpack.c.h.b16 %v6491
      %v6568 = vunpack.c.l.b16 %v6492
      %v6569 = vunpack.c.h.b16 %v6492
      %v6570 = vunpack.c.l.b16 %v6493
      %v6571 = vunpack.c.h.b16 %v6493
      %v6572 = vunpack.c.l.b16 %v6494
      %v6573 = vunpack.c.h.b16 %v6494
      %v6574 = vunpack.c.l.b16 %v6495
      %v6575 = vunpack.c.h.b16 %v6495
      %v6576 = vunpack.c.l.b16 %v6496
      %v6577 = vunpack.c.h.b16 %v6496
      %v6578 = vunpack.c.l.b16 %v6497
      %v6579 = vunpack.c.h.b16 %v6497
      %v6580 = vunpack.c.l.b16 %v6498
      %v6581 = vunpack.c.h.b16 %v6498
      %v6582 = vunpack.c.l.b16 %v6499
      %v6583 = vunpack.c.h.b16 %v6499
      %v6584 = vunpack.c.l.b16 %v6500
      %v6585 = vunpack.c.h.b16 %v6500
      %v6586 = vunpack.c.l.b16 %v6501
      %v6587 = vunpack.c.h.b16 %v6501
      %v6588 = vunpack.c.l.b16 %v6502
      %v6589 = vunpack.c.h.b16 %v6502
      %v6590 = vunpack.c.l.b16 %v6503
      %v6591 = vunpack.c.h.b16 %v6503
      %v6592 = vunpack.c.l.b16 %v6504
      %v6593 = vunpack.c.h.b16 %v6504
      %v6594 = vunpack.c.l.b16 %v6505
      %v6595 = vunpack.c.h.b16 %v6505
      %v6596 = vunpack.c.l.b16 %v6506
      %v6597 = vunpack.c.h.b16 %v6506
      %v6598 = vunpack.c.l.b16 %v6507
      %v6599 = vunpack.c.h.b16 %v6507
      %v6600 = vunpack.c.l.b16 %v6508
      %v6601 = vunpack.c.h.b16 %v6508
      %v6602 = vunpack.c.l.b16 %v6509
      %v6603 = vunpack.c.h.b16 %v6509
      %v6604 = vunpack.c.l.b16 %v6510
      %v6605 = vunpack.c.h.b16 %v6510
      %v6606 = vunpack.c.l.b16 %v6511
      %v6607 = vunpack.c.h.b16 %v6511
      %v6608 = vpack.c.b16 %v6548, %v6544
      %v6609 = vpack.c.b16 %v6549, %v6545
      %v6610 = vpack.c.b16 %v6550, %v6546
      %v6611 = vpack.c.b16 %v6551, %v6547
      %v6612 = vpack.c.b16 %v6556, %v6552
      %v6613 = vpack.c.b16 %v6557, %v6553
      %v6614 = vpack.c.b16 %v6558, %v6554
      %v6615 = vpack.c.b16 %v6559, %v6555
      %v6616 = vpack.c.b16 %v6564, %v6560
      %v6617 = vpack.c.b16 %v6565, %v6561
      %v6618 = vpack.c.b16 %v6566, %v6562
      %v6619 = vpack.c.b16 %v6567, %v6563
      %v6620 = vpack.c.b16 %v6572, %v6568
      %v6621 = vpack.c.b16 %v6573, %v6569
      %v6622 = vpack.c.b16 %v6574, %v6570
      %v6623 = vpack.c.b16 %v6575, %v6571
      %v6624 = vpack.c.b16 %v6580, %v6576
      %v6625 = vpack.c.b16 %v6581, %v6577
      %v6626 = vpack.c.b16 %v6582, %v6578
      %v6627 = vpack.c.b16 %v6583, %v6579
      %v6628 = vpack.c.b16 %v6588, %v6584
      %v6629 = vpack.c.b16 %v6589, %v6585
      %v6630 = vpack.c.b16 %v6590, %v6586
      %v6631 = vpack.c.b16 %v6591, %v6587
      %v6632 = vpack.c.b16 %v6596, %v6592
      %v6633 = vpack.c.b16 %v6597, %v6593
      %v6634 = vpack.c.b16 %v6598, %v6594
      %v6635 = vpack.c.b16 %v6599, %v6595
      %v6636 = vpack.c.b16 %v6604, %v6600
      %v6637 = vpack.c.b16 %v6605, %v6601
      %v6638 = vpack.c.b16 %v6606, %v6602
      %v6639 = vpack.c.b16 %v6607, %v6603
      %6672 = vmatprep.subr.bf16.mxu0 %v6609
      %6673 = vmatpush1.bf16.msra.mxu0 %v6608
      %6674 = vmatprep.subr.bf16.mxu0 %v6613
      %6675 = vmatpush1.bf16.msra.mxu0 %v6612
      %6676 = vmatprep.subr.bf16.mxu0 %v6617
      %6677 = vmatpush1.bf16.msra.mxu0 %v6616
      %6678 = vmatprep.subr.bf16.mxu0 %v6621
      %6679 = vmatpush1.bf16.msra.mxu0 %v6620
      %6680 = vmatprep.subr.bf16.mxu0 %v6625
      %6681 = vmatpush1.bf16.msra.mxu0 %v6624
      %6682 = vmatprep.subr.bf16.mxu0 %v6629
      %6683 = vmatpush1.bf16.msra.mxu0 %v6628
      %6684 = vmatprep.subr.bf16.mxu0 %v6633
      %6685 = vmatpush1.bf16.msra.mxu0 %v6632
      %6686 = vmatprep.subr.bf16.mxu0 %v6637
      %6687 = vmatpush1.bf16.msra.mxu0 %v6636
      %6688 = vmatprep.subr.bf16.mxu0 0
      %6689 = vmatpush1.bf16.msra.mxu0 0
      %6690 = vmatprep.subr.bf16.mxu0 0
      %6691 = vmatpush1.bf16.msra.mxu0 0
      %6692 = vmatprep.subr.bf16.mxu0 0
      %6693 = vmatpush1.bf16.msra.mxu0 0
      %6694 = vmatprep.subr.bf16.mxu0 0
      %6695 = vmatpush1.bf16.msra.mxu0 0
      %6696 = vmatprep.subr.bf16.mxu0 0
      %6697 = vmatpush1.bf16.msra.mxu0 0
      %6698 = vmatprep.subr.bf16.mxu0 0
      %6699 = vmatpush1.bf16.msra.mxu0 0
      %6700 = vmatprep.subr.bf16.mxu0 0
      %6701 = vmatpush1.bf16.msra.mxu0 0
      %6702 = vmatprep.subr.bf16.mxu0 0
      %6703 = vmatpush1.bf16.msra.mxu0 0
      %6704 = vmatprep.mubr.bf16.mxu0 0
      %6705 = vmatmul.mubr.bf16.gmra.mrb[0].mxu0 %v6479
      %v6706 = vpop.f32.mrb[0].mxu0
      %v6707 = vadd.f32 %v295, %v6706
      %v6708 = vpop.f32.mrb[0].mxu0
      %v6709 = vadd.f32 %v299, %v6708
      %v6710 = vpop.f32.mrb[0].mxu0
      %v6711 = vpop.f32.mrb[0].mxu0
      %6712 = vdwg.mxu0
      %6713 = vmatprep.subr.bf16.mxu0 %v6611
      %6714 = vmatpush1.bf16.msra.mxu0 %v6610
      %6715 = vmatprep.subr.bf16.mxu0 %v6615
      %6716 = vmatpush1.bf16.msra.mxu0 %v6614
      %6717 = vmatprep.subr.bf16.mxu0 %v6619
      %6718 = vmatpush1.bf16.msra.mxu0 %v6618
      %6719 = vmatprep.subr.bf16.mxu0 %v6623
      %6720 = vmatpush1.bf16.msra.mxu0 %v6622
      %6721 = vmatprep.subr.bf16.mxu0 %v6627
      %6722 = vmatpush1.bf16.msra.mxu0 %v6626
      %6723 = vmatprep.subr.bf16.mxu0 %v6631
      %6724 = vmatpush1.bf16.msra.mxu0 %v6630
      %6725 = vmatprep.subr.bf16.mxu0 %v6635
      %6726 = vmatpush1.bf16.msra.mxu0 %v6634
      %6727 = vmatprep.subr.bf16.mxu0 %v6639
      %6728 = vmatpush1.bf16.msra.mxu0 %v6638
      %6729 = vmatprep.subr.bf16.mxu0 0
      %6730 = vmatpush1.bf16.msra.mxu0 0
      %6731 = vmatprep.subr.bf16.mxu0 0
      %6732 = vmatpush1.bf16.msra.mxu0 0
      %6733 = vmatprep.subr.bf16.mxu0 0
      %6734 = vmatpush1.bf16.msra.mxu0 0
      %6735 = vmatprep.subr.bf16.mxu0 0
      %6736 = vmatpush1.bf16.msra.mxu0 0
      %6737 = vmatprep.subr.bf16.mxu0 0
      %6738 = vmatpush1.bf16.msra.mxu0 0
      %6739 = vmatprep.subr.bf16.mxu0 0
      %6740 = vmatpush1.bf16.msra.mxu0 0
      %6741 = vmatprep.subr.bf16.mxu0 0
      %6742 = vmatpush1.bf16.msra.mxu0 0
      %6743 = vmatprep.subr.bf16.mxu0 0
      %6744 = vmatpush1.bf16.msra.mxu0 0
      %6745 = vmatprep.mubr.bf16.mxu0 0
      %6746 = vmatmul.mubr.bf16.gmra.mrb[0].mxu0 %v6479
      %v6747 = vpop.f32.mrb[0].mxu0
      %v6748 = vadd.f32 %v303, %v6747
      %v6749 = vpop.f32.mrb[0].mxu0
      %v6750 = vadd.f32 %v307, %v6749
      %v6751 = vpop.f32.mrb[0].mxu0
      %v6752 = vpop.f32.mrb[0].mxu0
      %6753 = vdwg.mxu0
      %s6754 = sadd.s32 %s97, 7
      %s6755 = sshra.s32 %s6754, 3
      %s6756 = sand.u32 %s6754, 7
      %s6757 = sshra.s32 %s6754, 3
      %s6758 = sand.u32 %s6754, 7
      %s6759 = smul.u32 %s6755, 4
      %s6760 = smul.u32 %s6759, 8
      %s6761 = sadd.s32 %s6760, %s6758
      %s6762 = scalar_lea.vmem [#allocation4], %s6761
      %v6763 = vld [vmem:[%s6762] ss:$8 sm:$0xf]
      %v6764 = vld [vmem:[#allocation7] sm:$0xff]
      %v6765 = vld [vmem:[#allocation7 + $0x8] sm:$0xff]
      %v6766 = vld [vmem:[#allocation7 + $0x10] sm:$0xff]
      %v6767 = vld [vmem:[#allocation7 + $0x18] sm:$0xff]
      %v6768 = vld [vmem:[#allocation7 + $0x20] sm:$0xff]
      %v6769 = vld [vmem:[#allocation7 + $0x28] sm:$0xff]
      %v6770 = vld [vmem:[#allocation7 + $0x30] sm:$0xff]
      %v6771 = vld [vmem:[#allocation7 + $0x38] sm:$0xff]
      %v6772 = vld [vmem:[#allocation7 + $0x40] sm:$0xff]
      %v6773 = vld [vmem:[#allocation7 + $0x48] sm:$0xff]
      %v6774 = vld [vmem:[#allocation7 + $0x50] sm:$0xff]
      %v6775 = vld [vmem:[#allocation7 + $0x58] sm:$0xff]
      %v6776 = vld [vmem:[#allocation7 + $0x60] sm:$0xff]
      %v6777 = vld [vmem:[#allocation7 + $0x68] sm:$0xff]
      %v6778 = vld [vmem:[#allocation7 + $0x70] sm:$0xff]
      %v6779 = vld [vmem:[#allocation7 + $0x78] sm:$0xff]
      %v6780 = vld [vmem:[#allocation7 + $0x80] sm:$0xff]
      %v6781 = vld [vmem:[#allocation7 + $0x88] sm:$0xff]
      %v6782 = vld [vmem:[#allocation7 + $0x90] sm:$0xff]
      %v6783 = vld [vmem:[#allocation7 + $0x98] sm:$0xff]
      %v6784 = vld [vmem:[#allocation7 + $0xa0] sm:$0xff]
      %v6785 = vld [vmem:[#allocation7 + $0xa8] sm:$0xff]
      %v6786 = vld [vmem:[#allocation7 + $0xb0] sm:$0xff]
      %v6787 = vld [vmem:[#allocation7 + $0xb8] sm:$0xff]
      %v6788 = vld [vmem:[#allocation7 + $0xc0] sm:$0xff]
      %v6789 = vld [vmem:[#allocation7 + $0xc8] sm:$0xff]
      %v6790 = vld [vmem:[#allocation7 + $0xd0] sm:$0xff]
      %v6791 = vld [vmem:[#allocation7 + $0xd8] sm:$0xff]
      %v6792 = vld [vmem:[#allocation7 + $0xe0] sm:$0xff]
      %v6793 = vld [vmem:[#allocation7 + $0xe8] sm:$0xff]
      %v6794 = vld [vmem:[#allocation7 + $0xf0] sm:$0xff]
      %v6795 = vld [vmem:[#allocation7 + $0xf8] sm:$0xff]
      %v6828 = vunpack.c.l.b16 %v6764
      %v6829 = vunpack.c.h.b16 %v6764
      %v6830 = vunpack.c.l.b16 %v6765
      %v6831 = vunpack.c.h.b16 %v6765
      %v6832 = vunpack.c.l.b16 %v6766
      %v6833 = vunpack.c.h.b16 %v6766
      %v6834 = vunpack.c.l.b16 %v6767
      %v6835 = vunpack.c.h.b16 %v6767
      %v6836 = vunpack.c.l.b16 %v6768
      %v6837 = vunpack.c.h.b16 %v6768
      %v6838 = vunpack.c.l.b16 %v6769
      %v6839 = vunpack.c.h.b16 %v6769
      %v6840 = vunpack.c.l.b16 %v6770
      %v6841 = vunpack.c.h.b16 %v6770
      %v6842 = vunpack.c.l.b16 %v6771
      %v6843 = vunpack.c.h.b16 %v6771
      %v6844 = vunpack.c.l.b16 %v6772
      %v6845 = vunpack.c.h.b16 %v6772
      %v6846 = vunpack.c.l.b16 %v6773
      %v6847 = vunpack.c.h.b16 %v6773
      %v6848 = vunpack.c.l.b16 %v6774
      %v6849 = vunpack.c.h.b16 %v6774
      %v6850 = vunpack.c.l.b16 %v6775
      %v6851 = vunpack.c.h.b16 %v6775
      %v6852 = vunpack.c.l.b16 %v6776
      %v6853 = vunpack.c.h.b16 %v6776
      %v6854 = vunpack.c.l.b16 %v6777
      %v6855 = vunpack.c.h.b16 %v6777
      %v6856 = vunpack.c.l.b16 %v6778
      %v6857 = vunpack.c.h.b16 %v6778
      %v6858 = vunpack.c.l.b16 %v6779
      %v6859 = vunpack.c.h.b16 %v6779
      %v6860 = vunpack.c.l.b16 %v6780
      %v6861 = vunpack.c.h.b16 %v6780
      %v6862 = vunpack.c.l.b16 %v6781
      %v6863 = vunpack.c.h.b16 %v6781
      %v6864 = vunpack.c.l.b16 %v6782
      %v6865 = vunpack.c.h.b16 %v6782
      %v6866 = vunpack.c.l.b16 %v6783
      %v6867 = vunpack.c.h.b16 %v6783
      %v6868 = vunpack.c.l.b16 %v6784
      %v6869 = vunpack.c.h.b16 %v6784
      %v6870 = vunpack.c.l.b16 %v6785
      %v6871 = vunpack.c.h.b16 %v6785
      %v6872 = vunpack.c.l.b16 %v6786
      %v6873 = vunpack.c.h.b16 %v6786
      %v6874 = vunpack.c.l.b16 %v6787
      %v6875 = vunpack.c.h.b16 %v6787
      %v6876 = vunpack.c.l.b16 %v6788
      %v6877 = vunpack.c.h.b16 %v6788
      %v6878 = vunpack.c.l.b16 %v6789
      %v6879 = vunpack.c.h.b16 %v6789
      %v6880 = vunpack.c.l.b16 %v6790
      %v6881 = vunpack.c.h.b16 %v6790
      %v6882 = vunpack.c.l.b16 %v6791
      %v6883 = vunpack.c.h.b16 %v6791
      %v6884 = vunpack.c.l.b16 %v6792
      %v6885 = vunpack.c.h.b16 %v6792
      %v6886 = vunpack.c.l.b16 %v6793
      %v6887 = vunpack.c.h.b16 %v6793
      %v6888 = vunpack.c.l.b16 %v6794
      %v6889 = vunpack.c.h.b16 %v6794
      %v6890 = vunpack.c.l.b16 %v6795
      %v6891 = vunpack.c.h.b16 %v6795
      %v6892 = vpack.c.b16 %v6832, %v6828
      %v6893 = vpack.c.b16 %v6833, %v6829
      %v6894 = vpack.c.b16 %v6834, %v6830
      %v6895 = vpack.c.b16 %v6835, %v6831
      %v6896 = vpack.c.b16 %v6840, %v6836
      %v6897 = vpack.c.b16 %v6841, %v6837
      %v6898 = vpack.c.b16 %v6842, %v6838
      %v6899 = vpack.c.b16 %v6843, %v6839
      %v6900 = vpack.c.b16 %v6848, %v6844
      %v6901 = vpack.c.b16 %v6849, %v6845
      %v6902 = vpack.c.b16 %v6850, %v6846
      %v6903 = vpack.c.b16 %v6851, %v6847
      %v6904 = vpack.c.b16 %v6856, %v6852
      %v6905 = vpack.c.b16 %v6857, %v6853
      %v6906 = vpack.c.b16 %v6858, %v6854
      %v6907 = vpack.c.b16 %v6859, %v6855
      %v6908 = vpack.c.b16 %v6864, %v6860
      %v6909 = vpack.c.b16 %v6865, %v6861
      %v6910 = vpack.c.b16 %v6866, %v6862
      %v6911 = vpack.c.b16 %v6867, %v6863
      %v6912 = vpack.c.b16 %v6872, %v6868
      %v6913 = vpack.c.b16 %v6873, %v6869
      %v6914 = vpack.c.b16 %v6874, %v6870
      %v6915 = vpack.c.b16 %v6875, %v6871
      %v6916 = vpack.c.b16 %v6880, %v6876
      %v6917 = vpack.c.b16 %v6881, %v6877
      %v6918 = vpack.c.b16 %v6882, %v6878
      %v6919 = vpack.c.b16 %v6883, %v6879
      %v6920 = vpack.c.b16 %v6888, %v6884
      %v6921 = vpack.c.b16 %v6889, %v6885
      %v6922 = vpack.c.b16 %v6890, %v6886
      %v6923 = vpack.c.b16 %v6891, %v6887
      %6956 = vmatprep.subr.bf16.mxu0 %v6893
      %6957 = vmatpush1.bf16.msra.mxu0 %v6892
      %6958 = vmatprep.subr.bf16.mxu0 %v6897
      %6959 = vmatpush1.bf16.msra.mxu0 %v6896
      %6960 = vmatprep.subr.bf16.mxu0 %v6901
      %6961 = vmatpush1.bf16.msra.mxu0 %v6900
      %6962 = vmatprep.subr.bf16.mxu0 %v6905
      %6963 = vmatpush1.bf16.msra.mxu0 %v6904
      %6964 = vmatprep.subr.bf16.mxu0 %v6909
      %6965 = vmatpush1.bf16.msra.mxu0 %v6908
      %6966 = vmatprep.subr.bf16.mxu0 %v6913
      %6967 = vmatpush1.bf16.msra.mxu0 %v6912
      %6968 = vmatprep.subr.bf16.mxu0 %v6917
      %6969 = vmatpush1.bf16.msra.mxu0 %v6916
      %6970 = vmatprep.subr.bf16.mxu0 %v6921
      %6971 = vmatpush1.bf16.msra.mxu0 %v6920
      %6972 = vmatprep.subr.bf16.mxu0 0
      %6973 = vmatpush1.bf16.msra.mxu0 0
      %6974 = vmatprep.subr.bf16.mxu0 0
      %6975 = vmatpush1.bf16.msra.mxu0 0
      %6976 = vmatprep.subr.bf16.mxu0 0
      %6977 = vmatpush1.bf16.msra.mxu0 0
      %6978 = vmatprep.subr.bf16.mxu0 0
      %6979 = vmatpush1.bf16.msra.mxu0 0
      %6980 = vmatprep.subr.bf16.mxu0 0
      %6981 = vmatpush1.bf16.msra.mxu0 0
      %6982 = vmatprep.subr.bf16.mxu0 0
      %6983 = vmatpush1.bf16.msra.mxu0 0
      %6984 = vmatprep.subr.bf16.mxu0 0
      %6985 = vmatpush1.bf16.msra.mxu0 0
      %6986 = vmatprep.subr.bf16.mxu0 0
      %6987 = vmatpush1.bf16.msra.mxu0 0
      %6988 = vmatprep.mubr.bf16.mxu0 0
      %6989 = vmatmul.mubr.bf16.gmra.mrb[0].mxu0 %v6179
      %v6990 = vpop.f32.mrb[0].mxu0
      %v6991 = vadd.f32 0.0, %v6990
      %v6992 = vpop.f32.mrb[0].mxu0
      %v6993 = vadd.f32 0.0, %v6992
      %v6994 = vpop.f32.mrb[0].mxu0
      %v6995 = vpop.f32.mrb[0].mxu0
      %6996 = vdwg.mxu0
      %6997 = vmatprep.subr.bf16.mxu0 %v6895
      %6998 = vmatpush1.bf16.msra.mxu0 %v6894
      %6999 = vmatprep.subr.bf16.mxu0 %v6899
      %7000 = vmatpush1.bf16.msra.mxu0 %v6898
      %7001 = vmatprep.subr.bf16.mxu0 %v6903
      %7002 = vmatpush1.bf16.msra.mxu0 %v6902
      %7003 = vmatprep.subr.bf16.mxu0 %v6907
      %7004 = vmatpush1.bf16.msra.mxu0 %v6906
      %7005 = vmatprep.subr.bf16.mxu0 %v6911
      %7006 = vmatpush1.bf16.msra.mxu0 %v6910
      %7007 = vmatprep.subr.bf16.mxu0 %v6915
      %7008 = vmatpush1.bf16.msra.mxu0 %v6914
      %7009 = vmatprep.subr.bf16.mxu0 %v6919
      %7010 = vmatpush1.bf16.msra.mxu0 %v6918
      %7011 = vmatprep.subr.bf16.mxu0 %v6923
      %7012 = vmatpush1.bf16.msra.mxu0 %v6922
      %7013 = vmatprep.subr.bf16.mxu0 0
      %7014 = vmatpush1.bf16.msra.mxu0 0
      %7015 = vmatprep.subr.bf16.mxu0 0
      %7016 = vmatpush1.bf16.msra.mxu0 0
      %7017 = vmatprep.subr.bf16.mxu0 0
      %7018 = vmatpush1.bf16.msra.mxu0 0
      %7019 = vmatprep.subr.bf16.mxu0 0
      %7020 = vmatpush1.bf16.msra.mxu0 0
      %7021 = vmatprep.subr.bf16.mxu0 0
      %7022 = vmatpush1.bf16.msra.mxu0 0
      %7023 = vmatprep.subr.bf16.mxu0 0
      %7024 = vmatpush1.bf16.msra.mxu0 0
      %7025 = vmatprep.subr.bf16.mxu0 0
      %7026 = vmatpush1.bf16.msra.mxu0 0
      %7027 = vmatprep.subr.bf16.mxu0 0
      %7028 = vmatpush1.bf16.msra.mxu0 0
      %7029 = vmatprep.mubr.bf16.mxu0 0
      %7030 = vmatmul.mubr.bf16.gmra.mrb[0].mxu0 %v6179
      %v7031 = vpop.f32.mrb[0].mxu0
      %v7032 = vadd.f32 0.0, %v7031
      %v7033 = vpop.f32.mrb[0].mxu0
      %v7034 = vadd.f32 0.0, %v7033
      %v7035 = vpop.f32.mrb[0].mxu0
      %v7036 = vpop.f32.mrb[0].mxu0
      %7037 = vdwg.mxu0
      %v7042 = vcombine.low %v6991, %v6993
      %v7043 = vcombine.low %v7032, %v7034
      %v7045 = vunpack.c.l.s4 1966171168
      %v7046 = vunpack.c.0.s8 %v7045
      %v7047 = vlaneseq
      %v7048 = vshrl.u32 %v7047, 7
      %v7049 = vsub.s32 %v7046, %v7048
      %v7050 = vrot.slane %v7042, %v7049
      %v7052 = vunpack.c.l.s4 1966171168
      %v7053 = vunpack.c.0.s8 %v7052
      %v7054 = vlaneseq
      %v7055 = vshrl.u32 %v7054, 7
      %v7056 = vsub.s32 %v7053, %v7055
      %v7057 = vrot.slane %v7043, %v7056
      %v7058 = vcombine.low %v7050, %v7057
      %v7060 = vunpack.c.l.s4 1966171168
      %v7061 = vunpack.c.0.s8 %v7060
      %v7062 = vlaneseq
      %v7063 = vshrl.u32 %v7062, 7
      %v7064 = vsub.s32 %v7061, %v7063
      %v7065 = vrot.slane %v7058, %v7064
      %v7067 = vadd.f32 %v6763, %v7065
      %v7068 = vxor.u32 %v7067, 2147483648
      %v7069 = vmul.f32 %v7068, 1.442695
      %v7070 = vpow.pop %v7069
      %v7071 = vadd.f32 %v7070, 1.0
      %v7072 = vrcp.pop %v7071
      %v7073 = vmul.f32 1.0, %v7072
      %v7075 = vrot.slane %v7067, 3
      %v7077 = vtanh.pop %v7075
      %v7079 = vrot.slane %v7073, 1
      %v7081 = vmul.f32 %v7079, %v6174
      %v7082 = vmul.f32 %v7073, %v7077
      %v7083 = vadd.f32 %v7081, %v7082
      %v7084 = vtanh.pop %v7083
      %v7085 = vrot.slane %v7073, 2
      %v7087 = vmul.f32 %v7085, %v7084
      %v7088 = vpack.c.bf16 %v7087, %v7087
      %v7089 = vld [vmem:[#allocation9] sm:$0xff]
      %v7090 = vld [vmem:[#allocation9 + $0x8] sm:$0xff]
      %v7091 = vld [vmem:[#allocation9 + $0x10] sm:$0xff]
      %v7092 = vld [vmem:[#allocation9 + $0x18] sm:$0xff]
      %v7093 = vld [vmem:[#allocation9 + $0x20] sm:$0xff]
      %v7094 = vld [vmem:[#allocation9 + $0x28] sm:$0xff]
      %v7095 = vld [vmem:[#allocation9 + $0x30] sm:$0xff]
      %v7096 = vld [vmem:[#allocation9 + $0x38] sm:$0xff]
      %v7097 = vld [vmem:[#allocation9 + $0x40] sm:$0xff]
      %v7098 = vld [vmem:[#allocation9 + $0x48] sm:$0xff]
      %v7099 = vld [vmem:[#allocation9 + $0x50] sm:$0xff]
      %v7100 = vld [vmem:[#allocation9 + $0x58] sm:$0xff]
      %v7101 = vld [vmem:[#allocation9 + $0x60] sm:$0xff]
      %v7102 = vld [vmem:[#allocation9 + $0x68] sm:$0xff]
      %v7103 = vld [vmem:[#allocation9 + $0x70] sm:$0xff]
      %v7104 = vld [vmem:[#allocation9 + $0x78] sm:$0xff]
      %v7105 = vld [vmem:[#allocation9 + $0x80] sm:$0xff]
      %v7106 = vld [vmem:[#allocation9 + $0x88] sm:$0xff]
      %v7107 = vld [vmem:[#allocation9 + $0x90] sm:$0xff]
      %v7108 = vld [vmem:[#allocation9 + $0x98] sm:$0xff]
      %v7109 = vld [vmem:[#allocation9 + $0xa0] sm:$0xff]
      %v7110 = vld [vmem:[#allocation9 + $0xa8] sm:$0xff]
      %v7111 = vld [vmem:[#allocation9 + $0xb0] sm:$0xff]
      %v7112 = vld [vmem:[#allocation9 + $0xb8] sm:$0xff]
      %v7113 = vld [vmem:[#allocation9 + $0xc0] sm:$0xff]
      %v7114 = vld [vmem:[#allocation9 + $0xc8] sm:$0xff]
      %v7115 = vld [vmem:[#allocation9 + $0xd0] sm:$0xff]
      %v7116 = vld [vmem:[#allocation9 + $0xd8] sm:$0xff]
      %v7117 = vld [vmem:[#allocation9 + $0xe0] sm:$0xff]
      %v7118 = vld [vmem:[#allocation9 + $0xe8] sm:$0xff]
      %v7119 = vld [vmem:[#allocation9 + $0xf0] sm:$0xff]
      %v7120 = vld [vmem:[#allocation9 + $0xf8] sm:$0xff]
      %v7153 = vunpack.c.l.b16 %v7089
      %v7154 = vunpack.c.h.b16 %v7089
      %v7155 = vunpack.c.l.b16 %v7090
      %v7156 = vunpack.c.h.b16 %v7090
      %v7157 = vunpack.c.l.b16 %v7091
      %v7158 = vunpack.c.h.b16 %v7091
      %v7159 = vunpack.c.l.b16 %v7092
      %v7160 = vunpack.c.h.b16 %v7092
      %v7161 = vunpack.c.l.b16 %v7093
      %v7162 = vunpack.c.h.b16 %v7093
      %v7163 = vunpack.c.l.b16 %v7094
      %v7164 = vunpack.c.h.b16 %v7094
      %v7165 = vunpack.c.l.b16 %v7095
      %v7166 = vunpack.c.h.b16 %v7095
      %v7167 = vunpack.c.l.b16 %v7096
      %v7168 = vunpack.c.h.b16 %v7096
      %v7169 = vunpack.c.l.b16 %v7097
      %v7170 = vunpack.c.h.b16 %v7097
      %v7171 = vunpack.c.l.b16 %v7098
      %v7172 = vunpack.c.h.b16 %v7098
      %v7173 = vunpack.c.l.b16 %v7099
      %v7174 = vunpack.c.h.b16 %v7099
      %v7175 = vunpack.c.l.b16 %v7100
      %v7176 = vunpack.c.h.b16 %v7100
      %v7177 = vunpack.c.l.b16 %v7101
      %v7178 = vunpack.c.h.b16 %v7101
      %v7179 = vunpack.c.l.b16 %v7102
      %v7180 = vunpack.c.h.b16 %v7102
      %v7181 = vunpack.c.l.b16 %v7103
      %v7182 = vunpack.c.h.b16 %v7103
      %v7183 = vunpack.c.l.b16 %v7104
      %v7184 = vunpack.c.h.b16 %v7104
      %v7185 = vunpack.c.l.b16 %v7105
      %v7186 = vunpack.c.h.b16 %v7105
      %v7187 = vunpack.c.l.b16 %v7106
      %v7188 = vunpack.c.h.b16 %v7106
      %v7189 = vunpack.c.l.b16 %v7107
      %v7190 = vunpack.c.h.b16 %v7107
      %v7191 = vunpack.c.l.b16 %v7108
      %v7192 = vunpack.c.h.b16 %v7108
      %v7193 = vunpack.c.l.b16 %v7109
      %v7194 = vunpack.c.h.b16 %v7109
      %v7195 = vunpack.c.l.b16 %v7110
      %v7196 = vunpack.c.h.b16 %v7110
      %v7197 = vunpack.c.l.b16 %v7111
      %v7198 = vunpack.c.h.b16 %v7111
      %v7199 = vunpack.c.l.b16 %v7112
      %v7200 = vunpack.c.h.b16 %v7112
      %v7201 = vunpack.c.l.b16 %v7113
      %v7202 = vunpack.c.h.b16 %v7113
      %v7203 = vunpack.c.l.b16 %v7114
      %v7204 = vunpack.c.h.b16 %v7114
      %v7205 = vunpack.c.l.b16 %v7115
      %v7206 = vunpack.c.h.b16 %v7115
      %v7207 = vunpack.c.l.b16 %v7116
      %v7208 = vunpack.c.h.b16 %v7116
      %v7209 = vunpack.c.l.b16 %v7117
      %v7210 = vunpack.c.h.b16 %v7117
      %v7211 = vunpack.c.l.b16 %v7118
      %v7212 = vunpack.c.h.b16 %v7118
      %v7213 = vunpack.c.l.b16 %v7119
      %v7214 = vunpack.c.h.b16 %v7119
      %v7215 = vunpack.c.l.b16 %v7120
      %v7216 = vunpack.c.h.b16 %v7120
      %v7217 = vpack.c.b16 %v7157, %v7153
      %v7218 = vpack.c.b16 %v7158, %v7154
      %v7219 = vpack.c.b16 %v7159, %v7155
      %v7220 = vpack.c.b16 %v7160, %v7156
      %v7221 = vpack.c.b16 %v7165, %v7161
      %v7222 = vpack.c.b16 %v7166, %v7162
      %v7223 = vpack.c.b16 %v7167, %v7163
      %v7224 = vpack.c.b16 %v7168, %v7164
      %v7225 = vpack.c.b16 %v7173, %v7169
      %v7226 = vpack.c.b16 %v7174, %v7170
      %v7227 = vpack.c.b16 %v7175, %v7171
      %v7228 = vpack.c.b16 %v7176, %v7172
      %v7229 = vpack.c.b16 %v7181, %v7177
      %v7230 = vpack.c.b16 %v7182, %v7178
      %v7231 = vpack.c.b16 %v7183, %v7179
      %v7232 = vpack.c.b16 %v7184, %v7180
      %v7233 = vpack.c.b16 %v7189, %v7185
      %v7234 = vpack.c.b16 %v7190, %v7186
      %v7235 = vpack.c.b16 %v7191, %v7187
      %v7236 = vpack.c.b16 %v7192, %v7188
      %v7237 = vpack.c.b16 %v7197, %v7193
      %v7238 = vpack.c.b16 %v7198, %v7194
      %v7239 = vpack.c.b16 %v7199, %v7195
      %v7240 = vpack.c.b16 %v7200, %v7196
      %v7241 = vpack.c.b16 %v7205, %v7201
      %v7242 = vpack.c.b16 %v7206, %v7202
      %v7243 = vpack.c.b16 %v7207, %v7203
      %v7244 = vpack.c.b16 %v7208, %v7204
      %v7245 = vpack.c.b16 %v7213, %v7209
      %v7246 = vpack.c.b16 %v7214, %v7210
      %v7247 = vpack.c.b16 %v7215, %v7211
      %v7248 = vpack.c.b16 %v7216, %v7212
      %7281 = vmatprep.subr.bf16.mxu0 %v7218
      %7282 = vmatpush1.bf16.msra.mxu0 %v7217
      %7283 = vmatprep.subr.bf16.mxu0 %v7222
      %7284 = vmatpush1.bf16.msra.mxu0 %v7221
      %7285 = vmatprep.subr.bf16.mxu0 %v7226
      %7286 = vmatpush1.bf16.msra.mxu0 %v7225
      %7287 = vmatprep.subr.bf16.mxu0 %v7230
      %7288 = vmatpush1.bf16.msra.mxu0 %v7229
      %7289 = vmatprep.subr.bf16.mxu0 %v7234
      %7290 = vmatpush1.bf16.msra.mxu0 %v7233
      %7291 = vmatprep.subr.bf16.mxu0 %v7238
      %7292 = vmatpush1.bf16.msra.mxu0 %v7237
      %7293 = vmatprep.subr.bf16.mxu0 %v7242
      %7294 = vmatpush1.bf16.msra.mxu0 %v7241
      %7295 = vmatprep.subr.bf16.mxu0 %v7246
      %7296 = vmatpush1.bf16.msra.mxu0 %v7245
      %7297 = vmatprep.subr.bf16.mxu0 0
      %7298 = vmatpush1.bf16.msra.mxu0 0
      %7299 = vmatprep.subr.bf16.mxu0 0
      %7300 = vmatpush1.bf16.msra.mxu0 0
      %7301 = vmatprep.subr.bf16.mxu0 0
      %7302 = vmatpush1.bf16.msra.mxu0 0
      %7303 = vmatprep.subr.bf16.mxu0 0
      %7304 = vmatpush1.bf16.msra.mxu0 0
      %7305 = vmatprep.subr.bf16.mxu0 0
      %7306 = vmatpush1.bf16.msra.mxu0 0
      %7307 = vmatprep.subr.bf16.mxu0 0
      %7308 = vmatpush1.bf16.msra.mxu0 0
      %7309 = vmatprep.subr.bf16.mxu0 0
      %7310 = vmatpush1.bf16.msra.mxu0 0
      %7311 = vmatprep.subr.bf16.mxu0 0
      %7312 = vmatpush1.bf16.msra.mxu0 0
      %7313 = vmatprep.mubr.bf16.mxu0 0
      %7314 = vmatmul.mubr.bf16.gmra.mrb[0].mxu0 %v7088
      %v7315 = vpop.f32.mrb[0].mxu0
      %v7316 = vadd.f32 %v6707, %v7315
      %v7317 = vpop.f32.mrb[0].mxu0
      %v7318 = vadd.f32 %v6709, %v7317
      %v7319 = vpop.f32.mrb[0].mxu0
      %v7320 = vpop.f32.mrb[0].mxu0
      %7321 = vdwg.mxu0
      %7322 = vmatprep.subr.bf16.mxu0 %v7220
      %7323 = vmatpush1.bf16.msra.mxu0 %v7219
      %7324 = vmatprep.subr.bf16.mxu0 %v7224
      %7325 = vmatpush1.bf16.msra.mxu0 %v7223
      %7326 = vmatprep.subr.bf16.mxu0 %v7228
      %7327 = vmatpush1.bf16.msra.mxu0 %v7227
      %7328 = vmatprep.subr.bf16.mxu0 %v7232
      %7329 = vmatpush1.bf16.msra.mxu0 %v7231
      %7330 = vmatprep.subr.bf16.mxu0 %v7236
      %7331 = vmatpush1.bf16.msra.mxu0 %v7235
      %7332 = vmatprep.subr.bf16.mxu0 %v7240
      %7333 = vmatpush1.bf16.msra.mxu0 %v7239
      %7334 = vmatprep.subr.bf16.mxu0 %v7244
      %7335 = vmatpush1.bf16.msra.mxu0 %v7243
      %7336 = vmatprep.subr.bf16.mxu0 %v7248
      %7337 = vmatpush1.bf16.msra.mxu0 %v7247
      %7338 = vmatprep.subr.bf16.mxu0 0
      %7339 = vmatpush1.bf16.msra.mxu0 0
      %7340 = vmatprep.subr.bf16.mxu0 0
      %7341 = vmatpush1.bf16.msra.mxu0 0
      %7342 = vmatprep.subr.bf16.mxu0 0
      %7343 = vmatpush1.bf16.msra.mxu0 0
      %7344 = vmatprep.subr.bf16.mxu0 0
      %7345 = vmatpush1.bf16.msra.mxu0 0
      %7346 = vmatprep.subr.bf16.mxu0 0
      %7347 = vmatpush1.bf16.msra.mxu0 0
      %7348 = vmatprep.subr.bf16.mxu0 0
      %7349 = vmatpush1.bf16.msra.mxu0 0
      %7350 = vmatprep.subr.bf16.mxu0 0
      %7351 = vmatpush1.bf16.msra.mxu0 0
      %7352 = vmatprep.subr.bf16.mxu0 0
      %7353 = vmatpush1.bf16.msra.mxu0 0
      %7354 = vmatprep.mubr.bf16.mxu0 0
      %7355 = vmatmul.mubr.bf16.gmra.mrb[0].mxu0 %v7088
      %v7356 = vpop.f32.mrb[0].mxu0
      %v7357 = vadd.f32 %v6748, %v7356
      %v7358 = vpop.f32.mrb[0].mxu0
      %v7359 = vadd.f32 %v6750, %v7358
      %v7360 = vpop.f32.mrb[0].mxu0
      %v7361 = vpop.f32.mrb[0].mxu0
      %7362 = vdwg.mxu0
      %v7363 = vxor.u32 %v7316, 2147483648
      %v7364 = vxor.u32 %v7318, 2147483648
      %v7365 = vxor.u32 %v7357, 2147483648
      %v7366 = vmul.f32 %v7363, 1.442695
      %v7367 = vpow.pop %v7366
      %v7368 = vmul.f32 %v7364, 1.442695
      %v7369 = vpow.pop %v7368
      %v7370 = vmul.f32 %v7365, 1.442695
      %v7371 = vpow.pop %v7370
      %v7372 = vadd.f32 %v7367, 1.0
      %v7373 = vadd.f32 %v7369, 1.0
      %v7374 = vadd.f32 %v7371, 1.0
      %v7375 = vrcp.pop %v7372
      %v7376 = vmul.f32 1.0, %v7375
      %v7377 = vrcp.pop %v7373
      %v7378 = vmul.f32 1.0, %v7377
      %v7379 = vrcp.pop %v7374
      %v7380 = vmul.f32 1.0, %v7379
      %v7381 = vtanh.pop %v7359
      %v7382 = vmul.f32 %v7378, %v6475
      %v7383 = vmul.f32 %v7376, %v7381
      %v7384 = vadd.f32 %v7382, %v7383
      %v7385 = vtanh.pop %v7384
      %v7386 = vmul.f32 %v7380, %v7385
      %7387 = vst [vmem:[#allocation3 + $0x7] sm:$0x1] %v7386
      %v7388 = vld [vmem:[#allocation3] sm:$0xff]
      %s7389 = scalar_lea.vmem [#allocation12], %s97
      %7390 = vst [vmem:[%s7389] sm:$0xff] %v7388
    $region46: #{tpu_custom_call.1} parent=1 // loop_footer
      %s92 = sadd.s32 1, %s88
    $region47: #{tpu_custom_call.1} parent=1 // loop_footer_branch
      %87 = sbr.rel target = $region43
    $region48: #{tpu_custom_call.1} parent=1 // loop_exit
      _
    %7391 = vst [vmem:[#allocation2] sm:$0x1] %v93
    %7392 = vst [vmem:[#allocation2 + $0x1] sm:$0x1] %v94
    %7393 = vst [vmem:[#allocation2 + $0x2] sm:$0x1] %v95
    %7394 = vst [vmem:[#allocation2 + $0x3] sm:$0x1] %v96
    // Predicated region
    $region49: #{tpu_custom_call.1} parent=1 // pred_check
      _
    $region50: #{tpu_custom_call.1} parent=1 // pred_check_branch
      %7396 = sbr.rel (0) target = $region52
    $region51: #{tpu_custom_call.1} parent=1 // pred_region
      %s7398 = ssub.s32 512, 512
      %7399 = vsyncadd [#allocation6], %s7398
      %s7400 = sshll.u32 [#allocation12], 4
      %s7401 = int_to_ptr.vmem [resolvable:$true] %s7400
      %7406 = dma.vmem_to_hbm [thread:$0]  %s7401, 512, %s5, [#allocation6], 128, 128, 8
    $region52: #{tpu_custom_call.1} parent=1 // pred_fallthru
      _
    // Predicated region
    $region53: #{tpu_custom_call.1} parent=1 // pred_check
      _
    $region54: #{tpu_custom_call.1} parent=1 // pred_check_branch
      %7408 = sbr.rel (0) target = $region56
    $region55: #{tpu_custom_call.1} parent=1 // pred_region
      %7409 = dma.done [#allocation6], 512
    $region56: #{tpu_custom_call.1} parent=1 // pred_fallthru
      _
    %7410 = vsyncpa [#allocation5], 1
    %7411 = vsyncpa [#allocation8], 1
    %7412 = vsyncpa [#allocation11], 1
    %7413 = vsyncpa [#allocation6], 1

</llo_original>
